<compile_context>
chip_gen: v7x
topology: tpu7x:2x2x1
jax: 0.10.0
libtpu: 0.0.40
codegen_flags: <defaults>
</compile_context>

<pallas_src>
import functools
import math

import jax
import jax.numpy as jnp
from jax import lax
from jax.experimental import pallas as pl
from jax.experimental.pallas import tpu as pltpu

D_MODEL = 64
D_K = 64
D_V = 64
N_HEADS = 4   # TODO(synk): `n_heads` is an external global in the source script; 4 chosen here.
LN_EPS = 1e-5
NEG_INF = -1.0e9


def _layer_norm(x):
    # LayerNorm over last dim with default (untrained) affine params: weight=1, bias=0.
    mean = jnp.mean(x, axis=-1, keepdims=True)
    xc = x - mean
    var = jnp.mean(xc * xc, axis=-1, keepdims=True)
    return xc * lax.rsqrt(var + LN_EPS)


def mha_kernel(x_ref, mask_ref, wqkv_ref, wo_ref, out_ref, attn_ref, ctx_ref, *,
               compute_dtype):
    bt, s, d = x_ref.shape          # (batch-block, seq, d_model)
    m_rows = bt * s

    x = x_ref[...]                  # (bt, s, d) f32
    x2 = x.reshape(m_rows, d)       # flatten so matmuls have M = bt*s rows

    # Fused Q|K|V projection: one MXU matmul, N = 3*H*d_k.
    qkv = jnp.dot(x2.astype(compute_dtype), wqkv_ref[...],
                  preferred_element_type=jnp.float32)            # (M, 3*H*Dk) f32

    # Additive mask, hoisted once for all heads (mask > 0  ->  -1e9).
    neg_mask = mask_ref[...] * NEG_INF                           # (bt, s, s) f32

    scale = 1.0 / math.sqrt(D_K)
    hdk = N_HEADS * D_K

    for h in range(N_HEADS):        # statically unrolled (N_HEADS = 4)
        qh = qkv[:, h * D_K:(h + 1) * D_K].reshape(bt, s, D_K).astype(compute_dtype)
        kh = qkv[:, hdk + h * D_K:hdk + (h + 1) * D_K].reshape(bt, s, D_K).astype(compute_dtype)
        vh = qkv[:, 2 * hdk + h * D_V:2 * hdk + (h + 1) * D_V].reshape(bt, s, D_V).astype(compute_dtype)

        # scores = Q @ K^T / sqrt(d_k), batched over bt; transpose folded into contraction.
        scores = lax.dot_general(
            qh, kh, dimension_numbers=(((2,), (2,)), ((0,), (0,))),
            preferred_element_type=jnp.float32)                  # (bt, s, s) f32
        scores = scores * scale + neg_mask

        # softmax along keys (f32); reciprocal goes to the EUP slot.
        smax = jnp.max(scores, axis=-1, keepdims=True)
        e = jnp.exp(scores - smax)
        attn = e * pl.reciprocal(jnp.sum(e, axis=-1, keepdims=True), approx=True)

        # Attention probabilities output (kept: the module returns them).
        # TODO(synk): with seq a multiple of 128 this should be packed lane-dense instead.
        attn_ref[:, h, :, :] = attn

        # context_h = attn @ V, batched over bt; write directly into the scratch slab.
        ctxh = lax.dot_general(
            attn.astype(compute_dtype), vh,
            dimension_numbers=(((2,), (1,)), ((0,), (0,))),
            preferred_element_type=jnp.float32)                  # (bt, s, Dv) f32
        ctx_ref[:, h * D_V:(h + 1) * D_V] = ctxh.reshape(m_rows, D_V)

    # Output projection + residual + (untrained) LayerNorm.
    mha = jnp.dot(ctx_ref[...].astype(compute_dtype), wo_ref[...],
                  preferred_element_type=jnp.float32)            # (M, d) f32
    y = _layer_norm(mha + x2)
    out_ref[...] = y.reshape(bt, s, d).astype(out_ref.dtype)


def _choose_batch_block(batch, seq, min_rows=128, max_rows=512):
    """Largest-enough divisor of `batch` so the flattened block has >=128 rows (cap 512)."""
    best = 1
    for bt in range(1, batch + 1):
        if batch % bt:
            continue
        if bt * seq > max_rows and best > 1:
            break
        best = bt
        if bt * seq >= min_rows:
            break
    return best


def multi_head_attention(x, attn_mask, params, *, compute_dtype=jnp.bfloat16):
    """Self-attention as used in the encoder: input_Q = input_K = input_V = x.

    x:         (B, S, D_MODEL) f32
    attn_mask: (B, S, S), nonzero == masked key position
    params:    (wq, wk, wv, wo) with wq/wk/wv: (D_MODEL, H*D_K), wo: (H*D_V, D_MODEL)
    returns:   (output (B, S, D_MODEL) f32, attn (B, H, S, S) f32)
    """
    B, S, D = x.shape
    assert D == D_MODEL
    wq, wk, wv, wo = params

    # Fuse QKV weights once at the boundary; store weights in the matmul compute dtype.
    wqkv = jnp.concatenate([wq, wk, wv], axis=1).astype(compute_dtype)   # (D, 3*H*Dk)
    wo_c = wo.astype(compute_dtype)                                      # (H*Dv, D)
    mask_f = attn_mask.astype(jnp.float32)

    bt = _choose_batch_block(B, S)
    grid = (B // bt,)
    m_rows = bt * S

    kernel = functools.partial(mha_kernel, compute_dtype=compute_dtype)

    grid_spec = pltpu.PrefetchScalarGridSpec(
        num_scalar_prefetch=0,
        grid=grid,
        in_specs=[
            pl.BlockSpec((bt, S, D_MODEL), lambda b: (b, 0, 0)),
            pl.BlockSpec((bt, S, S), lambda b: (b, 0, 0)),
            # Grid-invariant weights: constant index_map -> DMA'd once, not re-fetched.
            pl.BlockSpec(wqkv.shape, lambda b: (0, 0)),
            pl.BlockSpec(wo_c.shape, lambda b: (0, 0)),
        ],
        out_specs=[
            pl.BlockSpec((bt, S, D_MODEL), lambda b: (b, 0, 0)),
            pl.BlockSpec((bt, N_HEADS, S, S), lambda b: (b, 0, 0, 0)),
        ],
        scratch_shapes=[pltpu.VMEM((m_rows, N_HEADS * D_V), jnp.float32)],
    )

    out_shape = (
        jax.ShapeDtypeStruct((B, S, D_MODEL), jnp.float32),
        jax.ShapeDtypeStruct((B, N_HEADS, S, S), jnp.float32),
    )

    return pl.pallas_call(
        kernel,
        grid_spec=grid_spec,
        out_shape=out_shape,
        compiler_params=pltpu.CompilerParams(
            dimension_semantics=("parallel",)),   # batch-block axis: megacore / 2nd TC on v7x
    )(x, mask_f, wqkv, wo_c)


def init_params(key):
    ks = jax.random.split(key, 4)
    s = 0.02
    wq = s * jax.random.normal(ks[0], (D_MODEL, N_HEADS * D_K), jnp.float32)
    wk = s * jax.random.normal(ks[1], (D_MODEL, N_HEADS * D_K), jnp.float32)
    wv = s * jax.random.normal(ks[2], (D_MODEL, N_HEADS * D_V), jnp.float32)
    wo = s * jax.random.normal(ks[3], (N_HEADS * D_V, D_MODEL), jnp.float32)
    return (wq, wk, wv, wo)


if __name__ == "__main__":
    key = jax.random.PRNGKey(0)
    k_x, k_p = jax.random.split(key, 2)

    B, S = 32, 8
    x = jax.random.normal(k_x, (B, S, D_MODEL), jnp.float32)
    # pad-mask style: last two key positions are masked for every query.
    pad = jnp.zeros((B, S), jnp.float32).at[:, -2:].set(1.0)
    mask = jnp.broadcast_to(pad[:, None, :], (B, S, S)).astype(jnp.float32)

    params = init_params(k_p)

    out, attn = multi_head_attention(x, mask, params)
    jax.block_until_ready(out)
    jax.block_until_ready(attn)

    assert out.shape == (B, S, D_MODEL)
    assert attn.shape == (B, N_HEADS, S, S)
    # sanity: softmax rows sum to ~1 and masked key columns get ~0 probability
    row_sums = jnp.sum(attn, axis=-1)
    assert bool(jnp.all(jnp.abs(row_sums - 1.0) < 2e-2))
    assert bool(jnp.all(attn[..., -2:] < 1e-6))
    print("KERNEL_OK")
</pallas_src>

<mosaic_0001>
module attributes {stable_mosaic.version = 11 : i64} {
  func.func @mha_kernel(%arg0: i32, %arg1: memref<16x8x64xf32, #tpu.memory_space<vmem>>, %arg2: memref<16x8x8xf32, #tpu.memory_space<vmem>>, %arg3: memref<64x768xbf16, #tpu.memory_space<vmem>>, %arg4: memref<256x64xbf16, #tpu.memory_space<vmem>>, %arg5: memref<16x8x64xf32, #tpu.memory_space<vmem>>, %arg6: memref<16x4x8x8xf32, #tpu.memory_space<vmem>>, %arg7: memref<128x256xf32, #tpu.memory_space<vmem>>) attributes {dimension_semantics = [#tpu.dimension_semantics<parallel>], iteration_bounds = array<i64: 2>, scalar_prefetch = 0 : i64, scratch_operands = 1 : i64, tpu.core_type = #tpu.core_type<tc>, window_params = [{transform_indices = @transform_0, window_bounds = array<i64: 16, 8, 64>}, {transform_indices = @transform_1, window_bounds = array<i64: 16, 8, 8>}, {pipeline_mode = #tpu.pipeline_mode<synchronous>, transform_indices = @transform_2, window_bounds = array<i64: 64, 768>}, {pipeline_mode = #tpu.pipeline_mode<synchronous>, transform_indices = @transform_3, window_bounds = array<i64: 256, 64>}, {transform_indices = @transform_4, window_bounds = array<i64: 16, 8, 64>}, {transform_indices = @transform_5, window_bounds = array<i64: 16, 4, 8, 8>}]} {
    %c0 = arith.constant 0 : index
    %c0_0 = arith.constant 0 : index
    %c0_1 = arith.constant 0 : index
    %0 = vector.load %arg1[%c0, %c0_0, %c0_1] : memref<16x8x64xf32, #tpu.memory_space<vmem>>, vector<16x8x64xf32>
    %1 = vector.shape_cast %0 : vector<16x8x64xf32> to vector<128x64xf32>
    %2 = arith.truncf %1 : vector<128x64xf32> to vector<128x64xbf16>
    %c0_2 = arith.constant 0 : index
    %c0_3 = arith.constant 0 : index
    %3 = vector.load %arg3[%c0_2, %c0_3] : memref<64x768xbf16, #tpu.memory_space<vmem>>, vector<64x768xbf16>
    %cst = arith.constant dense<0.000000e+00> : vector<128x768xf32>
    %4 = tpu.matmul %2, %3, %cst {dimension_numbers = #tpu.dot_dimension_numbers<[1], [0], [0], [1], [0, 0, 1, 1], [], []>} : vector<128x64xbf16>, vector<64x768xbf16>, vector<128x768xf32> -> vector<128x768xf32>
    %c0_4 = arith.constant 0 : index
    %c0_5 = arith.constant 0 : index
    %c0_6 = arith.constant 0 : index
    %5 = vector.load %arg2[%c0_4, %c0_5, %c0_6] : memref<16x8x8xf32, #tpu.memory_space<vmem>>, vector<16x8x8xf32>
    %cst_7 = arith.constant -1.000000e+09 : f32
    %6 = vector.broadcast %cst_7 : f32 to vector<16x8x8xf32>
    %7 = arith.mulf %5, %6 : vector<16x8x8xf32>
    %8 = vector.extract_strided_slice %4 {offsets = [0, 0], sizes = [128, 64], strides = [1, 1]} : vector<128x768xf32> to vector<128x64xf32>
    %9 = vector.shape_cast %8 : vector<128x64xf32> to vector<16x8x64xf32>
    %10 = arith.truncf %9 : vector<16x8x64xf32> to vector<16x8x64xbf16>
    %11 = vector.extract_strided_slice %4 {offsets = [0, 256], sizes = [128, 64], strides = [1, 1]} : vector<128x768xf32> to vector<128x64xf32>
    %12 = vector.shape_cast %11 : vector<128x64xf32> to vector<16x8x64xf32>
    %13 = arith.truncf %12 : vector<16x8x64xf32> to vector<16x8x64xbf16>
    %14 = vector.extract_strided_slice %4 {offsets = [0, 512], sizes = [128, 64], strides = [1, 1]} : vector<128x768xf32> to vector<128x64xf32>
    %15 = vector.shape_cast %14 : vector<128x64xf32> to vector<16x8x64xf32>
    %16 = arith.truncf %15 : vector<16x8x64xf32> to vector<16x8x64xbf16>
    %cst_8 = arith.constant dense<0.000000e+00> : vector<16x8x8xf32>
    %17 = tpu.matmul %10, %13, %cst_8 {dimension_numbers = #tpu.dot_dimension_numbers<[2], [2], [1], [1], [0, 0, 0, 1, 1, 1], [0], [0]>} : vector<16x8x64xbf16>, vector<16x8x64xbf16>, vector<16x8x8xf32> -> vector<16x8x8xf32>
    %cst_9 = arith.constant 1.250000e-01 : f32
    %18 = vector.broadcast %cst_9 : f32 to vector<16x8x8xf32>
    %19 = arith.mulf %17, %18 : vector<16x8x8xf32>
    %20 = arith.addf %19, %7 : vector<16x8x8xf32>
    %cst_10 = arith.constant dense<0xFF800000> : vector<16x8xf32>
    %21 = vector.multi_reduction <maximumf>, %20, %cst_10 [2] : vector<16x8x8xf32> to vector<16x8xf32>
    %22 = vector.shape_cast %21 : vector<16x8xf32> to vector<16x8x1xf32>
    %23 = vector.broadcast %22 : vector<16x8x1xf32> to vector<16x8x8xf32>
    %24 = arith.subf %20, %23 : vector<16x8x8xf32>
    %25 = math.exp %24 : vector<16x8x8xf32>
    %cst_11 = arith.constant dense<0.000000e+00> : vector<16x8xf32>
    %26 = vector.multi_reduction <add>, %25, %cst_11 [2] : vector<16x8x8xf32> to vector<16x8xf32>
    %27 = vector.shape_cast %26 : vector<16x8xf32> to vector<16x8x1xf32>
    %28 = tpu.reciprocal %27 {approx = true} : vector<16x8x1xf32> -> vector<16x8x1xf32>
    %29 = vector.broadcast %28 : vector<16x8x1xf32> to vector<16x8x8xf32>
    %30 = arith.mulf %25, %29 : vector<16x8x8xf32>
    %c0_12 = arith.constant 0 : index
    %c0_13 = arith.constant 0 : index
    %c0_14 = arith.constant 0 : index
    %c0_15 = arith.constant 0 : index
    %31 = vector.load %arg6[%c0_12, %c0_13, %c0_14, %c0_15] : memref<16x4x8x8xf32, #tpu.memory_space<vmem>>, vector<16x1x8x8xf32>
    %32 = vector.shape_cast %31 : vector<16x1x8x8xf32> to vector<16x8x8xf32>
    %33 = vector.shape_cast %30 : vector<16x8x8xf32> to vector<16x1x8x8xf32>
    tpu.vector_store %arg6[%c0_12, %c0_13, %c0_14, %c0_15], %33 {strides = array<i32>} : memref<16x4x8x8xf32, #tpu.memory_space<vmem>>, vector<16x1x8x8xf32>,
    %34 = arith.truncf %30 : vector<16x8x8xf32> to vector<16x8x8xbf16>
    %cst_16 = arith.constant dense<0.000000e+00> : vector<16x8x64xf32>
    %35 = tpu.matmul %34, %16, %cst_16 {dimension_numbers = #tpu.dot_dimension_numbers<[2], [1], [1], [2], [0, 0, 0, 1, 1, 2], [0], [0]>} : vector<16x8x8xbf16>, vector<16x8x64xbf16>, vector<16x8x64xf32> -> vector<16x8x64xf32>
    %36 = vector.shape_cast %35 : vector<16x8x64xf32> to vector<128x64xf32>
    %c0_17 = arith.constant 0 : index
    %c0_18 = arith.constant 0 : index
    %37 = vector.load %arg7[%c0_17, %c0_18] : memref<128x256xf32, #tpu.memory_space<vmem>>, vector<128x64xf32>
    tpu.vector_store %arg7[%c0_17, %c0_18], %36 {strides = array<i32>} : memref<128x256xf32, #tpu.memory_space<vmem>>, vector<128x64xf32>,
    %38 = vector.extract_strided_slice %4 {offsets = [0, 64], sizes = [128, 64], strides = [1, 1]} : vector<128x768xf32> to vector<128x64xf32>
    %39 = vector.shape_cast %38 : vector<128x64xf32> to vector<16x8x64xf32>
    %40 = arith.truncf %39 : vector<16x8x64xf32> to vector<16x8x64xbf16>
    %41 = vector.extract_strided_slice %4 {offsets = [0, 320], sizes = [128, 64], strides = [1, 1]} : vector<128x768xf32> to vector<128x64xf32>
    %42 = vector.shape_cast %41 : vector<128x64xf32> to vector<16x8x64xf32>
    %43 = arith.truncf %42 : vector<16x8x64xf32> to vector<16x8x64xbf16>
    %44 = vector.extract_strided_slice %4 {offsets = [0, 576], sizes = [128, 64], strides = [1, 1]} : vector<128x768xf32> to vector<128x64xf32>
    %45 = vector.shape_cast %44 : vector<128x64xf32> to vector<16x8x64xf32>
    %46 = arith.truncf %45 : vector<16x8x64xf32> to vector<16x8x64xbf16>
    %cst_19 = arith.constant dense<0.000000e+00> : vector<16x8x8xf32>
    %47 = tpu.matmul %40, %43, %cst_19 {dimension_numbers = #tpu.dot_dimension_numbers<[2], [2], [1], [1], [0, 0, 0, 1, 1, 1], [0], [0]>} : vector<16x8x64xbf16>, vector<16x8x64xbf16>, vector<16x8x8xf32> -> vector<16x8x8xf32>
    %cst_20 = arith.constant 1.250000e-01 : f32
    %48 = vector.broadcast %cst_20 : f32 to vector<16x8x8xf32>
    %49 = arith.mulf %47, %48 : vector<16x8x8xf32>
    %50 = arith.addf %49, %7 : vector<16x8x8xf32>
    %cst_21 = arith.constant dense<0xFF800000> : vector<16x8xf32>
    %51 = vector.multi_reduction <maximumf>, %50, %cst_21 [2] : vector<16x8x8xf32> to vector<16x8xf32>
    %52 = vector.shape_cast %51 : vector<16x8xf32> to vector<16x8x1xf32>
    %53 = vector.broadcast %52 : vector<16x8x1xf32> to vector<16x8x8xf32>
    %54 = arith.subf %50, %53 : vector<16x8x8xf32>
    %55 = math.exp %54 : vector<16x8x8xf32>
    %cst_22 = arith.constant dense<0.000000e+00> : vector<16x8xf32>
    %56 = vector.multi_reduction <add>, %55, %cst_22 [2] : vector<16x8x8xf32> to vector<16x8xf32>
    %57 = vector.shape_cast %56 : vector<16x8xf32> to vector<16x8x1xf32>
    %58 = tpu.reciprocal %57 {approx = true} : vector<16x8x1xf32> -> vector<16x8x1xf32>
    %59 = vector.broadcast %58 : vector<16x8x1xf32> to vector<16x8x8xf32>
    %60 = arith.mulf %55, %59 : vector<16x8x8xf32>
    %c0_23 = arith.constant 0 : index
    %c1 = arith.constant 1 : index
    %c0_24 = arith.constant 0 : index
    %c0_25 = arith.constant 0 : index
    %61 = vector.load %arg6[%c0_23, %c1, %c0_24, %c0_25] : memref<16x4x8x8xf32, #tpu.memory_space<vmem>>, vector<16x1x8x8xf32>
    %62 = vector.shape_cast %61 : vector<16x1x8x8xf32> to vector<16x8x8xf32>
    %63 = vector.shape_cast %60 : vector<16x8x8xf32> to vector<16x1x8x8xf32>
    tpu.vector_store %arg6[%c0_23, %c1, %c0_24, %c0_25], %63 {strides = array<i32>} : memref<16x4x8x8xf32, #tpu.memory_space<vmem>>, vector<16x1x8x8xf32>,
    %64 = arith.truncf %60 : vector<16x8x8xf32> to vector<16x8x8xbf16>
    %cst_26 = arith.constant dense<0.000000e+00> : vector<16x8x64xf32>
    %65 = tpu.matmul %64, %46, %cst_26 {dimension_numbers = #tpu.dot_dimension_numbers<[2], [1], [1], [2], [0, 0, 0, 1, 1, 2], [0], [0]>} : vector<16x8x8xbf16>, vector<16x8x64xbf16>, vector<16x8x64xf32> -> vector<16x8x64xf32>
    %66 = vector.shape_cast %65 : vector<16x8x64xf32> to vector<128x64xf32>
    %c0_27 = arith.constant 0 : index
    %c64 = arith.constant 64 : index
    %67 = vector.load %arg7[%c0_27, %c64] : memref<128x256xf32, #tpu.memory_space<vmem>>, vector<128x64xf32>
    tpu.vector_store %arg7[%c0_27, %c64], %66 {strides = array<i32>} : memref<128x256xf32, #tpu.memory_space<vmem>>, vector<128x64xf32>,
    %68 = vector.extract_strided_slice %4 {offsets = [0, 128], sizes = [128, 64], strides = [1, 1]} : vector<128x768xf32> to vector<128x64xf32>
    %69 = vector.shape_cast %68 : vector<128x64xf32> to vector<16x8x64xf32>
    %70 = arith.truncf %69 : vector<16x8x64xf32> to vector<16x8x64xbf16>
    %71 = vector.extract_strided_slice %4 {offsets = [0, 384], sizes = [128, 64], strides = [1, 1]} : vector<128x768xf32> to vector<128x64xf32>
    %72 = vector.shape_cast %71 : vector<128x64xf32> to vector<16x8x64xf32>
    %73 = arith.truncf %72 : vector<16x8x64xf32> to vector<16x8x64xbf16>
    %74 = vector.extract_strided_slice %4 {offsets = [0, 640], sizes = [128, 64], strides = [1, 1]} : vector<128x768xf32> to vector<128x64xf32>
    %75 = vector.shape_cast %74 : vector<128x64xf32> to vector<16x8x64xf32>
    %76 = arith.truncf %75 : vector<16x8x64xf32> to vector<16x8x64xbf16>
    %cst_28 = arith.constant dense<0.000000e+00> : vector<16x8x8xf32>
    %77 = tpu.matmul %70, %73, %cst_28 {dimension_numbers = #tpu.dot_dimension_numbers<[2], [2], [1], [1], [0, 0, 0, 1, 1, 1], [0], [0]>} : vector<16x8x64xbf16>, vector<16x8x64xbf16>, vector<16x8x8xf32> -> vector<16x8x8xf32>
    %cst_29 = arith.constant 1.250000e-01 : f32
    %78 = vector.broadcast %cst_29 : f32 to vector<16x8x8xf32>
    %79 = arith.mulf %77, %78 : vector<16x8x8xf32>
    %80 = arith.addf %79, %7 : vector<16x8x8xf32>
    %cst_30 = arith.constant dense<0xFF800000> : vector<16x8xf32>
    %81 = vector.multi_reduction <maximumf>, %80, %cst_30 [2] : vector<16x8x8xf32> to vector<16x8xf32>
    %82 = vector.shape_cast %81 : vector<16x8xf32> to vector<16x8x1xf32>
    %83 = vector.broadcast %82 : vector<16x8x1xf32> to vector<16x8x8xf32>
    %84 = arith.subf %80, %83 : vector<16x8x8xf32>
    %85 = math.exp %84 : vector<16x8x8xf32>
    %cst_31 = arith.constant dense<0.000000e+00> : vector<16x8xf32>
    %86 = vector.multi_reduction <add>, %85, %cst_31 [2] : vector<16x8x8xf32> to vector<16x8xf32>
    %87 = vector.shape_cast %86 : vector<16x8xf32> to vector<16x8x1xf32>
    %88 = tpu.reciprocal %87 {approx = true} : vector<16x8x1xf32> -> vector<16x8x1xf32>
    %89 = vector.broadcast %88 : vector<16x8x1xf32> to vector<16x8x8xf32>
    %90 = arith.mulf %85, %89 : vector<16x8x8xf32>
    %c0_32 = arith.constant 0 : index
    %c2 = arith.constant 2 : index
    %c0_33 = arith.constant 0 : index
    %c0_34 = arith.constant 0 : index
    %91 = vector.load %arg6[%c0_32, %c2, %c0_33, %c0_34] : memref<16x4x8x8xf32, #tpu.memory_space<vmem>>, vector<16x1x8x8xf32>
    %92 = vector.shape_cast %91 : vector<16x1x8x8xf32> to vector<16x8x8xf32>
    %93 = vector.shape_cast %90 : vector<16x8x8xf32> to vector<16x1x8x8xf32>
    tpu.vector_store %arg6[%c0_32, %c2, %c0_33, %c0_34], %93 {strides = array<i32>} : memref<16x4x8x8xf32, #tpu.memory_space<vmem>>, vector<16x1x8x8xf32>,
    %94 = arith.truncf %90 : vector<16x8x8xf32> to vector<16x8x8xbf16>
    %cst_35 = arith.constant dense<0.000000e+00> : vector<16x8x64xf32>
    %95 = tpu.matmul %94, %76, %cst_35 {dimension_numbers = #tpu.dot_dimension_numbers<[2], [1], [1], [2], [0, 0, 0, 1, 1, 2], [0], [0]>} : vector<16x8x8xbf16>, vector<16x8x64xbf16>, vector<16x8x64xf32> -> vector<16x8x64xf32>
    %96 = vector.shape_cast %95 : vector<16x8x64xf32> to vector<128x64xf32>
    %c0_36 = arith.constant 0 : index
    %c128 = arith.constant 128 : index
    %97 = vector.load %arg7[%c0_36, %c128] : memref<128x256xf32, #tpu.memory_space<vmem>>, vector<128x64xf32>
    tpu.vector_store %arg7[%c0_36, %c128], %96 {strides = array<i32>} : memref<128x256xf32, #tpu.memory_space<vmem>>, vector<128x64xf32>,
    %98 = vector.extract_strided_slice %4 {offsets = [0, 192], sizes = [128, 64], strides = [1, 1]} : vector<128x768xf32> to vector<128x64xf32>
    %99 = vector.shape_cast %98 : vector<128x64xf32> to vector<16x8x64xf32>
    %100 = arith.truncf %99 : vector<16x8x64xf32> to vector<16x8x64xbf16>
    %101 = vector.extract_strided_slice %4 {offsets = [0, 448], sizes = [128, 64], strides = [1, 1]} : vector<128x768xf32> to vector<128x64xf32>
    %102 = vector.shape_cast %101 : vector<128x64xf32> to vector<16x8x64xf32>
    %103 = arith.truncf %102 : vector<16x8x64xf32> to vector<16x8x64xbf16>
    %104 = vector.extract_strided_slice %4 {offsets = [0, 704], sizes = [128, 64], strides = [1, 1]} : vector<128x768xf32> to vector<128x64xf32>
    %105 = vector.shape_cast %104 : vector<128x64xf32> to vector<16x8x64xf32>
    %106 = arith.truncf %105 : vector<16x8x64xf32> to vector<16x8x64xbf16>
    %cst_37 = arith.constant dense<0.000000e+00> : vector<16x8x8xf32>
    %107 = tpu.matmul %100, %103, %cst_37 {dimension_numbers = #tpu.dot_dimension_numbers<[2], [2], [1], [1], [0, 0, 0, 1, 1, 1], [0], [0]>} : vector<16x8x64xbf16>, vector<16x8x64xbf16>, vector<16x8x8xf32> -> vector<16x8x8xf32>
    %cst_38 = arith.constant 1.250000e-01 : f32
    %108 = vector.broadcast %cst_38 : f32 to vector<16x8x8xf32>
    %109 = arith.mulf %107, %108 : vector<16x8x8xf32>
    %110 = arith.addf %109, %7 : vector<16x8x8xf32>
    %cst_39 = arith.constant dense<0xFF800000> : vector<16x8xf32>
    %111 = vector.multi_reduction <maximumf>, %110, %cst_39 [2] : vector<16x8x8xf32> to vector<16x8xf32>
    %112 = vector.shape_cast %111 : vector<16x8xf32> to vector<16x8x1xf32>
    %113 = vector.broadcast %112 : vector<16x8x1xf32> to vector<16x8x8xf32>
    %114 = arith.subf %110, %113 : vector<16x8x8xf32>
    %115 = math.exp %114 : vector<16x8x8xf32>
    %cst_40 = arith.constant dense<0.000000e+00> : vector<16x8xf32>
    %116 = vector.multi_reduction <add>, %115, %cst_40 [2] : vector<16x8x8xf32> to vector<16x8xf32>
    %117 = vector.shape_cast %116 : vector<16x8xf32> to vector<16x8x1xf32>
    %118 = tpu.reciprocal %117 {approx = true} : vector<16x8x1xf32> -> vector<16x8x1xf32>
    %119 = vector.broadcast %118 : vector<16x8x1xf32> to vector<16x8x8xf32>
    %120 = arith.mulf %115, %119 : vector<16x8x8xf32>
    %c0_41 = arith.constant 0 : index
    %c3 = arith.constant 3 : index
    %c0_42 = arith.constant 0 : index
    %c0_43 = arith.constant 0 : index
    %121 = vector.load %arg6[%c0_41, %c3, %c0_42, %c0_43] : memref<16x4x8x8xf32, #tpu.memory_space<vmem>>, vector<16x1x8x8xf32>
    %122 = vector.shape_cast %121 : vector<16x1x8x8xf32> to vector<16x8x8xf32>
    %123 = vector.shape_cast %120 : vector<16x8x8xf32> to vector<16x1x8x8xf32>
    tpu.vector_store %arg6[%c0_41, %c3, %c0_42, %c0_43], %123 {strides = array<i32>} : memref<16x4x8x8xf32, #tpu.memory_space<vmem>>, vector<16x1x8x8xf32>,
    %124 = arith.truncf %120 : vector<16x8x8xf32> to vector<16x8x8xbf16>
    %cst_44 = arith.constant dense<0.000000e+00> : vector<16x8x64xf32>
    %125 = tpu.matmul %124, %106, %cst_44 {dimension_numbers = #tpu.dot_dimension_numbers<[2], [1], [1], [2], [0, 0, 0, 1, 1, 2], [0], [0]>} : vector<16x8x8xbf16>, vector<16x8x64xbf16>, vector<16x8x64xf32> -> vector<16x8x64xf32>
    %126 = vector.shape_cast %125 : vector<16x8x64xf32> to vector<128x64xf32>
    %c0_45 = arith.constant 0 : index
    %c192 = arith.constant 192 : index
    %127 = vector.load %arg7[%c0_45, %c192] : memref<128x256xf32, #tpu.memory_space<vmem>>, vector<128x64xf32>
    tpu.vector_store %arg7[%c0_45, %c192], %126 {strides = array<i32>} : memref<128x256xf32, #tpu.memory_space<vmem>>, vector<128x64xf32>,
    %c0_46 = arith.constant 0 : index
    %c0_47 = arith.constant 0 : index
    %128 = vector.load %arg7[%c0_46, %c0_47] : memref<128x256xf32, #tpu.memory_space<vmem>>, vector<128x256xf32>
    %129 = arith.truncf %128 : vector<128x256xf32> to vector<128x256xbf16>
    %c0_48 = arith.constant 0 : index
    %c0_49 = arith.constant 0 : index
    %130 = vector.load %arg4[%c0_48, %c0_49] : memref<256x64xbf16, #tpu.memory_space<vmem>>, vector<256x64xbf16>
    %cst_50 = arith.constant dense<0.000000e+00> : vector<128x64xf32>
    %131 = tpu.matmul %129, %130, %cst_50 {dimension_numbers = #tpu.dot_dimension_numbers<[1], [0], [0], [1], [0, 0, 1, 1], [], []>} : vector<128x256xbf16>, vector<256x64xbf16>, vector<128x64xf32> -> vector<128x64xf32>
    %132 = arith.addf %131, %1 : vector<128x64xf32>
    %cst_51 = arith.constant dense<0.000000e+00> : vector<128xf32>
    %133 = vector.multi_reduction <add>, %132, %cst_51 [1] : vector<128x64xf32> to vector<128xf32>
    %134 = vector.shape_cast %133 : vector<128xf32> to vector<128x1xf32>
    %cst_52 = arith.constant 6.400000e+01 : f32
    %135 = vector.broadcast %cst_52 : f32 to vector<128x1xf32>
    %136 = arith.divf %134, %135 : vector<128x1xf32>
    %137 = vector.broadcast %136 : vector<128x1xf32> to vector<128x64xf32>
    %138 = arith.subf %132, %137 : vector<128x64xf32>
    %139 = arith.mulf %138, %138 : vector<128x64xf32>
    %cst_53 = arith.constant dense<0.000000e+00> : vector<128xf32>
    %140 = vector.multi_reduction <add>, %139, %cst_53 [1] : vector<128x64xf32> to vector<128xf32>
    %141 = vector.shape_cast %140 : vector<128xf32> to vector<128x1xf32>
    %cst_54 = arith.constant 6.400000e+01 : f32
    %142 = vector.broadcast %cst_54 : f32 to vector<128x1xf32>
    %143 = arith.divf %141, %142 : vector<128x1xf32>
    %cst_55 = arith.constant 9.99999974E-6 : f32
    %144 = vector.broadcast %cst_55 : f32 to vector<128x1xf32>
    %145 = arith.addf %143, %144 : vector<128x1xf32>
    %146 = math.rsqrt %145 : vector<128x1xf32>
    %147 = vector.broadcast %146 : vector<128x1xf32> to vector<128x64xf32>
    %148 = arith.mulf %138, %147 : vector<128x64xf32>
    %149 = vector.shape_cast %148 : vector<128x64xf32> to vector<16x8x64xf32>
    %c0_56 = arith.constant 0 : index
    %c0_57 = arith.constant 0 : index
    %c0_58 = arith.constant 0 : index
    %150 = vector.load %arg5[%c0_56, %c0_57, %c0_58] : memref<16x8x64xf32, #tpu.memory_space<vmem>>, vector<16x8x64xf32>
    tpu.vector_store %arg5[%c0_56, %c0_57, %c0_58], %149 {strides = array<i32>} : memref<16x8x64xf32, #tpu.memory_space<vmem>>, vector<16x8x64xf32>,
    return
  }
  func.func @transform_0(%arg0: i32) -> (i32, i32, i32) {
    %c0_i32 = arith.constant 0 : i32
    %c0_i32_0 = arith.constant 0 : i32
    %c0_i32_1 = arith.constant 0 : i32
    return %arg0, %c0_i32, %c0_i32_0 : i32, i32, i32
  }
  func.func @transform_1(%arg0: i32) -> (i32, i32, i32) {
    %c0_i32 = arith.constant 0 : i32
    %c0_i32_0 = arith.constant 0 : i32
    %c0_i32_1 = arith.constant 0 : i32
    return %arg0, %c0_i32, %c0_i32_0 : i32, i32, i32
  }
  func.func @transform_2(%arg0: i32) -> (i32, i32) {
    %c0_i32 = arith.constant 0 : i32
    %c0_i32_0 = arith.constant 0 : i32
    %c0_i32_1 = arith.constant 0 : i32
    return %c0_i32, %c0_i32_0 : i32, i32
  }
  func.func @transform_3(%arg0: i32) -> (i32, i32) {
    %c0_i32 = arith.constant 0 : i32
    %c0_i32_0 = arith.constant 0 : i32
    %c0_i32_1 = arith.constant 0 : i32
    return %c0_i32, %c0_i32_0 : i32, i32
  }
  func.func @transform_4(%arg0: i32) -> (i32, i32, i32) {
    %c0_i32 = arith.constant 0 : i32
    %c0_i32_0 = arith.constant 0 : i32
    %c0_i32_1 = arith.constant 0 : i32
    return %arg0, %c0_i32, %c0_i32_0 : i32, i32, i32
  }
  func.func @transform_5(%arg0: i32) -> (i32, i32, i32, i32) {
    %c0_i32 = arith.constant 0 : i32
    %c0_i32_0 = arith.constant 0 : i32
    %c0_i32_1 = arith.constant 0 : i32
    %c0_i32_2 = arith.constant 0 : i32
    return %arg0, %c0_i32, %c0_i32_0, %c0_i32_1 : i32, i32, i32, i32
  }
}

</mosaic_0001>

<llo_original>
// kernel: tpu_custom_call.1
$region0: #{tpu_custom_call.1}
  #allocation0 [shape = 'u32[]', space=smem, size = 0x4, offset = 0x4, fixed_abs, tag = 'smem constant byte address 0x4 - core index']
  #allocation1 [shape = 'u32[144,128]{1,0:T(1,128)}', space=vmem, size = 0x12000, scoped, tag = 'internal scratch']
  #allocation2 [shape = 'f32[128,256]{1,0:T(8,128)}', space=vmem, size = 0x20000, scoped, tag = 'scratch operand']
  %s0 = inlined_call_operand.vmem [shape: f32[32,8,64], index: 0, kind: input, shape index: {}]
  %s1 = inlined_call_operand.vmem [shape: f32[32,8,8], index: 1, kind: input, shape index: {}]
  %s2 = inlined_call_operand.vmem [shape: bf16[64,768], index: 2, kind: input, shape index: {}]
  %s3 = inlined_call_operand.vmem [shape: bf16[256,64], index: 3, kind: input, shape index: {}]
  %s4 = inlined_call_operand.hbm [shape: f32[32,8,64], index: 4, kind: output, shape index: {0}]
  %s5 = inlined_call_operand.vmem [shape: f32[32,4,8,8], index: 5, kind: output, shape index: {1}]
  %6 = xla_tuple %s4, %s5
  %s7 = sld [smem:[#allocation0]]
  $region57: #{tpu_custom_call.1} parent=0
    _
  %s9 = ssub.s32 1, %s7
  %s10 = scalar_select 0, %s9, %s7
  $region1: #{tpu_custom_call.1} parent=0
    #allocation3 [shape = 'u8[131072]{0}', space=vmem, size = 0x20000, scoped, tag = 'output window, operand 0']
    #allocation4 [shape = 's32[2]{0}', space=sflag, size = 0x8, scoped, tag = 'scoped memory for tpu_custom_call.1']
    %11 = vsyncpa [#allocation4], 0
    %s12 = scalar_lea.sflag [#allocation4], 1
    %13 = vsyncpa %s12, 0
    loop: start=0, step=1, limit=4
    $region2: #{tpu_custom_call.1} parent=1 // loop_pre_header
      _
    $region3: #{tpu_custom_call.1} parent=1 // loop_header
      %s15 = sphi 0, %s19
      %p16 = scmp.ge.s32.totalorder %s15, 4
      %s25 = sphi 0, %s27
      %s28 = sphi 0, %s25
      %s29 = sphi 0, %s28
      %s45 = sphi 0, %s29
      %s51 = sphi 0, %s53
      %s54 = sphi 0, %s51
      %s55 = sphi 0, %s54
      %s71 = sphi 0, %s55
      %s75 = sphi 0, %s75
      %s77 = sphi 0, %s75
      %s78 = sphi 0, %s77
      %s92 = sphi 0, %s78
      %s96 = sphi 0, %s96
      %s98 = sphi 0, %s96
      %s99 = sphi 0, %s98
      %s113 = sphi 0, %s99
      %s119 = sphi 0, %s121
      %s122 = sphi 0, %s119
      %s123 = sphi 0, %s122
      %s139 = sphi 0, %s123
      %s145 = sphi 0, %s147
      %s148 = sphi 0, %s145
      %s149 = sphi 0, %s148
      %s165 = sphi 0, %s149
    $region4: #{tpu_custom_call.1} parent=1 // loop_header_branch
      %18 = sbr.rel (%p16) target = $region8
    $region5: #{tpu_custom_call.1} parent=1 // loop_body
      %s20 = ssub.s32 %s15, 1
      %s21 = ssub.s32 %s15, 2
      %s22 = sadd.s32 %s15, 1
      %s23 = ssub.s32 %s15, %s22
      %p24 = scmp.eq.s32.totalorder %s23, 0
      %s26 = sadd.s32 %s25, 1
      %s27 = scalar_select %p24, %s25, %s26
      %p30 = pneg %p24
      %p31 = scmp.eq.s32.totalorder %s15, 1
      %p32 = por %p30, %p31
      %p33 = scmp.ne.s32.totalorder %s25, %s28
      %p34 = scmp.eq.s32.totalorder %s15, 0
      %p35 = por %p33, %p34
      %p36 = scmp.ne.s32.totalorder %s25, %s28
      %p37 = scmp.eq.s32.totalorder %s20, 1
      %p38 = por %p36, %p37
      %p39 = scmp.ne.s32.totalorder %s28, %s29
      %p40 = scmp.eq.s32.totalorder %s20, 0
      %p41 = por %p39, %p40
      %p42 = scmp.ne.s32.totalorder %s28, %s29
      %p43 = scmp.eq.s32.totalorder %s21, 1
      %p44 = por %p42, %p43
      %p46 = scmp.ne.s32.totalorder %s29, %s45
      %p47 = scmp.eq.s32.totalorder %s21, 0
      %p48 = por %p46, %p47
      %s49 = ssub.s32 %s15, %s22
      %p50 = scmp.eq.s32.totalorder %s49, 0
      %s52 = sadd.s32 %s51, 1
      %s53 = scalar_select %p50, %s51, %s52
      %p56 = pneg %p50
      %p57 = scmp.eq.s32.totalorder %s15, 1
      %p58 = por %p56, %p57
      %p59 = scmp.ne.s32.totalorder %s51, %s54
      %p60 = scmp.eq.s32.totalorder %s15, 0
      %p61 = por %p59, %p60
      %p62 = scmp.ne.s32.totalorder %s51, %s54
      %p63 = scmp.eq.s32.totalorder %s20, 1
      %p64 = por %p62, %p63
      %p65 = scmp.ne.s32.totalorder %s54, %s55
      %p66 = scmp.eq.s32.totalorder %s20, 0
      %p67 = por %p65, %p66
      %p68 = scmp.ne.s32.totalorder %s54, %s55
      %p69 = scmp.eq.s32.totalorder %s21, 1
      %p70 = por %p68, %p69
      %p72 = scmp.ne.s32.totalorder %s55, %s71
      %p73 = scmp.eq.s32.totalorder %s21, 0
      %p74 = por %p72, %p73
      %s76 = sadd.s32 %s75, 1
      %p79 = scmp.eq.s32.totalorder %s15, 1
      %p80 = scmp.ne.s32.totalorder %s75, %s77
      %p81 = scmp.eq.s32.totalorder %s15, 0
      %p82 = por %p80, %p81
      %p83 = scmp.ne.s32.totalorder %s75, %s77
      %p84 = scmp.eq.s32.totalorder %s20, 1
      %p85 = por %p83, %p84
      %p86 = scmp.ne.s32.totalorder %s77, %s78
      %p87 = scmp.eq.s32.totalorder %s20, 0
      %p88 = por %p86, %p87
      %p89 = scmp.ne.s32.totalorder %s77, %s78
      %p90 = scmp.eq.s32.totalorder %s21, 1
      %p91 = por %p89, %p90
      %p93 = scmp.ne.s32.totalorder %s78, %s92
      %p94 = scmp.eq.s32.totalorder %s21, 0
      %p95 = por %p93, %p94
      %s97 = sadd.s32 %s96, 1
      %p100 = scmp.eq.s32.totalorder %s15, 1
      %p101 = scmp.ne.s32.totalorder %s96, %s98
      %p102 = scmp.eq.s32.totalorder %s15, 0
      %p103 = por %p101, %p102
      %p104 = scmp.ne.s32.totalorder %s96, %s98
      %p105 = scmp.eq.s32.totalorder %s20, 1
      %p106 = por %p104, %p105
      %p107 = scmp.ne.s32.totalorder %s98, %s99
      %p108 = scmp.eq.s32.totalorder %s20, 0
      %p109 = por %p107, %p108
      %p110 = scmp.ne.s32.totalorder %s98, %s99
      %p111 = scmp.eq.s32.totalorder %s21, 1
      %p112 = por %p110, %p111
      %p114 = scmp.ne.s32.totalorder %s99, %s113
      %p115 = scmp.eq.s32.totalorder %s21, 0
      %p116 = por %p114, %p115
      %s117 = ssub.s32 %s15, %s22
      %p118 = scmp.eq.s32.totalorder %s117, 0
      %s120 = sadd.s32 %s119, 1
      %s121 = scalar_select %p118, %s119, %s120
      %p124 = pneg %p118
      %p125 = scmp.eq.s32.totalorder %s15, 1
      %p126 = por %p124, %p125
      %p127 = scmp.ne.s32.totalorder %s119, %s122
      %p128 = scmp.eq.s32.totalorder %s15, 0
      %p129 = por %p127, %p128
      %p130 = scmp.ne.s32.totalorder %s119, %s122
      %p131 = scmp.eq.s32.totalorder %s20, 1
      %p132 = por %p130, %p131
      %p133 = scmp.ne.s32.totalorder %s122, %s123
      %p134 = scmp.eq.s32.totalorder %s20, 0
      %p135 = por %p133, %p134
      %p136 = scmp.ne.s32.totalorder %s122, %s123
      %p137 = scmp.eq.s32.totalorder %s21, 1
      %p138 = por %p136, %p137
      %p140 = scmp.ne.s32.totalorder %s123, %s139
      %p141 = scmp.eq.s32.totalorder %s21, 0
      %p142 = por %p140, %p141
      %s143 = ssub.s32 %s15, %s22
      %p144 = scmp.eq.s32.totalorder %s143, 0
      %s146 = sadd.s32 %s145, 1
      %s147 = scalar_select %p144, %s145, %s146
      %p150 = pneg %p144
      %p151 = scmp.eq.s32.totalorder %s15, 1
      %p152 = por %p150, %p151
      %p153 = scmp.ne.s32.totalorder %s145, %s148
      %p154 = scmp.eq.s32.totalorder %s15, 0
      %p155 = por %p153, %p154
      %p156 = scmp.ne.s32.totalorder %s145, %s148
      %p157 = scmp.eq.s32.totalorder %s20, 1
      %p158 = por %p156, %p157
      %p159 = scmp.ne.s32.totalorder %s148, %s149
      %p160 = scmp.eq.s32.totalorder %s20, 0
      %p161 = por %p159, %p160
      %p162 = scmp.ne.s32.totalorder %s148, %s149
      %p163 = scmp.eq.s32.totalorder %s21, 1
      %p164 = por %p162, %p163
      %p166 = scmp.ne.s32.totalorder %s149, %s165
      %p167 = scmp.eq.s32.totalorder %s21, 0
      %p168 = por %p166, %p167
      %p169 = scmp.le.s32.totalorder 1, %s15
      %p170 = scmp.lt.s32.totalorder %s15, 3
      %p171 = pnand %p169, %p170
      %p172 = pneg %p171
      // Predicated region
      $region9: #{tpu_custom_call.1} parent=5 // pred_check
        _
      $region10: #{tpu_custom_call.1} parent=5 // pred_check_branch
        %174 = sbr.rel (%p171) target = $region12
      $region11: #{tpu_custom_call.1} parent=5 // pred_region
        %s175 = ssub.s32 %s15, 1
        // Predicated region
        $region13: #{tpu_custom_call.1} parent=11 // pred_check
          %p176 = pneg %p88
        $region14: #{tpu_custom_call.1} parent=11 // pred_check_branch
          %178 = sbr.rel (%p176) target = $region16
        $region15: #{tpu_custom_call.1} parent=11 // pred_region
          _
        $region16: #{tpu_custom_call.1} parent=11 // pred_fallthru
          _
        // Predicated region
        $region17: #{tpu_custom_call.1} parent=11 // pred_check
          %p179 = pneg %p109
        $region18: #{tpu_custom_call.1} parent=11 // pred_check_branch
          %181 = sbr.rel (%p179) target = $region20
        $region19: #{tpu_custom_call.1} parent=11 // pred_region
          _
        $region20: #{tpu_custom_call.1} parent=11 // pred_fallthru
          _
      $region12: #{tpu_custom_call.1} parent=5 // pred_fallthru
        _
      %p182 = scmp.lt.s32.totalorder %s15, 2
      // Predicated region
      $region21: #{tpu_custom_call.1} parent=5 // pred_check
        %p183 = pneg %p182
      $region22: #{tpu_custom_call.1} parent=5 // pred_check_branch
        %185 = sbr.rel (%p183) target = $region24
      $region23: #{tpu_custom_call.1} parent=5 // pred_region
        // Predicated region
        $region25: #{tpu_custom_call.1} parent=23 // pred_check
          %p186 = pneg %p35
        $region26: #{tpu_custom_call.1} parent=23 // pred_check_branch
          %188 = sbr.rel (%p186) target = $region28
        $region27: #{tpu_custom_call.1} parent=23 // pred_region
          %s189 = smul.u32 16, %s15
          %p190 = scmp.lt.s32.totalorder %s189, 31
          %s191 = scalar_select %p190, %s189, 31
          %s192 = smul.addr %s191, 8
          %s193 = scalar_lea.vmem %s0, %s192
          %s194 = smul.u32 16, %s15
        $region28: #{tpu_custom_call.1} parent=23 // pred_fallthru
          _
        // Predicated region
        $region29: #{tpu_custom_call.1} parent=23 // pred_check
          %p195 = pneg %p61
        $region30: #{tpu_custom_call.1} parent=23 // pred_check_branch
          %197 = sbr.rel (%p195) target = $region32
        $region31: #{tpu_custom_call.1} parent=23 // pred_region
          %s198 = smul.u32 16, %s15
          %p199 = scmp.lt.s32.totalorder %s198, 31
          %s200 = scalar_select %p199, %s198, 31
          %s201 = smul.addr %s200, 8
          %s202 = scalar_lea.vmem %s1, %s201
          %s203 = smul.u32 16, %s15
        $region32: #{tpu_custom_call.1} parent=23 // pred_fallthru
          _
      $region24: #{tpu_custom_call.1} parent=5 // pred_fallthru
        _
      %p204 = scmp.le.s32.totalorder 1, %s15
      %p205 = scmp.lt.s32.totalorder %s15, 3
      %p206 = pnand %p204, %p205
      %p207 = pneg %p206
      // Predicated region
      $region33: #{tpu_custom_call.1} parent=5 // pred_check
        _
      $region34: #{tpu_custom_call.1} parent=5 // pred_check_branch
        %209 = sbr.rel (%p206) target = $region36
      $region35: #{tpu_custom_call.1} parent=5 // pred_region
        %s210 = ssub.s32 %s15, 1
        %s211 = smul.u32 16, %s20
        %p212 = scmp.lt.s32.totalorder %s211, 31
        %s213 = scalar_select %p212, %s211, 31
        %s214 = smul.addr %s213, 8
        %s215 = scalar_lea.vmem %s0, %s214
        %p216 = pneg %p41
        %p217 = pneg %p38
        %s218 = smul.u32 16, %s20
        %p219 = scmp.lt.s32.totalorder %s218, 31
        %s220 = scalar_select %p219, %s218, 31
        %s221 = smul.addr %s220, 8
        %s222 = scalar_lea.vmem %s1, %s221
        %p223 = pneg %p67
        %p224 = pneg %p64
        %p225 = pneg %p88
        %p226 = pneg %p85
        %p227 = pneg %p109
        %p228 = pneg %p106
        %p229 = pneg %p135
        %p230 = pneg %p132
        %s231 = sand.u32 %s122, 1
        %s232 = scalar_lea.sflag [#allocation4], %s231
        %s233 = sand.u32 %s122, 1
        %s234 = smul.addr %s233, 128
        %s235 = scalar_lea.vmem [#allocation3], %s234
        %p236 = pneg %p161
        %p237 = pneg %p158
        %s238 = smul.u32 16, %s20
        %p239 = scmp.lt.s32.totalorder %s238, 31
        %s240 = scalar_select %p239, %s238, 31
        %s241 = smul.addr %s240, 4
        %s242 = smul.addr %s241, 8
        %s243 = scalar_lea.vmem %s5, %s242
        %s244 = smul.u32 16, %s20
        %p245 = scmp.lt.s32.totalorder %s244, 31
        %s246 = scalar_select %p245, %s244, 31
        %s247 = smul.addr %s246, 8
        %s248 = scalar_lea.vmem %s0, %s247
        %s249 = smul.u32 16, %s20
        %s250 = smul.u32 16, %s20
        %p251 = scmp.lt.s32.totalorder %s250, 31
        %s252 = scalar_select %p251, %s250, 31
        %s253 = smul.addr %s252, 8
        %s254 = scalar_lea.vmem %s1, %s253
        %s255 = smul.u32 16, %s20
        %s256 = smul.u32 16, %s20
        %s257 = smul.u32 16, %s20
        %p258 = scmp.lt.s32.totalorder %s257, 31
        %s259 = scalar_select %p258, %s257, 31
        %s260 = smul.addr %s259, 4
        %s261 = smul.addr %s260, 8
        %s262 = scalar_lea.vmem %s5, %s261
        %s263 = smul.u32 16, %s20
        %v265 = vld [vmem:[%s248] sm:$0xff]
        %v266 = vld [vmem:[%s248 + $0x8] sm:$0xff]
        %v267 = vld [vmem:[%s248 + $0x10] sm:$0xff]
        %v268 = vld [vmem:[%s248 + $0x18] sm:$0xff]
        %v269 = vld [vmem:[%s248 + $0x20] sm:$0xff]
        %v270 = vld [vmem:[%s248 + $0x28] sm:$0xff]
        %v271 = vld [vmem:[%s248 + $0x30] sm:$0xff]
        %v272 = vld [vmem:[%s248 + $0x38] sm:$0xff]
        %v273 = vld [vmem:[%s248 + $0x40] sm:$0xff]
        %v274 = vld [vmem:[%s248 + $0x48] sm:$0xff]
        %v275 = vld [vmem:[%s248 + $0x50] sm:$0xff]
        %v276 = vld [vmem:[%s248 + $0x58] sm:$0xff]
        %v277 = vld [vmem:[%s248 + $0x60] sm:$0xff]
        %v278 = vld [vmem:[%s248 + $0x68] sm:$0xff]
        %v279 = vld [vmem:[%s248 + $0x70] sm:$0xff]
        %v280 = vld [vmem:[%s248 + $0x78] sm:$0xff]
        %v281 = vpack.c.bf16 %v266, %v265
        %v282 = vpack.c.bf16 %v268, %v267
        %v283 = vpack.c.bf16 %v270, %v269
        %v284 = vpack.c.bf16 %v272, %v271
        %v285 = vpack.c.bf16 %v274, %v273
        %v286 = vpack.c.bf16 %v276, %v275
        %v287 = vpack.c.bf16 %v278, %v277
        %v288 = vpack.c.bf16 %v280, %v279
        %v289 = vld [vmem:[%s2] sm:$0xff]
        %v290 = vld [vmem:[%s2 + $0x8] sm:$0xff]
        %v291 = vld [vmem:[%s2 + $0x10] sm:$0xff]
        %v292 = vld [vmem:[%s2 + $0x18] sm:$0xff]
        %v293 = vld [vmem:[%s2 + $0x20] sm:$0xff]
        %v294 = vld [vmem:[%s2 + $0x28] sm:$0xff]
        %v295 = vld [vmem:[%s2 + $0x30] sm:$0xff]
        %v296 = vld [vmem:[%s2 + $0x38] sm:$0xff]
        %v297 = vld [vmem:[%s2 + $0x40] sm:$0xff]
        %v298 = vld [vmem:[%s2 + $0x48] sm:$0xff]
        %v299 = vld [vmem:[%s2 + $0x50] sm:$0xff]
        %v300 = vld [vmem:[%s2 + $0x58] sm:$0xff]
        %v301 = vld [vmem:[%s2 + $0x60] sm:$0xff]
        %v302 = vld [vmem:[%s2 + $0x68] sm:$0xff]
        %v303 = vld [vmem:[%s2 + $0x70] sm:$0xff]
        %v304 = vld [vmem:[%s2 + $0x78] sm:$0xff]
        %v305 = vld [vmem:[%s2 + $0x80] sm:$0xff]
        %v306 = vld [vmem:[%s2 + $0x88] sm:$0xff]
        %v307 = vld [vmem:[%s2 + $0x90] sm:$0xff]
        %v308 = vld [vmem:[%s2 + $0x98] sm:$0xff]
        %v309 = vld [vmem:[%s2 + $0xa0] sm:$0xff]
        %v310 = vld [vmem:[%s2 + $0xa8] sm:$0xff]
        %v311 = vld [vmem:[%s2 + $0xb0] sm:$0xff]
        %v312 = vld [vmem:[%s2 + $0xb8] sm:$0xff]
        %v337 = vunpack.c.l.b16 %v289
        %v338 = vunpack.c.h.b16 %v289
        %v339 = vunpack.c.l.b16 %v290
        %v340 = vunpack.c.h.b16 %v290
        %v341 = vunpack.c.l.b16 %v291
        %v342 = vunpack.c.h.b16 %v291
        %v343 = vunpack.c.l.b16 %v292
        %v344 = vunpack.c.h.b16 %v292
        %v345 = vunpack.c.l.b16 %v293
        %v346 = vunpack.c.h.b16 %v293
        %v347 = vunpack.c.l.b16 %v294
        %v348 = vunpack.c.h.b16 %v294
        %v349 = vunpack.c.l.b16 %v295
        %v350 = vunpack.c.h.b16 %v295
        %v351 = vunpack.c.l.b16 %v296
        %v352 = vunpack.c.h.b16 %v296
        %v353 = vunpack.c.l.b16 %v297
        %v354 = vunpack.c.h.b16 %v297
        %v355 = vunpack.c.l.b16 %v298
        %v356 = vunpack.c.h.b16 %v298
        %v357 = vunpack.c.l.b16 %v299
        %v358 = vunpack.c.h.b16 %v299
        %v359 = vunpack.c.l.b16 %v300
        %v360 = vunpack.c.h.b16 %v300
        %v361 = vunpack.c.l.b16 %v301
        %v362 = vunpack.c.h.b16 %v301
        %v363 = vunpack.c.l.b16 %v302
        %v364 = vunpack.c.h.b16 %v302
        %v365 = vunpack.c.l.b16 %v303
        %v366 = vunpack.c.h.b16 %v303
        %v367 = vunpack.c.l.b16 %v304
        %v368 = vunpack.c.h.b16 %v304
        %v369 = vunpack.c.l.b16 %v305
        %v370 = vunpack.c.h.b16 %v305
        %v371 = vunpack.c.l.b16 %v306
        %v372 = vunpack.c.h.b16 %v306
        %v373 = vunpack.c.l.b16 %v307
        %v374 = vunpack.c.h.b16 %v307
        %v375 = vunpack.c.l.b16 %v308
        %v376 = vunpack.c.h.b16 %v308
        %v377 = vunpack.c.l.b16 %v309
        %v378 = vunpack.c.h.b16 %v309
        %v379 = vunpack.c.l.b16 %v310
        %v380 = vunpack.c.h.b16 %v310
        %v381 = vunpack.c.l.b16 %v311
        %v382 = vunpack.c.h.b16 %v311
        %v383 = vunpack.c.l.b16 %v312
        %v384 = vunpack.c.h.b16 %v312
        %v385 = vpack.c.b16 %v343, %v337
        %v386 = vpack.c.b16 %v344, %v338
        %v387 = vpack.c.b16 %v345, %v339
        %v388 = vpack.c.b16 %v346, %v340
        %v389 = vpack.c.b16 %v347, %v341
        %v390 = vpack.c.b16 %v348, %v342
        %v391 = vpack.c.b16 %v355, %v349
        %v392 = vpack.c.b16 %v356, %v350
        %v393 = vpack.c.b16 %v357, %v351
        %v394 = vpack.c.b16 %v358, %v352
        %v395 = vpack.c.b16 %v359, %v353
        %v396 = vpack.c.b16 %v360, %v354
        %v397 = vpack.c.b16 %v367, %v361
        %v398 = vpack.c.b16 %v368, %v362
        %v399 = vpack.c.b16 %v369, %v363
        %v400 = vpack.c.b16 %v370, %v364
        %v401 = vpack.c.b16 %v371, %v365
        %v402 = vpack.c.b16 %v372, %v366
        %v403 = vpack.c.b16 %v379, %v373
        %v404 = vpack.c.b16 %v380, %v374
        %v405 = vpack.c.b16 %v381, %v375
        %v406 = vpack.c.b16 %v382, %v376
        %v407 = vpack.c.b16 %v383, %v377
        %v408 = vpack.c.b16 %v384, %v378
        %vm433 = vcmask 523264
        %v435 = vsel %vm433, %v281, 0
        %v438 = vsel %vm433, %v282, 0
        %v441 = vsel %vm433, %v283, 0
        %v444 = vsel %vm433, %v284, 0
        %v447 = vsel %vm433, %v285, 0
        %v450 = vsel %vm433, %v286, 0
        %v453 = vsel %vm433, %v287, 0
        %v456 = vsel %vm433, %v288, 0
        %458 = vmatprep.subr.bf16.mxu0 %v386
        %459 = vmatpush1.bf16.msra.mxu0 %v385
        %460 = vmatprep.subr.bf16.mxu0 %v392
        %461 = vmatpush1.bf16.msra.mxu0 %v391
        %462 = vmatprep.subr.bf16.mxu0 %v398
        %463 = vmatpush1.bf16.msra.mxu0 %v397
        %464 = vmatprep.subr.bf16.mxu0 %v404
        %465 = vmatpush1.bf16.msra.mxu0 %v403
        %466 = vmatprep.subr.bf16.mxu0 0
        %467 = vmatpush1.bf16.msra.mxu0 0
        %468 = vmatprep.subr.bf16.mxu0 0
        %469 = vmatpush1.bf16.msra.mxu0 0
        %470 = vmatprep.subr.bf16.mxu0 0
        %471 = vmatpush1.bf16.msra.mxu0 0
        %472 = vmatprep.subr.bf16.mxu0 0
        %473 = vmatpush1.bf16.msra.mxu0 0
        %474 = vmatprep.subr.bf16.mxu0 0
        %475 = vmatpush1.bf16.msra.mxu0 0
        %476 = vmatprep.subr.bf16.mxu0 0
        %477 = vmatpush1.bf16.msra.mxu0 0
        %478 = vmatprep.subr.bf16.mxu0 0
        %479 = vmatpush1.bf16.msra.mxu0 0
        %480 = vmatprep.subr.bf16.mxu0 0
        %481 = vmatpush1.bf16.msra.mxu0 0
        %482 = vmatprep.subr.bf16.mxu0 0
        %483 = vmatpush1.bf16.msra.mxu0 0
        %484 = vmatprep.subr.bf16.mxu0 0
        %485 = vmatpush1.bf16.msra.mxu0 0
        %486 = vmatprep.subr.bf16.mxu0 0
        %487 = vmatpush1.bf16.msra.mxu0 0
        %488 = vmatprep.subr.bf16.mxu0 0
        %489 = vmatpush1.bf16.msra.mxu0 0
        %490 = vmatprep.mubr.bf16.mxu0 0
        %491 = vmatmul.mubr.bf16.gmra.mrb[0].mxu0 %v435
        %v492 = vpop.f32.mrb[0].mxu0
        %v493 = vadd.f32 0.0, %v492
        %v494 = vpop.f32.mrb[0].mxu0
        %v495 = vadd.f32 0.0, %v494
        %v496 = vpop.f32.mrb[0].mxu0
        %v497 = vadd.f32 0.0, %v496
        %v498 = vpop.f32.mrb[0].mxu0
        %v499 = vadd.f32 0.0, %v498
        %500 = vmatprep.mubr.bf16.mxu0 0
        %501 = vmatmul.mubr.bf16.gmra.mrb[0].mxu0 %v438
        %v502 = vpop.f32.mrb[0].mxu0
        %v503 = vadd.f32 0.0, %v502
        %v504 = vpop.f32.mrb[0].mxu0
        %v505 = vadd.f32 0.0, %v504
        %v506 = vpop.f32.mrb[0].mxu0
        %v507 = vadd.f32 0.0, %v506
        %v508 = vpop.f32.mrb[0].mxu0
        %v509 = vadd.f32 0.0, %v508
        %510 = vmatprep.mubr.bf16.mxu0 0
        %511 = vmatmul.mubr.bf16.gmra.mrb[0].mxu0 %v441
        %v512 = vpop.f32.mrb[0].mxu0
        %v513 = vadd.f32 0.0, %v512
        %v514 = vpop.f32.mrb[0].mxu0
        %v515 = vadd.f32 0.0, %v514
        %v516 = vpop.f32.mrb[0].mxu0
        %v517 = vadd.f32 0.0, %v516
        %v518 = vpop.f32.mrb[0].mxu0
        %v519 = vadd.f32 0.0, %v518
        %520 = vmatprep.mubr.bf16.mxu0 0
        %521 = vmatmul.mubr.bf16.gmra.mrb[0].mxu0 %v444
        %v522 = vpop.f32.mrb[0].mxu0
        %v523 = vadd.f32 0.0, %v522
        %v524 = vpop.f32.mrb[0].mxu0
        %v525 = vadd.f32 0.0, %v524
        %v526 = vpop.f32.mrb[0].mxu0
        %v527 = vadd.f32 0.0, %v526
        %v528 = vpop.f32.mrb[0].mxu0
        %v529 = vadd.f32 0.0, %v528
        %530 = vmatprep.mubr.bf16.mxu0 0
        %531 = vmatmul.mubr.bf16.gmra.mrb[0].mxu0 %v447
        %v532 = vpop.f32.mrb[0].mxu0
        %v533 = vadd.f32 0.0, %v532
        %v534 = vpop.f32.mrb[0].mxu0
        %v535 = vadd.f32 0.0, %v534
        %v536 = vpop.f32.mrb[0].mxu0
        %v537 = vadd.f32 0.0, %v536
        %v538 = vpop.f32.mrb[0].mxu0
        %v539 = vadd.f32 0.0, %v538
        %540 = vmatprep.mubr.bf16.mxu0 0
        %541 = vmatmul.mubr.bf16.gmra.mrb[0].mxu0 %v450
        %v542 = vpop.f32.mrb[0].mxu0
        %v543 = vadd.f32 0.0, %v542
        %v544 = vpop.f32.mrb[0].mxu0
        %v545 = vadd.f32 0.0, %v544
        %v546 = vpop.f32.mrb[0].mxu0
        %v547 = vadd.f32 0.0, %v546
        %v548 = vpop.f32.mrb[0].mxu0
        %v549 = vadd.f32 0.0, %v548
        %550 = vmatprep.mubr.bf16.mxu0 0
        %551 = vmatmul.mubr.bf16.gmra.mrb[0].mxu0 %v453
        %v552 = vpop.f32.mrb[0].mxu0
        %v553 = vadd.f32 0.0, %v552
        %v554 = vpop.f32.mrb[0].mxu0
        %v555 = vadd.f32 0.0, %v554
        %v556 = vpop.f32.mrb[0].mxu0
        %v557 = vadd.f32 0.0, %v556
        %v558 = vpop.f32.mrb[0].mxu0
        %v559 = vadd.f32 0.0, %v558
        %560 = vmatprep.mubr.bf16.mxu0 0
        %561 = vmatmul.mubr.bf16.gmra.mrb[0].mxu0 %v456
        %v562 = vpop.f32.mrb[0].mxu0
        %v563 = vadd.f32 0.0, %v562
        %v564 = vpop.f32.mrb[0].mxu0
        %v565 = vadd.f32 0.0, %v564
        %v566 = vpop.f32.mrb[0].mxu0
        %v567 = vadd.f32 0.0, %v566
        %v568 = vpop.f32.mrb[0].mxu0
        %v569 = vadd.f32 0.0, %v568
        %570 = vdwg.mxu0
        %571 = vmatprep.subr.bf16.mxu0 %v388
        %572 = vmatpush1.bf16.msra.mxu0 %v387
        %573 = vmatprep.subr.bf16.mxu0 %v394
        %574 = vmatpush1.bf16.msra.mxu0 %v393
        %575 = vmatprep.subr.bf16.mxu0 %v400
        %576 = vmatpush1.bf16.msra.mxu0 %v399
        %577 = vmatprep.subr.bf16.mxu0 %v406
        %578 = vmatpush1.bf16.msra.mxu0 %v405
        %579 = vmatprep.subr.bf16.mxu0 0
        %580 = vmatpush1.bf16.msra.mxu0 0
        %581 = vmatprep.subr.bf16.mxu0 0
        %582 = vmatpush1.bf16.msra.mxu0 0
        %583 = vmatprep.subr.bf16.mxu0 0
        %584 = vmatpush1.bf16.msra.mxu0 0
        %585 = vmatprep.subr.bf16.mxu0 0
        %586 = vmatpush1.bf16.msra.mxu0 0
        %587 = vmatprep.subr.bf16.mxu0 0
        %588 = vmatpush1.bf16.msra.mxu0 0
        %589 = vmatprep.subr.bf16.mxu0 0
        %590 = vmatpush1.bf16.msra.mxu0 0
        %591 = vmatprep.subr.bf16.mxu0 0
        %592 = vmatpush1.bf16.msra.mxu0 0
        %593 = vmatprep.subr.bf16.mxu0 0
        %594 = vmatpush1.bf16.msra.mxu0 0
        %595 = vmatprep.subr.bf16.mxu0 0
        %596 = vmatpush1.bf16.msra.mxu0 0
        %597 = vmatprep.subr.bf16.mxu0 0
        %598 = vmatpush1.bf16.msra.mxu0 0
        %599 = vmatprep.subr.bf16.mxu0 0
        %600 = vmatpush1.bf16.msra.mxu0 0
        %601 = vmatprep.subr.bf16.mxu0 0
        %602 = vmatpush1.bf16.msra.mxu0 0
        %603 = vmatprep.mubr.bf16.mxu0 0
        %604 = vmatmul.mubr.bf16.gmra.mrb[0].mxu0 %v435
        %v605 = vpop.f32.mrb[0].mxu0
        %v606 = vadd.f32 0.0, %v605
        %v607 = vpop.f32.mrb[0].mxu0
        %v608 = vadd.f32 0.0, %v607
        %v609 = vpop.f32.mrb[0].mxu0
        %v610 = vadd.f32 0.0, %v609
        %v611 = vpop.f32.mrb[0].mxu0
        %v612 = vadd.f32 0.0, %v611
        %613 = vmatprep.mubr.bf16.mxu0 0
        %614 = vmatmul.mubr.bf16.gmra.mrb[0].mxu0 %v438
        %v615 = vpop.f32.mrb[0].mxu0
        %v616 = vadd.f32 0.0, %v615
        %v617 = vpop.f32.mrb[0].mxu0
        %v618 = vadd.f32 0.0, %v617
        %v619 = vpop.f32.mrb[0].mxu0
        %v620 = vadd.f32 0.0, %v619
        %v621 = vpop.f32.mrb[0].mxu0
        %v622 = vadd.f32 0.0, %v621
        %623 = vmatprep.mubr.bf16.mxu0 0
        %624 = vmatmul.mubr.bf16.gmra.mrb[0].mxu0 %v441
        %v625 = vpop.f32.mrb[0].mxu0
        %v626 = vadd.f32 0.0, %v625
        %v627 = vpop.f32.mrb[0].mxu0
        %v628 = vadd.f32 0.0, %v627
        %v629 = vpop.f32.mrb[0].mxu0
        %v630 = vadd.f32 0.0, %v629
        %v631 = vpop.f32.mrb[0].mxu0
        %v632 = vadd.f32 0.0, %v631
        %633 = vmatprep.mubr.bf16.mxu0 0
        %634 = vmatmul.mubr.bf16.gmra.mrb[0].mxu0 %v444
        %v635 = vpop.f32.mrb[0].mxu0
        %v636 = vadd.f32 0.0, %v635
        %v637 = vpop.f32.mrb[0].mxu0
        %v638 = vadd.f32 0.0, %v637
        %v639 = vpop.f32.mrb[0].mxu0
        %v640 = vadd.f32 0.0, %v639
        %v641 = vpop.f32.mrb[0].mxu0
        %v642 = vadd.f32 0.0, %v641
        %643 = vmatprep.mubr.bf16.mxu0 0
        %644 = vmatmul.mubr.bf16.gmra.mrb[0].mxu0 %v447
        %v645 = vpop.f32.mrb[0].mxu0
        %v646 = vadd.f32 0.0, %v645
        %v647 = vpop.f32.mrb[0].mxu0
        %v648 = vadd.f32 0.0, %v647
        %v649 = vpop.f32.mrb[0].mxu0
        %v650 = vadd.f32 0.0, %v649
        %v651 = vpop.f32.mrb[0].mxu0
        %v652 = vadd.f32 0.0, %v651
        %653 = vmatprep.mubr.bf16.mxu0 0
        %654 = vmatmul.mubr.bf16.gmra.mrb[0].mxu0 %v450
        %v655 = vpop.f32.mrb[0].mxu0
        %v656 = vadd.f32 0.0, %v655
        %v657 = vpop.f32.mrb[0].mxu0
        %v658 = vadd.f32 0.0, %v657
        %v659 = vpop.f32.mrb[0].mxu0
        %v660 = vadd.f32 0.0, %v659
        %v661 = vpop.f32.mrb[0].mxu0
        %v662 = vadd.f32 0.0, %v661
        %663 = vmatprep.mubr.bf16.mxu0 0
        %664 = vmatmul.mubr.bf16.gmra.mrb[0].mxu0 %v453
        %v665 = vpop.f32.mrb[0].mxu0
        %v666 = vadd.f32 0.0, %v665
        %v667 = vpop.f32.mrb[0].mxu0
        %v668 = vadd.f32 0.0, %v667
        %v669 = vpop.f32.mrb[0].mxu0
        %v670 = vadd.f32 0.0, %v669
        %v671 = vpop.f32.mrb[0].mxu0
        %v672 = vadd.f32 0.0, %v671
        %673 = vmatprep.mubr.bf16.mxu0 0
        %674 = vmatmul.mubr.bf16.gmra.mrb[0].mxu0 %v456
        %v675 = vpop.f32.mrb[0].mxu0
        %v676 = vadd.f32 0.0, %v675
        %v677 = vpop.f32.mrb[0].mxu0
        %v678 = vadd.f32 0.0, %v677
        %v679 = vpop.f32.mrb[0].mxu0
        %v680 = vadd.f32 0.0, %v679
        %v681 = vpop.f32.mrb[0].mxu0
        %v682 = vadd.f32 0.0, %v681
        %683 = vdwg.mxu0
        %684 = vmatprep.subr.bf16.mxu0 %v390
        %685 = vmatpush1.bf16.msra.mxu0 %v389
        %686 = vmatprep.subr.bf16.mxu0 %v396
        %687 = vmatpush1.bf16.msra.mxu0 %v395
        %688 = vmatprep.subr.bf16.mxu0 %v402
        %689 = vmatpush1.bf16.msra.mxu0 %v401
        %690 = vmatprep.subr.bf16.mxu0 %v408
        %691 = vmatpush1.bf16.msra.mxu0 %v407
        %692 = vmatprep.subr.bf16.mxu0 0
        %693 = vmatpush1.bf16.msra.mxu0 0
        %694 = vmatprep.subr.bf16.mxu0 0
        %695 = vmatpush1.bf16.msra.mxu0 0
        %696 = vmatprep.subr.bf16.mxu0 0
        %697 = vmatpush1.bf16.msra.mxu0 0
        %698 = vmatprep.subr.bf16.mxu0 0
        %699 = vmatpush1.bf16.msra.mxu0 0
        %700 = vmatprep.subr.bf16.mxu0 0
        %701 = vmatpush1.bf16.msra.mxu0 0
        %702 = vmatprep.subr.bf16.mxu0 0
        %703 = vmatpush1.bf16.msra.mxu0 0
        %704 = vmatprep.subr.bf16.mxu0 0
        %705 = vmatpush1.bf16.msra.mxu0 0
        %706 = vmatprep.subr.bf16.mxu0 0
        %707 = vmatpush1.bf16.msra.mxu0 0
        %708 = vmatprep.subr.bf16.mxu0 0
        %709 = vmatpush1.bf16.msra.mxu0 0
        %710 = vmatprep.subr.bf16.mxu0 0
        %711 = vmatpush1.bf16.msra.mxu0 0
        %712 = vmatprep.subr.bf16.mxu0 0
        %713 = vmatpush1.bf16.msra.mxu0 0
        %714 = vmatprep.subr.bf16.mxu0 0
        %715 = vmatpush1.bf16.msra.mxu0 0
        %716 = vmatprep.mubr.bf16.mxu0 0
        %717 = vmatmul.mubr.bf16.gmra.mrb[0].mxu0 %v435
        %v718 = vpop.f32.mrb[0].mxu0
        %v719 = vadd.f32 0.0, %v718
        %v720 = vpop.f32.mrb[0].mxu0
        %v721 = vadd.f32 0.0, %v720
        %v722 = vpop.f32.mrb[0].mxu0
        %v723 = vadd.f32 0.0, %v722
        %v724 = vpop.f32.mrb[0].mxu0
        %v725 = vadd.f32 0.0, %v724
        %726 = vmatprep.mubr.bf16.mxu0 0
        %727 = vmatmul.mubr.bf16.gmra.mrb[0].mxu0 %v438
        %v728 = vpop.f32.mrb[0].mxu0
        %v729 = vadd.f32 0.0, %v728
        %v730 = vpop.f32.mrb[0].mxu0
        %v731 = vadd.f32 0.0, %v730
        %v732 = vpop.f32.mrb[0].mxu0
        %v733 = vadd.f32 0.0, %v732
        %v734 = vpop.f32.mrb[0].mxu0
        %v735 = vadd.f32 0.0, %v734
        %736 = vmatprep.mubr.bf16.mxu0 0
        %737 = vmatmul.mubr.bf16.gmra.mrb[0].mxu0 %v441
        %v738 = vpop.f32.mrb[0].mxu0
        %v739 = vadd.f32 0.0, %v738
        %v740 = vpop.f32.mrb[0].mxu0
        %v741 = vadd.f32 0.0, %v740
        %v742 = vpop.f32.mrb[0].mxu0
        %v743 = vadd.f32 0.0, %v742
        %v744 = vpop.f32.mrb[0].mxu0
        %v745 = vadd.f32 0.0, %v744
        %746 = vmatprep.mubr.bf16.mxu0 0
        %747 = vmatmul.mubr.bf16.gmra.mrb[0].mxu0 %v444
        %v748 = vpop.f32.mrb[0].mxu0
        %v749 = vadd.f32 0.0, %v748
        %v750 = vpop.f32.mrb[0].mxu0
        %v751 = vadd.f32 0.0, %v750
        %v752 = vpop.f32.mrb[0].mxu0
        %v753 = vadd.f32 0.0, %v752
        %v754 = vpop.f32.mrb[0].mxu0
        %v755 = vadd.f32 0.0, %v754
        %756 = vmatprep.mubr.bf16.mxu0 0
        %757 = vmatmul.mubr.bf16.gmra.mrb[0].mxu0 %v447
        %v758 = vpop.f32.mrb[0].mxu0
        %v759 = vadd.f32 0.0, %v758
        %v760 = vpop.f32.mrb[0].mxu0
        %v761 = vadd.f32 0.0, %v760
        %v762 = vpop.f32.mrb[0].mxu0
        %v763 = vadd.f32 0.0, %v762
        %v764 = vpop.f32.mrb[0].mxu0
        %v765 = vadd.f32 0.0, %v764
        %766 = vmatprep.mubr.bf16.mxu0 0
        %767 = vmatmul.mubr.bf16.gmra.mrb[0].mxu0 %v450
        %v768 = vpop.f32.mrb[0].mxu0
        %v769 = vadd.f32 0.0, %v768
        %v770 = vpop.f32.mrb[0].mxu0
        %v771 = vadd.f32 0.0, %v770
        %v772 = vpop.f32.mrb[0].mxu0
        %v773 = vadd.f32 0.0, %v772
        %v774 = vpop.f32.mrb[0].mxu0
        %v775 = vadd.f32 0.0, %v774
        %776 = vmatprep.mubr.bf16.mxu0 0
        %777 = vmatmul.mubr.bf16.gmra.mrb[0].mxu0 %v453
        %v778 = vpop.f32.mrb[0].mxu0
        %v779 = vadd.f32 0.0, %v778
        %v780 = vpop.f32.mrb[0].mxu0
        %v781 = vadd.f32 0.0, %v780
        %v782 = vpop.f32.mrb[0].mxu0
        %v783 = vadd.f32 0.0, %v782
        %v784 = vpop.f32.mrb[0].mxu0
        %v785 = vadd.f32 0.0, %v784
        %786 = vmatprep.mubr.bf16.mxu0 0
        %787 = vmatmul.mubr.bf16.gmra.mrb[0].mxu0 %v456
        %v788 = vpop.f32.mrb[0].mxu0
        %v789 = vadd.f32 0.0, %v788
        %v790 = vpop.f32.mrb[0].mxu0
        %v791 = vadd.f32 0.0, %v790
        %v792 = vpop.f32.mrb[0].mxu0
        %v793 = vadd.f32 0.0, %v792
        %v794 = vpop.f32.mrb[0].mxu0
        %v795 = vadd.f32 0.0, %v794
        %796 = vdwg.mxu0
        %v797 = vld [vmem:[%s254] sm:$0xff]
        %v798 = vld [vmem:[%s254 + $0x8] sm:$0xff]
        %v799 = vld [vmem:[%s254 + $0x10] sm:$0xff]
        %v800 = vld [vmem:[%s254 + $0x18] sm:$0xff]
        %v801 = vld [vmem:[%s254 + $0x20] sm:$0xff]
        %v802 = vld [vmem:[%s254 + $0x28] sm:$0xff]
        %v803 = vld [vmem:[%s254 + $0x30] sm:$0xff]
        %v804 = vld [vmem:[%s254 + $0x38] sm:$0xff]
        %v805 = vld [vmem:[%s254 + $0x40] sm:$0xff]
        %v806 = vld [vmem:[%s254 + $0x48] sm:$0xff]
        %v807 = vld [vmem:[%s254 + $0x50] sm:$0xff]
        %v808 = vld [vmem:[%s254 + $0x58] sm:$0xff]
        %v809 = vld [vmem:[%s254 + $0x60] sm:$0xff]
        %v810 = vld [vmem:[%s254 + $0x68] sm:$0xff]
        %v811 = vld [vmem:[%s254 + $0x70] sm:$0xff]
        %v812 = vld [vmem:[%s254 + $0x78] sm:$0xff]
        %v813 = vmul.f32 %v797, -1e+09
        %v814 = vmul.f32 %v798, -1e+09
        %v815 = vmul.f32 %v799, -1e+09
        %v816 = vmul.f32 %v800, -1e+09
        %v817 = vmul.f32 %v801, -1e+09
        %v818 = vmul.f32 %v802, -1e+09
        %v819 = vmul.f32 %v803, -1e+09
        %v820 = vmul.f32 %v804, -1e+09
        %v821 = vmul.f32 %v805, -1e+09
        %v822 = vmul.f32 %v806, -1e+09
        %v823 = vmul.f32 %v807, -1e+09
        %v824 = vmul.f32 %v808, -1e+09
        %v825 = vmul.f32 %v809, -1e+09
        %v826 = vmul.f32 %v810, -1e+09
        %v827 = vmul.f32 %v811, -1e+09
        %v828 = vmul.f32 %v812, -1e+09
        %v829 = vpack.c.bf16 %v493, %v493
        %v830 = vpack.c.bf16 %v497, %v497
        %v831 = vpack.c.bf16 %v503, %v503
        %v832 = vpack.c.bf16 %v507, %v507
        %v833 = vpack.c.bf16 %v513, %v513
        %v834 = vpack.c.bf16 %v517, %v517
        %v835 = vpack.c.bf16 %v523, %v523
        %v836 = vpack.c.bf16 %v527, %v527
        %v837 = vpack.c.bf16 %v533, %v533
        %v838 = vpack.c.bf16 %v537, %v537
        %v839 = vpack.c.bf16 %v543, %v543
        %v840 = vpack.c.bf16 %v547, %v547
        %v841 = vpack.c.bf16 %v553, %v553
        %v842 = vpack.c.bf16 %v557, %v557
        %v843 = vpack.c.bf16 %v563, %v563
        %v844 = vpack.c.bf16 %v567, %v567
        %v845 = vpack.c.bf16 %v606, %v606
        %v846 = vpack.c.bf16 %v610, %v610
        %v847 = vpack.c.bf16 %v616, %v616
        %v848 = vpack.c.bf16 %v620, %v620
        %v849 = vpack.c.bf16 %v626, %v626
        %v850 = vpack.c.bf16 %v630, %v630
        %v851 = vpack.c.bf16 %v636, %v636
        %v852 = vpack.c.bf16 %v640, %v640
        %v853 = vpack.c.bf16 %v646, %v646
        %v854 = vpack.c.bf16 %v650, %v650
        %v855 = vpack.c.bf16 %v656, %v656
        %v856 = vpack.c.bf16 %v660, %v660
        %v857 = vpack.c.bf16 %v666, %v666
        %v858 = vpack.c.bf16 %v670, %v670
        %v859 = vpack.c.bf16 %v676, %v676
        %v860 = vpack.c.bf16 %v680, %v680
        %v861 = vpack.c.bf16 %v719, %v719
        %v862 = vpack.c.bf16 %v723, %v723
        %v863 = vpack.c.bf16 %v729, %v729
        %v864 = vpack.c.bf16 %v733, %v733
        %v865 = vpack.c.bf16 %v739, %v739
        %v866 = vpack.c.bf16 %v743, %v743
        %v867 = vpack.c.bf16 %v749, %v749
        %v868 = vpack.c.bf16 %v753, %v753
        %v869 = vpack.c.bf16 %v759, %v759
        %v870 = vpack.c.bf16 %v763, %v763
        %v871 = vpack.c.bf16 %v769, %v769
        %v872 = vpack.c.bf16 %v773, %v773
        %v873 = vpack.c.bf16 %v779, %v779
        %v874 = vpack.c.bf16 %v783, %v783
        %v875 = vpack.c.bf16 %v789, %v789
        %v876 = vpack.c.bf16 %v793, %v793
        %v878 = vsel %vm433, %v829, 0
        %v881 = vsel %vm433, %v845, 0
        %883 = vmatprep.subr.bf16.mxu0 0
        %884 = vmatpush1.bf16.xpose.msra.mxu0 %v881
        %885 = vmatprep.subr.bf16.mxu0 0
        %886 = vmatpush1.bf16.xpose.msra.mxu0 0
        %887 = vmatprep.subr.bf16.mxu0 0
        %888 = vmatpush1.bf16.xpose.msra.mxu0 0
        %889 = vmatprep.subr.bf16.mxu0 0
        %890 = vmatpush1.bf16.xpose.msra.mxu0 0
        %891 = vmatprep.subr.bf16.mxu0 0
        %892 = vmatpush1.bf16.xpose.msra.mxu0 0
        %893 = vmatprep.subr.bf16.mxu0 0
        %894 = vmatpush1.bf16.xpose.msra.mxu0 0
        %895 = vmatprep.subr.bf16.mxu0 0
        %896 = vmatpush1.bf16.xpose.msra.mxu0 0
        %897 = vmatprep.subr.bf16.mxu0 0
        %898 = vmatpush1.bf16.xpose.msra.mxu0 0
        %899 = vmatprep.subr.bf16.mxu0 0
        %900 = vmatpush1.bf16.xpose.msra.mxu0 0
        %901 = vmatprep.subr.bf16.mxu0 0
        %902 = vmatpush1.bf16.xpose.msra.mxu0 0
        %903 = vmatprep.subr.bf16.mxu0 0
        %904 = vmatpush1.bf16.xpose.msra.mxu0 0
        %905 = vmatprep.subr.bf16.mxu0 0
        %906 = vmatpush1.bf16.xpose.msra.mxu0 0
        %907 = vmatprep.subr.bf16.mxu0 0
        %908 = vmatpush1.bf16.xpose.msra.mxu0 0
        %909 = vmatprep.subr.bf16.mxu0 0
        %910 = vmatpush1.bf16.xpose.msra.mxu0 0
        %911 = vmatprep.subr.bf16.mxu0 0
        %912 = vmatpush1.bf16.xpose.msra.mxu0 0
        %913 = vmatprep.subr.bf16.mxu0 0
        %914 = vmatpush1.bf16.xpose.msra.mxu0 0
        %915 = vmatprep.mubr.bf16.mxu0 0
        %916 = vmatmul.mubr.bf16.gmra.mrb[0].mxu0 %v878
        %v917 = vpop.f32.mrb[0].mxu0
        %v918 = vadd.f32 0.0, %v917
        %v919 = vpop.f32.mrb[0].mxu0
        %v920 = vpop.f32.mrb[0].mxu0
        %v921 = vpop.f32.mrb[0].mxu0
        %922 = vdwg.mxu0
        %v924 = vsel %vm433, %v830, 0
        %v927 = vsel %vm433, %v846, 0
        %929 = vmatprep.subr.bf16.mxu0 0
        %930 = vmatpush1.bf16.xpose.msra.mxu0 %v927
        %931 = vmatprep.subr.bf16.mxu0 0
        %932 = vmatpush1.bf16.xpose.msra.mxu0 0
        %933 = vmatprep.subr.bf16.mxu0 0
        %934 = vmatpush1.bf16.xpose.msra.mxu0 0
        %935 = vmatprep.subr.bf16.mxu0 0
        %936 = vmatpush1.bf16.xpose.msra.mxu0 0
        %937 = vmatprep.subr.bf16.mxu0 0
        %938 = vmatpush1.bf16.xpose.msra.mxu0 0
        %939 = vmatprep.subr.bf16.mxu0 0
        %940 = vmatpush1.bf16.xpose.msra.mxu0 0
        %941 = vmatprep.subr.bf16.mxu0 0
        %942 = vmatpush1.bf16.xpose.msra.mxu0 0
        %943 = vmatprep.subr.bf16.mxu0 0
        %944 = vmatpush1.bf16.xpose.msra.mxu0 0
        %945 = vmatprep.subr.bf16.mxu0 0
        %946 = vmatpush1.bf16.xpose.msra.mxu0 0
        %947 = vmatprep.subr.bf16.mxu0 0
        %948 = vmatpush1.bf16.xpose.msra.mxu0 0
        %949 = vmatprep.subr.bf16.mxu0 0
        %950 = vmatpush1.bf16.xpose.msra.mxu0 0
        %951 = vmatprep.subr.bf16.mxu0 0
        %952 = vmatpush1.bf16.xpose.msra.mxu0 0
        %953 = vmatprep.subr.bf16.mxu0 0
        %954 = vmatpush1.bf16.xpose.msra.mxu0 0
        %955 = vmatprep.subr.bf16.mxu0 0
        %956 = vmatpush1.bf16.xpose.msra.mxu0 0
        %957 = vmatprep.subr.bf16.mxu0 0
        %958 = vmatpush1.bf16.xpose.msra.mxu0 0
        %959 = vmatprep.subr.bf16.mxu0 0
        %960 = vmatpush1.bf16.xpose.msra.mxu0 0
        %961 = vmatprep.mubr.bf16.mxu0 0
        %962 = vmatmul.mubr.bf16.gmra.mrb[0].mxu0 %v924
        %v963 = vpop.f32.mrb[0].mxu0
        %v964 = vadd.f32 0.0, %v963
        %v965 = vpop.f32.mrb[0].mxu0
        %v966 = vpop.f32.mrb[0].mxu0
        %v967 = vpop.f32.mrb[0].mxu0
        %968 = vdwg.mxu0
        %v970 = vsel %vm433, %v831, 0
        %v973 = vsel %vm433, %v847, 0
        %975 = vmatprep.subr.bf16.mxu0 0
        %976 = vmatpush1.bf16.xpose.msra.mxu0 %v973
        %977 = vmatprep.subr.bf16.mxu0 0
        %978 = vmatpush1.bf16.xpose.msra.mxu0 0
        %979 = vmatprep.subr.bf16.mxu0 0
        %980 = vmatpush1.bf16.xpose.msra.mxu0 0
        %981 = vmatprep.subr.bf16.mxu0 0
        %982 = vmatpush1.bf16.xpose.msra.mxu0 0
        %983 = vmatprep.subr.bf16.mxu0 0
        %984 = vmatpush1.bf16.xpose.msra.mxu0 0
        %985 = vmatprep.subr.bf16.mxu0 0
        %986 = vmatpush1.bf16.xpose.msra.mxu0 0
        %987 = vmatprep.subr.bf16.mxu0 0
        %988 = vmatpush1.bf16.xpose.msra.mxu0 0
        %989 = vmatprep.subr.bf16.mxu0 0
        %990 = vmatpush1.bf16.xpose.msra.mxu0 0
        %991 = vmatprep.subr.bf16.mxu0 0
        %992 = vmatpush1.bf16.xpose.msra.mxu0 0
        %993 = vmatprep.subr.bf16.mxu0 0
        %994 = vmatpush1.bf16.xpose.msra.mxu0 0
        %995 = vmatprep.subr.bf16.mxu0 0
        %996 = vmatpush1.bf16.xpose.msra.mxu0 0
        %997 = vmatprep.subr.bf16.mxu0 0
        %998 = vmatpush1.bf16.xpose.msra.mxu0 0
        %999 = vmatprep.subr.bf16.mxu0 0
        %1000 = vmatpush1.bf16.xpose.msra.mxu0 0
        %1001 = vmatprep.subr.bf16.mxu0 0
        %1002 = vmatpush1.bf16.xpose.msra.mxu0 0
        %1003 = vmatprep.subr.bf16.mxu0 0
        %1004 = vmatpush1.bf16.xpose.msra.mxu0 0
        %1005 = vmatprep.subr.bf16.mxu0 0
        %1006 = vmatpush1.bf16.xpose.msra.mxu0 0
        %1007 = vmatprep.mubr.bf16.mxu0 0
        %1008 = vmatmul.mubr.bf16.gmra.mrb[0].mxu0 %v970
        %v1009 = vpop.f32.mrb[0].mxu0
        %v1010 = vadd.f32 0.0, %v1009
        %v1011 = vpop.f32.mrb[0].mxu0
        %v1012 = vpop.f32.mrb[0].mxu0
        %v1013 = vpop.f32.mrb[0].mxu0
        %1014 = vdwg.mxu0
        %v1016 = vsel %vm433, %v832, 0
        %v1019 = vsel %vm433, %v848, 0
        %1021 = vmatprep.subr.bf16.mxu0 0
        %1022 = vmatpush1.bf16.xpose.msra.mxu0 %v1019
        %1023 = vmatprep.subr.bf16.mxu0 0
        %1024 = vmatpush1.bf16.xpose.msra.mxu0 0
        %1025 = vmatprep.subr.bf16.mxu0 0
        %1026 = vmatpush1.bf16.xpose.msra.mxu0 0
        %1027 = vmatprep.subr.bf16.mxu0 0
        %1028 = vmatpush1.bf16.xpose.msra.mxu0 0
        %1029 = vmatprep.subr.bf16.mxu0 0
        %1030 = vmatpush1.bf16.xpose.msra.mxu0 0
        %1031 = vmatprep.subr.bf16.mxu0 0
        %1032 = vmatpush1.bf16.xpose.msra.mxu0 0
        %1033 = vmatprep.subr.bf16.mxu0 0
        %1034 = vmatpush1.bf16.xpose.msra.mxu0 0
        %1035 = vmatprep.subr.bf16.mxu0 0
        %1036 = vmatpush1.bf16.xpose.msra.mxu0 0
        %1037 = vmatprep.subr.bf16.mxu0 0
        %1038 = vmatpush1.bf16.xpose.msra.mxu0 0
        %1039 = vmatprep.subr.bf16.mxu0 0
        %1040 = vmatpush1.bf16.xpose.msra.mxu0 0
        %1041 = vmatprep.subr.bf16.mxu0 0
        %1042 = vmatpush1.bf16.xpose.msra.mxu0 0
        %1043 = vmatprep.subr.bf16.mxu0 0
        %1044 = vmatpush1.bf16.xpose.msra.mxu0 0
        %1045 = vmatprep.subr.bf16.mxu0 0
        %1046 = vmatpush1.bf16.xpose.msra.mxu0 0
        %1047 = vmatprep.subr.bf16.mxu0 0
        %1048 = vmatpush1.bf16.xpose.msra.mxu0 0
        %1049 = vmatprep.subr.bf16.mxu0 0
        %1050 = vmatpush1.bf16.xpose.msra.mxu0 0
        %1051 = vmatprep.subr.bf16.mxu0 0
        %1052 = vmatpush1.bf16.xpose.msra.mxu0 0
        %1053 = vmatprep.mubr.bf16.mxu0 0
        %1054 = vmatmul.mubr.bf16.gmra.mrb[0].mxu0 %v1016
        %v1055 = vpop.f32.mrb[0].mxu0
        %v1056 = vadd.f32 0.0, %v1055
        %v1057 = vpop.f32.mrb[0].mxu0
        %v1058 = vpop.f32.mrb[0].mxu0
        %v1059 = vpop.f32.mrb[0].mxu0
        %1060 = vdwg.mxu0
        %v1062 = vsel %vm433, %v833, 0
        %v1065 = vsel %vm433, %v849, 0
        %1067 = vmatprep.subr.bf16.mxu0 0
        %1068 = vmatpush1.bf16.xpose.msra.mxu0 %v1065
        %1069 = vmatprep.subr.bf16.mxu0 0
        %1070 = vmatpush1.bf16.xpose.msra.mxu0 0
        %1071 = vmatprep.subr.bf16.mxu0 0
        %1072 = vmatpush1.bf16.xpose.msra.mxu0 0
        %1073 = vmatprep.subr.bf16.mxu0 0
        %1074 = vmatpush1.bf16.xpose.msra.mxu0 0
        %1075 = vmatprep.subr.bf16.mxu0 0
        %1076 = vmatpush1.bf16.xpose.msra.mxu0 0
        %1077 = vmatprep.subr.bf16.mxu0 0
        %1078 = vmatpush1.bf16.xpose.msra.mxu0 0
        %1079 = vmatprep.subr.bf16.mxu0 0
        %1080 = vmatpush1.bf16.xpose.msra.mxu0 0
        %1081 = vmatprep.subr.bf16.mxu0 0
        %1082 = vmatpush1.bf16.xpose.msra.mxu0 0
        %1083 = vmatprep.subr.bf16.mxu0 0
        %1084 = vmatpush1.bf16.xpose.msra.mxu0 0
        %1085 = vmatprep.subr.bf16.mxu0 0
        %1086 = vmatpush1.bf16.xpose.msra.mxu0 0
        %1087 = vmatprep.subr.bf16.mxu0 0
        %1088 = vmatpush1.bf16.xpose.msra.mxu0 0
        %1089 = vmatprep.subr.bf16.mxu0 0
        %1090 = vmatpush1.bf16.xpose.msra.mxu0 0
        %1091 = vmatprep.subr.bf16.mxu0 0
        %1092 = vmatpush1.bf16.xpose.msra.mxu0 0
        %1093 = vmatprep.subr.bf16.mxu0 0
        %1094 = vmatpush1.bf16.xpose.msra.mxu0 0
        %1095 = vmatprep.subr.bf16.mxu0 0
        %1096 = vmatpush1.bf16.xpose.msra.mxu0 0
        %1097 = vmatprep.subr.bf16.mxu0 0
        %1098 = vmatpush1.bf16.xpose.msra.mxu0 0
        %1099 = vmatprep.mubr.bf16.mxu0 0
        %1100 = vmatmul.mubr.bf16.gmra.mrb[0].mxu0 %v1062
        %v1101 = vpop.f32.mrb[0].mxu0
        %v1102 = vadd.f32 0.0, %v1101
        %v1103 = vpop.f32.mrb[0].mxu0
        %v1104 = vpop.f32.mrb[0].mxu0
        %v1105 = vpop.f32.mrb[0].mxu0
        %1106 = vdwg.mxu0
        %v1108 = vsel %vm433, %v834, 0
        %v1111 = vsel %vm433, %v850, 0
        %1113 = vmatprep.subr.bf16.mxu0 0
        %1114 = vmatpush1.bf16.xpose.msra.mxu0 %v1111
        %1115 = vmatprep.subr.bf16.mxu0 0
        %1116 = vmatpush1.bf16.xpose.msra.mxu0 0
        %1117 = vmatprep.subr.bf16.mxu0 0
        %1118 = vmatpush1.bf16.xpose.msra.mxu0 0
        %1119 = vmatprep.subr.bf16.mxu0 0
        %1120 = vmatpush1.bf16.xpose.msra.mxu0 0
        %1121 = vmatprep.subr.bf16.mxu0 0
        %1122 = vmatpush1.bf16.xpose.msra.mxu0 0
        %1123 = vmatprep.subr.bf16.mxu0 0
        %1124 = vmatpush1.bf16.xpose.msra.mxu0 0
        %1125 = vmatprep.subr.bf16.mxu0 0
        %1126 = vmatpush1.bf16.xpose.msra.mxu0 0
        %1127 = vmatprep.subr.bf16.mxu0 0
        %1128 = vmatpush1.bf16.xpose.msra.mxu0 0
        %1129 = vmatprep.subr.bf16.mxu0 0
        %1130 = vmatpush1.bf16.xpose.msra.mxu0 0
        %1131 = vmatprep.subr.bf16.mxu0 0
        %1132 = vmatpush1.bf16.xpose.msra.mxu0 0
        %1133 = vmatprep.subr.bf16.mxu0 0
        %1134 = vmatpush1.bf16.xpose.msra.mxu0 0
        %1135 = vmatprep.subr.bf16.mxu0 0
        %1136 = vmatpush1.bf16.xpose.msra.mxu0 0
        %1137 = vmatprep.subr.bf16.mxu0 0
        %1138 = vmatpush1.bf16.xpose.msra.mxu0 0
        %1139 = vmatprep.subr.bf16.mxu0 0
        %1140 = vmatpush1.bf16.xpose.msra.mxu0 0
        %1141 = vmatprep.subr.bf16.mxu0 0
        %1142 = vmatpush1.bf16.xpose.msra.mxu0 0
        %1143 = vmatprep.subr.bf16.mxu0 0
        %1144 = vmatpush1.bf16.xpose.msra.mxu0 0
        %1145 = vmatprep.mubr.bf16.mxu0 0
        %1146 = vmatmul.mubr.bf16.gmra.mrb[0].mxu0 %v1108
        %v1147 = vpop.f32.mrb[0].mxu0
        %v1148 = vadd.f32 0.0, %v1147
        %v1149 = vpop.f32.mrb[0].mxu0
        %v1150 = vpop.f32.mrb[0].mxu0
        %v1151 = vpop.f32.mrb[0].mxu0
        %1152 = vdwg.mxu0
        %v1154 = vsel %vm433, %v835, 0
        %v1157 = vsel %vm433, %v851, 0
        %1159 = vmatprep.subr.bf16.mxu0 0
        %1160 = vmatpush1.bf16.xpose.msra.mxu0 %v1157
        %1161 = vmatprep.subr.bf16.mxu0 0
        %1162 = vmatpush1.bf16.xpose.msra.mxu0 0
        %1163 = vmatprep.subr.bf16.mxu0 0
        %1164 = vmatpush1.bf16.xpose.msra.mxu0 0
        %1165 = vmatprep.subr.bf16.mxu0 0
        %1166 = vmatpush1.bf16.xpose.msra.mxu0 0
        %1167 = vmatprep.subr.bf16.mxu0 0
        %1168 = vmatpush1.bf16.xpose.msra.mxu0 0
        %1169 = vmatprep.subr.bf16.mxu0 0
        %1170 = vmatpush1.bf16.xpose.msra.mxu0 0
        %1171 = vmatprep.subr.bf16.mxu0 0
        %1172 = vmatpush1.bf16.xpose.msra.mxu0 0
        %1173 = vmatprep.subr.bf16.mxu0 0
        %1174 = vmatpush1.bf16.xpose.msra.mxu0 0
        %1175 = vmatprep.subr.bf16.mxu0 0
        %1176 = vmatpush1.bf16.xpose.msra.mxu0 0
        %1177 = vmatprep.subr.bf16.mxu0 0
        %1178 = vmatpush1.bf16.xpose.msra.mxu0 0
        %1179 = vmatprep.subr.bf16.mxu0 0
        %1180 = vmatpush1.bf16.xpose.msra.mxu0 0
        %1181 = vmatprep.subr.bf16.mxu0 0
        %1182 = vmatpush1.bf16.xpose.msra.mxu0 0
        %1183 = vmatprep.subr.bf16.mxu0 0
        %1184 = vmatpush1.bf16.xpose.msra.mxu0 0
        %1185 = vmatprep.subr.bf16.mxu0 0
        %1186 = vmatpush1.bf16.xpose.msra.mxu0 0
        %1187 = vmatprep.subr.bf16.mxu0 0
        %1188 = vmatpush1.bf16.xpose.msra.mxu0 0
        %1189 = vmatprep.subr.bf16.mxu0 0
        %1190 = vmatpush1.bf16.xpose.msra.mxu0 0
        %1191 = vmatprep.mubr.bf16.mxu0 0
        %1192 = vmatmul.mubr.bf16.gmra.mrb[0].mxu0 %v1154
        %v1193 = vpop.f32.mrb[0].mxu0
        %v1194 = vadd.f32 0.0, %v1193
        %v1195 = vpop.f32.mrb[0].mxu0
        %v1196 = vpop.f32.mrb[0].mxu0
        %v1197 = vpop.f32.mrb[0].mxu0
        %1198 = vdwg.mxu0
        %v1200 = vsel %vm433, %v836, 0
        %v1203 = vsel %vm433, %v852, 0
        %1205 = vmatprep.subr.bf16.mxu0 0
        %1206 = vmatpush1.bf16.xpose.msra.mxu0 %v1203
        %1207 = vmatprep.subr.bf16.mxu0 0
        %1208 = vmatpush1.bf16.xpose.msra.mxu0 0
        %1209 = vmatprep.subr.bf16.mxu0 0
        %1210 = vmatpush1.bf16.xpose.msra.mxu0 0
        %1211 = vmatprep.subr.bf16.mxu0 0
        %1212 = vmatpush1.bf16.xpose.msra.mxu0 0
        %1213 = vmatprep.subr.bf16.mxu0 0
        %1214 = vmatpush1.bf16.xpose.msra.mxu0 0
        %1215 = vmatprep.subr.bf16.mxu0 0
        %1216 = vmatpush1.bf16.xpose.msra.mxu0 0
        %1217 = vmatprep.subr.bf16.mxu0 0
        %1218 = vmatpush1.bf16.xpose.msra.mxu0 0
        %1219 = vmatprep.subr.bf16.mxu0 0
        %1220 = vmatpush1.bf16.xpose.msra.mxu0 0
        %1221 = vmatprep.subr.bf16.mxu0 0
        %1222 = vmatpush1.bf16.xpose.msra.mxu0 0
        %1223 = vmatprep.subr.bf16.mxu0 0
        %1224 = vmatpush1.bf16.xpose.msra.mxu0 0
        %1225 = vmatprep.subr.bf16.mxu0 0
        %1226 = vmatpush1.bf16.xpose.msra.mxu0 0
        %1227 = vmatprep.subr.bf16.mxu0 0
        %1228 = vmatpush1.bf16.xpose.msra.mxu0 0
        %1229 = vmatprep.subr.bf16.mxu0 0
        %1230 = vmatpush1.bf16.xpose.msra.mxu0 0
        %1231 = vmatprep.subr.bf16.mxu0 0
        %1232 = vmatpush1.bf16.xpose.msra.mxu0 0
        %1233 = vmatprep.subr.bf16.mxu0 0
        %1234 = vmatpush1.bf16.xpose.msra.mxu0 0
        %1235 = vmatprep.subr.bf16.mxu0 0
        %1236 = vmatpush1.bf16.xpose.msra.mxu0 0
        %1237 = vmatprep.mubr.bf16.mxu0 0
        %1238 = vmatmul.mubr.bf16.gmra.mrb[0].mxu0 %v1200
        %v1239 = vpop.f32.mrb[0].mxu0
        %v1240 = vadd.f32 0.0, %v1239
        %v1241 = vpop.f32.mrb[0].mxu0
        %v1242 = vpop.f32.mrb[0].mxu0
        %v1243 = vpop.f32.mrb[0].mxu0
        %1244 = vdwg.mxu0
        %v1246 = vsel %vm433, %v837, 0
        %v1249 = vsel %vm433, %v853, 0
        %1251 = vmatprep.subr.bf16.mxu0 0
        %1252 = vmatpush1.bf16.xpose.msra.mxu0 %v1249
        %1253 = vmatprep.subr.bf16.mxu0 0
        %1254 = vmatpush1.bf16.xpose.msra.mxu0 0
        %1255 = vmatprep.subr.bf16.mxu0 0
        %1256 = vmatpush1.bf16.xpose.msra.mxu0 0
        %1257 = vmatprep.subr.bf16.mxu0 0
        %1258 = vmatpush1.bf16.xpose.msra.mxu0 0
        %1259 = vmatprep.subr.bf16.mxu0 0
        %1260 = vmatpush1.bf16.xpose.msra.mxu0 0
        %1261 = vmatprep.subr.bf16.mxu0 0
        %1262 = vmatpush1.bf16.xpose.msra.mxu0 0
        %1263 = vmatprep.subr.bf16.mxu0 0
        %1264 = vmatpush1.bf16.xpose.msra.mxu0 0
        %1265 = vmatprep.subr.bf16.mxu0 0
        %1266 = vmatpush1.bf16.xpose.msra.mxu0 0
        %1267 = vmatprep.subr.bf16.mxu0 0
        %1268 = vmatpush1.bf16.xpose.msra.mxu0 0
        %1269 = vmatprep.subr.bf16.mxu0 0
        %1270 = vmatpush1.bf16.xpose.msra.mxu0 0
        %1271 = vmatprep.subr.bf16.mxu0 0
        %1272 = vmatpush1.bf16.xpose.msra.mxu0 0
        %1273 = vmatprep.subr.bf16.mxu0 0
        %1274 = vmatpush1.bf16.xpose.msra.mxu0 0
        %1275 = vmatprep.subr.bf16.mxu0 0
        %1276 = vmatpush1.bf16.xpose.msra.mxu0 0
        %1277 = vmatprep.subr.bf16.mxu0 0
        %1278 = vmatpush1.bf16.xpose.msra.mxu0 0
        %1279 = vmatprep.subr.bf16.mxu0 0
        %1280 = vmatpush1.bf16.xpose.msra.mxu0 0
        %1281 = vmatprep.subr.bf16.mxu0 0
        %1282 = vmatpush1.bf16.xpose.msra.mxu0 0
        %1283 = vmatprep.mubr.bf16.mxu0 0
        %1284 = vmatmul.mubr.bf16.gmra.mrb[0].mxu0 %v1246
        %v1285 = vpop.f32.mrb[0].mxu0
        %v1286 = vadd.f32 0.0, %v1285
        %v1287 = vpop.f32.mrb[0].mxu0
        %v1288 = vpop.f32.mrb[0].mxu0
        %v1289 = vpop.f32.mrb[0].mxu0
        %1290 = vdwg.mxu0
        %v1292 = vsel %vm433, %v838, 0
        %v1295 = vsel %vm433, %v854, 0
        %1297 = vmatprep.subr.bf16.mxu0 0
        %1298 = vmatpush1.bf16.xpose.msra.mxu0 %v1295
        %1299 = vmatprep.subr.bf16.mxu0 0
        %1300 = vmatpush1.bf16.xpose.msra.mxu0 0
        %1301 = vmatprep.subr.bf16.mxu0 0
        %1302 = vmatpush1.bf16.xpose.msra.mxu0 0
        %1303 = vmatprep.subr.bf16.mxu0 0
        %1304 = vmatpush1.bf16.xpose.msra.mxu0 0
        %1305 = vmatprep.subr.bf16.mxu0 0
        %1306 = vmatpush1.bf16.xpose.msra.mxu0 0
        %1307 = vmatprep.subr.bf16.mxu0 0
        %1308 = vmatpush1.bf16.xpose.msra.mxu0 0
        %1309 = vmatprep.subr.bf16.mxu0 0
        %1310 = vmatpush1.bf16.xpose.msra.mxu0 0
        %1311 = vmatprep.subr.bf16.mxu0 0
        %1312 = vmatpush1.bf16.xpose.msra.mxu0 0
        %1313 = vmatprep.subr.bf16.mxu0 0
        %1314 = vmatpush1.bf16.xpose.msra.mxu0 0
        %1315 = vmatprep.subr.bf16.mxu0 0
        %1316 = vmatpush1.bf16.xpose.msra.mxu0 0
        %1317 = vmatprep.subr.bf16.mxu0 0
        %1318 = vmatpush1.bf16.xpose.msra.mxu0 0
        %1319 = vmatprep.subr.bf16.mxu0 0
        %1320 = vmatpush1.bf16.xpose.msra.mxu0 0
        %1321 = vmatprep.subr.bf16.mxu0 0
        %1322 = vmatpush1.bf16.xpose.msra.mxu0 0
        %1323 = vmatprep.subr.bf16.mxu0 0
        %1324 = vmatpush1.bf16.xpose.msra.mxu0 0
        %1325 = vmatprep.subr.bf16.mxu0 0
        %1326 = vmatpush1.bf16.xpose.msra.mxu0 0
        %1327 = vmatprep.subr.bf16.mxu0 0
        %1328 = vmatpush1.bf16.xpose.msra.mxu0 0
        %1329 = vmatprep.mubr.bf16.mxu0 0
        %1330 = vmatmul.mubr.bf16.gmra.mrb[0].mxu0 %v1292
        %v1331 = vpop.f32.mrb[0].mxu0
        %v1332 = vadd.f32 0.0, %v1331
        %v1333 = vpop.f32.mrb[0].mxu0
        %v1334 = vpop.f32.mrb[0].mxu0
        %v1335 = vpop.f32.mrb[0].mxu0
        %1336 = vdwg.mxu0
        %v1338 = vsel %vm433, %v839, 0
        %v1341 = vsel %vm433, %v855, 0
        %1343 = vmatprep.subr.bf16.mxu0 0
        %1344 = vmatpush1.bf16.xpose.msra.mxu0 %v1341
        %1345 = vmatprep.subr.bf16.mxu0 0
        %1346 = vmatpush1.bf16.xpose.msra.mxu0 0
        %1347 = vmatprep.subr.bf16.mxu0 0
        %1348 = vmatpush1.bf16.xpose.msra.mxu0 0
        %1349 = vmatprep.subr.bf16.mxu0 0
        %1350 = vmatpush1.bf16.xpose.msra.mxu0 0
        %1351 = vmatprep.subr.bf16.mxu0 0
        %1352 = vmatpush1.bf16.xpose.msra.mxu0 0
        %1353 = vmatprep.subr.bf16.mxu0 0
        %1354 = vmatpush1.bf16.xpose.msra.mxu0 0
        %1355 = vmatprep.subr.bf16.mxu0 0
        %1356 = vmatpush1.bf16.xpose.msra.mxu0 0
        %1357 = vmatprep.subr.bf16.mxu0 0
        %1358 = vmatpush1.bf16.xpose.msra.mxu0 0
        %1359 = vmatprep.subr.bf16.mxu0 0
        %1360 = vmatpush1.bf16.xpose.msra.mxu0 0
        %1361 = vmatprep.subr.bf16.mxu0 0
        %1362 = vmatpush1.bf16.xpose.msra.mxu0 0
        %1363 = vmatprep.subr.bf16.mxu0 0
        %1364 = vmatpush1.bf16.xpose.msra.mxu0 0
        %1365 = vmatprep.subr.bf16.mxu0 0
        %1366 = vmatpush1.bf16.xpose.msra.mxu0 0
        %1367 = vmatprep.subr.bf16.mxu0 0
        %1368 = vmatpush1.bf16.xpose.msra.mxu0 0
        %1369 = vmatprep.subr.bf16.mxu0 0
        %1370 = vmatpush1.bf16.xpose.msra.mxu0 0
        %1371 = vmatprep.subr.bf16.mxu0 0
        %1372 = vmatpush1.bf16.xpose.msra.mxu0 0
        %1373 = vmatprep.subr.bf16.mxu0 0
        %1374 = vmatpush1.bf16.xpose.msra.mxu0 0
        %1375 = vmatprep.mubr.bf16.mxu0 0
        %1376 = vmatmul.mubr.bf16.gmra.mrb[0].mxu0 %v1338
        %v1377 = vpop.f32.mrb[0].mxu0
        %v1378 = vadd.f32 0.0, %v1377
        %v1379 = vpop.f32.mrb[0].mxu0
        %v1380 = vpop.f32.mrb[0].mxu0
        %v1381 = vpop.f32.mrb[0].mxu0
        %1382 = vdwg.mxu0
        %v1384 = vsel %vm433, %v840, 0
        %v1387 = vsel %vm433, %v856, 0
        %1389 = vmatprep.subr.bf16.mxu0 0
        %1390 = vmatpush1.bf16.xpose.msra.mxu0 %v1387
        %1391 = vmatprep.subr.bf16.mxu0 0
        %1392 = vmatpush1.bf16.xpose.msra.mxu0 0
        %1393 = vmatprep.subr.bf16.mxu0 0
        %1394 = vmatpush1.bf16.xpose.msra.mxu0 0
        %1395 = vmatprep.subr.bf16.mxu0 0
        %1396 = vmatpush1.bf16.xpose.msra.mxu0 0
        %1397 = vmatprep.subr.bf16.mxu0 0
        %1398 = vmatpush1.bf16.xpose.msra.mxu0 0
        %1399 = vmatprep.subr.bf16.mxu0 0
        %1400 = vmatpush1.bf16.xpose.msra.mxu0 0
        %1401 = vmatprep.subr.bf16.mxu0 0
        %1402 = vmatpush1.bf16.xpose.msra.mxu0 0
        %1403 = vmatprep.subr.bf16.mxu0 0
        %1404 = vmatpush1.bf16.xpose.msra.mxu0 0
        %1405 = vmatprep.subr.bf16.mxu0 0
        %1406 = vmatpush1.bf16.xpose.msra.mxu0 0
        %1407 = vmatprep.subr.bf16.mxu0 0
        %1408 = vmatpush1.bf16.xpose.msra.mxu0 0
        %1409 = vmatprep.subr.bf16.mxu0 0
        %1410 = vmatpush1.bf16.xpose.msra.mxu0 0
        %1411 = vmatprep.subr.bf16.mxu0 0
        %1412 = vmatpush1.bf16.xpose.msra.mxu0 0
        %1413 = vmatprep.subr.bf16.mxu0 0
        %1414 = vmatpush1.bf16.xpose.msra.mxu0 0
        %1415 = vmatprep.subr.bf16.mxu0 0
        %1416 = vmatpush1.bf16.xpose.msra.mxu0 0
        %1417 = vmatprep.subr.bf16.mxu0 0
        %1418 = vmatpush1.bf16.xpose.msra.mxu0 0
        %1419 = vmatprep.subr.bf16.mxu0 0
        %1420 = vmatpush1.bf16.xpose.msra.mxu0 0
        %1421 = vmatprep.mubr.bf16.mxu0 0
        %1422 = vmatmul.mubr.bf16.gmra.mrb[0].mxu0 %v1384
        %v1423 = vpop.f32.mrb[0].mxu0
        %v1424 = vadd.f32 0.0, %v1423
        %v1425 = vpop.f32.mrb[0].mxu0
        %v1426 = vpop.f32.mrb[0].mxu0
        %v1427 = vpop.f32.mrb[0].mxu0
        %1428 = vdwg.mxu0
        %v1430 = vsel %vm433, %v841, 0
        %v1433 = vsel %vm433, %v857, 0
        %1435 = vmatprep.subr.bf16.mxu0 0
        %1436 = vmatpush1.bf16.xpose.msra.mxu0 %v1433
        %1437 = vmatprep.subr.bf16.mxu0 0
        %1438 = vmatpush1.bf16.xpose.msra.mxu0 0
        %1439 = vmatprep.subr.bf16.mxu0 0
        %1440 = vmatpush1.bf16.xpose.msra.mxu0 0
        %1441 = vmatprep.subr.bf16.mxu0 0
        %1442 = vmatpush1.bf16.xpose.msra.mxu0 0
        %1443 = vmatprep.subr.bf16.mxu0 0
        %1444 = vmatpush1.bf16.xpose.msra.mxu0 0
        %1445 = vmatprep.subr.bf16.mxu0 0
        %1446 = vmatpush1.bf16.xpose.msra.mxu0 0
        %1447 = vmatprep.subr.bf16.mxu0 0
        %1448 = vmatpush1.bf16.xpose.msra.mxu0 0
        %1449 = vmatprep.subr.bf16.mxu0 0
        %1450 = vmatpush1.bf16.xpose.msra.mxu0 0
        %1451 = vmatprep.subr.bf16.mxu0 0
        %1452 = vmatpush1.bf16.xpose.msra.mxu0 0
        %1453 = vmatprep.subr.bf16.mxu0 0
        %1454 = vmatpush1.bf16.xpose.msra.mxu0 0
        %1455 = vmatprep.subr.bf16.mxu0 0
        %1456 = vmatpush1.bf16.xpose.msra.mxu0 0
        %1457 = vmatprep.subr.bf16.mxu0 0
        %1458 = vmatpush1.bf16.xpose.msra.mxu0 0
        %1459 = vmatprep.subr.bf16.mxu0 0
        %1460 = vmatpush1.bf16.xpose.msra.mxu0 0
        %1461 = vmatprep.subr.bf16.mxu0 0
        %1462 = vmatpush1.bf16.xpose.msra.mxu0 0
        %1463 = vmatprep.subr.bf16.mxu0 0
        %1464 = vmatpush1.bf16.xpose.msra.mxu0 0
        %1465 = vmatprep.subr.bf16.mxu0 0
        %1466 = vmatpush1.bf16.xpose.msra.mxu0 0
        %1467 = vmatprep.mubr.bf16.mxu0 0
        %1468 = vmatmul.mubr.bf16.gmra.mrb[0].mxu0 %v1430
        %v1469 = vpop.f32.mrb[0].mxu0
        %v1470 = vadd.f32 0.0, %v1469
        %v1471 = vpop.f32.mrb[0].mxu0
        %v1472 = vpop.f32.mrb[0].mxu0
        %v1473 = vpop.f32.mrb[0].mxu0
        %1474 = vdwg.mxu0
        %v1476 = vsel %vm433, %v842, 0
        %v1479 = vsel %vm433, %v858, 0
        %1481 = vmatprep.subr.bf16.mxu0 0
        %1482 = vmatpush1.bf16.xpose.msra.mxu0 %v1479
        %1483 = vmatprep.subr.bf16.mxu0 0
        %1484 = vmatpush1.bf16.xpose.msra.mxu0 0
        %1485 = vmatprep.subr.bf16.mxu0 0
        %1486 = vmatpush1.bf16.xpose.msra.mxu0 0
        %1487 = vmatprep.subr.bf16.mxu0 0
        %1488 = vmatpush1.bf16.xpose.msra.mxu0 0
        %1489 = vmatprep.subr.bf16.mxu0 0
        %1490 = vmatpush1.bf16.xpose.msra.mxu0 0
        %1491 = vmatprep.subr.bf16.mxu0 0
        %1492 = vmatpush1.bf16.xpose.msra.mxu0 0
        %1493 = vmatprep.subr.bf16.mxu0 0
        %1494 = vmatpush1.bf16.xpose.msra.mxu0 0
        %1495 = vmatprep.subr.bf16.mxu0 0
        %1496 = vmatpush1.bf16.xpose.msra.mxu0 0
        %1497 = vmatprep.subr.bf16.mxu0 0
        %1498 = vmatpush1.bf16.xpose.msra.mxu0 0
        %1499 = vmatprep.subr.bf16.mxu0 0
        %1500 = vmatpush1.bf16.xpose.msra.mxu0 0
        %1501 = vmatprep.subr.bf16.mxu0 0
        %1502 = vmatpush1.bf16.xpose.msra.mxu0 0
        %1503 = vmatprep.subr.bf16.mxu0 0
        %1504 = vmatpush1.bf16.xpose.msra.mxu0 0
        %1505 = vmatprep.subr.bf16.mxu0 0
        %1506 = vmatpush1.bf16.xpose.msra.mxu0 0
        %1507 = vmatprep.subr.bf16.mxu0 0
        %1508 = vmatpush1.bf16.xpose.msra.mxu0 0
        %1509 = vmatprep.subr.bf16.mxu0 0
        %1510 = vmatpush1.bf16.xpose.msra.mxu0 0
        %1511 = vmatprep.subr.bf16.mxu0 0
        %1512 = vmatpush1.bf16.xpose.msra.mxu0 0
        %1513 = vmatprep.mubr.bf16.mxu0 0
        %1514 = vmatmul.mubr.bf16.gmra.mrb[0].mxu0 %v1476
        %v1515 = vpop.f32.mrb[0].mxu0
        %v1516 = vadd.f32 0.0, %v1515
        %v1517 = vpop.f32.mrb[0].mxu0
        %v1518 = vpop.f32.mrb[0].mxu0
        %v1519 = vpop.f32.mrb[0].mxu0
        %1520 = vdwg.mxu0
        %v1522 = vsel %vm433, %v843, 0
        %v1525 = vsel %vm433, %v859, 0
        %1527 = vmatprep.subr.bf16.mxu0 0
        %1528 = vmatpush1.bf16.xpose.msra.mxu0 %v1525
        %1529 = vmatprep.subr.bf16.mxu0 0
        %1530 = vmatpush1.bf16.xpose.msra.mxu0 0
        %1531 = vmatprep.subr.bf16.mxu0 0
        %1532 = vmatpush1.bf16.xpose.msra.mxu0 0
        %1533 = vmatprep.subr.bf16.mxu0 0
        %1534 = vmatpush1.bf16.xpose.msra.mxu0 0
        %1535 = vmatprep.subr.bf16.mxu0 0
        %1536 = vmatpush1.bf16.xpose.msra.mxu0 0
        %1537 = vmatprep.subr.bf16.mxu0 0
        %1538 = vmatpush1.bf16.xpose.msra.mxu0 0
        %1539 = vmatprep.subr.bf16.mxu0 0
        %1540 = vmatpush1.bf16.xpose.msra.mxu0 0
        %1541 = vmatprep.subr.bf16.mxu0 0
        %1542 = vmatpush1.bf16.xpose.msra.mxu0 0
        %1543 = vmatprep.subr.bf16.mxu0 0
        %1544 = vmatpush1.bf16.xpose.msra.mxu0 0
        %1545 = vmatprep.subr.bf16.mxu0 0
        %1546 = vmatpush1.bf16.xpose.msra.mxu0 0
        %1547 = vmatprep.subr.bf16.mxu0 0
        %1548 = vmatpush1.bf16.xpose.msra.mxu0 0
        %1549 = vmatprep.subr.bf16.mxu0 0
        %1550 = vmatpush1.bf16.xpose.msra.mxu0 0
        %1551 = vmatprep.subr.bf16.mxu0 0
        %1552 = vmatpush1.bf16.xpose.msra.mxu0 0
        %1553 = vmatprep.subr.bf16.mxu0 0
        %1554 = vmatpush1.bf16.xpose.msra.mxu0 0
        %1555 = vmatprep.subr.bf16.mxu0 0
        %1556 = vmatpush1.bf16.xpose.msra.mxu0 0
        %1557 = vmatprep.subr.bf16.mxu0 0
        %1558 = vmatpush1.bf16.xpose.msra.mxu0 0
        %1559 = vmatprep.mubr.bf16.mxu0 0
        %1560 = vmatmul.mubr.bf16.gmra.mrb[0].mxu0 %v1522
        %v1561 = vpop.f32.mrb[0].mxu0
        %v1562 = vadd.f32 0.0, %v1561
        %v1563 = vpop.f32.mrb[0].mxu0
        %v1564 = vpop.f32.mrb[0].mxu0
        %v1565 = vpop.f32.mrb[0].mxu0
        %1566 = vdwg.mxu0
        %v1568 = vsel %vm433, %v844, 0
        %v1571 = vsel %vm433, %v860, 0
        %1573 = vmatprep.subr.bf16.mxu0 0
        %1574 = vmatpush1.bf16.xpose.msra.mxu0 %v1571
        %1575 = vmatprep.subr.bf16.mxu0 0
        %1576 = vmatpush1.bf16.xpose.msra.mxu0 0
        %1577 = vmatprep.subr.bf16.mxu0 0
        %1578 = vmatpush1.bf16.xpose.msra.mxu0 0
        %1579 = vmatprep.subr.bf16.mxu0 0
        %1580 = vmatpush1.bf16.xpose.msra.mxu0 0
        %1581 = vmatprep.subr.bf16.mxu0 0
        %1582 = vmatpush1.bf16.xpose.msra.mxu0 0
        %1583 = vmatprep.subr.bf16.mxu0 0
        %1584 = vmatpush1.bf16.xpose.msra.mxu0 0
        %1585 = vmatprep.subr.bf16.mxu0 0
        %1586 = vmatpush1.bf16.xpose.msra.mxu0 0
        %1587 = vmatprep.subr.bf16.mxu0 0
        %1588 = vmatpush1.bf16.xpose.msra.mxu0 0
        %1589 = vmatprep.subr.bf16.mxu0 0
        %1590 = vmatpush1.bf16.xpose.msra.mxu0 0
        %1591 = vmatprep.subr.bf16.mxu0 0
        %1592 = vmatpush1.bf16.xpose.msra.mxu0 0
        %1593 = vmatprep.subr.bf16.mxu0 0
        %1594 = vmatpush1.bf16.xpose.msra.mxu0 0
        %1595 = vmatprep.subr.bf16.mxu0 0
        %1596 = vmatpush1.bf16.xpose.msra.mxu0 0
        %1597 = vmatprep.subr.bf16.mxu0 0
        %1598 = vmatpush1.bf16.xpose.msra.mxu0 0
        %1599 = vmatprep.subr.bf16.mxu0 0
        %1600 = vmatpush1.bf16.xpose.msra.mxu0 0
        %1601 = vmatprep.subr.bf16.mxu0 0
        %1602 = vmatpush1.bf16.xpose.msra.mxu0 0
        %1603 = vmatprep.subr.bf16.mxu0 0
        %1604 = vmatpush1.bf16.xpose.msra.mxu0 0
        %1605 = vmatprep.mubr.bf16.mxu0 0
        %1606 = vmatmul.mubr.bf16.gmra.mrb[0].mxu0 %v1568
        %v1607 = vpop.f32.mrb[0].mxu0
        %v1608 = vadd.f32 0.0, %v1607
        %v1609 = vpop.f32.mrb[0].mxu0
        %v1610 = vpop.f32.mrb[0].mxu0
        %v1611 = vpop.f32.mrb[0].mxu0
        %1612 = vdwg.mxu0
        %v1613 = vmul.f32 %v918, 0.125
        %v1614 = vmul.f32 %v964, 0.125
        %v1615 = vmul.f32 %v1010, 0.125
        %v1616 = vmul.f32 %v1056, 0.125
        %v1617 = vmul.f32 %v1102, 0.125
        %v1618 = vmul.f32 %v1148, 0.125
        %v1619 = vmul.f32 %v1194, 0.125
        %v1620 = vmul.f32 %v1240, 0.125
        %v1621 = vmul.f32 %v1286, 0.125
        %v1622 = vmul.f32 %v1332, 0.125
        %v1623 = vmul.f32 %v1378, 0.125
        %v1624 = vmul.f32 %v1424, 0.125
        %v1625 = vmul.f32 %v1470, 0.125
        %v1626 = vmul.f32 %v1516, 0.125
        %v1627 = vmul.f32 %v1562, 0.125
        %v1628 = vmul.f32 %v1608, 0.125
        %v1629 = vadd.f32 %v1613, %v813
        %v1630 = vadd.f32 %v1614, %v814
        %v1631 = vadd.f32 %v1615, %v815
        %v1632 = vadd.f32 %v1616, %v816
        %v1633 = vadd.f32 %v1617, %v817
        %v1634 = vadd.f32 %v1618, %v818
        %v1635 = vadd.f32 %v1619, %v819
        %v1636 = vadd.f32 %v1620, %v820
        %v1637 = vadd.f32 %v1621, %v821
        %v1638 = vadd.f32 %v1622, %v822
        %v1639 = vadd.f32 %v1623, %v823
        %v1640 = vadd.f32 %v1624, %v824
        %v1641 = vadd.f32 %v1625, %v825
        %v1642 = vadd.f32 %v1626, %v826
        %v1643 = vadd.f32 %v1627, %v827
        %v1644 = vadd.f32 %v1628, %v828
        %vm1645 = vcmask 64512
        %v1646 = vsel %vm1645, %v1629, -inf
        %1647 = vmax.xlane.f32.xlu0 %v1646
        %v1648 = vpop.xlane.xlu0 %1647
        %v1649 = vsel %vm1645, %v1630, -inf
        %1650 = vmax.xlane.f32.xlu0 %v1649
        %v1651 = vpop.xlane.xlu0 %1650
        %v1652 = vsel %vm1645, %v1631, -inf
        %1653 = vmax.xlane.f32.xlu0 %v1652
        %v1654 = vpop.xlane.xlu0 %1653
        %v1655 = vsel %vm1645, %v1632, -inf
        %1656 = vmax.xlane.f32.xlu0 %v1655
        %v1657 = vpop.xlane.xlu0 %1656
        %v1658 = vsel %vm1645, %v1633, -inf
        %1659 = vmax.xlane.f32.xlu0 %v1658
        %v1660 = vpop.xlane.xlu0 %1659
        %v1661 = vsel %vm1645, %v1634, -inf
        %1662 = vmax.xlane.f32.xlu0 %v1661
        %v1663 = vpop.xlane.xlu0 %1662
        %v1664 = vsel %vm1645, %v1635, -inf
        %1665 = vmax.xlane.f32.xlu0 %v1664
        %v1666 = vpop.xlane.xlu0 %1665
        %v1667 = vsel %vm1645, %v1636, -inf
        %1668 = vmax.xlane.f32.xlu0 %v1667
        %v1669 = vpop.xlane.xlu0 %1668
        %v1670 = vsel %vm1645, %v1637, -inf
        %1671 = vmax.xlane.f32.xlu0 %v1670
        %v1672 = vpop.xlane.xlu0 %1671
        %v1673 = vsel %vm1645, %v1638, -inf
        %1674 = vmax.xlane.f32.xlu0 %v1673
        %v1675 = vpop.xlane.xlu0 %1674
        %v1676 = vsel %vm1645, %v1639, -inf
        %1677 = vmax.xlane.f32.xlu0 %v1676
        %v1678 = vpop.xlane.xlu0 %1677
        %v1679 = vsel %vm1645, %v1640, -inf
        %1680 = vmax.xlane.f32.xlu0 %v1679
        %v1681 = vpop.xlane.xlu0 %1680
        %v1682 = vsel %vm1645, %v1641, -inf
        %1683 = vmax.xlane.f32.xlu0 %v1682
        %v1684 = vpop.xlane.xlu0 %1683
        %v1685 = vsel %vm1645, %v1642, -inf
        %1686 = vmax.xlane.f32.xlu0 %v1685
        %v1687 = vpop.xlane.xlu0 %1686
        %v1688 = vsel %vm1645, %v1643, -inf
        %1689 = vmax.xlane.f32.xlu0 %v1688
        %v1690 = vpop.xlane.xlu0 %1689
        %v1691 = vsel %vm1645, %v1644, -inf
        %1692 = vmax.xlane.f32.xlu0 %v1691
        %v1693 = vpop.xlane.xlu0 %1692
        %v1694 = vsub.f32 %v1629, %v1648
        %v1695 = vsub.f32 %v1630, %v1651
        %v1696 = vsub.f32 %v1631, %v1654
        %v1697 = vsub.f32 %v1632, %v1657
        %v1698 = vsub.f32 %v1633, %v1660
        %v1699 = vsub.f32 %v1634, %v1663
        %v1700 = vsub.f32 %v1635, %v1666
        %v1701 = vsub.f32 %v1636, %v1669
        %v1702 = vsub.f32 %v1637, %v1672
        %v1703 = vsub.f32 %v1638, %v1675
        %v1704 = vsub.f32 %v1639, %v1678
        %v1705 = vsub.f32 %v1640, %v1681
        %v1706 = vsub.f32 %v1641, %v1684
        %v1707 = vsub.f32 %v1642, %v1687
        %v1708 = vsub.f32 %v1643, %v1690
        %v1709 = vsub.f32 %v1644, %v1693
        %v1710 = vmul.f32 %v1694, 1.442695
        %v1711 = vpow.pop %v1710
        %v1712 = vmul.f32 %v1695, 1.442695
        %v1713 = vpow.pop %v1712
        %v1714 = vmul.f32 %v1696, 1.442695
        %v1715 = vpow.pop %v1714
        %v1716 = vmul.f32 %v1697, 1.442695
        %v1717 = vpow.pop %v1716
        %v1718 = vmul.f32 %v1698, 1.442695
        %v1719 = vpow.pop %v1718
        %v1720 = vmul.f32 %v1699, 1.442695
        %v1721 = vpow.pop %v1720
        %v1722 = vmul.f32 %v1700, 1.442695
        %v1723 = vpow.pop %v1722
        %v1724 = vmul.f32 %v1701, 1.442695
        %v1725 = vpow.pop %v1724
        %v1726 = vmul.f32 %v1702, 1.442695
        %v1727 = vpow.pop %v1726
        %v1728 = vmul.f32 %v1703, 1.442695
        %v1729 = vpow.pop %v1728
        %v1730 = vmul.f32 %v1704, 1.442695
        %v1731 = vpow.pop %v1730
        %v1732 = vmul.f32 %v1705, 1.442695
        %v1733 = vpow.pop %v1732
        %v1734 = vmul.f32 %v1706, 1.442695
        %v1735 = vpow.pop %v1734
        %v1736 = vmul.f32 %v1707, 1.442695
        %v1737 = vpow.pop %v1736
        %v1738 = vmul.f32 %v1708, 1.442695
        %v1739 = vpow.pop %v1738
        %v1740 = vmul.f32 %v1709, 1.442695
        %v1741 = vpow.pop %v1740
        %v1742 = vsel %vm1645, %v1711, 0.0
        %1743 = vadd.xlane.f32.xlu0 %v1742
        %v1744 = vpop.xlane.xlu0 %1743
        %v1745 = vsel %vm1645, %v1713, 0.0
        %1746 = vadd.xlane.f32.xlu0 %v1745
        %v1747 = vpop.xlane.xlu0 %1746
        %v1748 = vsel %vm1645, %v1715, 0.0
        %1749 = vadd.xlane.f32.xlu0 %v1748
        %v1750 = vpop.xlane.xlu0 %1749
        %v1751 = vsel %vm1645, %v1717, 0.0
        %1752 = vadd.xlane.f32.xlu0 %v1751
        %v1753 = vpop.xlane.xlu0 %1752
        %v1754 = vsel %vm1645, %v1719, 0.0
        %1755 = vadd.xlane.f32.xlu0 %v1754
        %v1756 = vpop.xlane.xlu0 %1755
        %v1757 = vsel %vm1645, %v1721, 0.0
        %1758 = vadd.xlane.f32.xlu0 %v1757
        %v1759 = vpop.xlane.xlu0 %1758
        %v1760 = vsel %vm1645, %v1723, 0.0
        %1761 = vadd.xlane.f32.xlu0 %v1760
        %v1762 = vpop.xlane.xlu0 %1761
        %v1763 = vsel %vm1645, %v1725, 0.0
        %1764 = vadd.xlane.f32.xlu0 %v1763
        %v1765 = vpop.xlane.xlu0 %1764
        %v1766 = vsel %vm1645, %v1727, 0.0
        %1767 = vadd.xlane.f32.xlu0 %v1766
        %v1768 = vpop.xlane.xlu0 %1767
        %v1769 = vsel %vm1645, %v1729, 0.0
        %1770 = vadd.xlane.f32.xlu0 %v1769
        %v1771 = vpop.xlane.xlu0 %1770
        %v1772 = vsel %vm1645, %v1731, 0.0
        %1773 = vadd.xlane.f32.xlu0 %v1772
        %v1774 = vpop.xlane.xlu0 %1773
        %v1775 = vsel %vm1645, %v1733, 0.0
        %1776 = vadd.xlane.f32.xlu0 %v1775
        %v1777 = vpop.xlane.xlu0 %1776
        %v1778 = vsel %vm1645, %v1735, 0.0
        %1779 = vadd.xlane.f32.xlu0 %v1778
        %v1780 = vpop.xlane.xlu0 %1779
        %v1781 = vsel %vm1645, %v1737, 0.0
        %1782 = vadd.xlane.f32.xlu0 %v1781
        %v1783 = vpop.xlane.xlu0 %1782
        %v1784 = vsel %vm1645, %v1739, 0.0
        %1785 = vadd.xlane.f32.xlu0 %v1784
        %v1786 = vpop.xlane.xlu0 %1785
        %v1787 = vsel %vm1645, %v1741, 0.0
        %1788 = vadd.xlane.f32.xlu0 %v1787
        %v1789 = vpop.xlane.xlu0 %1788
        %v1790 = vrcp.pop %v1744
        %v1791 = vrcp.pop %v1747
        %v1792 = vrcp.pop %v1750
        %v1793 = vrcp.pop %v1753
        %v1794 = vrcp.pop %v1756
        %v1795 = vrcp.pop %v1759
        %v1796 = vrcp.pop %v1762
        %v1797 = vrcp.pop %v1765
        %v1798 = vrcp.pop %v1768
        %v1799 = vrcp.pop %v1771
        %v1800 = vrcp.pop %v1774
        %v1801 = vrcp.pop %v1777
        %v1802 = vrcp.pop %v1780
        %v1803 = vrcp.pop %v1783
        %v1804 = vrcp.pop %v1786
        %v1805 = vrcp.pop %v1789
        %v1806 = vmul.f32 %v1711, %v1790
        %v1807 = vmul.f32 %v1713, %v1791
        %v1808 = vmul.f32 %v1715, %v1792
        %v1809 = vmul.f32 %v1717, %v1793
        %v1810 = vmul.f32 %v1719, %v1794
        %v1811 = vmul.f32 %v1721, %v1795
        %v1812 = vmul.f32 %v1723, %v1796
        %v1813 = vmul.f32 %v1725, %v1797
        %v1814 = vmul.f32 %v1727, %v1798
        %v1815 = vmul.f32 %v1729, %v1799
        %v1816 = vmul.f32 %v1731, %v1800
        %v1817 = vmul.f32 %v1733, %v1801
        %v1818 = vmul.f32 %v1735, %v1802
        %v1819 = vmul.f32 %v1737, %v1803
        %v1820 = vmul.f32 %v1739, %v1804
        %v1821 = vmul.f32 %v1741, %v1805
        %1822 = vst.msk [vmem:[%s262] sm:$0xff] %vm1645, %v1806
        %1823 = vst.msk [vmem:[%s262 + $0x20] sm:$0xff] %vm1645, %v1807
        %1824 = vst.msk [vmem:[%s262 + $0x40] sm:$0xff] %vm1645, %v1808
        %1825 = vst.msk [vmem:[%s262 + $0x60] sm:$0xff] %vm1645, %v1809
        %1826 = vst.msk [vmem:[%s262 + $0x80] sm:$0xff] %vm1645, %v1810
        %1827 = vst.msk [vmem:[%s262 + $0xa0] sm:$0xff] %vm1645, %v1811
        %1828 = vst.msk [vmem:[%s262 + $0xc0] sm:$0xff] %vm1645, %v1812
        %1829 = vst.msk [vmem:[%s262 + $0xe0] sm:$0xff] %vm1645, %v1813
        %1830 = vst.msk [vmem:[%s262 + $0x100] sm:$0xff] %vm1645, %v1814
        %1831 = vst.msk [vmem:[%s262 + $0x120] sm:$0xff] %vm1645, %v1815
        %1832 = vst.msk [vmem:[%s262 + $0x140] sm:$0xff] %vm1645, %v1816
        %1833 = vst.msk [vmem:[%s262 + $0x160] sm:$0xff] %vm1645, %v1817
        %1834 = vst.msk [vmem:[%s262 + $0x180] sm:$0xff] %vm1645, %v1818
        %1835 = vst.msk [vmem:[%s262 + $0x1a0] sm:$0xff] %vm1645, %v1819
        %1836 = vst.msk [vmem:[%s262 + $0x1c0] sm:$0xff] %vm1645, %v1820
        %1837 = vst.msk [vmem:[%s262 + $0x1e0] sm:$0xff] %vm1645, %v1821
        %v1838 = vpack.c.bf16 %v1806, %v1806
        %v1839 = vpack.c.bf16 %v1807, %v1807
        %v1840 = vpack.c.bf16 %v1808, %v1808
        %v1841 = vpack.c.bf16 %v1809, %v1809
        %v1842 = vpack.c.bf16 %v1810, %v1810
        %v1843 = vpack.c.bf16 %v1811, %v1811
        %v1844 = vpack.c.bf16 %v1812, %v1812
        %v1845 = vpack.c.bf16 %v1813, %v1813
        %v1846 = vpack.c.bf16 %v1814, %v1814
        %v1847 = vpack.c.bf16 %v1815, %v1815
        %v1848 = vpack.c.bf16 %v1816, %v1816
        %v1849 = vpack.c.bf16 %v1817, %v1817
        %v1850 = vpack.c.bf16 %v1818, %v1818
        %v1851 = vpack.c.bf16 %v1819, %v1819
        %v1852 = vpack.c.bf16 %v1820, %v1820
        %v1853 = vpack.c.bf16 %v1821, %v1821
        %v1855 = vsel %vm1645, %v1838, 0
        %vm1857 = vcmask 1043456
        %v1859 = vsel %vm1857, %v861, 0
        %1861 = vmatprep.subr.bf16.mxu0 0
        %1862 = vmatpush1.bf16.msra.mxu0 %v1859
        %1863 = vmatprep.subr.bf16.mxu0 0
        %1864 = vmatpush1.bf16.msra.mxu0 0
        %1865 = vmatprep.subr.bf16.mxu0 0
        %1866 = vmatpush1.bf16.msra.mxu0 0
        %1867 = vmatprep.subr.bf16.mxu0 0
        %1868 = vmatpush1.bf16.msra.mxu0 0
        %1869 = vmatprep.subr.bf16.mxu0 0
        %1870 = vmatpush1.bf16.msra.mxu0 0
        %1871 = vmatprep.subr.bf16.mxu0 0
        %1872 = vmatpush1.bf16.msra.mxu0 0
        %1873 = vmatprep.subr.bf16.mxu0 0
        %1874 = vmatpush1.bf16.msra.mxu0 0
        %1875 = vmatprep.subr.bf16.mxu0 0
        %1876 = vmatpush1.bf16.msra.mxu0 0
        %1877 = vmatprep.subr.bf16.mxu0 0
        %1878 = vmatpush1.bf16.msra.mxu0 0
        %1879 = vmatprep.subr.bf16.mxu0 0
        %1880 = vmatpush1.bf16.msra.mxu0 0
        %1881 = vmatprep.subr.bf16.mxu0 0
        %1882 = vmatpush1.bf16.msra.mxu0 0
        %1883 = vmatprep.subr.bf16.mxu0 0
        %1884 = vmatpush1.bf16.msra.mxu0 0
        %1885 = vmatprep.subr.bf16.mxu0 0
        %1886 = vmatpush1.bf16.msra.mxu0 0
        %1887 = vmatprep.subr.bf16.mxu0 0
        %1888 = vmatpush1.bf16.msra.mxu0 0
        %1889 = vmatprep.subr.bf16.mxu0 0
        %1890 = vmatpush1.bf16.msra.mxu0 0
        %1891 = vmatprep.subr.bf16.mxu0 0
        %1892 = vmatpush1.bf16.msra.mxu0 0
        %1893 = vmatprep.mubr.bf16.mxu0 0
        %1894 = vmatmul.mubr.bf16.gmra.mrb[0].mxu0 %v1855
        %v1895 = vpop.f32.mrb[0].mxu0
        %v1896 = vadd.f32 0.0, %v1895
        %v1897 = vpop.f32.mrb[0].mxu0
        %v1898 = vpop.f32.mrb[0].mxu0
        %v1899 = vpop.f32.mrb[0].mxu0
        %1900 = vdwg.mxu0
        %v1902 = vsel %vm1645, %v1839, 0
        %v1905 = vsel %vm1857, %v862, 0
        %1907 = vmatprep.subr.bf16.mxu0 0
        %1908 = vmatpush1.bf16.msra.mxu0 %v1905
        %1909 = vmatprep.subr.bf16.mxu0 0
        %1910 = vmatpush1.bf16.msra.mxu0 0
        %1911 = vmatprep.subr.bf16.mxu0 0
        %1912 = vmatpush1.bf16.msra.mxu0 0
        %1913 = vmatprep.subr.bf16.mxu0 0
        %1914 = vmatpush1.bf16.msra.mxu0 0
        %1915 = vmatprep.subr.bf16.mxu0 0
        %1916 = vmatpush1.bf16.msra.mxu0 0
        %1917 = vmatprep.subr.bf16.mxu0 0
        %1918 = vmatpush1.bf16.msra.mxu0 0
        %1919 = vmatprep.subr.bf16.mxu0 0
        %1920 = vmatpush1.bf16.msra.mxu0 0
        %1921 = vmatprep.subr.bf16.mxu0 0
        %1922 = vmatpush1.bf16.msra.mxu0 0
        %1923 = vmatprep.subr.bf16.mxu0 0
        %1924 = vmatpush1.bf16.msra.mxu0 0
        %1925 = vmatprep.subr.bf16.mxu0 0
        %1926 = vmatpush1.bf16.msra.mxu0 0
        %1927 = vmatprep.subr.bf16.mxu0 0
        %1928 = vmatpush1.bf16.msra.mxu0 0
        %1929 = vmatprep.subr.bf16.mxu0 0
        %1930 = vmatpush1.bf16.msra.mxu0 0
        %1931 = vmatprep.subr.bf16.mxu0 0
        %1932 = vmatpush1.bf16.msra.mxu0 0
        %1933 = vmatprep.subr.bf16.mxu0 0
        %1934 = vmatpush1.bf16.msra.mxu0 0
        %1935 = vmatprep.subr.bf16.mxu0 0
        %1936 = vmatpush1.bf16.msra.mxu0 0
        %1937 = vmatprep.subr.bf16.mxu0 0
        %1938 = vmatpush1.bf16.msra.mxu0 0
        %1939 = vmatprep.mubr.bf16.mxu0 0
        %1940 = vmatmul.mubr.bf16.gmra.mrb[0].mxu0 %v1902
        %v1941 = vpop.f32.mrb[0].mxu0
        %v1942 = vadd.f32 0.0, %v1941
        %v1943 = vpop.f32.mrb[0].mxu0
        %v1944 = vpop.f32.mrb[0].mxu0
        %v1945 = vpop.f32.mrb[0].mxu0
        %1946 = vdwg.mxu0
        %v1948 = vsel %vm1645, %v1840, 0
        %v1951 = vsel %vm1857, %v863, 0
        %1953 = vmatprep.subr.bf16.mxu0 0
        %1954 = vmatpush1.bf16.msra.mxu0 %v1951
        %1955 = vmatprep.subr.bf16.mxu0 0
        %1956 = vmatpush1.bf16.msra.mxu0 0
        %1957 = vmatprep.subr.bf16.mxu0 0
        %1958 = vmatpush1.bf16.msra.mxu0 0
        %1959 = vmatprep.subr.bf16.mxu0 0
        %1960 = vmatpush1.bf16.msra.mxu0 0
        %1961 = vmatprep.subr.bf16.mxu0 0
        %1962 = vmatpush1.bf16.msra.mxu0 0
        %1963 = vmatprep.subr.bf16.mxu0 0
        %1964 = vmatpush1.bf16.msra.mxu0 0
        %1965 = vmatprep.subr.bf16.mxu0 0
        %1966 = vmatpush1.bf16.msra.mxu0 0
        %1967 = vmatprep.subr.bf16.mxu0 0
        %1968 = vmatpush1.bf16.msra.mxu0 0
        %1969 = vmatprep.subr.bf16.mxu0 0
        %1970 = vmatpush1.bf16.msra.mxu0 0
        %1971 = vmatprep.subr.bf16.mxu0 0
        %1972 = vmatpush1.bf16.msra.mxu0 0
        %1973 = vmatprep.subr.bf16.mxu0 0
        %1974 = vmatpush1.bf16.msra.mxu0 0
        %1975 = vmatprep.subr.bf16.mxu0 0
        %1976 = vmatpush1.bf16.msra.mxu0 0
        %1977 = vmatprep.subr.bf16.mxu0 0
        %1978 = vmatpush1.bf16.msra.mxu0 0
        %1979 = vmatprep.subr.bf16.mxu0 0
        %1980 = vmatpush1.bf16.msra.mxu0 0
        %1981 = vmatprep.subr.bf16.mxu0 0
        %1982 = vmatpush1.bf16.msra.mxu0 0
        %1983 = vmatprep.subr.bf16.mxu0 0
        %1984 = vmatpush1.bf16.msra.mxu0 0
        %1985 = vmatprep.mubr.bf16.mxu0 0
        %1986 = vmatmul.mubr.bf16.gmra.mrb[0].mxu0 %v1948
        %v1987 = vpop.f32.mrb[0].mxu0
        %v1988 = vadd.f32 0.0, %v1987
        %v1989 = vpop.f32.mrb[0].mxu0
        %v1990 = vpop.f32.mrb[0].mxu0
        %v1991 = vpop.f32.mrb[0].mxu0
        %1992 = vdwg.mxu0
        %v1994 = vsel %vm1645, %v1841, 0
        %v1997 = vsel %vm1857, %v864, 0
        %1999 = vmatprep.subr.bf16.mxu0 0
        %2000 = vmatpush1.bf16.msra.mxu0 %v1997
        %2001 = vmatprep.subr.bf16.mxu0 0
        %2002 = vmatpush1.bf16.msra.mxu0 0
        %2003 = vmatprep.subr.bf16.mxu0 0
        %2004 = vmatpush1.bf16.msra.mxu0 0
        %2005 = vmatprep.subr.bf16.mxu0 0
        %2006 = vmatpush1.bf16.msra.mxu0 0
        %2007 = vmatprep.subr.bf16.mxu0 0
        %2008 = vmatpush1.bf16.msra.mxu0 0
        %2009 = vmatprep.subr.bf16.mxu0 0
        %2010 = vmatpush1.bf16.msra.mxu0 0
        %2011 = vmatprep.subr.bf16.mxu0 0
        %2012 = vmatpush1.bf16.msra.mxu0 0
        %2013 = vmatprep.subr.bf16.mxu0 0
        %2014 = vmatpush1.bf16.msra.mxu0 0
        %2015 = vmatprep.subr.bf16.mxu0 0
        %2016 = vmatpush1.bf16.msra.mxu0 0
        %2017 = vmatprep.subr.bf16.mxu0 0
        %2018 = vmatpush1.bf16.msra.mxu0 0
        %2019 = vmatprep.subr.bf16.mxu0 0
        %2020 = vmatpush1.bf16.msra.mxu0 0
        %2021 = vmatprep.subr.bf16.mxu0 0
        %2022 = vmatpush1.bf16.msra.mxu0 0
        %2023 = vmatprep.subr.bf16.mxu0 0
        %2024 = vmatpush1.bf16.msra.mxu0 0
        %2025 = vmatprep.subr.bf16.mxu0 0
        %2026 = vmatpush1.bf16.msra.mxu0 0
        %2027 = vmatprep.subr.bf16.mxu0 0
        %2028 = vmatpush1.bf16.msra.mxu0 0
        %2029 = vmatprep.subr.bf16.mxu0 0
        %2030 = vmatpush1.bf16.msra.mxu0 0
        %2031 = vmatprep.mubr.bf16.mxu0 0
        %2032 = vmatmul.mubr.bf16.gmra.mrb[0].mxu0 %v1994
        %v2033 = vpop.f32.mrb[0].mxu0
        %v2034 = vadd.f32 0.0, %v2033
        %v2035 = vpop.f32.mrb[0].mxu0
        %v2036 = vpop.f32.mrb[0].mxu0
        %v2037 = vpop.f32.mrb[0].mxu0
        %2038 = vdwg.mxu0
        %v2040 = vsel %vm1645, %v1842, 0
        %v2043 = vsel %vm1857, %v865, 0
        %2045 = vmatprep.subr.bf16.mxu0 0
        %2046 = vmatpush1.bf16.msra.mxu0 %v2043
        %2047 = vmatprep.subr.bf16.mxu0 0
        %2048 = vmatpush1.bf16.msra.mxu0 0
        %2049 = vmatprep.subr.bf16.mxu0 0
        %2050 = vmatpush1.bf16.msra.mxu0 0
        %2051 = vmatprep.subr.bf16.mxu0 0
        %2052 = vmatpush1.bf16.msra.mxu0 0
        %2053 = vmatprep.subr.bf16.mxu0 0
        %2054 = vmatpush1.bf16.msra.mxu0 0
        %2055 = vmatprep.subr.bf16.mxu0 0
        %2056 = vmatpush1.bf16.msra.mxu0 0
        %2057 = vmatprep.subr.bf16.mxu0 0
        %2058 = vmatpush1.bf16.msra.mxu0 0
        %2059 = vmatprep.subr.bf16.mxu0 0
        %2060 = vmatpush1.bf16.msra.mxu0 0
        %2061 = vmatprep.subr.bf16.mxu0 0
        %2062 = vmatpush1.bf16.msra.mxu0 0
        %2063 = vmatprep.subr.bf16.mxu0 0
        %2064 = vmatpush1.bf16.msra.mxu0 0
        %2065 = vmatprep.subr.bf16.mxu0 0
        %2066 = vmatpush1.bf16.msra.mxu0 0
        %2067 = vmatprep.subr.bf16.mxu0 0
        %2068 = vmatpush1.bf16.msra.mxu0 0
        %2069 = vmatprep.subr.bf16.mxu0 0
        %2070 = vmatpush1.bf16.msra.mxu0 0
        %2071 = vmatprep.subr.bf16.mxu0 0
        %2072 = vmatpush1.bf16.msra.mxu0 0
        %2073 = vmatprep.subr.bf16.mxu0 0
        %2074 = vmatpush1.bf16.msra.mxu0 0
        %2075 = vmatprep.subr.bf16.mxu0 0
        %2076 = vmatpush1.bf16.msra.mxu0 0
        %2077 = vmatprep.mubr.bf16.mxu0 0
        %2078 = vmatmul.mubr.bf16.gmra.mrb[0].mxu0 %v2040
        %v2079 = vpop.f32.mrb[0].mxu0
        %v2080 = vadd.f32 0.0, %v2079
        %v2081 = vpop.f32.mrb[0].mxu0
        %v2082 = vpop.f32.mrb[0].mxu0
        %v2083 = vpop.f32.mrb[0].mxu0
        %2084 = vdwg.mxu0
        %v2086 = vsel %vm1645, %v1843, 0
        %v2089 = vsel %vm1857, %v866, 0
        %2091 = vmatprep.subr.bf16.mxu0 0
        %2092 = vmatpush1.bf16.msra.mxu0 %v2089
        %2093 = vmatprep.subr.bf16.mxu0 0
        %2094 = vmatpush1.bf16.msra.mxu0 0
        %2095 = vmatprep.subr.bf16.mxu0 0
        %2096 = vmatpush1.bf16.msra.mxu0 0
        %2097 = vmatprep.subr.bf16.mxu0 0
        %2098 = vmatpush1.bf16.msra.mxu0 0
        %2099 = vmatprep.subr.bf16.mxu0 0
        %2100 = vmatpush1.bf16.msra.mxu0 0
        %2101 = vmatprep.subr.bf16.mxu0 0
        %2102 = vmatpush1.bf16.msra.mxu0 0
        %2103 = vmatprep.subr.bf16.mxu0 0
        %2104 = vmatpush1.bf16.msra.mxu0 0
        %2105 = vmatprep.subr.bf16.mxu0 0
        %2106 = vmatpush1.bf16.msra.mxu0 0
        %2107 = vmatprep.subr.bf16.mxu0 0
        %2108 = vmatpush1.bf16.msra.mxu0 0
        %2109 = vmatprep.subr.bf16.mxu0 0
        %2110 = vmatpush1.bf16.msra.mxu0 0
        %2111 = vmatprep.subr.bf16.mxu0 0
        %2112 = vmatpush1.bf16.msra.mxu0 0
        %2113 = vmatprep.subr.bf16.mxu0 0
        %2114 = vmatpush1.bf16.msra.mxu0 0
        %2115 = vmatprep.subr.bf16.mxu0 0
        %2116 = vmatpush1.bf16.msra.mxu0 0
        %2117 = vmatprep.subr.bf16.mxu0 0
        %2118 = vmatpush1.bf16.msra.mxu0 0
        %2119 = vmatprep.subr.bf16.mxu0 0
        %2120 = vmatpush1.bf16.msra.mxu0 0
        %2121 = vmatprep.subr.bf16.mxu0 0
        %2122 = vmatpush1.bf16.msra.mxu0 0
        %2123 = vmatprep.mubr.bf16.mxu0 0
        %2124 = vmatmul.mubr.bf16.gmra.mrb[0].mxu0 %v2086
        %v2125 = vpop.f32.mrb[0].mxu0
        %v2126 = vadd.f32 0.0, %v2125
        %v2127 = vpop.f32.mrb[0].mxu0
        %v2128 = vpop.f32.mrb[0].mxu0
        %v2129 = vpop.f32.mrb[0].mxu0
        %2130 = vdwg.mxu0
        %v2132 = vsel %vm1645, %v1844, 0
        %v2135 = vsel %vm1857, %v867, 0
        %2137 = vmatprep.subr.bf16.mxu0 0
        %2138 = vmatpush1.bf16.msra.mxu0 %v2135
        %2139 = vmatprep.subr.bf16.mxu0 0
        %2140 = vmatpush1.bf16.msra.mxu0 0
        %2141 = vmatprep.subr.bf16.mxu0 0
        %2142 = vmatpush1.bf16.msra.mxu0 0
        %2143 = vmatprep.subr.bf16.mxu0 0
        %2144 = vmatpush1.bf16.msra.mxu0 0
        %2145 = vmatprep.subr.bf16.mxu0 0
        %2146 = vmatpush1.bf16.msra.mxu0 0
        %2147 = vmatprep.subr.bf16.mxu0 0
        %2148 = vmatpush1.bf16.msra.mxu0 0
        %2149 = vmatprep.subr.bf16.mxu0 0
        %2150 = vmatpush1.bf16.msra.mxu0 0
        %2151 = vmatprep.subr.bf16.mxu0 0
        %2152 = vmatpush1.bf16.msra.mxu0 0
        %2153 = vmatprep.subr.bf16.mxu0 0
        %2154 = vmatpush1.bf16.msra.mxu0 0
        %2155 = vmatprep.subr.bf16.mxu0 0
        %2156 = vmatpush1.bf16.msra.mxu0 0
        %2157 = vmatprep.subr.bf16.mxu0 0
        %2158 = vmatpush1.bf16.msra.mxu0 0
        %2159 = vmatprep.subr.bf16.mxu0 0
        %2160 = vmatpush1.bf16.msra.mxu0 0
        %2161 = vmatprep.subr.bf16.mxu0 0
        %2162 = vmatpush1.bf16.msra.mxu0 0
        %2163 = vmatprep.subr.bf16.mxu0 0
        %2164 = vmatpush1.bf16.msra.mxu0 0
        %2165 = vmatprep.subr.bf16.mxu0 0
        %2166 = vmatpush1.bf16.msra.mxu0 0
        %2167 = vmatprep.subr.bf16.mxu0 0
        %2168 = vmatpush1.bf16.msra.mxu0 0
        %2169 = vmatprep.mubr.bf16.mxu0 0
        %2170 = vmatmul.mubr.bf16.gmra.mrb[0].mxu0 %v2132
        %v2171 = vpop.f32.mrb[0].mxu0
        %v2172 = vadd.f32 0.0, %v2171
        %v2173 = vpop.f32.mrb[0].mxu0
        %v2174 = vpop.f32.mrb[0].mxu0
        %v2175 = vpop.f32.mrb[0].mxu0
        %2176 = vdwg.mxu0
        %v2178 = vsel %vm1645, %v1845, 0
        %v2181 = vsel %vm1857, %v868, 0
        %2183 = vmatprep.subr.bf16.mxu0 0
        %2184 = vmatpush1.bf16.msra.mxu0 %v2181
        %2185 = vmatprep.subr.bf16.mxu0 0
        %2186 = vmatpush1.bf16.msra.mxu0 0
        %2187 = vmatprep.subr.bf16.mxu0 0
        %2188 = vmatpush1.bf16.msra.mxu0 0
        %2189 = vmatprep.subr.bf16.mxu0 0
        %2190 = vmatpush1.bf16.msra.mxu0 0
        %2191 = vmatprep.subr.bf16.mxu0 0
        %2192 = vmatpush1.bf16.msra.mxu0 0
        %2193 = vmatprep.subr.bf16.mxu0 0
        %2194 = vmatpush1.bf16.msra.mxu0 0
        %2195 = vmatprep.subr.bf16.mxu0 0
        %2196 = vmatpush1.bf16.msra.mxu0 0
        %2197 = vmatprep.subr.bf16.mxu0 0
        %2198 = vmatpush1.bf16.msra.mxu0 0
        %2199 = vmatprep.subr.bf16.mxu0 0
        %2200 = vmatpush1.bf16.msra.mxu0 0
        %2201 = vmatprep.subr.bf16.mxu0 0
        %2202 = vmatpush1.bf16.msra.mxu0 0
        %2203 = vmatprep.subr.bf16.mxu0 0
        %2204 = vmatpush1.bf16.msra.mxu0 0
        %2205 = vmatprep.subr.bf16.mxu0 0
        %2206 = vmatpush1.bf16.msra.mxu0 0
        %2207 = vmatprep.subr.bf16.mxu0 0
        %2208 = vmatpush1.bf16.msra.mxu0 0
        %2209 = vmatprep.subr.bf16.mxu0 0
        %2210 = vmatpush1.bf16.msra.mxu0 0
        %2211 = vmatprep.subr.bf16.mxu0 0
        %2212 = vmatpush1.bf16.msra.mxu0 0
        %2213 = vmatprep.subr.bf16.mxu0 0
        %2214 = vmatpush1.bf16.msra.mxu0 0
        %2215 = vmatprep.mubr.bf16.mxu0 0
        %2216 = vmatmul.mubr.bf16.gmra.mrb[0].mxu0 %v2178
        %v2217 = vpop.f32.mrb[0].mxu0
        %v2218 = vadd.f32 0.0, %v2217
        %v2219 = vpop.f32.mrb[0].mxu0
        %v2220 = vpop.f32.mrb[0].mxu0
        %v2221 = vpop.f32.mrb[0].mxu0
        %2222 = vdwg.mxu0
        %v2224 = vsel %vm1645, %v1846, 0
        %v2227 = vsel %vm1857, %v869, 0
        %2229 = vmatprep.subr.bf16.mxu0 0
        %2230 = vmatpush1.bf16.msra.mxu0 %v2227
        %2231 = vmatprep.subr.bf16.mxu0 0
        %2232 = vmatpush1.bf16.msra.mxu0 0
        %2233 = vmatprep.subr.bf16.mxu0 0
        %2234 = vmatpush1.bf16.msra.mxu0 0
        %2235 = vmatprep.subr.bf16.mxu0 0
        %2236 = vmatpush1.bf16.msra.mxu0 0
        %2237 = vmatprep.subr.bf16.mxu0 0
        %2238 = vmatpush1.bf16.msra.mxu0 0
        %2239 = vmatprep.subr.bf16.mxu0 0
        %2240 = vmatpush1.bf16.msra.mxu0 0
        %2241 = vmatprep.subr.bf16.mxu0 0
        %2242 = vmatpush1.bf16.msra.mxu0 0
        %2243 = vmatprep.subr.bf16.mxu0 0
        %2244 = vmatpush1.bf16.msra.mxu0 0
        %2245 = vmatprep.subr.bf16.mxu0 0
        %2246 = vmatpush1.bf16.msra.mxu0 0
        %2247 = vmatprep.subr.bf16.mxu0 0
        %2248 = vmatpush1.bf16.msra.mxu0 0
        %2249 = vmatprep.subr.bf16.mxu0 0
        %2250 = vmatpush1.bf16.msra.mxu0 0
        %2251 = vmatprep.subr.bf16.mxu0 0
        %2252 = vmatpush1.bf16.msra.mxu0 0
        %2253 = vmatprep.subr.bf16.mxu0 0
        %2254 = vmatpush1.bf16.msra.mxu0 0
        %2255 = vmatprep.subr.bf16.mxu0 0
        %2256 = vmatpush1.bf16.msra.mxu0 0
        %2257 = vmatprep.subr.bf16.mxu0 0
        %2258 = vmatpush1.bf16.msra.mxu0 0
        %2259 = vmatprep.subr.bf16.mxu0 0
        %2260 = vmatpush1.bf16.msra.mxu0 0
        %2261 = vmatprep.mubr.bf16.mxu0 0
        %2262 = vmatmul.mubr.bf16.gmra.mrb[0].mxu0 %v2224
        %v2263 = vpop.f32.mrb[0].mxu0
        %v2264 = vadd.f32 0.0, %v2263
        %v2265 = vpop.f32.mrb[0].mxu0
        %v2266 = vpop.f32.mrb[0].mxu0
        %v2267 = vpop.f32.mrb[0].mxu0
        %2268 = vdwg.mxu0
        %v2270 = vsel %vm1645, %v1847, 0
        %v2273 = vsel %vm1857, %v870, 0
        %2275 = vmatprep.subr.bf16.mxu0 0
        %2276 = vmatpush1.bf16.msra.mxu0 %v2273
        %2277 = vmatprep.subr.bf16.mxu0 0
        %2278 = vmatpush1.bf16.msra.mxu0 0
        %2279 = vmatprep.subr.bf16.mxu0 0
        %2280 = vmatpush1.bf16.msra.mxu0 0
        %2281 = vmatprep.subr.bf16.mxu0 0
        %2282 = vmatpush1.bf16.msra.mxu0 0
        %2283 = vmatprep.subr.bf16.mxu0 0
        %2284 = vmatpush1.bf16.msra.mxu0 0
        %2285 = vmatprep.subr.bf16.mxu0 0
        %2286 = vmatpush1.bf16.msra.mxu0 0
        %2287 = vmatprep.subr.bf16.mxu0 0
        %2288 = vmatpush1.bf16.msra.mxu0 0
        %2289 = vmatprep.subr.bf16.mxu0 0
        %2290 = vmatpush1.bf16.msra.mxu0 0
        %2291 = vmatprep.subr.bf16.mxu0 0
        %2292 = vmatpush1.bf16.msra.mxu0 0
        %2293 = vmatprep.subr.bf16.mxu0 0
        %2294 = vmatpush1.bf16.msra.mxu0 0
        %2295 = vmatprep.subr.bf16.mxu0 0
        %2296 = vmatpush1.bf16.msra.mxu0 0
        %2297 = vmatprep.subr.bf16.mxu0 0
        %2298 = vmatpush1.bf16.msra.mxu0 0
        %2299 = vmatprep.subr.bf16.mxu0 0
        %2300 = vmatpush1.bf16.msra.mxu0 0
        %2301 = vmatprep.subr.bf16.mxu0 0
        %2302 = vmatpush1.bf16.msra.mxu0 0
        %2303 = vmatprep.subr.bf16.mxu0 0
        %2304 = vmatpush1.bf16.msra.mxu0 0
        %2305 = vmatprep.subr.bf16.mxu0 0
        %2306 = vmatpush1.bf16.msra.mxu0 0
        %2307 = vmatprep.mubr.bf16.mxu0 0
        %2308 = vmatmul.mubr.bf16.gmra.mrb[0].mxu0 %v2270
        %v2309 = vpop.f32.mrb[0].mxu0
        %v2310 = vadd.f32 0.0, %v2309
        %v2311 = vpop.f32.mrb[0].mxu0
        %v2312 = vpop.f32.mrb[0].mxu0
        %v2313 = vpop.f32.mrb[0].mxu0
        %2314 = vdwg.mxu0
        %v2316 = vsel %vm1645, %v1848, 0
        %v2319 = vsel %vm1857, %v871, 0
        %2321 = vmatprep.subr.bf16.mxu0 0
        %2322 = vmatpush1.bf16.msra.mxu0 %v2319
        %2323 = vmatprep.subr.bf16.mxu0 0
        %2324 = vmatpush1.bf16.msra.mxu0 0
        %2325 = vmatprep.subr.bf16.mxu0 0
        %2326 = vmatpush1.bf16.msra.mxu0 0
        %2327 = vmatprep.subr.bf16.mxu0 0
        %2328 = vmatpush1.bf16.msra.mxu0 0
        %2329 = vmatprep.subr.bf16.mxu0 0
        %2330 = vmatpush1.bf16.msra.mxu0 0
        %2331 = vmatprep.subr.bf16.mxu0 0
        %2332 = vmatpush1.bf16.msra.mxu0 0
        %2333 = vmatprep.subr.bf16.mxu0 0
        %2334 = vmatpush1.bf16.msra.mxu0 0
        %2335 = vmatprep.subr.bf16.mxu0 0
        %2336 = vmatpush1.bf16.msra.mxu0 0
        %2337 = vmatprep.subr.bf16.mxu0 0
        %2338 = vmatpush1.bf16.msra.mxu0 0
        %2339 = vmatprep.subr.bf16.mxu0 0
        %2340 = vmatpush1.bf16.msra.mxu0 0
        %2341 = vmatprep.subr.bf16.mxu0 0
        %2342 = vmatpush1.bf16.msra.mxu0 0
        %2343 = vmatprep.subr.bf16.mxu0 0
        %2344 = vmatpush1.bf16.msra.mxu0 0
        %2345 = vmatprep.subr.bf16.mxu0 0
        %2346 = vmatpush1.bf16.msra.mxu0 0
        %2347 = vmatprep.subr.bf16.mxu0 0
        %2348 = vmatpush1.bf16.msra.mxu0 0
        %2349 = vmatprep.subr.bf16.mxu0 0
        %2350 = vmatpush1.bf16.msra.mxu0 0
        %2351 = vmatprep.subr.bf16.mxu0 0
        %2352 = vmatpush1.bf16.msra.mxu0 0
        %2353 = vmatprep.mubr.bf16.mxu0 0
        %2354 = vmatmul.mubr.bf16.gmra.mrb[0].mxu0 %v2316
        %v2355 = vpop.f32.mrb[0].mxu0
        %v2356 = vadd.f32 0.0, %v2355
        %v2357 = vpop.f32.mrb[0].mxu0
        %v2358 = vpop.f32.mrb[0].mxu0
        %v2359 = vpop.f32.mrb[0].mxu0
        %2360 = vdwg.mxu0
        %v2362 = vsel %vm1645, %v1849, 0
        %v2365 = vsel %vm1857, %v872, 0
        %2367 = vmatprep.subr.bf16.mxu0 0
        %2368 = vmatpush1.bf16.msra.mxu0 %v2365
        %2369 = vmatprep.subr.bf16.mxu0 0
        %2370 = vmatpush1.bf16.msra.mxu0 0
        %2371 = vmatprep.subr.bf16.mxu0 0
        %2372 = vmatpush1.bf16.msra.mxu0 0
        %2373 = vmatprep.subr.bf16.mxu0 0
        %2374 = vmatpush1.bf16.msra.mxu0 0
        %2375 = vmatprep.subr.bf16.mxu0 0
        %2376 = vmatpush1.bf16.msra.mxu0 0
        %2377 = vmatprep.subr.bf16.mxu0 0
        %2378 = vmatpush1.bf16.msra.mxu0 0
        %2379 = vmatprep.subr.bf16.mxu0 0
        %2380 = vmatpush1.bf16.msra.mxu0 0
        %2381 = vmatprep.subr.bf16.mxu0 0
        %2382 = vmatpush1.bf16.msra.mxu0 0
        %2383 = vmatprep.subr.bf16.mxu0 0
        %2384 = vmatpush1.bf16.msra.mxu0 0
        %2385 = vmatprep.subr.bf16.mxu0 0
        %2386 = vmatpush1.bf16.msra.mxu0 0
        %2387 = vmatprep.subr.bf16.mxu0 0
        %2388 = vmatpush1.bf16.msra.mxu0 0
        %2389 = vmatprep.subr.bf16.mxu0 0
        %2390 = vmatpush1.bf16.msra.mxu0 0
        %2391 = vmatprep.subr.bf16.mxu0 0
        %2392 = vmatpush1.bf16.msra.mxu0 0
        %2393 = vmatprep.subr.bf16.mxu0 0
        %2394 = vmatpush1.bf16.msra.mxu0 0
        %2395 = vmatprep.subr.bf16.mxu0 0
        %2396 = vmatpush1.bf16.msra.mxu0 0
        %2397 = vmatprep.subr.bf16.mxu0 0
        %2398 = vmatpush1.bf16.msra.mxu0 0
        %2399 = vmatprep.mubr.bf16.mxu0 0
        %2400 = vmatmul.mubr.bf16.gmra.mrb[0].mxu0 %v2362
        %v2401 = vpop.f32.mrb[0].mxu0
        %v2402 = vadd.f32 0.0, %v2401
        %v2403 = vpop.f32.mrb[0].mxu0
        %v2404 = vpop.f32.mrb[0].mxu0
        %v2405 = vpop.f32.mrb[0].mxu0
        %2406 = vdwg.mxu0
        %v2408 = vsel %vm1645, %v1850, 0
        %v2411 = vsel %vm1857, %v873, 0
        %2413 = vmatprep.subr.bf16.mxu0 0
        %2414 = vmatpush1.bf16.msra.mxu0 %v2411
        %2415 = vmatprep.subr.bf16.mxu0 0
        %2416 = vmatpush1.bf16.msra.mxu0 0
        %2417 = vmatprep.subr.bf16.mxu0 0
        %2418 = vmatpush1.bf16.msra.mxu0 0
        %2419 = vmatprep.subr.bf16.mxu0 0
        %2420 = vmatpush1.bf16.msra.mxu0 0
        %2421 = vmatprep.subr.bf16.mxu0 0
        %2422 = vmatpush1.bf16.msra.mxu0 0
        %2423 = vmatprep.subr.bf16.mxu0 0
        %2424 = vmatpush1.bf16.msra.mxu0 0
        %2425 = vmatprep.subr.bf16.mxu0 0
        %2426 = vmatpush1.bf16.msra.mxu0 0
        %2427 = vmatprep.subr.bf16.mxu0 0
        %2428 = vmatpush1.bf16.msra.mxu0 0
        %2429 = vmatprep.subr.bf16.mxu0 0
        %2430 = vmatpush1.bf16.msra.mxu0 0
        %2431 = vmatprep.subr.bf16.mxu0 0
        %2432 = vmatpush1.bf16.msra.mxu0 0
        %2433 = vmatprep.subr.bf16.mxu0 0
        %2434 = vmatpush1.bf16.msra.mxu0 0
        %2435 = vmatprep.subr.bf16.mxu0 0
        %2436 = vmatpush1.bf16.msra.mxu0 0
        %2437 = vmatprep.subr.bf16.mxu0 0
        %2438 = vmatpush1.bf16.msra.mxu0 0
        %2439 = vmatprep.subr.bf16.mxu0 0
        %2440 = vmatpush1.bf16.msra.mxu0 0
        %2441 = vmatprep.subr.bf16.mxu0 0
        %2442 = vmatpush1.bf16.msra.mxu0 0
        %2443 = vmatprep.subr.bf16.mxu0 0
        %2444 = vmatpush1.bf16.msra.mxu0 0
        %2445 = vmatprep.mubr.bf16.mxu0 0
        %2446 = vmatmul.mubr.bf16.gmra.mrb[0].mxu0 %v2408
        %v2447 = vpop.f32.mrb[0].mxu0
        %v2448 = vadd.f32 0.0, %v2447
        %v2449 = vpop.f32.mrb[0].mxu0
        %v2450 = vpop.f32.mrb[0].mxu0
        %v2451 = vpop.f32.mrb[0].mxu0
        %2452 = vdwg.mxu0
        %v2454 = vsel %vm1645, %v1851, 0
        %v2457 = vsel %vm1857, %v874, 0
        %2459 = vmatprep.subr.bf16.mxu0 0
        %2460 = vmatpush1.bf16.msra.mxu0 %v2457
        %2461 = vmatprep.subr.bf16.mxu0 0
        %2462 = vmatpush1.bf16.msra.mxu0 0
        %2463 = vmatprep.subr.bf16.mxu0 0
        %2464 = vmatpush1.bf16.msra.mxu0 0
        %2465 = vmatprep.subr.bf16.mxu0 0
        %2466 = vmatpush1.bf16.msra.mxu0 0
        %2467 = vmatprep.subr.bf16.mxu0 0
        %2468 = vmatpush1.bf16.msra.mxu0 0
        %2469 = vmatprep.subr.bf16.mxu0 0
        %2470 = vmatpush1.bf16.msra.mxu0 0
        %2471 = vmatprep.subr.bf16.mxu0 0
        %2472 = vmatpush1.bf16.msra.mxu0 0
        %2473 = vmatprep.subr.bf16.mxu0 0
        %2474 = vmatpush1.bf16.msra.mxu0 0
        %2475 = vmatprep.subr.bf16.mxu0 0
        %2476 = vmatpush1.bf16.msra.mxu0 0
        %2477 = vmatprep.subr.bf16.mxu0 0
        %2478 = vmatpush1.bf16.msra.mxu0 0
        %2479 = vmatprep.subr.bf16.mxu0 0
        %2480 = vmatpush1.bf16.msra.mxu0 0
        %2481 = vmatprep.subr.bf16.mxu0 0
        %2482 = vmatpush1.bf16.msra.mxu0 0
        %2483 = vmatprep.subr.bf16.mxu0 0
        %2484 = vmatpush1.bf16.msra.mxu0 0
        %2485 = vmatprep.subr.bf16.mxu0 0
        %2486 = vmatpush1.bf16.msra.mxu0 0
        %2487 = vmatprep.subr.bf16.mxu0 0
        %2488 = vmatpush1.bf16.msra.mxu0 0
        %2489 = vmatprep.subr.bf16.mxu0 0
        %2490 = vmatpush1.bf16.msra.mxu0 0
        %2491 = vmatprep.mubr.bf16.mxu0 0
        %2492 = vmatmul.mubr.bf16.gmra.mrb[0].mxu0 %v2454
        %v2493 = vpop.f32.mrb[0].mxu0
        %v2494 = vadd.f32 0.0, %v2493
        %v2495 = vpop.f32.mrb[0].mxu0
        %v2496 = vpop.f32.mrb[0].mxu0
        %v2497 = vpop.f32.mrb[0].mxu0
        %2498 = vdwg.mxu0
        %v2500 = vsel %vm1645, %v1852, 0
        %v2503 = vsel %vm1857, %v875, 0
        %2505 = vmatprep.subr.bf16.mxu0 0
        %2506 = vmatpush1.bf16.msra.mxu0 %v2503
        %2507 = vmatprep.subr.bf16.mxu0 0
        %2508 = vmatpush1.bf16.msra.mxu0 0
        %2509 = vmatprep.subr.bf16.mxu0 0
        %2510 = vmatpush1.bf16.msra.mxu0 0
        %2511 = vmatprep.subr.bf16.mxu0 0
        %2512 = vmatpush1.bf16.msra.mxu0 0
        %2513 = vmatprep.subr.bf16.mxu0 0
        %2514 = vmatpush1.bf16.msra.mxu0 0
        %2515 = vmatprep.subr.bf16.mxu0 0
        %2516 = vmatpush1.bf16.msra.mxu0 0
        %2517 = vmatprep.subr.bf16.mxu0 0
        %2518 = vmatpush1.bf16.msra.mxu0 0
        %2519 = vmatprep.subr.bf16.mxu0 0
        %2520 = vmatpush1.bf16.msra.mxu0 0
        %2521 = vmatprep.subr.bf16.mxu0 0
        %2522 = vmatpush1.bf16.msra.mxu0 0
        %2523 = vmatprep.subr.bf16.mxu0 0
        %2524 = vmatpush1.bf16.msra.mxu0 0
        %2525 = vmatprep.subr.bf16.mxu0 0
        %2526 = vmatpush1.bf16.msra.mxu0 0
        %2527 = vmatprep.subr.bf16.mxu0 0
        %2528 = vmatpush1.bf16.msra.mxu0 0
        %2529 = vmatprep.subr.bf16.mxu0 0
        %2530 = vmatpush1.bf16.msra.mxu0 0
        %2531 = vmatprep.subr.bf16.mxu0 0
        %2532 = vmatpush1.bf16.msra.mxu0 0
        %2533 = vmatprep.subr.bf16.mxu0 0
        %2534 = vmatpush1.bf16.msra.mxu0 0
        %2535 = vmatprep.subr.bf16.mxu0 0
        %2536 = vmatpush1.bf16.msra.mxu0 0
        %2537 = vmatprep.mubr.bf16.mxu0 0
        %2538 = vmatmul.mubr.bf16.gmra.mrb[0].mxu0 %v2500
        %v2539 = vpop.f32.mrb[0].mxu0
        %v2540 = vadd.f32 0.0, %v2539
        %v2541 = vpop.f32.mrb[0].mxu0
        %v2542 = vpop.f32.mrb[0].mxu0
        %v2543 = vpop.f32.mrb[0].mxu0
        %2544 = vdwg.mxu0
        %v2546 = vsel %vm1645, %v1853, 0
        %v2549 = vsel %vm1857, %v876, 0
        %2551 = vmatprep.subr.bf16.mxu0 0
        %2552 = vmatpush1.bf16.msra.mxu0 %v2549
        %2553 = vmatprep.subr.bf16.mxu0 0
        %2554 = vmatpush1.bf16.msra.mxu0 0
        %2555 = vmatprep.subr.bf16.mxu0 0
        %2556 = vmatpush1.bf16.msra.mxu0 0
        %2557 = vmatprep.subr.bf16.mxu0 0
        %2558 = vmatpush1.bf16.msra.mxu0 0
        %2559 = vmatprep.subr.bf16.mxu0 0
        %2560 = vmatpush1.bf16.msra.mxu0 0
        %2561 = vmatprep.subr.bf16.mxu0 0
        %2562 = vmatpush1.bf16.msra.mxu0 0
        %2563 = vmatprep.subr.bf16.mxu0 0
        %2564 = vmatpush1.bf16.msra.mxu0 0
        %2565 = vmatprep.subr.bf16.mxu0 0
        %2566 = vmatpush1.bf16.msra.mxu0 0
        %2567 = vmatprep.subr.bf16.mxu0 0
        %2568 = vmatpush1.bf16.msra.mxu0 0
        %2569 = vmatprep.subr.bf16.mxu0 0
        %2570 = vmatpush1.bf16.msra.mxu0 0
        %2571 = vmatprep.subr.bf16.mxu0 0
        %2572 = vmatpush1.bf16.msra.mxu0 0
        %2573 = vmatprep.subr.bf16.mxu0 0
        %2574 = vmatpush1.bf16.msra.mxu0 0
        %2575 = vmatprep.subr.bf16.mxu0 0
        %2576 = vmatpush1.bf16.msra.mxu0 0
        %2577 = vmatprep.subr.bf16.mxu0 0
        %2578 = vmatpush1.bf16.msra.mxu0 0
        %2579 = vmatprep.subr.bf16.mxu0 0
        %2580 = vmatpush1.bf16.msra.mxu0 0
        %2581 = vmatprep.subr.bf16.mxu0 0
        %2582 = vmatpush1.bf16.msra.mxu0 0
        %2583 = vmatprep.mubr.bf16.mxu0 0
        %2584 = vmatmul.mubr.bf16.gmra.mrb[0].mxu0 %v2546
        %v2585 = vpop.f32.mrb[0].mxu0
        %v2586 = vadd.f32 0.0, %v2585
        %v2587 = vpop.f32.mrb[0].mxu0
        %v2588 = vpop.f32.mrb[0].mxu0
        %v2589 = vpop.f32.mrb[0].mxu0
        %2590 = vdwg.mxu0
        %2591 = vst.msk [vmem:[#allocation2] sm:$0xff] %vm433, %v1896
        %2592 = vst.msk [vmem:[#allocation2 + $0x10] sm:$0xff] %vm433, %v1942
        %2593 = vst.msk [vmem:[#allocation2 + $0x20] sm:$0xff] %vm433, %v1988
        %2594 = vst.msk [vmem:[#allocation2 + $0x30] sm:$0xff] %vm433, %v2034
        %2595 = vst.msk [vmem:[#allocation2 + $0x40] sm:$0xff] %vm433, %v2080
        %2596 = vst.msk [vmem:[#allocation2 + $0x50] sm:$0xff] %vm433, %v2126
        %2597 = vst.msk [vmem:[#allocation2 + $0x60] sm:$0xff] %vm433, %v2172
        %2598 = vst.msk [vmem:[#allocation2 + $0x70] sm:$0xff] %vm433, %v2218
        %2599 = vst.msk [vmem:[#allocation2 + $0x80] sm:$0xff] %vm433, %v2264
        %2600 = vst.msk [vmem:[#allocation2 + $0x90] sm:$0xff] %vm433, %v2310
        %2601 = vst.msk [vmem:[#allocation2 + $0xa0] sm:$0xff] %vm433, %v2356
        %2602 = vst.msk [vmem:[#allocation2 + $0xb0] sm:$0xff] %vm433, %v2402
        %2603 = vst.msk [vmem:[#allocation2 + $0xc0] sm:$0xff] %vm433, %v2448
        %2604 = vst.msk [vmem:[#allocation2 + $0xd0] sm:$0xff] %vm433, %v2494
        %2605 = vst.msk [vmem:[#allocation2 + $0xe0] sm:$0xff] %vm433, %v2540
        %2606 = vst.msk [vmem:[#allocation2 + $0xf0] sm:$0xff] %vm433, %v2586
        %2608 = vrot.lane.b32.xlu0 %v829, 64
        %v2609 = vpop.permute.xlu0 %2608
        %2611 = vrot.lane.b32.xlu0 %v845, 64
        %v2612 = vpop.permute.xlu0 %2611
        %v2614 = vsel %vm433, %v2609, 0
        %v2617 = vsel %vm433, %v2612, 0
        %2619 = vmatprep.subr.bf16.mxu0 0
        %2620 = vmatpush1.bf16.xpose.msra.mxu0 %v2617
        %2621 = vmatprep.subr.bf16.mxu0 0
        %2622 = vmatpush1.bf16.xpose.msra.mxu0 0
        %2623 = vmatprep.subr.bf16.mxu0 0
        %2624 = vmatpush1.bf16.xpose.msra.mxu0 0
        %2625 = vmatprep.subr.bf16.mxu0 0
        %2626 = vmatpush1.bf16.xpose.msra.mxu0 0
        %2627 = vmatprep.subr.bf16.mxu0 0
        %2628 = vmatpush1.bf16.xpose.msra.mxu0 0
        %2629 = vmatprep.subr.bf16.mxu0 0
        %2630 = vmatpush1.bf16.xpose.msra.mxu0 0
        %2631 = vmatprep.subr.bf16.mxu0 0
        %2632 = vmatpush1.bf16.xpose.msra.mxu0 0
        %2633 = vmatprep.subr.bf16.mxu0 0
        %2634 = vmatpush1.bf16.xpose.msra.mxu0 0
        %2635 = vmatprep.subr.bf16.mxu0 0
        %2636 = vmatpush1.bf16.xpose.msra.mxu0 0
        %2637 = vmatprep.subr.bf16.mxu0 0
        %2638 = vmatpush1.bf16.xpose.msra.mxu0 0
        %2639 = vmatprep.subr.bf16.mxu0 0
        %2640 = vmatpush1.bf16.xpose.msra.mxu0 0
        %2641 = vmatprep.subr.bf16.mxu0 0
        %2642 = vmatpush1.bf16.xpose.msra.mxu0 0
        %2643 = vmatprep.subr.bf16.mxu0 0
        %2644 = vmatpush1.bf16.xpose.msra.mxu0 0
        %2645 = vmatprep.subr.bf16.mxu0 0
        %2646 = vmatpush1.bf16.xpose.msra.mxu0 0
        %2647 = vmatprep.subr.bf16.mxu0 0
        %2648 = vmatpush1.bf16.xpose.msra.mxu0 0
        %2649 = vmatprep.subr.bf16.mxu0 0
        %2650 = vmatpush1.bf16.xpose.msra.mxu0 0
        %2651 = vmatprep.mubr.bf16.mxu0 0
        %2652 = vmatmul.mubr.bf16.gmra.mrb[0].mxu0 %v2614
        %v2653 = vpop.f32.mrb[0].mxu0
        %v2654 = vadd.f32 0.0, %v2653
        %v2655 = vpop.f32.mrb[0].mxu0
        %v2656 = vpop.f32.mrb[0].mxu0
        %v2657 = vpop.f32.mrb[0].mxu0
        %2658 = vdwg.mxu0
        %2660 = vrot.lane.b32.xlu0 %v830, 64
        %v2661 = vpop.permute.xlu0 %2660
        %2663 = vrot.lane.b32.xlu0 %v846, 64
        %v2664 = vpop.permute.xlu0 %2663
        %v2666 = vsel %vm433, %v2661, 0
        %v2669 = vsel %vm433, %v2664, 0
        %2671 = vmatprep.subr.bf16.mxu0 0
        %2672 = vmatpush1.bf16.xpose.msra.mxu0 %v2669
        %2673 = vmatprep.subr.bf16.mxu0 0
        %2674 = vmatpush1.bf16.xpose.msra.mxu0 0
        %2675 = vmatprep.subr.bf16.mxu0 0
        %2676 = vmatpush1.bf16.xpose.msra.mxu0 0
        %2677 = vmatprep.subr.bf16.mxu0 0
        %2678 = vmatpush1.bf16.xpose.msra.mxu0 0
        %2679 = vmatprep.subr.bf16.mxu0 0
        %2680 = vmatpush1.bf16.xpose.msra.mxu0 0
        %2681 = vmatprep.subr.bf16.mxu0 0
        %2682 = vmatpush1.bf16.xpose.msra.mxu0 0
        %2683 = vmatprep.subr.bf16.mxu0 0
        %2684 = vmatpush1.bf16.xpose.msra.mxu0 0
        %2685 = vmatprep.subr.bf16.mxu0 0
        %2686 = vmatpush1.bf16.xpose.msra.mxu0 0
        %2687 = vmatprep.subr.bf16.mxu0 0
        %2688 = vmatpush1.bf16.xpose.msra.mxu0 0
        %2689 = vmatprep.subr.bf16.mxu0 0
        %2690 = vmatpush1.bf16.xpose.msra.mxu0 0
        %2691 = vmatprep.subr.bf16.mxu0 0
        %2692 = vmatpush1.bf16.xpose.msra.mxu0 0
        %2693 = vmatprep.subr.bf16.mxu0 0
        %2694 = vmatpush1.bf16.xpose.msra.mxu0 0
        %2695 = vmatprep.subr.bf16.mxu0 0
        %2696 = vmatpush1.bf16.xpose.msra.mxu0 0
        %2697 = vmatprep.subr.bf16.mxu0 0
        %2698 = vmatpush1.bf16.xpose.msra.mxu0 0
        %2699 = vmatprep.subr.bf16.mxu0 0
        %2700 = vmatpush1.bf16.xpose.msra.mxu0 0
        %2701 = vmatprep.subr.bf16.mxu0 0
        %2702 = vmatpush1.bf16.xpose.msra.mxu0 0
        %2703 = vmatprep.mubr.bf16.mxu0 0
        %2704 = vmatmul.mubr.bf16.gmra.mrb[0].mxu0 %v2666
        %v2705 = vpop.f32.mrb[0].mxu0
        %v2706 = vadd.f32 0.0, %v2705
        %v2707 = vpop.f32.mrb[0].mxu0
        %v2708 = vpop.f32.mrb[0].mxu0
        %v2709 = vpop.f32.mrb[0].mxu0
        %2710 = vdwg.mxu0
        %2712 = vrot.lane.b32.xlu0 %v831, 64
        %v2713 = vpop.permute.xlu0 %2712
        %2715 = vrot.lane.b32.xlu0 %v847, 64
        %v2716 = vpop.permute.xlu0 %2715
        %v2718 = vsel %vm433, %v2713, 0
        %v2721 = vsel %vm433, %v2716, 0
        %2723 = vmatprep.subr.bf16.mxu0 0
        %2724 = vmatpush1.bf16.xpose.msra.mxu0 %v2721
        %2725 = vmatprep.subr.bf16.mxu0 0
        %2726 = vmatpush1.bf16.xpose.msra.mxu0 0
        %2727 = vmatprep.subr.bf16.mxu0 0
        %2728 = vmatpush1.bf16.xpose.msra.mxu0 0
        %2729 = vmatprep.subr.bf16.mxu0 0
        %2730 = vmatpush1.bf16.xpose.msra.mxu0 0
        %2731 = vmatprep.subr.bf16.mxu0 0
        %2732 = vmatpush1.bf16.xpose.msra.mxu0 0
        %2733 = vmatprep.subr.bf16.mxu0 0
        %2734 = vmatpush1.bf16.xpose.msra.mxu0 0
        %2735 = vmatprep.subr.bf16.mxu0 0
        %2736 = vmatpush1.bf16.xpose.msra.mxu0 0
        %2737 = vmatprep.subr.bf16.mxu0 0
        %2738 = vmatpush1.bf16.xpose.msra.mxu0 0
        %2739 = vmatprep.subr.bf16.mxu0 0
        %2740 = vmatpush1.bf16.xpose.msra.mxu0 0
        %2741 = vmatprep.subr.bf16.mxu0 0
        %2742 = vmatpush1.bf16.xpose.msra.mxu0 0
        %2743 = vmatprep.subr.bf16.mxu0 0
        %2744 = vmatpush1.bf16.xpose.msra.mxu0 0
        %2745 = vmatprep.subr.bf16.mxu0 0
        %2746 = vmatpush1.bf16.xpose.msra.mxu0 0
        %2747 = vmatprep.subr.bf16.mxu0 0
        %2748 = vmatpush1.bf16.xpose.msra.mxu0 0
        %2749 = vmatprep.subr.bf16.mxu0 0
        %2750 = vmatpush1.bf16.xpose.msra.mxu0 0
        %2751 = vmatprep.subr.bf16.mxu0 0
        %2752 = vmatpush1.bf16.xpose.msra.mxu0 0
        %2753 = vmatprep.subr.bf16.mxu0 0
        %2754 = vmatpush1.bf16.xpose.msra.mxu0 0
        %2755 = vmatprep.mubr.bf16.mxu0 0
        %2756 = vmatmul.mubr.bf16.gmra.mrb[0].mxu0 %v2718
        %v2757 = vpop.f32.mrb[0].mxu0
        %v2758 = vadd.f32 0.0, %v2757
        %v2759 = vpop.f32.mrb[0].mxu0
        %v2760 = vpop.f32.mrb[0].mxu0
        %v2761 = vpop.f32.mrb[0].mxu0
        %2762 = vdwg.mxu0
        %2764 = vrot.lane.b32.xlu0 %v832, 64
        %v2765 = vpop.permute.xlu0 %2764
        %2767 = vrot.lane.b32.xlu0 %v848, 64
        %v2768 = vpop.permute.xlu0 %2767
        %v2770 = vsel %vm433, %v2765, 0
        %v2773 = vsel %vm433, %v2768, 0
        %2775 = vmatprep.subr.bf16.mxu0 0
        %2776 = vmatpush1.bf16.xpose.msra.mxu0 %v2773
        %2777 = vmatprep.subr.bf16.mxu0 0
        %2778 = vmatpush1.bf16.xpose.msra.mxu0 0
        %2779 = vmatprep.subr.bf16.mxu0 0
        %2780 = vmatpush1.bf16.xpose.msra.mxu0 0
        %2781 = vmatprep.subr.bf16.mxu0 0
        %2782 = vmatpush1.bf16.xpose.msra.mxu0 0
        %2783 = vmatprep.subr.bf16.mxu0 0
        %2784 = vmatpush1.bf16.xpose.msra.mxu0 0
        %2785 = vmatprep.subr.bf16.mxu0 0
        %2786 = vmatpush1.bf16.xpose.msra.mxu0 0
        %2787 = vmatprep.subr.bf16.mxu0 0
        %2788 = vmatpush1.bf16.xpose.msra.mxu0 0
        %2789 = vmatprep.subr.bf16.mxu0 0
        %2790 = vmatpush1.bf16.xpose.msra.mxu0 0
        %2791 = vmatprep.subr.bf16.mxu0 0
        %2792 = vmatpush1.bf16.xpose.msra.mxu0 0
        %2793 = vmatprep.subr.bf16.mxu0 0
        %2794 = vmatpush1.bf16.xpose.msra.mxu0 0
        %2795 = vmatprep.subr.bf16.mxu0 0
        %2796 = vmatpush1.bf16.xpose.msra.mxu0 0
        %2797 = vmatprep.subr.bf16.mxu0 0
        %2798 = vmatpush1.bf16.xpose.msra.mxu0 0
        %2799 = vmatprep.subr.bf16.mxu0 0
        %2800 = vmatpush1.bf16.xpose.msra.mxu0 0
        %2801 = vmatprep.subr.bf16.mxu0 0
        %2802 = vmatpush1.bf16.xpose.msra.mxu0 0
        %2803 = vmatprep.subr.bf16.mxu0 0
        %2804 = vmatpush1.bf16.xpose.msra.mxu0 0
        %2805 = vmatprep.subr.bf16.mxu0 0
        %2806 = vmatpush1.bf16.xpose.msra.mxu0 0
        %2807 = vmatprep.mubr.bf16.mxu0 0
        %2808 = vmatmul.mubr.bf16.gmra.mrb[0].mxu0 %v2770
        %v2809 = vpop.f32.mrb[0].mxu0
        %v2810 = vadd.f32 0.0, %v2809
        %v2811 = vpop.f32.mrb[0].mxu0
        %v2812 = vpop.f32.mrb[0].mxu0
        %v2813 = vpop.f32.mrb[0].mxu0
        %2814 = vdwg.mxu0
        %2816 = vrot.lane.b32.xlu0 %v833, 64
        %v2817 = vpop.permute.xlu0 %2816
        %2819 = vrot.lane.b32.xlu0 %v849, 64
        %v2820 = vpop.permute.xlu0 %2819
        %v2822 = vsel %vm433, %v2817, 0
        %v2825 = vsel %vm433, %v2820, 0
        %2827 = vmatprep.subr.bf16.mxu0 0
        %2828 = vmatpush1.bf16.xpose.msra.mxu0 %v2825
        %2829 = vmatprep.subr.bf16.mxu0 0
        %2830 = vmatpush1.bf16.xpose.msra.mxu0 0
        %2831 = vmatprep.subr.bf16.mxu0 0
        %2832 = vmatpush1.bf16.xpose.msra.mxu0 0
        %2833 = vmatprep.subr.bf16.mxu0 0
        %2834 = vmatpush1.bf16.xpose.msra.mxu0 0
        %2835 = vmatprep.subr.bf16.mxu0 0
        %2836 = vmatpush1.bf16.xpose.msra.mxu0 0
        %2837 = vmatprep.subr.bf16.mxu0 0
        %2838 = vmatpush1.bf16.xpose.msra.mxu0 0
        %2839 = vmatprep.subr.bf16.mxu0 0
        %2840 = vmatpush1.bf16.xpose.msra.mxu0 0
        %2841 = vmatprep.subr.bf16.mxu0 0
        %2842 = vmatpush1.bf16.xpose.msra.mxu0 0
        %2843 = vmatprep.subr.bf16.mxu0 0
        %2844 = vmatpush1.bf16.xpose.msra.mxu0 0
        %2845 = vmatprep.subr.bf16.mxu0 0
        %2846 = vmatpush1.bf16.xpose.msra.mxu0 0
        %2847 = vmatprep.subr.bf16.mxu0 0
        %2848 = vmatpush1.bf16.xpose.msra.mxu0 0
        %2849 = vmatprep.subr.bf16.mxu0 0
        %2850 = vmatpush1.bf16.xpose.msra.mxu0 0
        %2851 = vmatprep.subr.bf16.mxu0 0
        %2852 = vmatpush1.bf16.xpose.msra.mxu0 0
        %2853 = vmatprep.subr.bf16.mxu0 0
        %2854 = vmatpush1.bf16.xpose.msra.mxu0 0
        %2855 = vmatprep.subr.bf16.mxu0 0
        %2856 = vmatpush1.bf16.xpose.msra.mxu0 0
        %2857 = vmatprep.subr.bf16.mxu0 0
        %2858 = vmatpush1.bf16.xpose.msra.mxu0 0
        %2859 = vmatprep.mubr.bf16.mxu0 0
        %2860 = vmatmul.mubr.bf16.gmra.mrb[0].mxu0 %v2822
        %v2861 = vpop.f32.mrb[0].mxu0
        %v2862 = vadd.f32 0.0, %v2861
        %v2863 = vpop.f32.mrb[0].mxu0
        %v2864 = vpop.f32.mrb[0].mxu0
        %v2865 = vpop.f32.mrb[0].mxu0
        %2866 = vdwg.mxu0
        %2868 = vrot.lane.b32.xlu0 %v834, 64
        %v2869 = vpop.permute.xlu0 %2868
        %2871 = vrot.lane.b32.xlu0 %v850, 64
        %v2872 = vpop.permute.xlu0 %2871
        %v2874 = vsel %vm433, %v2869, 0
        %v2877 = vsel %vm433, %v2872, 0
        %2879 = vmatprep.subr.bf16.mxu0 0
        %2880 = vmatpush1.bf16.xpose.msra.mxu0 %v2877
        %2881 = vmatprep.subr.bf16.mxu0 0
        %2882 = vmatpush1.bf16.xpose.msra.mxu0 0
        %2883 = vmatprep.subr.bf16.mxu0 0
        %2884 = vmatpush1.bf16.xpose.msra.mxu0 0
        %2885 = vmatprep.subr.bf16.mxu0 0
        %2886 = vmatpush1.bf16.xpose.msra.mxu0 0
        %2887 = vmatprep.subr.bf16.mxu0 0
        %2888 = vmatpush1.bf16.xpose.msra.mxu0 0
        %2889 = vmatprep.subr.bf16.mxu0 0
        %2890 = vmatpush1.bf16.xpose.msra.mxu0 0
        %2891 = vmatprep.subr.bf16.mxu0 0
        %2892 = vmatpush1.bf16.xpose.msra.mxu0 0
        %2893 = vmatprep.subr.bf16.mxu0 0
        %2894 = vmatpush1.bf16.xpose.msra.mxu0 0
        %2895 = vmatprep.subr.bf16.mxu0 0
        %2896 = vmatpush1.bf16.xpose.msra.mxu0 0
        %2897 = vmatprep.subr.bf16.mxu0 0
        %2898 = vmatpush1.bf16.xpose.msra.mxu0 0
        %2899 = vmatprep.subr.bf16.mxu0 0
        %2900 = vmatpush1.bf16.xpose.msra.mxu0 0
        %2901 = vmatprep.subr.bf16.mxu0 0
        %2902 = vmatpush1.bf16.xpose.msra.mxu0 0
        %2903 = vmatprep.subr.bf16.mxu0 0
        %2904 = vmatpush1.bf16.xpose.msra.mxu0 0
        %2905 = vmatprep.subr.bf16.mxu0 0
        %2906 = vmatpush1.bf16.xpose.msra.mxu0 0
        %2907 = vmatprep.subr.bf16.mxu0 0
        %2908 = vmatpush1.bf16.xpose.msra.mxu0 0
        %2909 = vmatprep.subr.bf16.mxu0 0
        %2910 = vmatpush1.bf16.xpose.msra.mxu0 0
        %2911 = vmatprep.mubr.bf16.mxu0 0
        %2912 = vmatmul.mubr.bf16.gmra.mrb[0].mxu0 %v2874
        %v2913 = vpop.f32.mrb[0].mxu0
        %v2914 = vadd.f32 0.0, %v2913
        %v2915 = vpop.f32.mrb[0].mxu0
        %v2916 = vpop.f32.mrb[0].mxu0
        %v2917 = vpop.f32.mrb[0].mxu0
        %2918 = vdwg.mxu0
        %2920 = vrot.lane.b32.xlu0 %v835, 64
        %v2921 = vpop.permute.xlu0 %2920
        %2923 = vrot.lane.b32.xlu0 %v851, 64
        %v2924 = vpop.permute.xlu0 %2923
        %v2926 = vsel %vm433, %v2921, 0
        %v2929 = vsel %vm433, %v2924, 0
        %2931 = vmatprep.subr.bf16.mxu0 0
        %2932 = vmatpush1.bf16.xpose.msra.mxu0 %v2929
        %2933 = vmatprep.subr.bf16.mxu0 0
        %2934 = vmatpush1.bf16.xpose.msra.mxu0 0
        %2935 = vmatprep.subr.bf16.mxu0 0
        %2936 = vmatpush1.bf16.xpose.msra.mxu0 0
        %2937 = vmatprep.subr.bf16.mxu0 0
        %2938 = vmatpush1.bf16.xpose.msra.mxu0 0
        %2939 = vmatprep.subr.bf16.mxu0 0
        %2940 = vmatpush1.bf16.xpose.msra.mxu0 0
        %2941 = vmatprep.subr.bf16.mxu0 0
        %2942 = vmatpush1.bf16.xpose.msra.mxu0 0
        %2943 = vmatprep.subr.bf16.mxu0 0
        %2944 = vmatpush1.bf16.xpose.msra.mxu0 0
        %2945 = vmatprep.subr.bf16.mxu0 0
        %2946 = vmatpush1.bf16.xpose.msra.mxu0 0
        %2947 = vmatprep.subr.bf16.mxu0 0
        %2948 = vmatpush1.bf16.xpose.msra.mxu0 0
        %2949 = vmatprep.subr.bf16.mxu0 0
        %2950 = vmatpush1.bf16.xpose.msra.mxu0 0
        %2951 = vmatprep.subr.bf16.mxu0 0
        %2952 = vmatpush1.bf16.xpose.msra.mxu0 0
        %2953 = vmatprep.subr.bf16.mxu0 0
        %2954 = vmatpush1.bf16.xpose.msra.mxu0 0
        %2955 = vmatprep.subr.bf16.mxu0 0
        %2956 = vmatpush1.bf16.xpose.msra.mxu0 0
        %2957 = vmatprep.subr.bf16.mxu0 0
        %2958 = vmatpush1.bf16.xpose.msra.mxu0 0
        %2959 = vmatprep.subr.bf16.mxu0 0
        %2960 = vmatpush1.bf16.xpose.msra.mxu0 0
        %2961 = vmatprep.subr.bf16.mxu0 0
        %2962 = vmatpush1.bf16.xpose.msra.mxu0 0
        %2963 = vmatprep.mubr.bf16.mxu0 0
        %2964 = vmatmul.mubr.bf16.gmra.mrb[0].mxu0 %v2926
        %v2965 = vpop.f32.mrb[0].mxu0
        %v2966 = vadd.f32 0.0, %v2965
        %v2967 = vpop.f32.mrb[0].mxu0
        %v2968 = vpop.f32.mrb[0].mxu0
        %v2969 = vpop.f32.mrb[0].mxu0
        %2970 = vdwg.mxu0
        %2972 = vrot.lane.b32.xlu0 %v836, 64
        %v2973 = vpop.permute.xlu0 %2972
        %2975 = vrot.lane.b32.xlu0 %v852, 64
        %v2976 = vpop.permute.xlu0 %2975
        %v2978 = vsel %vm433, %v2973, 0
        %v2981 = vsel %vm433, %v2976, 0
        %2983 = vmatprep.subr.bf16.mxu0 0
        %2984 = vmatpush1.bf16.xpose.msra.mxu0 %v2981
        %2985 = vmatprep.subr.bf16.mxu0 0
        %2986 = vmatpush1.bf16.xpose.msra.mxu0 0
        %2987 = vmatprep.subr.bf16.mxu0 0
        %2988 = vmatpush1.bf16.xpose.msra.mxu0 0
        %2989 = vmatprep.subr.bf16.mxu0 0
        %2990 = vmatpush1.bf16.xpose.msra.mxu0 0
        %2991 = vmatprep.subr.bf16.mxu0 0
        %2992 = vmatpush1.bf16.xpose.msra.mxu0 0
        %2993 = vmatprep.subr.bf16.mxu0 0
        %2994 = vmatpush1.bf16.xpose.msra.mxu0 0
        %2995 = vmatprep.subr.bf16.mxu0 0
        %2996 = vmatpush1.bf16.xpose.msra.mxu0 0
        %2997 = vmatprep.subr.bf16.mxu0 0
        %2998 = vmatpush1.bf16.xpose.msra.mxu0 0
        %2999 = vmatprep.subr.bf16.mxu0 0
        %3000 = vmatpush1.bf16.xpose.msra.mxu0 0
        %3001 = vmatprep.subr.bf16.mxu0 0
        %3002 = vmatpush1.bf16.xpose.msra.mxu0 0
        %3003 = vmatprep.subr.bf16.mxu0 0
        %3004 = vmatpush1.bf16.xpose.msra.mxu0 0
        %3005 = vmatprep.subr.bf16.mxu0 0
        %3006 = vmatpush1.bf16.xpose.msra.mxu0 0
        %3007 = vmatprep.subr.bf16.mxu0 0
        %3008 = vmatpush1.bf16.xpose.msra.mxu0 0
        %3009 = vmatprep.subr.bf16.mxu0 0
        %3010 = vmatpush1.bf16.xpose.msra.mxu0 0
        %3011 = vmatprep.subr.bf16.mxu0 0
        %3012 = vmatpush1.bf16.xpose.msra.mxu0 0
        %3013 = vmatprep.subr.bf16.mxu0 0
        %3014 = vmatpush1.bf16.xpose.msra.mxu0 0
        %3015 = vmatprep.mubr.bf16.mxu0 0
        %3016 = vmatmul.mubr.bf16.gmra.mrb[0].mxu0 %v2978
        %v3017 = vpop.f32.mrb[0].mxu0
        %v3018 = vadd.f32 0.0, %v3017
        %v3019 = vpop.f32.mrb[0].mxu0
        %v3020 = vpop.f32.mrb[0].mxu0
        %v3021 = vpop.f32.mrb[0].mxu0
        %3022 = vdwg.mxu0
        %3024 = vrot.lane.b32.xlu0 %v837, 64
        %v3025 = vpop.permute.xlu0 %3024
        %3027 = vrot.lane.b32.xlu0 %v853, 64
        %v3028 = vpop.permute.xlu0 %3027
        %v3030 = vsel %vm433, %v3025, 0
        %v3033 = vsel %vm433, %v3028, 0
        %3035 = vmatprep.subr.bf16.mxu0 0
        %3036 = vmatpush1.bf16.xpose.msra.mxu0 %v3033
        %3037 = vmatprep.subr.bf16.mxu0 0
        %3038 = vmatpush1.bf16.xpose.msra.mxu0 0
        %3039 = vmatprep.subr.bf16.mxu0 0
        %3040 = vmatpush1.bf16.xpose.msra.mxu0 0
        %3041 = vmatprep.subr.bf16.mxu0 0
        %3042 = vmatpush1.bf16.xpose.msra.mxu0 0
        %3043 = vmatprep.subr.bf16.mxu0 0
        %3044 = vmatpush1.bf16.xpose.msra.mxu0 0
        %3045 = vmatprep.subr.bf16.mxu0 0
        %3046 = vmatpush1.bf16.xpose.msra.mxu0 0
        %3047 = vmatprep.subr.bf16.mxu0 0
        %3048 = vmatpush1.bf16.xpose.msra.mxu0 0
        %3049 = vmatprep.subr.bf16.mxu0 0
        %3050 = vmatpush1.bf16.xpose.msra.mxu0 0
        %3051 = vmatprep.subr.bf16.mxu0 0
        %3052 = vmatpush1.bf16.xpose.msra.mxu0 0
        %3053 = vmatprep.subr.bf16.mxu0 0
        %3054 = vmatpush1.bf16.xpose.msra.mxu0 0
        %3055 = vmatprep.subr.bf16.mxu0 0
        %3056 = vmatpush1.bf16.xpose.msra.mxu0 0
        %3057 = vmatprep.subr.bf16.mxu0 0
        %3058 = vmatpush1.bf16.xpose.msra.mxu0 0
        %3059 = vmatprep.subr.bf16.mxu0 0
        %3060 = vmatpush1.bf16.xpose.msra.mxu0 0
        %3061 = vmatprep.subr.bf16.mxu0 0
        %3062 = vmatpush1.bf16.xpose.msra.mxu0 0
        %3063 = vmatprep.subr.bf16.mxu0 0
        %3064 = vmatpush1.bf16.xpose.msra.mxu0 0
        %3065 = vmatprep.subr.bf16.mxu0 0
        %3066 = vmatpush1.bf16.xpose.msra.mxu0 0
        %3067 = vmatprep.mubr.bf16.mxu0 0
        %3068 = vmatmul.mubr.bf16.gmra.mrb[0].mxu0 %v3030
        %v3069 = vpop.f32.mrb[0].mxu0
        %v3070 = vadd.f32 0.0, %v3069
        %v3071 = vpop.f32.mrb[0].mxu0
        %v3072 = vpop.f32.mrb[0].mxu0
        %v3073 = vpop.f32.mrb[0].mxu0
        %3074 = vdwg.mxu0
        %3076 = vrot.lane.b32.xlu0 %v838, 64
        %v3077 = vpop.permute.xlu0 %3076
        %3079 = vrot.lane.b32.xlu0 %v854, 64
        %v3080 = vpop.permute.xlu0 %3079
        %v3082 = vsel %vm433, %v3077, 0
        %v3085 = vsel %vm433, %v3080, 0
        %3087 = vmatprep.subr.bf16.mxu0 0
        %3088 = vmatpush1.bf16.xpose.msra.mxu0 %v3085
        %3089 = vmatprep.subr.bf16.mxu0 0
        %3090 = vmatpush1.bf16.xpose.msra.mxu0 0
        %3091 = vmatprep.subr.bf16.mxu0 0
        %3092 = vmatpush1.bf16.xpose.msra.mxu0 0
        %3093 = vmatprep.subr.bf16.mxu0 0
        %3094 = vmatpush1.bf16.xpose.msra.mxu0 0
        %3095 = vmatprep.subr.bf16.mxu0 0
        %3096 = vmatpush1.bf16.xpose.msra.mxu0 0
        %3097 = vmatprep.subr.bf16.mxu0 0
        %3098 = vmatpush1.bf16.xpose.msra.mxu0 0
        %3099 = vmatprep.subr.bf16.mxu0 0
        %3100 = vmatpush1.bf16.xpose.msra.mxu0 0
        %3101 = vmatprep.subr.bf16.mxu0 0
        %3102 = vmatpush1.bf16.xpose.msra.mxu0 0
        %3103 = vmatprep.subr.bf16.mxu0 0
        %3104 = vmatpush1.bf16.xpose.msra.mxu0 0
        %3105 = vmatprep.subr.bf16.mxu0 0
        %3106 = vmatpush1.bf16.xpose.msra.mxu0 0
        %3107 = vmatprep.subr.bf16.mxu0 0
        %3108 = vmatpush1.bf16.xpose.msra.mxu0 0
        %3109 = vmatprep.subr.bf16.mxu0 0
        %3110 = vmatpush1.bf16.xpose.msra.mxu0 0
        %3111 = vmatprep.subr.bf16.mxu0 0
        %3112 = vmatpush1.bf16.xpose.msra.mxu0 0
        %3113 = vmatprep.subr.bf16.mxu0 0
        %3114 = vmatpush1.bf16.xpose.msra.mxu0 0
        %3115 = vmatprep.subr.bf16.mxu0 0
        %3116 = vmatpush1.bf16.xpose.msra.mxu0 0
        %3117 = vmatprep.subr.bf16.mxu0 0
        %3118 = vmatpush1.bf16.xpose.msra.mxu0 0
        %3119 = vmatprep.mubr.bf16.mxu0 0
        %3120 = vmatmul.mubr.bf16.gmra.mrb[0].mxu0 %v3082
        %v3121 = vpop.f32.mrb[0].mxu0
        %v3122 = vadd.f32 0.0, %v3121
        %v3123 = vpop.f32.mrb[0].mxu0
        %v3124 = vpop.f32.mrb[0].mxu0
        %v3125 = vpop.f32.mrb[0].mxu0
        %3126 = vdwg.mxu0
        %3128 = vrot.lane.b32.xlu0 %v839, 64
        %v3129 = vpop.permute.xlu0 %3128
        %3131 = vrot.lane.b32.xlu0 %v855, 64
        %v3132 = vpop.permute.xlu0 %3131
        %v3134 = vsel %vm433, %v3129, 0
        %v3137 = vsel %vm433, %v3132, 0
        %3139 = vmatprep.subr.bf16.mxu0 0
        %3140 = vmatpush1.bf16.xpose.msra.mxu0 %v3137
        %3141 = vmatprep.subr.bf16.mxu0 0
        %3142 = vmatpush1.bf16.xpose.msra.mxu0 0
        %3143 = vmatprep.subr.bf16.mxu0 0
        %3144 = vmatpush1.bf16.xpose.msra.mxu0 0
        %3145 = vmatprep.subr.bf16.mxu0 0
        %3146 = vmatpush1.bf16.xpose.msra.mxu0 0
        %3147 = vmatprep.subr.bf16.mxu0 0
        %3148 = vmatpush1.bf16.xpose.msra.mxu0 0
        %3149 = vmatprep.subr.bf16.mxu0 0
        %3150 = vmatpush1.bf16.xpose.msra.mxu0 0
        %3151 = vmatprep.subr.bf16.mxu0 0
        %3152 = vmatpush1.bf16.xpose.msra.mxu0 0
        %3153 = vmatprep.subr.bf16.mxu0 0
        %3154 = vmatpush1.bf16.xpose.msra.mxu0 0
        %3155 = vmatprep.subr.bf16.mxu0 0
        %3156 = vmatpush1.bf16.xpose.msra.mxu0 0
        %3157 = vmatprep.subr.bf16.mxu0 0
        %3158 = vmatpush1.bf16.xpose.msra.mxu0 0
        %3159 = vmatprep.subr.bf16.mxu0 0
        %3160 = vmatpush1.bf16.xpose.msra.mxu0 0
        %3161 = vmatprep.subr.bf16.mxu0 0
        %3162 = vmatpush1.bf16.xpose.msra.mxu0 0
        %3163 = vmatprep.subr.bf16.mxu0 0
        %3164 = vmatpush1.bf16.xpose.msra.mxu0 0
        %3165 = vmatprep.subr.bf16.mxu0 0
        %3166 = vmatpush1.bf16.xpose.msra.mxu0 0
        %3167 = vmatprep.subr.bf16.mxu0 0
        %3168 = vmatpush1.bf16.xpose.msra.mxu0 0
        %3169 = vmatprep.subr.bf16.mxu0 0
        %3170 = vmatpush1.bf16.xpose.msra.mxu0 0
        %3171 = vmatprep.mubr.bf16.mxu0 0
        %3172 = vmatmul.mubr.bf16.gmra.mrb[0].mxu0 %v3134
        %v3173 = vpop.f32.mrb[0].mxu0
        %v3174 = vadd.f32 0.0, %v3173
        %v3175 = vpop.f32.mrb[0].mxu0
        %v3176 = vpop.f32.mrb[0].mxu0
        %v3177 = vpop.f32.mrb[0].mxu0
        %3178 = vdwg.mxu0
        %3180 = vrot.lane.b32.xlu0 %v840, 64
        %v3181 = vpop.permute.xlu0 %3180
        %3183 = vrot.lane.b32.xlu0 %v856, 64
        %v3184 = vpop.permute.xlu0 %3183
        %v3186 = vsel %vm433, %v3181, 0
        %v3189 = vsel %vm433, %v3184, 0
        %3191 = vmatprep.subr.bf16.mxu0 0
        %3192 = vmatpush1.bf16.xpose.msra.mxu0 %v3189
        %3193 = vmatprep.subr.bf16.mxu0 0
        %3194 = vmatpush1.bf16.xpose.msra.mxu0 0
        %3195 = vmatprep.subr.bf16.mxu0 0
        %3196 = vmatpush1.bf16.xpose.msra.mxu0 0
        %3197 = vmatprep.subr.bf16.mxu0 0
        %3198 = vmatpush1.bf16.xpose.msra.mxu0 0
        %3199 = vmatprep.subr.bf16.mxu0 0
        %3200 = vmatpush1.bf16.xpose.msra.mxu0 0
        %3201 = vmatprep.subr.bf16.mxu0 0
        %3202 = vmatpush1.bf16.xpose.msra.mxu0 0
        %3203 = vmatprep.subr.bf16.mxu0 0
        %3204 = vmatpush1.bf16.xpose.msra.mxu0 0
        %3205 = vmatprep.subr.bf16.mxu0 0
        %3206 = vmatpush1.bf16.xpose.msra.mxu0 0
        %3207 = vmatprep.subr.bf16.mxu0 0
        %3208 = vmatpush1.bf16.xpose.msra.mxu0 0
        %3209 = vmatprep.subr.bf16.mxu0 0
        %3210 = vmatpush1.bf16.xpose.msra.mxu0 0
        %3211 = vmatprep.subr.bf16.mxu0 0
        %3212 = vmatpush1.bf16.xpose.msra.mxu0 0
        %3213 = vmatprep.subr.bf16.mxu0 0
        %3214 = vmatpush1.bf16.xpose.msra.mxu0 0
        %3215 = vmatprep.subr.bf16.mxu0 0
        %3216 = vmatpush1.bf16.xpose.msra.mxu0 0
        %3217 = vmatprep.subr.bf16.mxu0 0
        %3218 = vmatpush1.bf16.xpose.msra.mxu0 0
        %3219 = vmatprep.subr.bf16.mxu0 0
        %3220 = vmatpush1.bf16.xpose.msra.mxu0 0
        %3221 = vmatprep.subr.bf16.mxu0 0
        %3222 = vmatpush1.bf16.xpose.msra.mxu0 0
        %3223 = vmatprep.mubr.bf16.mxu0 0
        %3224 = vmatmul.mubr.bf16.gmra.mrb[0].mxu0 %v3186
        %v3225 = vpop.f32.mrb[0].mxu0
        %v3226 = vadd.f32 0.0, %v3225
        %v3227 = vpop.f32.mrb[0].mxu0
        %v3228 = vpop.f32.mrb[0].mxu0
        %v3229 = vpop.f32.mrb[0].mxu0
        %3230 = vdwg.mxu0
        %3232 = vrot.lane.b32.xlu0 %v841, 64
        %v3233 = vpop.permute.xlu0 %3232
        %3235 = vrot.lane.b32.xlu0 %v857, 64
        %v3236 = vpop.permute.xlu0 %3235
        %v3238 = vsel %vm433, %v3233, 0
        %v3241 = vsel %vm433, %v3236, 0
        %3243 = vmatprep.subr.bf16.mxu0 0
        %3244 = vmatpush1.bf16.xpose.msra.mxu0 %v3241
        %3245 = vmatprep.subr.bf16.mxu0 0
        %3246 = vmatpush1.bf16.xpose.msra.mxu0 0
        %3247 = vmatprep.subr.bf16.mxu0 0
        %3248 = vmatpush1.bf16.xpose.msra.mxu0 0
        %3249 = vmatprep.subr.bf16.mxu0 0
        %3250 = vmatpush1.bf16.xpose.msra.mxu0 0
        %3251 = vmatprep.subr.bf16.mxu0 0
        %3252 = vmatpush1.bf16.xpose.msra.mxu0 0
        %3253 = vmatprep.subr.bf16.mxu0 0
        %3254 = vmatpush1.bf16.xpose.msra.mxu0 0
        %3255 = vmatprep.subr.bf16.mxu0 0
        %3256 = vmatpush1.bf16.xpose.msra.mxu0 0
        %3257 = vmatprep.subr.bf16.mxu0 0
        %3258 = vmatpush1.bf16.xpose.msra.mxu0 0
        %3259 = vmatprep.subr.bf16.mxu0 0
        %3260 = vmatpush1.bf16.xpose.msra.mxu0 0
        %3261 = vmatprep.subr.bf16.mxu0 0
        %3262 = vmatpush1.bf16.xpose.msra.mxu0 0
        %3263 = vmatprep.subr.bf16.mxu0 0
        %3264 = vmatpush1.bf16.xpose.msra.mxu0 0
        %3265 = vmatprep.subr.bf16.mxu0 0
        %3266 = vmatpush1.bf16.xpose.msra.mxu0 0
        %3267 = vmatprep.subr.bf16.mxu0 0
        %3268 = vmatpush1.bf16.xpose.msra.mxu0 0
        %3269 = vmatprep.subr.bf16.mxu0 0
        %3270 = vmatpush1.bf16.xpose.msra.mxu0 0
        %3271 = vmatprep.subr.bf16.mxu0 0
        %3272 = vmatpush1.bf16.xpose.msra.mxu0 0
        %3273 = vmatprep.subr.bf16.mxu0 0
        %3274 = vmatpush1.bf16.xpose.msra.mxu0 0
        %3275 = vmatprep.mubr.bf16.mxu0 0
        %3276 = vmatmul.mubr.bf16.gmra.mrb[0].mxu0 %v3238
        %v3277 = vpop.f32.mrb[0].mxu0
        %v3278 = vadd.f32 0.0, %v3277
        %v3279 = vpop.f32.mrb[0].mxu0
        %v3280 = vpop.f32.mrb[0].mxu0
        %v3281 = vpop.f32.mrb[0].mxu0
        %3282 = vdwg.mxu0
        %3284 = vrot.lane.b32.xlu0 %v842, 64
        %v3285 = vpop.permute.xlu0 %3284
        %3287 = vrot.lane.b32.xlu0 %v858, 64
        %v3288 = vpop.permute.xlu0 %3287
        %v3290 = vsel %vm433, %v3285, 0
        %v3293 = vsel %vm433, %v3288, 0
        %3295 = vmatprep.subr.bf16.mxu0 0
        %3296 = vmatpush1.bf16.xpose.msra.mxu0 %v3293
        %3297 = vmatprep.subr.bf16.mxu0 0
        %3298 = vmatpush1.bf16.xpose.msra.mxu0 0
        %3299 = vmatprep.subr.bf16.mxu0 0
        %3300 = vmatpush1.bf16.xpose.msra.mxu0 0
        %3301 = vmatprep.subr.bf16.mxu0 0
        %3302 = vmatpush1.bf16.xpose.msra.mxu0 0
        %3303 = vmatprep.subr.bf16.mxu0 0
        %3304 = vmatpush1.bf16.xpose.msra.mxu0 0
        %3305 = vmatprep.subr.bf16.mxu0 0
        %3306 = vmatpush1.bf16.xpose.msra.mxu0 0
        %3307 = vmatprep.subr.bf16.mxu0 0
        %3308 = vmatpush1.bf16.xpose.msra.mxu0 0
        %3309 = vmatprep.subr.bf16.mxu0 0
        %3310 = vmatpush1.bf16.xpose.msra.mxu0 0
        %3311 = vmatprep.subr.bf16.mxu0 0
        %3312 = vmatpush1.bf16.xpose.msra.mxu0 0
        %3313 = vmatprep.subr.bf16.mxu0 0
        %3314 = vmatpush1.bf16.xpose.msra.mxu0 0
        %3315 = vmatprep.subr.bf16.mxu0 0
        %3316 = vmatpush1.bf16.xpose.msra.mxu0 0
        %3317 = vmatprep.subr.bf16.mxu0 0
        %3318 = vmatpush1.bf16.xpose.msra.mxu0 0
        %3319 = vmatprep.subr.bf16.mxu0 0
        %3320 = vmatpush1.bf16.xpose.msra.mxu0 0
        %3321 = vmatprep.subr.bf16.mxu0 0
        %3322 = vmatpush1.bf16.xpose.msra.mxu0 0
        %3323 = vmatprep.subr.bf16.mxu0 0
        %3324 = vmatpush1.bf16.xpose.msra.mxu0 0
        %3325 = vmatprep.subr.bf16.mxu0 0
        %3326 = vmatpush1.bf16.xpose.msra.mxu0 0
        %3327 = vmatprep.mubr.bf16.mxu0 0
        %3328 = vmatmul.mubr.bf16.gmra.mrb[0].mxu0 %v3290
        %v3329 = vpop.f32.mrb[0].mxu0
        %v3330 = vadd.f32 0.0, %v3329
        %v3331 = vpop.f32.mrb[0].mxu0
        %v3332 = vpop.f32.mrb[0].mxu0
        %v3333 = vpop.f32.mrb[0].mxu0
        %3334 = vdwg.mxu0
        %3336 = vrot.lane.b32.xlu0 %v843, 64
        %v3337 = vpop.permute.xlu0 %3336
        %3339 = vrot.lane.b32.xlu0 %v859, 64
        %v3340 = vpop.permute.xlu0 %3339
        %v3342 = vsel %vm433, %v3337, 0
        %v3345 = vsel %vm433, %v3340, 0
        %3347 = vmatprep.subr.bf16.mxu0 0
        %3348 = vmatpush1.bf16.xpose.msra.mxu0 %v3345
        %3349 = vmatprep.subr.bf16.mxu0 0
        %3350 = vmatpush1.bf16.xpose.msra.mxu0 0
        %3351 = vmatprep.subr.bf16.mxu0 0
        %3352 = vmatpush1.bf16.xpose.msra.mxu0 0
        %3353 = vmatprep.subr.bf16.mxu0 0
        %3354 = vmatpush1.bf16.xpose.msra.mxu0 0
        %3355 = vmatprep.subr.bf16.mxu0 0
        %3356 = vmatpush1.bf16.xpose.msra.mxu0 0
        %3357 = vmatprep.subr.bf16.mxu0 0
        %3358 = vmatpush1.bf16.xpose.msra.mxu0 0
        %3359 = vmatprep.subr.bf16.mxu0 0
        %3360 = vmatpush1.bf16.xpose.msra.mxu0 0
        %3361 = vmatprep.subr.bf16.mxu0 0
        %3362 = vmatpush1.bf16.xpose.msra.mxu0 0
        %3363 = vmatprep.subr.bf16.mxu0 0
        %3364 = vmatpush1.bf16.xpose.msra.mxu0 0
        %3365 = vmatprep.subr.bf16.mxu0 0
        %3366 = vmatpush1.bf16.xpose.msra.mxu0 0
        %3367 = vmatprep.subr.bf16.mxu0 0
        %3368 = vmatpush1.bf16.xpose.msra.mxu0 0
        %3369 = vmatprep.subr.bf16.mxu0 0
        %3370 = vmatpush1.bf16.xpose.msra.mxu0 0
        %3371 = vmatprep.subr.bf16.mxu0 0
        %3372 = vmatpush1.bf16.xpose.msra.mxu0 0
        %3373 = vmatprep.subr.bf16.mxu0 0
        %3374 = vmatpush1.bf16.xpose.msra.mxu0 0
        %3375 = vmatprep.subr.bf16.mxu0 0
        %3376 = vmatpush1.bf16.xpose.msra.mxu0 0
        %3377 = vmatprep.subr.bf16.mxu0 0
        %3378 = vmatpush1.bf16.xpose.msra.mxu0 0
        %3379 = vmatprep.mubr.bf16.mxu0 0
        %3380 = vmatmul.mubr.bf16.gmra.mrb[0].mxu0 %v3342
        %v3381 = vpop.f32.mrb[0].mxu0
        %v3382 = vadd.f32 0.0, %v3381
        %v3383 = vpop.f32.mrb[0].mxu0
        %v3384 = vpop.f32.mrb[0].mxu0
        %v3385 = vpop.f32.mrb[0].mxu0
        %3386 = vdwg.mxu0
        %3388 = vrot.lane.b32.xlu0 %v844, 64
        %v3389 = vpop.permute.xlu0 %3388
        %3391 = vrot.lane.b32.xlu0 %v860, 64
        %v3392 = vpop.permute.xlu0 %3391
        %v3394 = vsel %vm433, %v3389, 0
        %v3397 = vsel %vm433, %v3392, 0
        %3399 = vmatprep.subr.bf16.mxu0 0
        %3400 = vmatpush1.bf16.xpose.msra.mxu0 %v3397
        %3401 = vmatprep.subr.bf16.mxu0 0
        %3402 = vmatpush1.bf16.xpose.msra.mxu0 0
        %3403 = vmatprep.subr.bf16.mxu0 0
        %3404 = vmatpush1.bf16.xpose.msra.mxu0 0
        %3405 = vmatprep.subr.bf16.mxu0 0
        %3406 = vmatpush1.bf16.xpose.msra.mxu0 0
        %3407 = vmatprep.subr.bf16.mxu0 0
        %3408 = vmatpush1.bf16.xpose.msra.mxu0 0
        %3409 = vmatprep.subr.bf16.mxu0 0
        %3410 = vmatpush1.bf16.xpose.msra.mxu0 0
        %3411 = vmatprep.subr.bf16.mxu0 0
        %3412 = vmatpush1.bf16.xpose.msra.mxu0 0
        %3413 = vmatprep.subr.bf16.mxu0 0
        %3414 = vmatpush1.bf16.xpose.msra.mxu0 0
        %3415 = vmatprep.subr.bf16.mxu0 0
        %3416 = vmatpush1.bf16.xpose.msra.mxu0 0
        %3417 = vmatprep.subr.bf16.mxu0 0
        %3418 = vmatpush1.bf16.xpose.msra.mxu0 0
        %3419 = vmatprep.subr.bf16.mxu0 0
        %3420 = vmatpush1.bf16.xpose.msra.mxu0 0
        %3421 = vmatprep.subr.bf16.mxu0 0
        %3422 = vmatpush1.bf16.xpose.msra.mxu0 0
        %3423 = vmatprep.subr.bf16.mxu0 0
        %3424 = vmatpush1.bf16.xpose.msra.mxu0 0
        %3425 = vmatprep.subr.bf16.mxu0 0
        %3426 = vmatpush1.bf16.xpose.msra.mxu0 0
        %3427 = vmatprep.subr.bf16.mxu0 0
        %3428 = vmatpush1.bf16.xpose.msra.mxu0 0
        %3429 = vmatprep.subr.bf16.mxu0 0
        %3430 = vmatpush1.bf16.xpose.msra.mxu0 0
        %3431 = vmatprep.mubr.bf16.mxu0 0
        %3432 = vmatmul.mubr.bf16.gmra.mrb[0].mxu0 %v3394
        %v3433 = vpop.f32.mrb[0].mxu0
        %v3434 = vadd.f32 0.0, %v3433
        %v3435 = vpop.f32.mrb[0].mxu0
        %v3436 = vpop.f32.mrb[0].mxu0
        %v3437 = vpop.f32.mrb[0].mxu0
        %3438 = vdwg.mxu0
        %v3439 = vmul.f32 %v2654, 0.125
        %v3440 = vmul.f32 %v2706, 0.125
        %v3441 = vmul.f32 %v2758, 0.125
        %v3442 = vmul.f32 %v2810, 0.125
        %v3443 = vmul.f32 %v2862, 0.125
        %v3444 = vmul.f32 %v2914, 0.125
        %v3445 = vmul.f32 %v2966, 0.125
        %v3446 = vmul.f32 %v3018, 0.125
        %v3447 = vmul.f32 %v3070, 0.125
        %v3448 = vmul.f32 %v3122, 0.125
        %v3449 = vmul.f32 %v3174, 0.125
        %v3450 = vmul.f32 %v3226, 0.125
        %v3451 = vmul.f32 %v3278, 0.125
        %v3452 = vmul.f32 %v3330, 0.125
        %v3453 = vmul.f32 %v3382, 0.125
        %v3454 = vmul.f32 %v3434, 0.125
        %v3455 = vadd.f32 %v3439, %v813
        %v3456 = vadd.f32 %v3440, %v814
        %v3457 = vadd.f32 %v3441, %v815
        %v3458 = vadd.f32 %v3442, %v816
        %v3459 = vadd.f32 %v3443, %v817
        %v3460 = vadd.f32 %v3444, %v818
        %v3461 = vadd.f32 %v3445, %v819
        %v3462 = vadd.f32 %v3446, %v820
        %v3463 = vadd.f32 %v3447, %v821
        %v3464 = vadd.f32 %v3448, %v822
        %v3465 = vadd.f32 %v3449, %v823
        %v3466 = vadd.f32 %v3450, %v824
        %v3467 = vadd.f32 %v3451, %v825
        %v3468 = vadd.f32 %v3452, %v826
        %v3469 = vadd.f32 %v3453, %v827
        %v3470 = vadd.f32 %v3454, %v828
        %v3471 = vsel %vm1645, %v3455, -inf
        %3472 = vmax.xlane.f32.xlu0 %v3471
        %v3473 = vpop.xlane.xlu0 %3472
        %v3474 = vsel %vm1645, %v3456, -inf
        %3475 = vmax.xlane.f32.xlu0 %v3474
        %v3476 = vpop.xlane.xlu0 %3475
        %v3477 = vsel %vm1645, %v3457, -inf
        %3478 = vmax.xlane.f32.xlu0 %v3477
        %v3479 = vpop.xlane.xlu0 %3478
        %v3480 = vsel %vm1645, %v3458, -inf
        %3481 = vmax.xlane.f32.xlu0 %v3480
        %v3482 = vpop.xlane.xlu0 %3481
        %v3483 = vsel %vm1645, %v3459, -inf
        %3484 = vmax.xlane.f32.xlu0 %v3483
        %v3485 = vpop.xlane.xlu0 %3484
        %v3486 = vsel %vm1645, %v3460, -inf
        %3487 = vmax.xlane.f32.xlu0 %v3486
        %v3488 = vpop.xlane.xlu0 %3487
        %v3489 = vsel %vm1645, %v3461, -inf
        %3490 = vmax.xlane.f32.xlu0 %v3489
        %v3491 = vpop.xlane.xlu0 %3490
        %v3492 = vsel %vm1645, %v3462, -inf
        %3493 = vmax.xlane.f32.xlu0 %v3492
        %v3494 = vpop.xlane.xlu0 %3493
        %v3495 = vsel %vm1645, %v3463, -inf
        %3496 = vmax.xlane.f32.xlu0 %v3495
        %v3497 = vpop.xlane.xlu0 %3496
        %v3498 = vsel %vm1645, %v3464, -inf
        %3499 = vmax.xlane.f32.xlu0 %v3498
        %v3500 = vpop.xlane.xlu0 %3499
        %v3501 = vsel %vm1645, %v3465, -inf
        %3502 = vmax.xlane.f32.xlu0 %v3501
        %v3503 = vpop.xlane.xlu0 %3502
        %v3504 = vsel %vm1645, %v3466, -inf
        %3505 = vmax.xlane.f32.xlu0 %v3504
        %v3506 = vpop.xlane.xlu0 %3505
        %v3507 = vsel %vm1645, %v3467, -inf
        %3508 = vmax.xlane.f32.xlu0 %v3507
        %v3509 = vpop.xlane.xlu0 %3508
        %v3510 = vsel %vm1645, %v3468, -inf
        %3511 = vmax.xlane.f32.xlu0 %v3510
        %v3512 = vpop.xlane.xlu0 %3511
        %v3513 = vsel %vm1645, %v3469, -inf
        %3514 = vmax.xlane.f32.xlu0 %v3513
        %v3515 = vpop.xlane.xlu0 %3514
        %v3516 = vsel %vm1645, %v3470, -inf
        %3517 = vmax.xlane.f32.xlu0 %v3516
        %v3518 = vpop.xlane.xlu0 %3517
        %v3519 = vsub.f32 %v3455, %v3473
        %v3520 = vsub.f32 %v3456, %v3476
        %v3521 = vsub.f32 %v3457, %v3479
        %v3522 = vsub.f32 %v3458, %v3482
        %v3523 = vsub.f32 %v3459, %v3485
        %v3524 = vsub.f32 %v3460, %v3488
        %v3525 = vsub.f32 %v3461, %v3491
        %v3526 = vsub.f32 %v3462, %v3494
        %v3527 = vsub.f32 %v3463, %v3497
        %v3528 = vsub.f32 %v3464, %v3500
        %v3529 = vsub.f32 %v3465, %v3503
        %v3530 = vsub.f32 %v3466, %v3506
        %v3531 = vsub.f32 %v3467, %v3509
        %v3532 = vsub.f32 %v3468, %v3512
        %v3533 = vsub.f32 %v3469, %v3515
        %v3534 = vsub.f32 %v3470, %v3518
        %v3535 = vmul.f32 %v3519, 1.442695
        %v3536 = vpow.pop %v3535
        %v3537 = vmul.f32 %v3520, 1.442695
        %v3538 = vpow.pop %v3537
        %v3539 = vmul.f32 %v3521, 1.442695
        %v3540 = vpow.pop %v3539
        %v3541 = vmul.f32 %v3522, 1.442695
        %v3542 = vpow.pop %v3541
        %v3543 = vmul.f32 %v3523, 1.442695
        %v3544 = vpow.pop %v3543
        %v3545 = vmul.f32 %v3524, 1.442695
        %v3546 = vpow.pop %v3545
        %v3547 = vmul.f32 %v3525, 1.442695
        %v3548 = vpow.pop %v3547
        %v3549 = vmul.f32 %v3526, 1.442695
        %v3550 = vpow.pop %v3549
        %v3551 = vmul.f32 %v3527, 1.442695
        %v3552 = vpow.pop %v3551
        %v3553 = vmul.f32 %v3528, 1.442695
        %v3554 = vpow.pop %v3553
        %v3555 = vmul.f32 %v3529, 1.442695
        %v3556 = vpow.pop %v3555
        %v3557 = vmul.f32 %v3530, 1.442695
        %v3558 = vpow.pop %v3557
        %v3559 = vmul.f32 %v3531, 1.442695
        %v3560 = vpow.pop %v3559
        %v3561 = vmul.f32 %v3532, 1.442695
        %v3562 = vpow.pop %v3561
        %v3563 = vmul.f32 %v3533, 1.442695
        %v3564 = vpow.pop %v3563
        %v3565 = vmul.f32 %v3534, 1.442695
        %v3566 = vpow.pop %v3565
        %v3567 = vsel %vm1645, %v3536, 0.0
        %3568 = vadd.xlane.f32.xlu0 %v3567
        %v3569 = vpop.xlane.xlu0 %3568
        %v3570 = vsel %vm1645, %v3538, 0.0
        %3571 = vadd.xlane.f32.xlu0 %v3570
        %v3572 = vpop.xlane.xlu0 %3571
        %v3573 = vsel %vm1645, %v3540, 0.0
        %3574 = vadd.xlane.f32.xlu0 %v3573
        %v3575 = vpop.xlane.xlu0 %3574
        %v3576 = vsel %vm1645, %v3542, 0.0
        %3577 = vadd.xlane.f32.xlu0 %v3576
        %v3578 = vpop.xlane.xlu0 %3577
        %v3579 = vsel %vm1645, %v3544, 0.0
        %3580 = vadd.xlane.f32.xlu0 %v3579
        %v3581 = vpop.xlane.xlu0 %3580
        %v3582 = vsel %vm1645, %v3546, 0.0
        %3583 = vadd.xlane.f32.xlu0 %v3582
        %v3584 = vpop.xlane.xlu0 %3583
        %v3585 = vsel %vm1645, %v3548, 0.0
        %3586 = vadd.xlane.f32.xlu0 %v3585
        %v3587 = vpop.xlane.xlu0 %3586
        %v3588 = vsel %vm1645, %v3550, 0.0
        %3589 = vadd.xlane.f32.xlu0 %v3588
        %v3590 = vpop.xlane.xlu0 %3589
        %v3591 = vsel %vm1645, %v3552, 0.0
        %3592 = vadd.xlane.f32.xlu0 %v3591
        %v3593 = vpop.xlane.xlu0 %3592
        %v3594 = vsel %vm1645, %v3554, 0.0
        %3595 = vadd.xlane.f32.xlu0 %v3594
        %v3596 = vpop.xlane.xlu0 %3595
        %v3597 = vsel %vm1645, %v3556, 0.0
        %3598 = vadd.xlane.f32.xlu0 %v3597
        %v3599 = vpop.xlane.xlu0 %3598
        %v3600 = vsel %vm1645, %v3558, 0.0
        %3601 = vadd.xlane.f32.xlu0 %v3600
        %v3602 = vpop.xlane.xlu0 %3601
        %v3603 = vsel %vm1645, %v3560, 0.0
        %3604 = vadd.xlane.f32.xlu0 %v3603
        %v3605 = vpop.xlane.xlu0 %3604
        %v3606 = vsel %vm1645, %v3562, 0.0
        %3607 = vadd.xlane.f32.xlu0 %v3606
        %v3608 = vpop.xlane.xlu0 %3607
        %v3609 = vsel %vm1645, %v3564, 0.0
        %3610 = vadd.xlane.f32.xlu0 %v3609
        %v3611 = vpop.xlane.xlu0 %3610
        %v3612 = vsel %vm1645, %v3566, 0.0
        %3613 = vadd.xlane.f32.xlu0 %v3612
        %v3614 = vpop.xlane.xlu0 %3613
        %v3615 = vrcp.pop %v3569
        %v3616 = vrcp.pop %v3572
        %v3617 = vrcp.pop %v3575
        %v3618 = vrcp.pop %v3578
        %v3619 = vrcp.pop %v3581
        %v3620 = vrcp.pop %v3584
        %v3621 = vrcp.pop %v3587
        %v3622 = vrcp.pop %v3590
        %v3623 = vrcp.pop %v3593
        %v3624 = vrcp.pop %v3596
        %v3625 = vrcp.pop %v3599
        %v3626 = vrcp.pop %v3602
        %v3627 = vrcp.pop %v3605
        %v3628 = vrcp.pop %v3608
        %v3629 = vrcp.pop %v3611
        %v3630 = vrcp.pop %v3614
        %v3631 = vmul.f32 %v3536, %v3615
        %v3632 = vmul.f32 %v3538, %v3616
        %v3633 = vmul.f32 %v3540, %v3617
        %v3634 = vmul.f32 %v3542, %v3618
        %v3635 = vmul.f32 %v3544, %v3619
        %v3636 = vmul.f32 %v3546, %v3620
        %v3637 = vmul.f32 %v3548, %v3621
        %v3638 = vmul.f32 %v3550, %v3622
        %v3639 = vmul.f32 %v3552, %v3623
        %v3640 = vmul.f32 %v3554, %v3624
        %v3641 = vmul.f32 %v3556, %v3625
        %v3642 = vmul.f32 %v3558, %v3626
        %v3643 = vmul.f32 %v3560, %v3627
        %v3644 = vmul.f32 %v3562, %v3628
        %v3645 = vmul.f32 %v3564, %v3629
        %v3646 = vmul.f32 %v3566, %v3630
        %s3647 = scalar_lea.vmem %s262, 8
        %3648 = vst.msk [vmem:[%s3647] sm:$0xff] %vm1645, %v3631
        %3649 = vst.msk [vmem:[%s3647 + $0x20] sm:$0xff] %vm1645, %v3632
        %3650 = vst.msk [vmem:[%s3647 + $0x40] sm:$0xff] %vm1645, %v3633
        %3651 = vst.msk [vmem:[%s3647 + $0x60] sm:$0xff] %vm1645, %v3634
        %3652 = vst.msk [vmem:[%s3647 + $0x80] sm:$0xff] %vm1645, %v3635
        %3653 = vst.msk [vmem:[%s3647 + $0xa0] sm:$0xff] %vm1645, %v3636
        %3654 = vst.msk [vmem:[%s3647 + $0xc0] sm:$0xff] %vm1645, %v3637
        %3655 = vst.msk [vmem:[%s3647 + $0xe0] sm:$0xff] %vm1645, %v3638
        %3656 = vst.msk [vmem:[%s3647 + $0x100] sm:$0xff] %vm1645, %v3639
        %3657 = vst.msk [vmem:[%s3647 + $0x120] sm:$0xff] %vm1645, %v3640
        %3658 = vst.msk [vmem:[%s3647 + $0x140] sm:$0xff] %vm1645, %v3641
        %3659 = vst.msk [vmem:[%s3647 + $0x160] sm:$0xff] %vm1645, %v3642
        %3660 = vst.msk [vmem:[%s3647 + $0x180] sm:$0xff] %vm1645, %v3643
        %3661 = vst.msk [vmem:[%s3647 + $0x1a0] sm:$0xff] %vm1645, %v3644
        %3662 = vst.msk [vmem:[%s3647 + $0x1c0] sm:$0xff] %vm1645, %v3645
        %3663 = vst.msk [vmem:[%s3647 + $0x1e0] sm:$0xff] %vm1645, %v3646
        %v3664 = vpack.c.bf16 %v3631, %v3631
        %v3665 = vpack.c.bf16 %v3632, %v3632
        %v3666 = vpack.c.bf16 %v3633, %v3633
        %v3667 = vpack.c.bf16 %v3634, %v3634
        %v3668 = vpack.c.bf16 %v3635, %v3635
        %v3669 = vpack.c.bf16 %v3636, %v3636
        %v3670 = vpack.c.bf16 %v3637, %v3637
        %v3671 = vpack.c.bf16 %v3638, %v3638
        %v3672 = vpack.c.bf16 %v3639, %v3639
        %v3673 = vpack.c.bf16 %v3640, %v3640
        %v3674 = vpack.c.bf16 %v3641, %v3641
        %v3675 = vpack.c.bf16 %v3642, %v3642
        %v3676 = vpack.c.bf16 %v3643, %v3643
        %v3677 = vpack.c.bf16 %v3644, %v3644
        %v3678 = vpack.c.bf16 %v3645, %v3645
        %v3679 = vpack.c.bf16 %v3646, %v3646
        %3681 = vrot.lane.b32.xlu0 %v861, 64
        %v3682 = vpop.permute.xlu0 %3681
        %v3684 = vsel %vm1645, %v3664, 0
        %v3687 = vsel %vm1857, %v3682, 0
        %3689 = vmatprep.subr.bf16.mxu0 0
        %3690 = vmatpush1.bf16.msra.mxu0 %v3687
        %3691 = vmatprep.subr.bf16.mxu0 0
        %3692 = vmatpush1.bf16.msra.mxu0 0
        %3693 = vmatprep.subr.bf16.mxu0 0
        %3694 = vmatpush1.bf16.msra.mxu0 0
        %3695 = vmatprep.subr.bf16.mxu0 0
        %3696 = vmatpush1.bf16.msra.mxu0 0
        %3697 = vmatprep.subr.bf16.mxu0 0
        %3698 = vmatpush1.bf16.msra.mxu0 0
        %3699 = vmatprep.subr.bf16.mxu0 0
        %3700 = vmatpush1.bf16.msra.mxu0 0
        %3701 = vmatprep.subr.bf16.mxu0 0
        %3702 = vmatpush1.bf16.msra.mxu0 0
        %3703 = vmatprep.subr.bf16.mxu0 0
        %3704 = vmatpush1.bf16.msra.mxu0 0
        %3705 = vmatprep.subr.bf16.mxu0 0
        %3706 = vmatpush1.bf16.msra.mxu0 0
        %3707 = vmatprep.subr.bf16.mxu0 0
        %3708 = vmatpush1.bf16.msra.mxu0 0
        %3709 = vmatprep.subr.bf16.mxu0 0
        %3710 = vmatpush1.bf16.msra.mxu0 0
        %3711 = vmatprep.subr.bf16.mxu0 0
        %3712 = vmatpush1.bf16.msra.mxu0 0
        %3713 = vmatprep.subr.bf16.mxu0 0
        %3714 = vmatpush1.bf16.msra.mxu0 0
        %3715 = vmatprep.subr.bf16.mxu0 0
        %3716 = vmatpush1.bf16.msra.mxu0 0
        %3717 = vmatprep.subr.bf16.mxu0 0
        %3718 = vmatpush1.bf16.msra.mxu0 0
        %3719 = vmatprep.subr.bf16.mxu0 0
        %3720 = vmatpush1.bf16.msra.mxu0 0
        %3721 = vmatprep.mubr.bf16.mxu0 0
        %3722 = vmatmul.mubr.bf16.gmra.mrb[0].mxu0 %v3684
        %v3723 = vpop.f32.mrb[0].mxu0
        %v3724 = vadd.f32 0.0, %v3723
        %v3725 = vpop.f32.mrb[0].mxu0
        %v3726 = vpop.f32.mrb[0].mxu0
        %v3727 = vpop.f32.mrb[0].mxu0
        %3728 = vdwg.mxu0
        %3730 = vrot.lane.b32.xlu0 %v862, 64
        %v3731 = vpop.permute.xlu0 %3730
        %v3733 = vsel %vm1645, %v3665, 0
        %v3736 = vsel %vm1857, %v3731, 0
        %3738 = vmatprep.subr.bf16.mxu0 0
        %3739 = vmatpush1.bf16.msra.mxu0 %v3736
        %3740 = vmatprep.subr.bf16.mxu0 0
        %3741 = vmatpush1.bf16.msra.mxu0 0
        %3742 = vmatprep.subr.bf16.mxu0 0
        %3743 = vmatpush1.bf16.msra.mxu0 0
        %3744 = vmatprep.subr.bf16.mxu0 0
        %3745 = vmatpush1.bf16.msra.mxu0 0
        %3746 = vmatprep.subr.bf16.mxu0 0
        %3747 = vmatpush1.bf16.msra.mxu0 0
        %3748 = vmatprep.subr.bf16.mxu0 0
        %3749 = vmatpush1.bf16.msra.mxu0 0
        %3750 = vmatprep.subr.bf16.mxu0 0
        %3751 = vmatpush1.bf16.msra.mxu0 0
        %3752 = vmatprep.subr.bf16.mxu0 0
        %3753 = vmatpush1.bf16.msra.mxu0 0
        %3754 = vmatprep.subr.bf16.mxu0 0
        %3755 = vmatpush1.bf16.msra.mxu0 0
        %3756 = vmatprep.subr.bf16.mxu0 0
        %3757 = vmatpush1.bf16.msra.mxu0 0
        %3758 = vmatprep.subr.bf16.mxu0 0
        %3759 = vmatpush1.bf16.msra.mxu0 0
        %3760 = vmatprep.subr.bf16.mxu0 0
        %3761 = vmatpush1.bf16.msra.mxu0 0
        %3762 = vmatprep.subr.bf16.mxu0 0
        %3763 = vmatpush1.bf16.msra.mxu0 0
        %3764 = vmatprep.subr.bf16.mxu0 0
        %3765 = vmatpush1.bf16.msra.mxu0 0
        %3766 = vmatprep.subr.bf16.mxu0 0
        %3767 = vmatpush1.bf16.msra.mxu0 0
        %3768 = vmatprep.subr.bf16.mxu0 0
        %3769 = vmatpush1.bf16.msra.mxu0 0
        %3770 = vmatprep.mubr.bf16.mxu0 0
        %3771 = vmatmul.mubr.bf16.gmra.mrb[0].mxu0 %v3733
        %v3772 = vpop.f32.mrb[0].mxu0
        %v3773 = vadd.f32 0.0, %v3772
        %v3774 = vpop.f32.mrb[0].mxu0
        %v3775 = vpop.f32.mrb[0].mxu0
        %v3776 = vpop.f32.mrb[0].mxu0
        %3777 = vdwg.mxu0
        %3779 = vrot.lane.b32.xlu0 %v863, 64
        %v3780 = vpop.permute.xlu0 %3779
        %v3782 = vsel %vm1645, %v3666, 0
        %v3785 = vsel %vm1857, %v3780, 0
        %3787 = vmatprep.subr.bf16.mxu0 0
        %3788 = vmatpush1.bf16.msra.mxu0 %v3785
        %3789 = vmatprep.subr.bf16.mxu0 0
        %3790 = vmatpush1.bf16.msra.mxu0 0
        %3791 = vmatprep.subr.bf16.mxu0 0
        %3792 = vmatpush1.bf16.msra.mxu0 0
        %3793 = vmatprep.subr.bf16.mxu0 0
        %3794 = vmatpush1.bf16.msra.mxu0 0
        %3795 = vmatprep.subr.bf16.mxu0 0
        %3796 = vmatpush1.bf16.msra.mxu0 0
        %3797 = vmatprep.subr.bf16.mxu0 0
        %3798 = vmatpush1.bf16.msra.mxu0 0
        %3799 = vmatprep.subr.bf16.mxu0 0
        %3800 = vmatpush1.bf16.msra.mxu0 0
        %3801 = vmatprep.subr.bf16.mxu0 0
        %3802 = vmatpush1.bf16.msra.mxu0 0
        %3803 = vmatprep.subr.bf16.mxu0 0
        %3804 = vmatpush1.bf16.msra.mxu0 0
        %3805 = vmatprep.subr.bf16.mxu0 0
        %3806 = vmatpush1.bf16.msra.mxu0 0
        %3807 = vmatprep.subr.bf16.mxu0 0
        %3808 = vmatpush1.bf16.msra.mxu0 0
        %3809 = vmatprep.subr.bf16.mxu0 0
        %3810 = vmatpush1.bf16.msra.mxu0 0
        %3811 = vmatprep.subr.bf16.mxu0 0
        %3812 = vmatpush1.bf16.msra.mxu0 0
        %3813 = vmatprep.subr.bf16.mxu0 0
        %3814 = vmatpush1.bf16.msra.mxu0 0
        %3815 = vmatprep.subr.bf16.mxu0 0
        %3816 = vmatpush1.bf16.msra.mxu0 0
        %3817 = vmatprep.subr.bf16.mxu0 0
        %3818 = vmatpush1.bf16.msra.mxu0 0
        %3819 = vmatprep.mubr.bf16.mxu0 0
        %3820 = vmatmul.mubr.bf16.gmra.mrb[0].mxu0 %v3782
        %v3821 = vpop.f32.mrb[0].mxu0
        %v3822 = vadd.f32 0.0, %v3821
        %v3823 = vpop.f32.mrb[0].mxu0
        %v3824 = vpop.f32.mrb[0].mxu0
        %v3825 = vpop.f32.mrb[0].mxu0
        %3826 = vdwg.mxu0
        %3828 = vrot.lane.b32.xlu0 %v864, 64
        %v3829 = vpop.permute.xlu0 %3828
        %v3831 = vsel %vm1645, %v3667, 0
        %v3834 = vsel %vm1857, %v3829, 0
        %3836 = vmatprep.subr.bf16.mxu0 0
        %3837 = vmatpush1.bf16.msra.mxu0 %v3834
        %3838 = vmatprep.subr.bf16.mxu0 0
        %3839 = vmatpush1.bf16.msra.mxu0 0
        %3840 = vmatprep.subr.bf16.mxu0 0
        %3841 = vmatpush1.bf16.msra.mxu0 0
        %3842 = vmatprep.subr.bf16.mxu0 0
        %3843 = vmatpush1.bf16.msra.mxu0 0
        %3844 = vmatprep.subr.bf16.mxu0 0
        %3845 = vmatpush1.bf16.msra.mxu0 0
        %3846 = vmatprep.subr.bf16.mxu0 0
        %3847 = vmatpush1.bf16.msra.mxu0 0
        %3848 = vmatprep.subr.bf16.mxu0 0
        %3849 = vmatpush1.bf16.msra.mxu0 0
        %3850 = vmatprep.subr.bf16.mxu0 0
        %3851 = vmatpush1.bf16.msra.mxu0 0
        %3852 = vmatprep.subr.bf16.mxu0 0
        %3853 = vmatpush1.bf16.msra.mxu0 0
        %3854 = vmatprep.subr.bf16.mxu0 0
        %3855 = vmatpush1.bf16.msra.mxu0 0
        %3856 = vmatprep.subr.bf16.mxu0 0
        %3857 = vmatpush1.bf16.msra.mxu0 0
        %3858 = vmatprep.subr.bf16.mxu0 0
        %3859 = vmatpush1.bf16.msra.mxu0 0
        %3860 = vmatprep.subr.bf16.mxu0 0
        %3861 = vmatpush1.bf16.msra.mxu0 0
        %3862 = vmatprep.subr.bf16.mxu0 0
        %3863 = vmatpush1.bf16.msra.mxu0 0
        %3864 = vmatprep.subr.bf16.mxu0 0
        %3865 = vmatpush1.bf16.msra.mxu0 0
        %3866 = vmatprep.subr.bf16.mxu0 0
        %3867 = vmatpush1.bf16.msra.mxu0 0
        %3868 = vmatprep.mubr.bf16.mxu0 0
        %3869 = vmatmul.mubr.bf16.gmra.mrb[0].mxu0 %v3831
        %v3870 = vpop.f32.mrb[0].mxu0
        %v3871 = vadd.f32 0.0, %v3870
        %v3872 = vpop.f32.mrb[0].mxu0
        %v3873 = vpop.f32.mrb[0].mxu0
        %v3874 = vpop.f32.mrb[0].mxu0
        %3875 = vdwg.mxu0
        %3877 = vrot.lane.b32.xlu0 %v865, 64
        %v3878 = vpop.permute.xlu0 %3877
        %v3880 = vsel %vm1645, %v3668, 0
        %v3883 = vsel %vm1857, %v3878, 0
        %3885 = vmatprep.subr.bf16.mxu0 0
        %3886 = vmatpush1.bf16.msra.mxu0 %v3883
        %3887 = vmatprep.subr.bf16.mxu0 0
        %3888 = vmatpush1.bf16.msra.mxu0 0
        %3889 = vmatprep.subr.bf16.mxu0 0
        %3890 = vmatpush1.bf16.msra.mxu0 0
        %3891 = vmatprep.subr.bf16.mxu0 0
        %3892 = vmatpush1.bf16.msra.mxu0 0
        %3893 = vmatprep.subr.bf16.mxu0 0
        %3894 = vmatpush1.bf16.msra.mxu0 0
        %3895 = vmatprep.subr.bf16.mxu0 0
        %3896 = vmatpush1.bf16.msra.mxu0 0
        %3897 = vmatprep.subr.bf16.mxu0 0
        %3898 = vmatpush1.bf16.msra.mxu0 0
        %3899 = vmatprep.subr.bf16.mxu0 0
        %3900 = vmatpush1.bf16.msra.mxu0 0
        %3901 = vmatprep.subr.bf16.mxu0 0
        %3902 = vmatpush1.bf16.msra.mxu0 0
        %3903 = vmatprep.subr.bf16.mxu0 0
        %3904 = vmatpush1.bf16.msra.mxu0 0
        %3905 = vmatprep.subr.bf16.mxu0 0
        %3906 = vmatpush1.bf16.msra.mxu0 0
        %3907 = vmatprep.subr.bf16.mxu0 0
        %3908 = vmatpush1.bf16.msra.mxu0 0
        %3909 = vmatprep.subr.bf16.mxu0 0
        %3910 = vmatpush1.bf16.msra.mxu0 0
        %3911 = vmatprep.subr.bf16.mxu0 0
        %3912 = vmatpush1.bf16.msra.mxu0 0
        %3913 = vmatprep.subr.bf16.mxu0 0
        %3914 = vmatpush1.bf16.msra.mxu0 0
        %3915 = vmatprep.subr.bf16.mxu0 0
        %3916 = vmatpush1.bf16.msra.mxu0 0
        %3917 = vmatprep.mubr.bf16.mxu0 0
        %3918 = vmatmul.mubr.bf16.gmra.mrb[0].mxu0 %v3880
        %v3919 = vpop.f32.mrb[0].mxu0
        %v3920 = vadd.f32 0.0, %v3919
        %v3921 = vpop.f32.mrb[0].mxu0
        %v3922 = vpop.f32.mrb[0].mxu0
        %v3923 = vpop.f32.mrb[0].mxu0
        %3924 = vdwg.mxu0
        %3926 = vrot.lane.b32.xlu0 %v866, 64
        %v3927 = vpop.permute.xlu0 %3926
        %v3929 = vsel %vm1645, %v3669, 0
        %v3932 = vsel %vm1857, %v3927, 0
        %3934 = vmatprep.subr.bf16.mxu0 0
        %3935 = vmatpush1.bf16.msra.mxu0 %v3932
        %3936 = vmatprep.subr.bf16.mxu0 0
        %3937 = vmatpush1.bf16.msra.mxu0 0
        %3938 = vmatprep.subr.bf16.mxu0 0
        %3939 = vmatpush1.bf16.msra.mxu0 0
        %3940 = vmatprep.subr.bf16.mxu0 0
        %3941 = vmatpush1.bf16.msra.mxu0 0
        %3942 = vmatprep.subr.bf16.mxu0 0
        %3943 = vmatpush1.bf16.msra.mxu0 0
        %3944 = vmatprep.subr.bf16.mxu0 0
        %3945 = vmatpush1.bf16.msra.mxu0 0
        %3946 = vmatprep.subr.bf16.mxu0 0
        %3947 = vmatpush1.bf16.msra.mxu0 0
        %3948 = vmatprep.subr.bf16.mxu0 0
        %3949 = vmatpush1.bf16.msra.mxu0 0
        %3950 = vmatprep.subr.bf16.mxu0 0
        %3951 = vmatpush1.bf16.msra.mxu0 0
        %3952 = vmatprep.subr.bf16.mxu0 0
        %3953 = vmatpush1.bf16.msra.mxu0 0
        %3954 = vmatprep.subr.bf16.mxu0 0
        %3955 = vmatpush1.bf16.msra.mxu0 0
        %3956 = vmatprep.subr.bf16.mxu0 0
        %3957 = vmatpush1.bf16.msra.mxu0 0
        %3958 = vmatprep.subr.bf16.mxu0 0
        %3959 = vmatpush1.bf16.msra.mxu0 0
        %3960 = vmatprep.subr.bf16.mxu0 0
        %3961 = vmatpush1.bf16.msra.mxu0 0
        %3962 = vmatprep.subr.bf16.mxu0 0
        %3963 = vmatpush1.bf16.msra.mxu0 0
        %3964 = vmatprep.subr.bf16.mxu0 0
        %3965 = vmatpush1.bf16.msra.mxu0 0
        %3966 = vmatprep.mubr.bf16.mxu0 0
        %3967 = vmatmul.mubr.bf16.gmra.mrb[0].mxu0 %v3929
        %v3968 = vpop.f32.mrb[0].mxu0
        %v3969 = vadd.f32 0.0, %v3968
        %v3970 = vpop.f32.mrb[0].mxu0
        %v3971 = vpop.f32.mrb[0].mxu0
        %v3972 = vpop.f32.mrb[0].mxu0
        %3973 = vdwg.mxu0
        %3975 = vrot.lane.b32.xlu0 %v867, 64
        %v3976 = vpop.permute.xlu0 %3975
        %v3978 = vsel %vm1645, %v3670, 0
        %v3981 = vsel %vm1857, %v3976, 0
        %3983 = vmatprep.subr.bf16.mxu0 0
        %3984 = vmatpush1.bf16.msra.mxu0 %v3981
        %3985 = vmatprep.subr.bf16.mxu0 0
        %3986 = vmatpush1.bf16.msra.mxu0 0
        %3987 = vmatprep.subr.bf16.mxu0 0
        %3988 = vmatpush1.bf16.msra.mxu0 0
        %3989 = vmatprep.subr.bf16.mxu0 0
        %3990 = vmatpush1.bf16.msra.mxu0 0
        %3991 = vmatprep.subr.bf16.mxu0 0
        %3992 = vmatpush1.bf16.msra.mxu0 0
        %3993 = vmatprep.subr.bf16.mxu0 0
        %3994 = vmatpush1.bf16.msra.mxu0 0
        %3995 = vmatprep.subr.bf16.mxu0 0
        %3996 = vmatpush1.bf16.msra.mxu0 0
        %3997 = vmatprep.subr.bf16.mxu0 0
        %3998 = vmatpush1.bf16.msra.mxu0 0
        %3999 = vmatprep.subr.bf16.mxu0 0
        %4000 = vmatpush1.bf16.msra.mxu0 0
        %4001 = vmatprep.subr.bf16.mxu0 0
        %4002 = vmatpush1.bf16.msra.mxu0 0
        %4003 = vmatprep.subr.bf16.mxu0 0
        %4004 = vmatpush1.bf16.msra.mxu0 0
        %4005 = vmatprep.subr.bf16.mxu0 0
        %4006 = vmatpush1.bf16.msra.mxu0 0
        %4007 = vmatprep.subr.bf16.mxu0 0
        %4008 = vmatpush1.bf16.msra.mxu0 0
        %4009 = vmatprep.subr.bf16.mxu0 0
        %4010 = vmatpush1.bf16.msra.mxu0 0
        %4011 = vmatprep.subr.bf16.mxu0 0
        %4012 = vmatpush1.bf16.msra.mxu0 0
        %4013 = vmatprep.subr.bf16.mxu0 0
        %4014 = vmatpush1.bf16.msra.mxu0 0
        %4015 = vmatprep.mubr.bf16.mxu0 0
        %4016 = vmatmul.mubr.bf16.gmra.mrb[0].mxu0 %v3978
        %v4017 = vpop.f32.mrb[0].mxu0
        %v4018 = vadd.f32 0.0, %v4017
        %v4019 = vpop.f32.mrb[0].mxu0
        %v4020 = vpop.f32.mrb[0].mxu0
        %v4021 = vpop.f32.mrb[0].mxu0
        %4022 = vdwg.mxu0
        %4024 = vrot.lane.b32.xlu0 %v868, 64
        %v4025 = vpop.permute.xlu0 %4024
        %v4027 = vsel %vm1645, %v3671, 0
        %v4030 = vsel %vm1857, %v4025, 0
        %4032 = vmatprep.subr.bf16.mxu0 0
        %4033 = vmatpush1.bf16.msra.mxu0 %v4030
        %4034 = vmatprep.subr.bf16.mxu0 0
        %4035 = vmatpush1.bf16.msra.mxu0 0
        %4036 = vmatprep.subr.bf16.mxu0 0
        %4037 = vmatpush1.bf16.msra.mxu0 0
        %4038 = vmatprep.subr.bf16.mxu0 0
        %4039 = vmatpush1.bf16.msra.mxu0 0
        %4040 = vmatprep.subr.bf16.mxu0 0
        %4041 = vmatpush1.bf16.msra.mxu0 0
        %4042 = vmatprep.subr.bf16.mxu0 0
        %4043 = vmatpush1.bf16.msra.mxu0 0
        %4044 = vmatprep.subr.bf16.mxu0 0
        %4045 = vmatpush1.bf16.msra.mxu0 0
        %4046 = vmatprep.subr.bf16.mxu0 0
        %4047 = vmatpush1.bf16.msra.mxu0 0
        %4048 = vmatprep.subr.bf16.mxu0 0
        %4049 = vmatpush1.bf16.msra.mxu0 0
        %4050 = vmatprep.subr.bf16.mxu0 0
        %4051 = vmatpush1.bf16.msra.mxu0 0
        %4052 = vmatprep.subr.bf16.mxu0 0
        %4053 = vmatpush1.bf16.msra.mxu0 0
        %4054 = vmatprep.subr.bf16.mxu0 0
        %4055 = vmatpush1.bf16.msra.mxu0 0
        %4056 = vmatprep.subr.bf16.mxu0 0
        %4057 = vmatpush1.bf16.msra.mxu0 0
        %4058 = vmatprep.subr.bf16.mxu0 0
        %4059 = vmatpush1.bf16.msra.mxu0 0
        %4060 = vmatprep.subr.bf16.mxu0 0
        %4061 = vmatpush1.bf16.msra.mxu0 0
        %4062 = vmatprep.subr.bf16.mxu0 0
        %4063 = vmatpush1.bf16.msra.mxu0 0
        %4064 = vmatprep.mubr.bf16.mxu0 0
        %4065 = vmatmul.mubr.bf16.gmra.mrb[0].mxu0 %v4027
        %v4066 = vpop.f32.mrb[0].mxu0
        %v4067 = vadd.f32 0.0, %v4066
        %v4068 = vpop.f32.mrb[0].mxu0
        %v4069 = vpop.f32.mrb[0].mxu0
        %v4070 = vpop.f32.mrb[0].mxu0
        %4071 = vdwg.mxu0
        %4073 = vrot.lane.b32.xlu0 %v869, 64
        %v4074 = vpop.permute.xlu0 %4073
        %v4076 = vsel %vm1645, %v3672, 0
        %v4079 = vsel %vm1857, %v4074, 0
        %4081 = vmatprep.subr.bf16.mxu0 0
        %4082 = vmatpush1.bf16.msra.mxu0 %v4079
        %4083 = vmatprep.subr.bf16.mxu0 0
        %4084 = vmatpush1.bf16.msra.mxu0 0
        %4085 = vmatprep.subr.bf16.mxu0 0
        %4086 = vmatpush1.bf16.msra.mxu0 0
        %4087 = vmatprep.subr.bf16.mxu0 0
        %4088 = vmatpush1.bf16.msra.mxu0 0
        %4089 = vmatprep.subr.bf16.mxu0 0
        %4090 = vmatpush1.bf16.msra.mxu0 0
        %4091 = vmatprep.subr.bf16.mxu0 0
        %4092 = vmatpush1.bf16.msra.mxu0 0
        %4093 = vmatprep.subr.bf16.mxu0 0
        %4094 = vmatpush1.bf16.msra.mxu0 0
        %4095 = vmatprep.subr.bf16.mxu0 0
        %4096 = vmatpush1.bf16.msra.mxu0 0
        %4097 = vmatprep.subr.bf16.mxu0 0
        %4098 = vmatpush1.bf16.msra.mxu0 0
        %4099 = vmatprep.subr.bf16.mxu0 0
        %4100 = vmatpush1.bf16.msra.mxu0 0
        %4101 = vmatprep.subr.bf16.mxu0 0
        %4102 = vmatpush1.bf16.msra.mxu0 0
        %4103 = vmatprep.subr.bf16.mxu0 0
        %4104 = vmatpush1.bf16.msra.mxu0 0
        %4105 = vmatprep.subr.bf16.mxu0 0
        %4106 = vmatpush1.bf16.msra.mxu0 0
        %4107 = vmatprep.subr.bf16.mxu0 0
        %4108 = vmatpush1.bf16.msra.mxu0 0
        %4109 = vmatprep.subr.bf16.mxu0 0
        %4110 = vmatpush1.bf16.msra.mxu0 0
        %4111 = vmatprep.subr.bf16.mxu0 0
        %4112 = vmatpush1.bf16.msra.mxu0 0
        %4113 = vmatprep.mubr.bf16.mxu0 0
        %4114 = vmatmul.mubr.bf16.gmra.mrb[0].mxu0 %v4076
        %v4115 = vpop.f32.mrb[0].mxu0
        %v4116 = vadd.f32 0.0, %v4115
        %v4117 = vpop.f32.mrb[0].mxu0
        %v4118 = vpop.f32.mrb[0].mxu0
        %v4119 = vpop.f32.mrb[0].mxu0
        %4120 = vdwg.mxu0
        %4122 = vrot.lane.b32.xlu0 %v870, 64
        %v4123 = vpop.permute.xlu0 %4122
        %v4125 = vsel %vm1645, %v3673, 0
        %v4128 = vsel %vm1857, %v4123, 0
        %4130 = vmatprep.subr.bf16.mxu0 0
        %4131 = vmatpush1.bf16.msra.mxu0 %v4128
        %4132 = vmatprep.subr.bf16.mxu0 0
        %4133 = vmatpush1.bf16.msra.mxu0 0
        %4134 = vmatprep.subr.bf16.mxu0 0
        %4135 = vmatpush1.bf16.msra.mxu0 0
        %4136 = vmatprep.subr.bf16.mxu0 0
        %4137 = vmatpush1.bf16.msra.mxu0 0
        %4138 = vmatprep.subr.bf16.mxu0 0
        %4139 = vmatpush1.bf16.msra.mxu0 0
        %4140 = vmatprep.subr.bf16.mxu0 0
        %4141 = vmatpush1.bf16.msra.mxu0 0
        %4142 = vmatprep.subr.bf16.mxu0 0
        %4143 = vmatpush1.bf16.msra.mxu0 0
        %4144 = vmatprep.subr.bf16.mxu0 0
        %4145 = vmatpush1.bf16.msra.mxu0 0
        %4146 = vmatprep.subr.bf16.mxu0 0
        %4147 = vmatpush1.bf16.msra.mxu0 0
        %4148 = vmatprep.subr.bf16.mxu0 0
        %4149 = vmatpush1.bf16.msra.mxu0 0
        %4150 = vmatprep.subr.bf16.mxu0 0
        %4151 = vmatpush1.bf16.msra.mxu0 0
        %4152 = vmatprep.subr.bf16.mxu0 0
        %4153 = vmatpush1.bf16.msra.mxu0 0
        %4154 = vmatprep.subr.bf16.mxu0 0
        %4155 = vmatpush1.bf16.msra.mxu0 0
        %4156 = vmatprep.subr.bf16.mxu0 0
        %4157 = vmatpush1.bf16.msra.mxu0 0
        %4158 = vmatprep.subr.bf16.mxu0 0
        %4159 = vmatpush1.bf16.msra.mxu0 0
        %4160 = vmatprep.subr.bf16.mxu0 0
        %4161 = vmatpush1.bf16.msra.mxu0 0
        %4162 = vmatprep.mubr.bf16.mxu0 0
        %4163 = vmatmul.mubr.bf16.gmra.mrb[0].mxu0 %v4125
        %v4164 = vpop.f32.mrb[0].mxu0
        %v4165 = vadd.f32 0.0, %v4164
        %v4166 = vpop.f32.mrb[0].mxu0
        %v4167 = vpop.f32.mrb[0].mxu0
        %v4168 = vpop.f32.mrb[0].mxu0
        %4169 = vdwg.mxu0
        %4171 = vrot.lane.b32.xlu0 %v871, 64
        %v4172 = vpop.permute.xlu0 %4171
        %v4174 = vsel %vm1645, %v3674, 0
        %v4177 = vsel %vm1857, %v4172, 0
        %4179 = vmatprep.subr.bf16.mxu0 0
        %4180 = vmatpush1.bf16.msra.mxu0 %v4177
        %4181 = vmatprep.subr.bf16.mxu0 0
        %4182 = vmatpush1.bf16.msra.mxu0 0
        %4183 = vmatprep.subr.bf16.mxu0 0
        %4184 = vmatpush1.bf16.msra.mxu0 0
        %4185 = vmatprep.subr.bf16.mxu0 0
        %4186 = vmatpush1.bf16.msra.mxu0 0
        %4187 = vmatprep.subr.bf16.mxu0 0
        %4188 = vmatpush1.bf16.msra.mxu0 0
        %4189 = vmatprep.subr.bf16.mxu0 0
        %4190 = vmatpush1.bf16.msra.mxu0 0
        %4191 = vmatprep.subr.bf16.mxu0 0
        %4192 = vmatpush1.bf16.msra.mxu0 0
        %4193 = vmatprep.subr.bf16.mxu0 0
        %4194 = vmatpush1.bf16.msra.mxu0 0
        %4195 = vmatprep.subr.bf16.mxu0 0
        %4196 = vmatpush1.bf16.msra.mxu0 0
        %4197 = vmatprep.subr.bf16.mxu0 0
        %4198 = vmatpush1.bf16.msra.mxu0 0
        %4199 = vmatprep.subr.bf16.mxu0 0
        %4200 = vmatpush1.bf16.msra.mxu0 0
        %4201 = vmatprep.subr.bf16.mxu0 0
        %4202 = vmatpush1.bf16.msra.mxu0 0
        %4203 = vmatprep.subr.bf16.mxu0 0
        %4204 = vmatpush1.bf16.msra.mxu0 0
        %4205 = vmatprep.subr.bf16.mxu0 0
        %4206 = vmatpush1.bf16.msra.mxu0 0
        %4207 = vmatprep.subr.bf16.mxu0 0
        %4208 = vmatpush1.bf16.msra.mxu0 0
        %4209 = vmatprep.subr.bf16.mxu0 0
        %4210 = vmatpush1.bf16.msra.mxu0 0
        %4211 = vmatprep.mubr.bf16.mxu0 0
        %4212 = vmatmul.mubr.bf16.gmra.mrb[0].mxu0 %v4174
        %v4213 = vpop.f32.mrb[0].mxu0
        %v4214 = vadd.f32 0.0, %v4213
        %v4215 = vpop.f32.mrb[0].mxu0
        %v4216 = vpop.f32.mrb[0].mxu0
        %v4217 = vpop.f32.mrb[0].mxu0
        %4218 = vdwg.mxu0
        %4220 = vrot.lane.b32.xlu0 %v872, 64
        %v4221 = vpop.permute.xlu0 %4220
        %v4223 = vsel %vm1645, %v3675, 0
        %v4226 = vsel %vm1857, %v4221, 0
        %4228 = vmatprep.subr.bf16.mxu0 0
        %4229 = vmatpush1.bf16.msra.mxu0 %v4226
        %4230 = vmatprep.subr.bf16.mxu0 0
        %4231 = vmatpush1.bf16.msra.mxu0 0
        %4232 = vmatprep.subr.bf16.mxu0 0
        %4233 = vmatpush1.bf16.msra.mxu0 0
        %4234 = vmatprep.subr.bf16.mxu0 0
        %4235 = vmatpush1.bf16.msra.mxu0 0
        %4236 = vmatprep.subr.bf16.mxu0 0
        %4237 = vmatpush1.bf16.msra.mxu0 0
        %4238 = vmatprep.subr.bf16.mxu0 0
        %4239 = vmatpush1.bf16.msra.mxu0 0
        %4240 = vmatprep.subr.bf16.mxu0 0
        %4241 = vmatpush1.bf16.msra.mxu0 0
        %4242 = vmatprep.subr.bf16.mxu0 0
        %4243 = vmatpush1.bf16.msra.mxu0 0
        %4244 = vmatprep.subr.bf16.mxu0 0
        %4245 = vmatpush1.bf16.msra.mxu0 0
        %4246 = vmatprep.subr.bf16.mxu0 0
        %4247 = vmatpush1.bf16.msra.mxu0 0
        %4248 = vmatprep.subr.bf16.mxu0 0
        %4249 = vmatpush1.bf16.msra.mxu0 0
        %4250 = vmatprep.subr.bf16.mxu0 0
        %4251 = vmatpush1.bf16.msra.mxu0 0
        %4252 = vmatprep.subr.bf16.mxu0 0
        %4253 = vmatpush1.bf16.msra.mxu0 0
        %4254 = vmatprep.subr.bf16.mxu0 0
        %4255 = vmatpush1.bf16.msra.mxu0 0
        %4256 = vmatprep.subr.bf16.mxu0 0
        %4257 = vmatpush1.bf16.msra.mxu0 0
        %4258 = vmatprep.subr.bf16.mxu0 0
        %4259 = vmatpush1.bf16.msra.mxu0 0
        %4260 = vmatprep.mubr.bf16.mxu0 0
        %4261 = vmatmul.mubr.bf16.gmra.mrb[0].mxu0 %v4223
        %v4262 = vpop.f32.mrb[0].mxu0
        %v4263 = vadd.f32 0.0, %v4262
        %v4264 = vpop.f32.mrb[0].mxu0
        %v4265 = vpop.f32.mrb[0].mxu0
        %v4266 = vpop.f32.mrb[0].mxu0
        %4267 = vdwg.mxu0
        %4269 = vrot.lane.b32.xlu0 %v873, 64
        %v4270 = vpop.permute.xlu0 %4269
        %v4272 = vsel %vm1645, %v3676, 0
        %v4275 = vsel %vm1857, %v4270, 0
        %4277 = vmatprep.subr.bf16.mxu0 0
        %4278 = vmatpush1.bf16.msra.mxu0 %v4275
        %4279 = vmatprep.subr.bf16.mxu0 0
        %4280 = vmatpush1.bf16.msra.mxu0 0
        %4281 = vmatprep.subr.bf16.mxu0 0
        %4282 = vmatpush1.bf16.msra.mxu0 0
        %4283 = vmatprep.subr.bf16.mxu0 0
        %4284 = vmatpush1.bf16.msra.mxu0 0
        %4285 = vmatprep.subr.bf16.mxu0 0
        %4286 = vmatpush1.bf16.msra.mxu0 0
        %4287 = vmatprep.subr.bf16.mxu0 0
        %4288 = vmatpush1.bf16.msra.mxu0 0
        %4289 = vmatprep.subr.bf16.mxu0 0
        %4290 = vmatpush1.bf16.msra.mxu0 0
        %4291 = vmatprep.subr.bf16.mxu0 0
        %4292 = vmatpush1.bf16.msra.mxu0 0
        %4293 = vmatprep.subr.bf16.mxu0 0
        %4294 = vmatpush1.bf16.msra.mxu0 0
        %4295 = vmatprep.subr.bf16.mxu0 0
        %4296 = vmatpush1.bf16.msra.mxu0 0
        %4297 = vmatprep.subr.bf16.mxu0 0
        %4298 = vmatpush1.bf16.msra.mxu0 0
        %4299 = vmatprep.subr.bf16.mxu0 0
        %4300 = vmatpush1.bf16.msra.mxu0 0
        %4301 = vmatprep.subr.bf16.mxu0 0
        %4302 = vmatpush1.bf16.msra.mxu0 0
        %4303 = vmatprep.subr.bf16.mxu0 0
        %4304 = vmatpush1.bf16.msra.mxu0 0
        %4305 = vmatprep.subr.bf16.mxu0 0
        %4306 = vmatpush1.bf16.msra.mxu0 0
        %4307 = vmatprep.subr.bf16.mxu0 0
        %4308 = vmatpush1.bf16.msra.mxu0 0
        %4309 = vmatprep.mubr.bf16.mxu0 0
        %4310 = vmatmul.mubr.bf16.gmra.mrb[0].mxu0 %v4272
        %v4311 = vpop.f32.mrb[0].mxu0
        %v4312 = vadd.f32 0.0, %v4311
        %v4313 = vpop.f32.mrb[0].mxu0
        %v4314 = vpop.f32.mrb[0].mxu0
        %v4315 = vpop.f32.mrb[0].mxu0
        %4316 = vdwg.mxu0
        %4318 = vrot.lane.b32.xlu0 %v874, 64
        %v4319 = vpop.permute.xlu0 %4318
        %v4321 = vsel %vm1645, %v3677, 0
        %v4324 = vsel %vm1857, %v4319, 0
        %4326 = vmatprep.subr.bf16.mxu0 0
        %4327 = vmatpush1.bf16.msra.mxu0 %v4324
        %4328 = vmatprep.subr.bf16.mxu0 0
        %4329 = vmatpush1.bf16.msra.mxu0 0
        %4330 = vmatprep.subr.bf16.mxu0 0
        %4331 = vmatpush1.bf16.msra.mxu0 0
        %4332 = vmatprep.subr.bf16.mxu0 0
        %4333 = vmatpush1.bf16.msra.mxu0 0
        %4334 = vmatprep.subr.bf16.mxu0 0
        %4335 = vmatpush1.bf16.msra.mxu0 0
        %4336 = vmatprep.subr.bf16.mxu0 0
        %4337 = vmatpush1.bf16.msra.mxu0 0
        %4338 = vmatprep.subr.bf16.mxu0 0
        %4339 = vmatpush1.bf16.msra.mxu0 0
        %4340 = vmatprep.subr.bf16.mxu0 0
        %4341 = vmatpush1.bf16.msra.mxu0 0
        %4342 = vmatprep.subr.bf16.mxu0 0
        %4343 = vmatpush1.bf16.msra.mxu0 0
        %4344 = vmatprep.subr.bf16.mxu0 0
        %4345 = vmatpush1.bf16.msra.mxu0 0
        %4346 = vmatprep.subr.bf16.mxu0 0
        %4347 = vmatpush1.bf16.msra.mxu0 0
        %4348 = vmatprep.subr.bf16.mxu0 0
        %4349 = vmatpush1.bf16.msra.mxu0 0
        %4350 = vmatprep.subr.bf16.mxu0 0
        %4351 = vmatpush1.bf16.msra.mxu0 0
        %4352 = vmatprep.subr.bf16.mxu0 0
        %4353 = vmatpush1.bf16.msra.mxu0 0
        %4354 = vmatprep.subr.bf16.mxu0 0
        %4355 = vmatpush1.bf16.msra.mxu0 0
        %4356 = vmatprep.subr.bf16.mxu0 0
        %4357 = vmatpush1.bf16.msra.mxu0 0
        %4358 = vmatprep.mubr.bf16.mxu0 0
        %4359 = vmatmul.mubr.bf16.gmra.mrb[0].mxu0 %v4321
        %v4360 = vpop.f32.mrb[0].mxu0
        %v4361 = vadd.f32 0.0, %v4360
        %v4362 = vpop.f32.mrb[0].mxu0
        %v4363 = vpop.f32.mrb[0].mxu0
        %v4364 = vpop.f32.mrb[0].mxu0
        %4365 = vdwg.mxu0
        %4367 = vrot.lane.b32.xlu0 %v875, 64
        %v4368 = vpop.permute.xlu0 %4367
        %v4370 = vsel %vm1645, %v3678, 0
        %v4373 = vsel %vm1857, %v4368, 0
        %4375 = vmatprep.subr.bf16.mxu0 0
        %4376 = vmatpush1.bf16.msra.mxu0 %v4373
        %4377 = vmatprep.subr.bf16.mxu0 0
        %4378 = vmatpush1.bf16.msra.mxu0 0
        %4379 = vmatprep.subr.bf16.mxu0 0
        %4380 = vmatpush1.bf16.msra.mxu0 0
        %4381 = vmatprep.subr.bf16.mxu0 0
        %4382 = vmatpush1.bf16.msra.mxu0 0
        %4383 = vmatprep.subr.bf16.mxu0 0
        %4384 = vmatpush1.bf16.msra.mxu0 0
        %4385 = vmatprep.subr.bf16.mxu0 0
        %4386 = vmatpush1.bf16.msra.mxu0 0
        %4387 = vmatprep.subr.bf16.mxu0 0
        %4388 = vmatpush1.bf16.msra.mxu0 0
        %4389 = vmatprep.subr.bf16.mxu0 0
        %4390 = vmatpush1.bf16.msra.mxu0 0
        %4391 = vmatprep.subr.bf16.mxu0 0
        %4392 = vmatpush1.bf16.msra.mxu0 0
        %4393 = vmatprep.subr.bf16.mxu0 0
        %4394 = vmatpush1.bf16.msra.mxu0 0
        %4395 = vmatprep.subr.bf16.mxu0 0
        %4396 = vmatpush1.bf16.msra.mxu0 0
        %4397 = vmatprep.subr.bf16.mxu0 0
        %4398 = vmatpush1.bf16.msra.mxu0 0
        %4399 = vmatprep.subr.bf16.mxu0 0
        %4400 = vmatpush1.bf16.msra.mxu0 0
        %4401 = vmatprep.subr.bf16.mxu0 0
        %4402 = vmatpush1.bf16.msra.mxu0 0
        %4403 = vmatprep.subr.bf16.mxu0 0
        %4404 = vmatpush1.bf16.msra.mxu0 0
        %4405 = vmatprep.subr.bf16.mxu0 0
        %4406 = vmatpush1.bf16.msra.mxu0 0
        %4407 = vmatprep.mubr.bf16.mxu0 0
        %4408 = vmatmul.mubr.bf16.gmra.mrb[0].mxu0 %v4370
        %v4409 = vpop.f32.mrb[0].mxu0
        %v4410 = vadd.f32 0.0, %v4409
        %v4411 = vpop.f32.mrb[0].mxu0
        %v4412 = vpop.f32.mrb[0].mxu0
        %v4413 = vpop.f32.mrb[0].mxu0
        %4414 = vdwg.mxu0
        %4416 = vrot.lane.b32.xlu0 %v876, 64
        %v4417 = vpop.permute.xlu0 %4416
        %v4419 = vsel %vm1645, %v3679, 0
        %v4422 = vsel %vm1857, %v4417, 0
        %4424 = vmatprep.subr.bf16.mxu0 0
        %4425 = vmatpush1.bf16.msra.mxu0 %v4422
        %4426 = vmatprep.subr.bf16.mxu0 0
        %4427 = vmatpush1.bf16.msra.mxu0 0
        %4428 = vmatprep.subr.bf16.mxu0 0
        %4429 = vmatpush1.bf16.msra.mxu0 0
        %4430 = vmatprep.subr.bf16.mxu0 0
        %4431 = vmatpush1.bf16.msra.mxu0 0
        %4432 = vmatprep.subr.bf16.mxu0 0
        %4433 = vmatpush1.bf16.msra.mxu0 0
        %4434 = vmatprep.subr.bf16.mxu0 0
        %4435 = vmatpush1.bf16.msra.mxu0 0
        %4436 = vmatprep.subr.bf16.mxu0 0
        %4437 = vmatpush1.bf16.msra.mxu0 0
        %4438 = vmatprep.subr.bf16.mxu0 0
        %4439 = vmatpush1.bf16.msra.mxu0 0
        %4440 = vmatprep.subr.bf16.mxu0 0
        %4441 = vmatpush1.bf16.msra.mxu0 0
        %4442 = vmatprep.subr.bf16.mxu0 0
        %4443 = vmatpush1.bf16.msra.mxu0 0
        %4444 = vmatprep.subr.bf16.mxu0 0
        %4445 = vmatpush1.bf16.msra.mxu0 0
        %4446 = vmatprep.subr.bf16.mxu0 0
        %4447 = vmatpush1.bf16.msra.mxu0 0
        %4448 = vmatprep.subr.bf16.mxu0 0
        %4449 = vmatpush1.bf16.msra.mxu0 0
        %4450 = vmatprep.subr.bf16.mxu0 0
        %4451 = vmatpush1.bf16.msra.mxu0 0
        %4452 = vmatprep.subr.bf16.mxu0 0
        %4453 = vmatpush1.bf16.msra.mxu0 0
        %4454 = vmatprep.subr.bf16.mxu0 0
        %4455 = vmatpush1.bf16.msra.mxu0 0
        %4456 = vmatprep.mubr.bf16.mxu0 0
        %4457 = vmatmul.mubr.bf16.gmra.mrb[0].mxu0 %v4419
        %v4458 = vpop.f32.mrb[0].mxu0
        %v4459 = vadd.f32 0.0, %v4458
        %v4460 = vpop.f32.mrb[0].mxu0
        %v4461 = vpop.f32.mrb[0].mxu0
        %v4462 = vpop.f32.mrb[0].mxu0
        %4463 = vdwg.mxu0
        %4480 = vrot.lane.b32.xlu0 %v3724, 64
        %v4481 = vpop.permute.xlu0 %4480
        %4482 = vrot.lane.b32.xlu0 %v3773, 64
        %v4483 = vpop.permute.xlu0 %4482
        %4484 = vrot.lane.b32.xlu0 %v3822, 64
        %v4485 = vpop.permute.xlu0 %4484
        %4486 = vrot.lane.b32.xlu0 %v3871, 64
        %v4487 = vpop.permute.xlu0 %4486
        %4488 = vrot.lane.b32.xlu0 %v3920, 64
        %v4489 = vpop.permute.xlu0 %4488
        %4490 = vrot.lane.b32.xlu0 %v3969, 64
        %v4491 = vpop.permute.xlu0 %4490
        %4492 = vrot.lane.b32.xlu0 %v4018, 64
        %v4493 = vpop.permute.xlu0 %4492
        %4494 = vrot.lane.b32.xlu0 %v4067, 64
        %v4495 = vpop.permute.xlu0 %4494
        %4496 = vrot.lane.b32.xlu0 %v4116, 64
        %v4497 = vpop.permute.xlu0 %4496
        %4498 = vrot.lane.b32.xlu0 %v4165, 64
        %v4499 = vpop.permute.xlu0 %4498
        %4500 = vrot.lane.b32.xlu0 %v4214, 64
        %v4501 = vpop.permute.xlu0 %4500
        %4502 = vrot.lane.b32.xlu0 %v4263, 64
        %v4503 = vpop.permute.xlu0 %4502
        %4504 = vrot.lane.b32.xlu0 %v4312, 64
        %v4505 = vpop.permute.xlu0 %4504
        %4506 = vrot.lane.b32.xlu0 %v4361, 64
        %v4507 = vpop.permute.xlu0 %4506
        %4508 = vrot.lane.b32.xlu0 %v4410, 64
        %v4509 = vpop.permute.xlu0 %4508
        %4510 = vrot.lane.b32.xlu0 %v4459, 64
        %v4511 = vpop.permute.xlu0 %4510
        %vm4528 = vcmask 1048064
        %4529 = vst.msk [vmem:[#allocation2] sm:$0xff] %vm4528, %v4481
        %4530 = vst.msk [vmem:[#allocation2 + $0x10] sm:$0xff] %vm4528, %v4483
        %4531 = vst.msk [vmem:[#allocation2 + $0x20] sm:$0xff] %vm4528, %v4485
        %4532 = vst.msk [vmem:[#allocation2 + $0x30] sm:$0xff] %vm4528, %v4487
        %4533 = vst.msk [vmem:[#allocation2 + $0x40] sm:$0xff] %vm4528, %v4489
        %4534 = vst.msk [vmem:[#allocation2 + $0x50] sm:$0xff] %vm4528, %v4491
        %4535 = vst.msk [vmem:[#allocation2 + $0x60] sm:$0xff] %vm4528, %v4493
        %4536 = vst.msk [vmem:[#allocation2 + $0x70] sm:$0xff] %vm4528, %v4495
        %4537 = vst.msk [vmem:[#allocation2 + $0x80] sm:$0xff] %vm4528, %v4497
        %4538 = vst.msk [vmem:[#allocation2 + $0x90] sm:$0xff] %vm4528, %v4499
        %4539 = vst.msk [vmem:[#allocation2 + $0xa0] sm:$0xff] %vm4528, %v4501
        %4540 = vst.msk [vmem:[#allocation2 + $0xb0] sm:$0xff] %vm4528, %v4503
        %4541 = vst.msk [vmem:[#allocation2 + $0xc0] sm:$0xff] %vm4528, %v4505
        %4542 = vst.msk [vmem:[#allocation2 + $0xd0] sm:$0xff] %vm4528, %v4507
        %4543 = vst.msk [vmem:[#allocation2 + $0xe0] sm:$0xff] %vm4528, %v4509
        %4544 = vst.msk [vmem:[#allocation2 + $0xf0] sm:$0xff] %vm4528, %v4511
        %v4545 = vpack.c.bf16 %v495, %v495
        %v4546 = vpack.c.bf16 %v499, %v499
        %v4547 = vpack.c.bf16 %v505, %v505
        %v4548 = vpack.c.bf16 %v509, %v509
        %v4549 = vpack.c.bf16 %v515, %v515
        %v4550 = vpack.c.bf16 %v519, %v519
        %v4551 = vpack.c.bf16 %v525, %v525
        %v4552 = vpack.c.bf16 %v529, %v529
        %v4553 = vpack.c.bf16 %v535, %v535
        %v4554 = vpack.c.bf16 %v539, %v539
        %v4555 = vpack.c.bf16 %v545, %v545
        %v4556 = vpack.c.bf16 %v549, %v549
        %v4557 = vpack.c.bf16 %v555, %v555
        %v4558 = vpack.c.bf16 %v559, %v559
        %v4559 = vpack.c.bf16 %v565, %v565
        %v4560 = vpack.c.bf16 %v569, %v569
        %v4561 = vpack.c.bf16 %v608, %v608
        %v4562 = vpack.c.bf16 %v612, %v612
        %v4563 = vpack.c.bf16 %v618, %v618
        %v4564 = vpack.c.bf16 %v622, %v622
        %v4565 = vpack.c.bf16 %v628, %v628
        %v4566 = vpack.c.bf16 %v632, %v632
        %v4567 = vpack.c.bf16 %v638, %v638
        %v4568 = vpack.c.bf16 %v642, %v642
        %v4569 = vpack.c.bf16 %v648, %v648
        %v4570 = vpack.c.bf16 %v652, %v652
        %v4571 = vpack.c.bf16 %v658, %v658
        %v4572 = vpack.c.bf16 %v662, %v662
        %v4573 = vpack.c.bf16 %v668, %v668
        %v4574 = vpack.c.bf16 %v672, %v672
        %v4575 = vpack.c.bf16 %v678, %v678
        %v4576 = vpack.c.bf16 %v682, %v682
        %v4577 = vpack.c.bf16 %v721, %v721
        %v4578 = vpack.c.bf16 %v725, %v725
        %v4579 = vpack.c.bf16 %v731, %v731
        %v4580 = vpack.c.bf16 %v735, %v735
        %v4581 = vpack.c.bf16 %v741, %v741
        %v4582 = vpack.c.bf16 %v745, %v745
        %v4583 = vpack.c.bf16 %v751, %v751
        %v4584 = vpack.c.bf16 %v755, %v755
        %v4585 = vpack.c.bf16 %v761, %v761
        %v4586 = vpack.c.bf16 %v765, %v765
        %v4587 = vpack.c.bf16 %v771, %v771
        %v4588 = vpack.c.bf16 %v775, %v775
        %v4589 = vpack.c.bf16 %v781, %v781
        %v4590 = vpack.c.bf16 %v785, %v785
        %v4591 = vpack.c.bf16 %v791, %v791
        %v4592 = vpack.c.bf16 %v795, %v795
        %v4594 = vsel %vm433, %v4545, 0
        %v4597 = vsel %vm433, %v4561, 0
        %4599 = vmatprep.subr.bf16.mxu0 0
        %4600 = vmatpush1.bf16.xpose.msra.mxu0 %v4597
        %4601 = vmatprep.subr.bf16.mxu0 0
        %4602 = vmatpush1.bf16.xpose.msra.mxu0 0
        %4603 = vmatprep.subr.bf16.mxu0 0
        %4604 = vmatpush1.bf16.xpose.msra.mxu0 0
        %4605 = vmatprep.subr.bf16.mxu0 0
        %4606 = vmatpush1.bf16.xpose.msra.mxu0 0
        %4607 = vmatprep.subr.bf16.mxu0 0
        %4608 = vmatpush1.bf16.xpose.msra.mxu0 0
        %4609 = vmatprep.subr.bf16.mxu0 0
        %4610 = vmatpush1.bf16.xpose.msra.mxu0 0
        %4611 = vmatprep.subr.bf16.mxu0 0
        %4612 = vmatpush1.bf16.xpose.msra.mxu0 0
        %4613 = vmatprep.subr.bf16.mxu0 0
        %4614 = vmatpush1.bf16.xpose.msra.mxu0 0
        %4615 = vmatprep.subr.bf16.mxu0 0
        %4616 = vmatpush1.bf16.xpose.msra.mxu0 0
        %4617 = vmatprep.subr.bf16.mxu0 0
        %4618 = vmatpush1.bf16.xpose.msra.mxu0 0
        %4619 = vmatprep.subr.bf16.mxu0 0
        %4620 = vmatpush1.bf16.xpose.msra.mxu0 0
        %4621 = vmatprep.subr.bf16.mxu0 0
        %4622 = vmatpush1.bf16.xpose.msra.mxu0 0
        %4623 = vmatprep.subr.bf16.mxu0 0
        %4624 = vmatpush1.bf16.xpose.msra.mxu0 0
        %4625 = vmatprep.subr.bf16.mxu0 0
        %4626 = vmatpush1.bf16.xpose.msra.mxu0 0
        %4627 = vmatprep.subr.bf16.mxu0 0
        %4628 = vmatpush1.bf16.xpose.msra.mxu0 0
        %4629 = vmatprep.subr.bf16.mxu0 0
        %4630 = vmatpush1.bf16.xpose.msra.mxu0 0
        %4631 = vmatprep.mubr.bf16.mxu0 0
        %4632 = vmatmul.mubr.bf16.gmra.mrb[0].mxu0 %v4594
        %v4633 = vpop.f32.mrb[0].mxu0
        %v4634 = vadd.f32 0.0, %v4633
        %v4635 = vpop.f32.mrb[0].mxu0
        %v4636 = vpop.f32.mrb[0].mxu0
        %v4637 = vpop.f32.mrb[0].mxu0
        %4638 = vdwg.mxu0
        %v4640 = vsel %vm433, %v4546, 0
        %v4643 = vsel %vm433, %v4562, 0
        %4645 = vmatprep.subr.bf16.mxu0 0
        %4646 = vmatpush1.bf16.xpose.msra.mxu0 %v4643
        %4647 = vmatprep.subr.bf16.mxu0 0
        %4648 = vmatpush1.bf16.xpose.msra.mxu0 0
        %4649 = vmatprep.subr.bf16.mxu0 0
        %4650 = vmatpush1.bf16.xpose.msra.mxu0 0
        %4651 = vmatprep.subr.bf16.mxu0 0
        %4652 = vmatpush1.bf16.xpose.msra.mxu0 0
        %4653 = vmatprep.subr.bf16.mxu0 0
        %4654 = vmatpush1.bf16.xpose.msra.mxu0 0
        %4655 = vmatprep.subr.bf16.mxu0 0
        %4656 = vmatpush1.bf16.xpose.msra.mxu0 0
        %4657 = vmatprep.subr.bf16.mxu0 0
        %4658 = vmatpush1.bf16.xpose.msra.mxu0 0
        %4659 = vmatprep.subr.bf16.mxu0 0
        %4660 = vmatpush1.bf16.xpose.msra.mxu0 0
        %4661 = vmatprep.subr.bf16.mxu0 0
        %4662 = vmatpush1.bf16.xpose.msra.mxu0 0
        %4663 = vmatprep.subr.bf16.mxu0 0
        %4664 = vmatpush1.bf16.xpose.msra.mxu0 0
        %4665 = vmatprep.subr.bf16.mxu0 0
        %4666 = vmatpush1.bf16.xpose.msra.mxu0 0
        %4667 = vmatprep.subr.bf16.mxu0 0
        %4668 = vmatpush1.bf16.xpose.msra.mxu0 0
        %4669 = vmatprep.subr.bf16.mxu0 0
        %4670 = vmatpush1.bf16.xpose.msra.mxu0 0
        %4671 = vmatprep.subr.bf16.mxu0 0
        %4672 = vmatpush1.bf16.xpose.msra.mxu0 0
        %4673 = vmatprep.subr.bf16.mxu0 0
        %4674 = vmatpush1.bf16.xpose.msra.mxu0 0
        %4675 = vmatprep.subr.bf16.mxu0 0
        %4676 = vmatpush1.bf16.xpose.msra.mxu0 0
        %4677 = vmatprep.mubr.bf16.mxu0 0
        %4678 = vmatmul.mubr.bf16.gmra.mrb[0].mxu0 %v4640
        %v4679 = vpop.f32.mrb[0].mxu0
        %v4680 = vadd.f32 0.0, %v4679
        %v4681 = vpop.f32.mrb[0].mxu0
        %v4682 = vpop.f32.mrb[0].mxu0
        %v4683 = vpop.f32.mrb[0].mxu0
        %4684 = vdwg.mxu0
        %v4686 = vsel %vm433, %v4547, 0
        %v4689 = vsel %vm433, %v4563, 0
        %4691 = vmatprep.subr.bf16.mxu0 0
        %4692 = vmatpush1.bf16.xpose.msra.mxu0 %v4689
        %4693 = vmatprep.subr.bf16.mxu0 0
        %4694 = vmatpush1.bf16.xpose.msra.mxu0 0
        %4695 = vmatprep.subr.bf16.mxu0 0
        %4696 = vmatpush1.bf16.xpose.msra.mxu0 0
        %4697 = vmatprep.subr.bf16.mxu0 0
        %4698 = vmatpush1.bf16.xpose.msra.mxu0 0
        %4699 = vmatprep.subr.bf16.mxu0 0
        %4700 = vmatpush1.bf16.xpose.msra.mxu0 0
        %4701 = vmatprep.subr.bf16.mxu0 0
        %4702 = vmatpush1.bf16.xpose.msra.mxu0 0
        %4703 = vmatprep.subr.bf16.mxu0 0
        %4704 = vmatpush1.bf16.xpose.msra.mxu0 0
        %4705 = vmatprep.subr.bf16.mxu0 0
        %4706 = vmatpush1.bf16.xpose.msra.mxu0 0
        %4707 = vmatprep.subr.bf16.mxu0 0
        %4708 = vmatpush1.bf16.xpose.msra.mxu0 0
        %4709 = vmatprep.subr.bf16.mxu0 0
        %4710 = vmatpush1.bf16.xpose.msra.mxu0 0
        %4711 = vmatprep.subr.bf16.mxu0 0
        %4712 = vmatpush1.bf16.xpose.msra.mxu0 0
        %4713 = vmatprep.subr.bf16.mxu0 0
        %4714 = vmatpush1.bf16.xpose.msra.mxu0 0
        %4715 = vmatprep.subr.bf16.mxu0 0
        %4716 = vmatpush1.bf16.xpose.msra.mxu0 0
        %4717 = vmatprep.subr.bf16.mxu0 0
        %4718 = vmatpush1.bf16.xpose.msra.mxu0 0
        %4719 = vmatprep.subr.bf16.mxu0 0
        %4720 = vmatpush1.bf16.xpose.msra.mxu0 0
        %4721 = vmatprep.subr.bf16.mxu0 0
        %4722 = vmatpush1.bf16.xpose.msra.mxu0 0
        %4723 = vmatprep.mubr.bf16.mxu0 0
        %4724 = vmatmul.mubr.bf16.gmra.mrb[0].mxu0 %v4686
        %v4725 = vpop.f32.mrb[0].mxu0
        %v4726 = vadd.f32 0.0, %v4725
        %v4727 = vpop.f32.mrb[0].mxu0
        %v4728 = vpop.f32.mrb[0].mxu0
        %v4729 = vpop.f32.mrb[0].mxu0
        %4730 = vdwg.mxu0
        %v4732 = vsel %vm433, %v4548, 0
        %v4735 = vsel %vm433, %v4564, 0
        %4737 = vmatprep.subr.bf16.mxu0 0
        %4738 = vmatpush1.bf16.xpose.msra.mxu0 %v4735
        %4739 = vmatprep.subr.bf16.mxu0 0
        %4740 = vmatpush1.bf16.xpose.msra.mxu0 0
        %4741 = vmatprep.subr.bf16.mxu0 0
        %4742 = vmatpush1.bf16.xpose.msra.mxu0 0
        %4743 = vmatprep.subr.bf16.mxu0 0
        %4744 = vmatpush1.bf16.xpose.msra.mxu0 0
        %4745 = vmatprep.subr.bf16.mxu0 0
        %4746 = vmatpush1.bf16.xpose.msra.mxu0 0
        %4747 = vmatprep.subr.bf16.mxu0 0
        %4748 = vmatpush1.bf16.xpose.msra.mxu0 0
        %4749 = vmatprep.subr.bf16.mxu0 0
        %4750 = vmatpush1.bf16.xpose.msra.mxu0 0
        %4751 = vmatprep.subr.bf16.mxu0 0
        %4752 = vmatpush1.bf16.xpose.msra.mxu0 0
        %4753 = vmatprep.subr.bf16.mxu0 0
        %4754 = vmatpush1.bf16.xpose.msra.mxu0 0
        %4755 = vmatprep.subr.bf16.mxu0 0
        %4756 = vmatpush1.bf16.xpose.msra.mxu0 0
        %4757 = vmatprep.subr.bf16.mxu0 0
        %4758 = vmatpush1.bf16.xpose.msra.mxu0 0
        %4759 = vmatprep.subr.bf16.mxu0 0
        %4760 = vmatpush1.bf16.xpose.msra.mxu0 0
        %4761 = vmatprep.subr.bf16.mxu0 0
        %4762 = vmatpush1.bf16.xpose.msra.mxu0 0
        %4763 = vmatprep.subr.bf16.mxu0 0
        %4764 = vmatpush1.bf16.xpose.msra.mxu0 0
        %4765 = vmatprep.subr.bf16.mxu0 0
        %4766 = vmatpush1.bf16.xpose.msra.mxu0 0
        %4767 = vmatprep.subr.bf16.mxu0 0
        %4768 = vmatpush1.bf16.xpose.msra.mxu0 0
        %4769 = vmatprep.mubr.bf16.mxu0 0
        %4770 = vmatmul.mubr.bf16.gmra.mrb[0].mxu0 %v4732
        %v4771 = vpop.f32.mrb[0].mxu0
        %v4772 = vadd.f32 0.0, %v4771
        %v4773 = vpop.f32.mrb[0].mxu0
        %v4774 = vpop.f32.mrb[0].mxu0
        %v4775 = vpop.f32.mrb[0].mxu0
        %4776 = vdwg.mxu0
        %v4778 = vsel %vm433, %v4549, 0
        %v4781 = vsel %vm433, %v4565, 0
        %4783 = vmatprep.subr.bf16.mxu0 0
        %4784 = vmatpush1.bf16.xpose.msra.mxu0 %v4781
        %4785 = vmatprep.subr.bf16.mxu0 0
        %4786 = vmatpush1.bf16.xpose.msra.mxu0 0
        %4787 = vmatprep.subr.bf16.mxu0 0
        %4788 = vmatpush1.bf16.xpose.msra.mxu0 0
        %4789 = vmatprep.subr.bf16.mxu0 0
        %4790 = vmatpush1.bf16.xpose.msra.mxu0 0
        %4791 = vmatprep.subr.bf16.mxu0 0
        %4792 = vmatpush1.bf16.xpose.msra.mxu0 0
        %4793 = vmatprep.subr.bf16.mxu0 0
        %4794 = vmatpush1.bf16.xpose.msra.mxu0 0
        %4795 = vmatprep.subr.bf16.mxu0 0
        %4796 = vmatpush1.bf16.xpose.msra.mxu0 0
        %4797 = vmatprep.subr.bf16.mxu0 0
        %4798 = vmatpush1.bf16.xpose.msra.mxu0 0
        %4799 = vmatprep.subr.bf16.mxu0 0
        %4800 = vmatpush1.bf16.xpose.msra.mxu0 0
        %4801 = vmatprep.subr.bf16.mxu0 0
        %4802 = vmatpush1.bf16.xpose.msra.mxu0 0
        %4803 = vmatprep.subr.bf16.mxu0 0
        %4804 = vmatpush1.bf16.xpose.msra.mxu0 0
        %4805 = vmatprep.subr.bf16.mxu0 0
        %4806 = vmatpush1.bf16.xpose.msra.mxu0 0
        %4807 = vmatprep.subr.bf16.mxu0 0
        %4808 = vmatpush1.bf16.xpose.msra.mxu0 0
        %4809 = vmatprep.subr.bf16.mxu0 0
        %4810 = vmatpush1.bf16.xpose.msra.mxu0 0
        %4811 = vmatprep.subr.bf16.mxu0 0
        %4812 = vmatpush1.bf16.xpose.msra.mxu0 0
        %4813 = vmatprep.subr.bf16.mxu0 0
        %4814 = vmatpush1.bf16.xpose.msra.mxu0 0
        %4815 = vmatprep.mubr.bf16.mxu0 0
        %4816 = vmatmul.mubr.bf16.gmra.mrb[0].mxu0 %v4778
        %v4817 = vpop.f32.mrb[0].mxu0
        %v4818 = vadd.f32 0.0, %v4817
        %v4819 = vpop.f32.mrb[0].mxu0
        %v4820 = vpop.f32.mrb[0].mxu0
        %v4821 = vpop.f32.mrb[0].mxu0
        %4822 = vdwg.mxu0
        %v4824 = vsel %vm433, %v4550, 0
        %v4827 = vsel %vm433, %v4566, 0
        %4829 = vmatprep.subr.bf16.mxu0 0
        %4830 = vmatpush1.bf16.xpose.msra.mxu0 %v4827
        %4831 = vmatprep.subr.bf16.mxu0 0
        %4832 = vmatpush1.bf16.xpose.msra.mxu0 0
        %4833 = vmatprep.subr.bf16.mxu0 0
        %4834 = vmatpush1.bf16.xpose.msra.mxu0 0
        %4835 = vmatprep.subr.bf16.mxu0 0
        %4836 = vmatpush1.bf16.xpose.msra.mxu0 0
        %4837 = vmatprep.subr.bf16.mxu0 0
        %4838 = vmatpush1.bf16.xpose.msra.mxu0 0
        %4839 = vmatprep.subr.bf16.mxu0 0
        %4840 = vmatpush1.bf16.xpose.msra.mxu0 0
        %4841 = vmatprep.subr.bf16.mxu0 0
        %4842 = vmatpush1.bf16.xpose.msra.mxu0 0
        %4843 = vmatprep.subr.bf16.mxu0 0
        %4844 = vmatpush1.bf16.xpose.msra.mxu0 0
        %4845 = vmatprep.subr.bf16.mxu0 0
        %4846 = vmatpush1.bf16.xpose.msra.mxu0 0
        %4847 = vmatprep.subr.bf16.mxu0 0
        %4848 = vmatpush1.bf16.xpose.msra.mxu0 0
        %4849 = vmatprep.subr.bf16.mxu0 0
        %4850 = vmatpush1.bf16.xpose.msra.mxu0 0
        %4851 = vmatprep.subr.bf16.mxu0 0
        %4852 = vmatpush1.bf16.xpose.msra.mxu0 0
        %4853 = vmatprep.subr.bf16.mxu0 0
        %4854 = vmatpush1.bf16.xpose.msra.mxu0 0
        %4855 = vmatprep.subr.bf16.mxu0 0
        %4856 = vmatpush1.bf16.xpose.msra.mxu0 0
        %4857 = vmatprep.subr.bf16.mxu0 0
        %4858 = vmatpush1.bf16.xpose.msra.mxu0 0
        %4859 = vmatprep.subr.bf16.mxu0 0
        %4860 = vmatpush1.bf16.xpose.msra.mxu0 0
        %4861 = vmatprep.mubr.bf16.mxu0 0
        %4862 = vmatmul.mubr.bf16.gmra.mrb[0].mxu0 %v4824
        %v4863 = vpop.f32.mrb[0].mxu0
        %v4864 = vadd.f32 0.0, %v4863
        %v4865 = vpop.f32.mrb[0].mxu0
        %v4866 = vpop.f32.mrb[0].mxu0
        %v4867 = vpop.f32.mrb[0].mxu0
        %4868 = vdwg.mxu0
        %v4870 = vsel %vm433, %v4551, 0
        %v4873 = vsel %vm433, %v4567, 0
        %4875 = vmatprep.subr.bf16.mxu0 0
        %4876 = vmatpush1.bf16.xpose.msra.mxu0 %v4873
        %4877 = vmatprep.subr.bf16.mxu0 0
        %4878 = vmatpush1.bf16.xpose.msra.mxu0 0
        %4879 = vmatprep.subr.bf16.mxu0 0
        %4880 = vmatpush1.bf16.xpose.msra.mxu0 0
        %4881 = vmatprep.subr.bf16.mxu0 0
        %4882 = vmatpush1.bf16.xpose.msra.mxu0 0
        %4883 = vmatprep.subr.bf16.mxu0 0
        %4884 = vmatpush1.bf16.xpose.msra.mxu0 0
        %4885 = vmatprep.subr.bf16.mxu0 0
        %4886 = vmatpush1.bf16.xpose.msra.mxu0 0
        %4887 = vmatprep.subr.bf16.mxu0 0
        %4888 = vmatpush1.bf16.xpose.msra.mxu0 0
        %4889 = vmatprep.subr.bf16.mxu0 0
        %4890 = vmatpush1.bf16.xpose.msra.mxu0 0
        %4891 = vmatprep.subr.bf16.mxu0 0
        %4892 = vmatpush1.bf16.xpose.msra.mxu0 0
        %4893 = vmatprep.subr.bf16.mxu0 0
        %4894 = vmatpush1.bf16.xpose.msra.mxu0 0
        %4895 = vmatprep.subr.bf16.mxu0 0
        %4896 = vmatpush1.bf16.xpose.msra.mxu0 0
        %4897 = vmatprep.subr.bf16.mxu0 0
        %4898 = vmatpush1.bf16.xpose.msra.mxu0 0
        %4899 = vmatprep.subr.bf16.mxu0 0
        %4900 = vmatpush1.bf16.xpose.msra.mxu0 0
        %4901 = vmatprep.subr.bf16.mxu0 0
        %4902 = vmatpush1.bf16.xpose.msra.mxu0 0
        %4903 = vmatprep.subr.bf16.mxu0 0
        %4904 = vmatpush1.bf16.xpose.msra.mxu0 0
        %4905 = vmatprep.subr.bf16.mxu0 0
        %4906 = vmatpush1.bf16.xpose.msra.mxu0 0
        %4907 = vmatprep.mubr.bf16.mxu0 0
        %4908 = vmatmul.mubr.bf16.gmra.mrb[0].mxu0 %v4870
        %v4909 = vpop.f32.mrb[0].mxu0
        %v4910 = vadd.f32 0.0, %v4909
        %v4911 = vpop.f32.mrb[0].mxu0
        %v4912 = vpop.f32.mrb[0].mxu0
        %v4913 = vpop.f32.mrb[0].mxu0
        %4914 = vdwg.mxu0
        %v4916 = vsel %vm433, %v4552, 0
        %v4919 = vsel %vm433, %v4568, 0
        %4921 = vmatprep.subr.bf16.mxu0 0
        %4922 = vmatpush1.bf16.xpose.msra.mxu0 %v4919
        %4923 = vmatprep.subr.bf16.mxu0 0
        %4924 = vmatpush1.bf16.xpose.msra.mxu0 0
        %4925 = vmatprep.subr.bf16.mxu0 0
        %4926 = vmatpush1.bf16.xpose.msra.mxu0 0
        %4927 = vmatprep.subr.bf16.mxu0 0
        %4928 = vmatpush1.bf16.xpose.msra.mxu0 0
        %4929 = vmatprep.subr.bf16.mxu0 0
        %4930 = vmatpush1.bf16.xpose.msra.mxu0 0
        %4931 = vmatprep.subr.bf16.mxu0 0
        %4932 = vmatpush1.bf16.xpose.msra.mxu0 0
        %4933 = vmatprep.subr.bf16.mxu0 0
        %4934 = vmatpush1.bf16.xpose.msra.mxu0 0
        %4935 = vmatprep.subr.bf16.mxu0 0
        %4936 = vmatpush1.bf16.xpose.msra.mxu0 0
        %4937 = vmatprep.subr.bf16.mxu0 0
        %4938 = vmatpush1.bf16.xpose.msra.mxu0 0
        %4939 = vmatprep.subr.bf16.mxu0 0
        %4940 = vmatpush1.bf16.xpose.msra.mxu0 0
        %4941 = vmatprep.subr.bf16.mxu0 0
        %4942 = vmatpush1.bf16.xpose.msra.mxu0 0
        %4943 = vmatprep.subr.bf16.mxu0 0
        %4944 = vmatpush1.bf16.xpose.msra.mxu0 0
        %4945 = vmatprep.subr.bf16.mxu0 0
        %4946 = vmatpush1.bf16.xpose.msra.mxu0 0
        %4947 = vmatprep.subr.bf16.mxu0 0
        %4948 = vmatpush1.bf16.xpose.msra.mxu0 0
        %4949 = vmatprep.subr.bf16.mxu0 0
        %4950 = vmatpush1.bf16.xpose.msra.mxu0 0
        %4951 = vmatprep.subr.bf16.mxu0 0
        %4952 = vmatpush1.bf16.xpose.msra.mxu0 0
        %4953 = vmatprep.mubr.bf16.mxu0 0
        %4954 = vmatmul.mubr.bf16.gmra.mrb[0].mxu0 %v4916
        %v4955 = vpop.f32.mrb[0].mxu0
        %v4956 = vadd.f32 0.0, %v4955
        %v4957 = vpop.f32.mrb[0].mxu0
        %v4958 = vpop.f32.mrb[0].mxu0
        %v4959 = vpop.f32.mrb[0].mxu0
        %4960 = vdwg.mxu0
        %v4962 = vsel %vm433, %v4553, 0
        %v4965 = vsel %vm433, %v4569, 0
        %4967 = vmatprep.subr.bf16.mxu0 0
        %4968 = vmatpush1.bf16.xpose.msra.mxu0 %v4965
        %4969 = vmatprep.subr.bf16.mxu0 0
        %4970 = vmatpush1.bf16.xpose.msra.mxu0 0
        %4971 = vmatprep.subr.bf16.mxu0 0
        %4972 = vmatpush1.bf16.xpose.msra.mxu0 0
        %4973 = vmatprep.subr.bf16.mxu0 0
        %4974 = vmatpush1.bf16.xpose.msra.mxu0 0
        %4975 = vmatprep.subr.bf16.mxu0 0
        %4976 = vmatpush1.bf16.xpose.msra.mxu0 0
        %4977 = vmatprep.subr.bf16.mxu0 0
        %4978 = vmatpush1.bf16.xpose.msra.mxu0 0
        %4979 = vmatprep.subr.bf16.mxu0 0
        %4980 = vmatpush1.bf16.xpose.msra.mxu0 0
        %4981 = vmatprep.subr.bf16.mxu0 0
        %4982 = vmatpush1.bf16.xpose.msra.mxu0 0
        %4983 = vmatprep.subr.bf16.mxu0 0
        %4984 = vmatpush1.bf16.xpose.msra.mxu0 0
        %4985 = vmatprep.subr.bf16.mxu0 0
        %4986 = vmatpush1.bf16.xpose.msra.mxu0 0
        %4987 = vmatprep.subr.bf16.mxu0 0
        %4988 = vmatpush1.bf16.xpose.msra.mxu0 0
        %4989 = vmatprep.subr.bf16.mxu0 0
        %4990 = vmatpush1.bf16.xpose.msra.mxu0 0
        %4991 = vmatprep.subr.bf16.mxu0 0
        %4992 = vmatpush1.bf16.xpose.msra.mxu0 0
        %4993 = vmatprep.subr.bf16.mxu0 0
        %4994 = vmatpush1.bf16.xpose.msra.mxu0 0
        %4995 = vmatprep.subr.bf16.mxu0 0
        %4996 = vmatpush1.bf16.xpose.msra.mxu0 0
        %4997 = vmatprep.subr.bf16.mxu0 0
        %4998 = vmatpush1.bf16.xpose.msra.mxu0 0
        %4999 = vmatprep.mubr.bf16.mxu0 0
        %5000 = vmatmul.mubr.bf16.gmra.mrb[0].mxu0 %v4962
        %v5001 = vpop.f32.mrb[0].mxu0
        %v5002 = vadd.f32 0.0, %v5001
        %v5003 = vpop.f32.mrb[0].mxu0
        %v5004 = vpop.f32.mrb[0].mxu0
        %v5005 = vpop.f32.mrb[0].mxu0
        %5006 = vdwg.mxu0
        %v5008 = vsel %vm433, %v4554, 0
        %v5011 = vsel %vm433, %v4570, 0
        %5013 = vmatprep.subr.bf16.mxu0 0
        %5014 = vmatpush1.bf16.xpose.msra.mxu0 %v5011
        %5015 = vmatprep.subr.bf16.mxu0 0
        %5016 = vmatpush1.bf16.xpose.msra.mxu0 0
        %5017 = vmatprep.subr.bf16.mxu0 0
        %5018 = vmatpush1.bf16.xpose.msra.mxu0 0
        %5019 = vmatprep.subr.bf16.mxu0 0
        %5020 = vmatpush1.bf16.xpose.msra.mxu0 0
        %5021 = vmatprep.subr.bf16.mxu0 0
        %5022 = vmatpush1.bf16.xpose.msra.mxu0 0
        %5023 = vmatprep.subr.bf16.mxu0 0
        %5024 = vmatpush1.bf16.xpose.msra.mxu0 0
        %5025 = vmatprep.subr.bf16.mxu0 0
        %5026 = vmatpush1.bf16.xpose.msra.mxu0 0
        %5027 = vmatprep.subr.bf16.mxu0 0
        %5028 = vmatpush1.bf16.xpose.msra.mxu0 0
        %5029 = vmatprep.subr.bf16.mxu0 0
        %5030 = vmatpush1.bf16.xpose.msra.mxu0 0
        %5031 = vmatprep.subr.bf16.mxu0 0
        %5032 = vmatpush1.bf16.xpose.msra.mxu0 0
        %5033 = vmatprep.subr.bf16.mxu0 0
        %5034 = vmatpush1.bf16.xpose.msra.mxu0 0
        %5035 = vmatprep.subr.bf16.mxu0 0
        %5036 = vmatpush1.bf16.xpose.msra.mxu0 0
        %5037 = vmatprep.subr.bf16.mxu0 0
        %5038 = vmatpush1.bf16.xpose.msra.mxu0 0
        %5039 = vmatprep.subr.bf16.mxu0 0
        %5040 = vmatpush1.bf16.xpose.msra.mxu0 0
        %5041 = vmatprep.subr.bf16.mxu0 0
        %5042 = vmatpush1.bf16.xpose.msra.mxu0 0
        %5043 = vmatprep.subr.bf16.mxu0 0
        %5044 = vmatpush1.bf16.xpose.msra.mxu0 0
        %5045 = vmatprep.mubr.bf16.mxu0 0
        %5046 = vmatmul.mubr.bf16.gmra.mrb[0].mxu0 %v5008
        %v5047 = vpop.f32.mrb[0].mxu0
        %v5048 = vadd.f32 0.0, %v5047
        %v5049 = vpop.f32.mrb[0].mxu0
        %v5050 = vpop.f32.mrb[0].mxu0
        %v5051 = vpop.f32.mrb[0].mxu0
        %5052 = vdwg.mxu0
        %v5054 = vsel %vm433, %v4555, 0
        %v5057 = vsel %vm433, %v4571, 0
        %5059 = vmatprep.subr.bf16.mxu0 0
        %5060 = vmatpush1.bf16.xpose.msra.mxu0 %v5057
        %5061 = vmatprep.subr.bf16.mxu0 0
        %5062 = vmatpush1.bf16.xpose.msra.mxu0 0
        %5063 = vmatprep.subr.bf16.mxu0 0
        %5064 = vmatpush1.bf16.xpose.msra.mxu0 0
        %5065 = vmatprep.subr.bf16.mxu0 0
        %5066 = vmatpush1.bf16.xpose.msra.mxu0 0
        %5067 = vmatprep.subr.bf16.mxu0 0
        %5068 = vmatpush1.bf16.xpose.msra.mxu0 0
        %5069 = vmatprep.subr.bf16.mxu0 0
        %5070 = vmatpush1.bf16.xpose.msra.mxu0 0
        %5071 = vmatprep.subr.bf16.mxu0 0
        %5072 = vmatpush1.bf16.xpose.msra.mxu0 0
        %5073 = vmatprep.subr.bf16.mxu0 0
        %5074 = vmatpush1.bf16.xpose.msra.mxu0 0
        %5075 = vmatprep.subr.bf16.mxu0 0
        %5076 = vmatpush1.bf16.xpose.msra.mxu0 0
        %5077 = vmatprep.subr.bf16.mxu0 0
        %5078 = vmatpush1.bf16.xpose.msra.mxu0 0
        %5079 = vmatprep.subr.bf16.mxu0 0
        %5080 = vmatpush1.bf16.xpose.msra.mxu0 0
        %5081 = vmatprep.subr.bf16.mxu0 0
        %5082 = vmatpush1.bf16.xpose.msra.mxu0 0
        %5083 = vmatprep.subr.bf16.mxu0 0
        %5084 = vmatpush1.bf16.xpose.msra.mxu0 0
        %5085 = vmatprep.subr.bf16.mxu0 0
        %5086 = vmatpush1.bf16.xpose.msra.mxu0 0
        %5087 = vmatprep.subr.bf16.mxu0 0
        %5088 = vmatpush1.bf16.xpose.msra.mxu0 0
        %5089 = vmatprep.subr.bf16.mxu0 0
        %5090 = vmatpush1.bf16.xpose.msra.mxu0 0
        %5091 = vmatprep.mubr.bf16.mxu0 0
        %5092 = vmatmul.mubr.bf16.gmra.mrb[0].mxu0 %v5054
        %v5093 = vpop.f32.mrb[0].mxu0
        %v5094 = vadd.f32 0.0, %v5093
        %v5095 = vpop.f32.mrb[0].mxu0
        %v5096 = vpop.f32.mrb[0].mxu0
        %v5097 = vpop.f32.mrb[0].mxu0
        %5098 = vdwg.mxu0
        %v5100 = vsel %vm433, %v4556, 0
        %v5103 = vsel %vm433, %v4572, 0
        %5105 = vmatprep.subr.bf16.mxu0 0
        %5106 = vmatpush1.bf16.xpose.msra.mxu0 %v5103
        %5107 = vmatprep.subr.bf16.mxu0 0
        %5108 = vmatpush1.bf16.xpose.msra.mxu0 0
        %5109 = vmatprep.subr.bf16.mxu0 0
        %5110 = vmatpush1.bf16.xpose.msra.mxu0 0
        %5111 = vmatprep.subr.bf16.mxu0 0
        %5112 = vmatpush1.bf16.xpose.msra.mxu0 0
        %5113 = vmatprep.subr.bf16.mxu0 0
        %5114 = vmatpush1.bf16.xpose.msra.mxu0 0
        %5115 = vmatprep.subr.bf16.mxu0 0
        %5116 = vmatpush1.bf16.xpose.msra.mxu0 0
        %5117 = vmatprep.subr.bf16.mxu0 0
        %5118 = vmatpush1.bf16.xpose.msra.mxu0 0
        %5119 = vmatprep.subr.bf16.mxu0 0
        %5120 = vmatpush1.bf16.xpose.msra.mxu0 0
        %5121 = vmatprep.subr.bf16.mxu0 0
        %5122 = vmatpush1.bf16.xpose.msra.mxu0 0
        %5123 = vmatprep.subr.bf16.mxu0 0
        %5124 = vmatpush1.bf16.xpose.msra.mxu0 0
        %5125 = vmatprep.subr.bf16.mxu0 0
        %5126 = vmatpush1.bf16.xpose.msra.mxu0 0
        %5127 = vmatprep.subr.bf16.mxu0 0
        %5128 = vmatpush1.bf16.xpose.msra.mxu0 0
        %5129 = vmatprep.subr.bf16.mxu0 0
        %5130 = vmatpush1.bf16.xpose.msra.mxu0 0
        %5131 = vmatprep.subr.bf16.mxu0 0
        %5132 = vmatpush1.bf16.xpose.msra.mxu0 0
        %5133 = vmatprep.subr.bf16.mxu0 0
        %5134 = vmatpush1.bf16.xpose.msra.mxu0 0
        %5135 = vmatprep.subr.bf16.mxu0 0
        %5136 = vmatpush1.bf16.xpose.msra.mxu0 0
        %5137 = vmatprep.mubr.bf16.mxu0 0
        %5138 = vmatmul.mubr.bf16.gmra.mrb[0].mxu0 %v5100
        %v5139 = vpop.f32.mrb[0].mxu0
        %v5140 = vadd.f32 0.0, %v5139
        %v5141 = vpop.f32.mrb[0].mxu0
        %v5142 = vpop.f32.mrb[0].mxu0
        %v5143 = vpop.f32.mrb[0].mxu0
        %5144 = vdwg.mxu0
        %v5146 = vsel %vm433, %v4557, 0
        %v5149 = vsel %vm433, %v4573, 0
        %5151 = vmatprep.subr.bf16.mxu0 0
        %5152 = vmatpush1.bf16.xpose.msra.mxu0 %v5149
        %5153 = vmatprep.subr.bf16.mxu0 0
        %5154 = vmatpush1.bf16.xpose.msra.mxu0 0
        %5155 = vmatprep.subr.bf16.mxu0 0
        %5156 = vmatpush1.bf16.xpose.msra.mxu0 0
        %5157 = vmatprep.subr.bf16.mxu0 0
        %5158 = vmatpush1.bf16.xpose.msra.mxu0 0
        %5159 = vmatprep.subr.bf16.mxu0 0
        %5160 = vmatpush1.bf16.xpose.msra.mxu0 0
        %5161 = vmatprep.subr.bf16.mxu0 0
        %5162 = vmatpush1.bf16.xpose.msra.mxu0 0
        %5163 = vmatprep.subr.bf16.mxu0 0
        %5164 = vmatpush1.bf16.xpose.msra.mxu0 0
        %5165 = vmatprep.subr.bf16.mxu0 0
        %5166 = vmatpush1.bf16.xpose.msra.mxu0 0
        %5167 = vmatprep.subr.bf16.mxu0 0
        %5168 = vmatpush1.bf16.xpose.msra.mxu0 0
        %5169 = vmatprep.subr.bf16.mxu0 0
        %5170 = vmatpush1.bf16.xpose.msra.mxu0 0
        %5171 = vmatprep.subr.bf16.mxu0 0
        %5172 = vmatpush1.bf16.xpose.msra.mxu0 0
        %5173 = vmatprep.subr.bf16.mxu0 0
        %5174 = vmatpush1.bf16.xpose.msra.mxu0 0
        %5175 = vmatprep.subr.bf16.mxu0 0
        %5176 = vmatpush1.bf16.xpose.msra.mxu0 0
        %5177 = vmatprep.subr.bf16.mxu0 0
        %5178 = vmatpush1.bf16.xpose.msra.mxu0 0
        %5179 = vmatprep.subr.bf16.mxu0 0
        %5180 = vmatpush1.bf16.xpose.msra.mxu0 0
        %5181 = vmatprep.subr.bf16.mxu0 0
        %5182 = vmatpush1.bf16.xpose.msra.mxu0 0
        %5183 = vmatprep.mubr.bf16.mxu0 0
        %5184 = vmatmul.mubr.bf16.gmra.mrb[0].mxu0 %v5146
        %v5185 = vpop.f32.mrb[0].mxu0
        %v5186 = vadd.f32 0.0, %v5185
        %v5187 = vpop.f32.mrb[0].mxu0
        %v5188 = vpop.f32.mrb[0].mxu0
        %v5189 = vpop.f32.mrb[0].mxu0
        %5190 = vdwg.mxu0
        %v5192 = vsel %vm433, %v4558, 0
        %v5195 = vsel %vm433, %v4574, 0
        %5197 = vmatprep.subr.bf16.mxu0 0
        %5198 = vmatpush1.bf16.xpose.msra.mxu0 %v5195
        %5199 = vmatprep.subr.bf16.mxu0 0
        %5200 = vmatpush1.bf16.xpose.msra.mxu0 0
        %5201 = vmatprep.subr.bf16.mxu0 0
        %5202 = vmatpush1.bf16.xpose.msra.mxu0 0
        %5203 = vmatprep.subr.bf16.mxu0 0
        %5204 = vmatpush1.bf16.xpose.msra.mxu0 0
        %5205 = vmatprep.subr.bf16.mxu0 0
        %5206 = vmatpush1.bf16.xpose.msra.mxu0 0
        %5207 = vmatprep.subr.bf16.mxu0 0
        %5208 = vmatpush1.bf16.xpose.msra.mxu0 0
        %5209 = vmatprep.subr.bf16.mxu0 0
        %5210 = vmatpush1.bf16.xpose.msra.mxu0 0
        %5211 = vmatprep.subr.bf16.mxu0 0
        %5212 = vmatpush1.bf16.xpose.msra.mxu0 0
        %5213 = vmatprep.subr.bf16.mxu0 0
        %5214 = vmatpush1.bf16.xpose.msra.mxu0 0
        %5215 = vmatprep.subr.bf16.mxu0 0
        %5216 = vmatpush1.bf16.xpose.msra.mxu0 0
        %5217 = vmatprep.subr.bf16.mxu0 0
        %5218 = vmatpush1.bf16.xpose.msra.mxu0 0
        %5219 = vmatprep.subr.bf16.mxu0 0
        %5220 = vmatpush1.bf16.xpose.msra.mxu0 0
        %5221 = vmatprep.subr.bf16.mxu0 0
        %5222 = vmatpush1.bf16.xpose.msra.mxu0 0
        %5223 = vmatprep.subr.bf16.mxu0 0
        %5224 = vmatpush1.bf16.xpose.msra.mxu0 0
        %5225 = vmatprep.subr.bf16.mxu0 0
        %5226 = vmatpush1.bf16.xpose.msra.mxu0 0
        %5227 = vmatprep.subr.bf16.mxu0 0
        %5228 = vmatpush1.bf16.xpose.msra.mxu0 0
        %5229 = vmatprep.mubr.bf16.mxu0 0
        %5230 = vmatmul.mubr.bf16.gmra.mrb[0].mxu0 %v5192
        %v5231 = vpop.f32.mrb[0].mxu0
        %v5232 = vadd.f32 0.0, %v5231
        %v5233 = vpop.f32.mrb[0].mxu0
        %v5234 = vpop.f32.mrb[0].mxu0
        %v5235 = vpop.f32.mrb[0].mxu0
        %5236 = vdwg.mxu0
        %v5238 = vsel %vm433, %v4559, 0
        %v5241 = vsel %vm433, %v4575, 0
        %5243 = vmatprep.subr.bf16.mxu0 0
        %5244 = vmatpush1.bf16.xpose.msra.mxu0 %v5241
        %5245 = vmatprep.subr.bf16.mxu0 0
        %5246 = vmatpush1.bf16.xpose.msra.mxu0 0
        %5247 = vmatprep.subr.bf16.mxu0 0
        %5248 = vmatpush1.bf16.xpose.msra.mxu0 0
        %5249 = vmatprep.subr.bf16.mxu0 0
        %5250 = vmatpush1.bf16.xpose.msra.mxu0 0
        %5251 = vmatprep.subr.bf16.mxu0 0
        %5252 = vmatpush1.bf16.xpose.msra.mxu0 0
        %5253 = vmatprep.subr.bf16.mxu0 0
        %5254 = vmatpush1.bf16.xpose.msra.mxu0 0
        %5255 = vmatprep.subr.bf16.mxu0 0
        %5256 = vmatpush1.bf16.xpose.msra.mxu0 0
        %5257 = vmatprep.subr.bf16.mxu0 0
        %5258 = vmatpush1.bf16.xpose.msra.mxu0 0
        %5259 = vmatprep.subr.bf16.mxu0 0
        %5260 = vmatpush1.bf16.xpose.msra.mxu0 0
        %5261 = vmatprep.subr.bf16.mxu0 0
        %5262 = vmatpush1.bf16.xpose.msra.mxu0 0
        %5263 = vmatprep.subr.bf16.mxu0 0
        %5264 = vmatpush1.bf16.xpose.msra.mxu0 0
        %5265 = vmatprep.subr.bf16.mxu0 0
        %5266 = vmatpush1.bf16.xpose.msra.mxu0 0
        %5267 = vmatprep.subr.bf16.mxu0 0
        %5268 = vmatpush1.bf16.xpose.msra.mxu0 0
        %5269 = vmatprep.subr.bf16.mxu0 0
        %5270 = vmatpush1.bf16.xpose.msra.mxu0 0
        %5271 = vmatprep.subr.bf16.mxu0 0
        %5272 = vmatpush1.bf16.xpose.msra.mxu0 0
        %5273 = vmatprep.subr.bf16.mxu0 0
        %5274 = vmatpush1.bf16.xpose.msra.mxu0 0
        %5275 = vmatprep.mubr.bf16.mxu0 0
        %5276 = vmatmul.mubr.bf16.gmra.mrb[0].mxu0 %v5238
        %v5277 = vpop.f32.mrb[0].mxu0
        %v5278 = vadd.f32 0.0, %v5277
        %v5279 = vpop.f32.mrb[0].mxu0
        %v5280 = vpop.f32.mrb[0].mxu0
        %v5281 = vpop.f32.mrb[0].mxu0
        %5282 = vdwg.mxu0
        %v5284 = vsel %vm433, %v4560, 0
        %v5287 = vsel %vm433, %v4576, 0
        %5289 = vmatprep.subr.bf16.mxu0 0
        %5290 = vmatpush1.bf16.xpose.msra.mxu0 %v5287
        %5291 = vmatprep.subr.bf16.mxu0 0
        %5292 = vmatpush1.bf16.xpose.msra.mxu0 0
        %5293 = vmatprep.subr.bf16.mxu0 0
        %5294 = vmatpush1.bf16.xpose.msra.mxu0 0
        %5295 = vmatprep.subr.bf16.mxu0 0
        %5296 = vmatpush1.bf16.xpose.msra.mxu0 0
        %5297 = vmatprep.subr.bf16.mxu0 0
        %5298 = vmatpush1.bf16.xpose.msra.mxu0 0
        %5299 = vmatprep.subr.bf16.mxu0 0
        %5300 = vmatpush1.bf16.xpose.msra.mxu0 0
        %5301 = vmatprep.subr.bf16.mxu0 0
        %5302 = vmatpush1.bf16.xpose.msra.mxu0 0
        %5303 = vmatprep.subr.bf16.mxu0 0
        %5304 = vmatpush1.bf16.xpose.msra.mxu0 0
        %5305 = vmatprep.subr.bf16.mxu0 0
        %5306 = vmatpush1.bf16.xpose.msra.mxu0 0
        %5307 = vmatprep.subr.bf16.mxu0 0
        %5308 = vmatpush1.bf16.xpose.msra.mxu0 0
        %5309 = vmatprep.subr.bf16.mxu0 0
        %5310 = vmatpush1.bf16.xpose.msra.mxu0 0
        %5311 = vmatprep.subr.bf16.mxu0 0
        %5312 = vmatpush1.bf16.xpose.msra.mxu0 0
        %5313 = vmatprep.subr.bf16.mxu0 0
        %5314 = vmatpush1.bf16.xpose.msra.mxu0 0
        %5315 = vmatprep.subr.bf16.mxu0 0
        %5316 = vmatpush1.bf16.xpose.msra.mxu0 0
        %5317 = vmatprep.subr.bf16.mxu0 0
        %5318 = vmatpush1.bf16.xpose.msra.mxu0 0
        %5319 = vmatprep.subr.bf16.mxu0 0
        %5320 = vmatpush1.bf16.xpose.msra.mxu0 0
        %5321 = vmatprep.mubr.bf16.mxu0 0
        %5322 = vmatmul.mubr.bf16.gmra.mrb[0].mxu0 %v5284
        %v5323 = vpop.f32.mrb[0].mxu0
        %v5324 = vadd.f32 0.0, %v5323
        %v5325 = vpop.f32.mrb[0].mxu0
        %v5326 = vpop.f32.mrb[0].mxu0
        %v5327 = vpop.f32.mrb[0].mxu0
        %5328 = vdwg.mxu0
        %v5329 = vmul.f32 %v4634, 0.125
        %v5330 = vmul.f32 %v4680, 0.125
        %v5331 = vmul.f32 %v4726, 0.125
        %v5332 = vmul.f32 %v4772, 0.125
        %v5333 = vmul.f32 %v4818, 0.125
        %v5334 = vmul.f32 %v4864, 0.125
        %v5335 = vmul.f32 %v4910, 0.125
        %v5336 = vmul.f32 %v4956, 0.125
        %v5337 = vmul.f32 %v5002, 0.125
        %v5338 = vmul.f32 %v5048, 0.125
        %v5339 = vmul.f32 %v5094, 0.125
        %v5340 = vmul.f32 %v5140, 0.125
        %v5341 = vmul.f32 %v5186, 0.125
        %v5342 = vmul.f32 %v5232, 0.125
        %v5343 = vmul.f32 %v5278, 0.125
        %v5344 = vmul.f32 %v5324, 0.125
        %v5345 = vadd.f32 %v5329, %v813
        %v5346 = vadd.f32 %v5330, %v814
        %v5347 = vadd.f32 %v5331, %v815
        %v5348 = vadd.f32 %v5332, %v816
        %v5349 = vadd.f32 %v5333, %v817
        %v5350 = vadd.f32 %v5334, %v818
        %v5351 = vadd.f32 %v5335, %v819
        %v5352 = vadd.f32 %v5336, %v820
        %v5353 = vadd.f32 %v5337, %v821
        %v5354 = vadd.f32 %v5338, %v822
        %v5355 = vadd.f32 %v5339, %v823
        %v5356 = vadd.f32 %v5340, %v824
        %v5357 = vadd.f32 %v5341, %v825
        %v5358 = vadd.f32 %v5342, %v826
        %v5359 = vadd.f32 %v5343, %v827
        %v5360 = vadd.f32 %v5344, %v828
        %v5361 = vsel %vm1645, %v5345, -inf
        %5362 = vmax.xlane.f32.xlu0 %v5361
        %v5363 = vpop.xlane.xlu0 %5362
        %v5364 = vsel %vm1645, %v5346, -inf
        %5365 = vmax.xlane.f32.xlu0 %v5364
        %v5366 = vpop.xlane.xlu0 %5365
        %v5367 = vsel %vm1645, %v5347, -inf
        %5368 = vmax.xlane.f32.xlu0 %v5367
        %v5369 = vpop.xlane.xlu0 %5368
        %v5370 = vsel %vm1645, %v5348, -inf
        %5371 = vmax.xlane.f32.xlu0 %v5370
        %v5372 = vpop.xlane.xlu0 %5371
        %v5373 = vsel %vm1645, %v5349, -inf
        %5374 = vmax.xlane.f32.xlu0 %v5373
        %v5375 = vpop.xlane.xlu0 %5374
        %v5376 = vsel %vm1645, %v5350, -inf
        %5377 = vmax.xlane.f32.xlu0 %v5376
        %v5378 = vpop.xlane.xlu0 %5377
        %v5379 = vsel %vm1645, %v5351, -inf
        %5380 = vmax.xlane.f32.xlu0 %v5379
        %v5381 = vpop.xlane.xlu0 %5380
        %v5382 = vsel %vm1645, %v5352, -inf
        %5383 = vmax.xlane.f32.xlu0 %v5382
        %v5384 = vpop.xlane.xlu0 %5383
        %v5385 = vsel %vm1645, %v5353, -inf
        %5386 = vmax.xlane.f32.xlu0 %v5385
        %v5387 = vpop.xlane.xlu0 %5386
        %v5388 = vsel %vm1645, %v5354, -inf
        %5389 = vmax.xlane.f32.xlu0 %v5388
        %v5390 = vpop.xlane.xlu0 %5389
        %v5391 = vsel %vm1645, %v5355, -inf
        %5392 = vmax.xlane.f32.xlu0 %v5391
        %v5393 = vpop.xlane.xlu0 %5392
        %v5394 = vsel %vm1645, %v5356, -inf
        %5395 = vmax.xlane.f32.xlu0 %v5394
        %v5396 = vpop.xlane.xlu0 %5395
        %v5397 = vsel %vm1645, %v5357, -inf
        %5398 = vmax.xlane.f32.xlu0 %v5397
        %v5399 = vpop.xlane.xlu0 %5398
        %v5400 = vsel %vm1645, %v5358, -inf
        %5401 = vmax.xlane.f32.xlu0 %v5400
        %v5402 = vpop.xlane.xlu0 %5401
        %v5403 = vsel %vm1645, %v5359, -inf
        %5404 = vmax.xlane.f32.xlu0 %v5403
        %v5405 = vpop.xlane.xlu0 %5404
        %v5406 = vsel %vm1645, %v5360, -inf
        %5407 = vmax.xlane.f32.xlu0 %v5406
        %v5408 = vpop.xlane.xlu0 %5407
        %v5409 = vsub.f32 %v5345, %v5363
        %v5410 = vsub.f32 %v5346, %v5366
        %v5411 = vsub.f32 %v5347, %v5369
        %v5412 = vsub.f32 %v5348, %v5372
        %v5413 = vsub.f32 %v5349, %v5375
        %v5414 = vsub.f32 %v5350, %v5378
        %v5415 = vsub.f32 %v5351, %v5381
        %v5416 = vsub.f32 %v5352, %v5384
        %v5417 = vsub.f32 %v5353, %v5387
        %v5418 = vsub.f32 %v5354, %v5390
        %v5419 = vsub.f32 %v5355, %v5393
        %v5420 = vsub.f32 %v5356, %v5396
        %v5421 = vsub.f32 %v5357, %v5399
        %v5422 = vsub.f32 %v5358, %v5402
        %v5423 = vsub.f32 %v5359, %v5405
        %v5424 = vsub.f32 %v5360, %v5408
        %v5425 = vmul.f32 %v5409, 1.442695
        %v5426 = vpow.pop %v5425
        %v5427 = vmul.f32 %v5410, 1.442695
        %v5428 = vpow.pop %v5427
        %v5429 = vmul.f32 %v5411, 1.442695
        %v5430 = vpow.pop %v5429
        %v5431 = vmul.f32 %v5412, 1.442695
        %v5432 = vpow.pop %v5431
        %v5433 = vmul.f32 %v5413, 1.442695
        %v5434 = vpow.pop %v5433
        %v5435 = vmul.f32 %v5414, 1.442695
        %v5436 = vpow.pop %v5435
        %v5437 = vmul.f32 %v5415, 1.442695
        %v5438 = vpow.pop %v5437
        %v5439 = vmul.f32 %v5416, 1.442695
        %v5440 = vpow.pop %v5439
        %v5441 = vmul.f32 %v5417, 1.442695
        %v5442 = vpow.pop %v5441
        %v5443 = vmul.f32 %v5418, 1.442695
        %v5444 = vpow.pop %v5443
        %v5445 = vmul.f32 %v5419, 1.442695
        %v5446 = vpow.pop %v5445
        %v5447 = vmul.f32 %v5420, 1.442695
        %v5448 = vpow.pop %v5447
        %v5449 = vmul.f32 %v5421, 1.442695
        %v5450 = vpow.pop %v5449
        %v5451 = vmul.f32 %v5422, 1.442695
        %v5452 = vpow.pop %v5451
        %v5453 = vmul.f32 %v5423, 1.442695
        %v5454 = vpow.pop %v5453
        %v5455 = vmul.f32 %v5424, 1.442695
        %v5456 = vpow.pop %v5455
        %v5457 = vsel %vm1645, %v5426, 0.0
        %5458 = vadd.xlane.f32.xlu0 %v5457
        %v5459 = vpop.xlane.xlu0 %5458
        %v5460 = vsel %vm1645, %v5428, 0.0
        %5461 = vadd.xlane.f32.xlu0 %v5460
        %v5462 = vpop.xlane.xlu0 %5461
        %v5463 = vsel %vm1645, %v5430, 0.0
        %5464 = vadd.xlane.f32.xlu0 %v5463
        %v5465 = vpop.xlane.xlu0 %5464
        %v5466 = vsel %vm1645, %v5432, 0.0
        %5467 = vadd.xlane.f32.xlu0 %v5466
        %v5468 = vpop.xlane.xlu0 %5467
        %v5469 = vsel %vm1645, %v5434, 0.0
        %5470 = vadd.xlane.f32.xlu0 %v5469
        %v5471 = vpop.xlane.xlu0 %5470
        %v5472 = vsel %vm1645, %v5436, 0.0
        %5473 = vadd.xlane.f32.xlu0 %v5472
        %v5474 = vpop.xlane.xlu0 %5473
        %v5475 = vsel %vm1645, %v5438, 0.0
        %5476 = vadd.xlane.f32.xlu0 %v5475
        %v5477 = vpop.xlane.xlu0 %5476
        %v5478 = vsel %vm1645, %v5440, 0.0
        %5479 = vadd.xlane.f32.xlu0 %v5478
        %v5480 = vpop.xlane.xlu0 %5479
        %v5481 = vsel %vm1645, %v5442, 0.0
        %5482 = vadd.xlane.f32.xlu0 %v5481
        %v5483 = vpop.xlane.xlu0 %5482
        %v5484 = vsel %vm1645, %v5444, 0.0
        %5485 = vadd.xlane.f32.xlu0 %v5484
        %v5486 = vpop.xlane.xlu0 %5485
        %v5487 = vsel %vm1645, %v5446, 0.0
        %5488 = vadd.xlane.f32.xlu0 %v5487
        %v5489 = vpop.xlane.xlu0 %5488
        %v5490 = vsel %vm1645, %v5448, 0.0
        %5491 = vadd.xlane.f32.xlu0 %v5490
        %v5492 = vpop.xlane.xlu0 %5491
        %v5493 = vsel %vm1645, %v5450, 0.0
        %5494 = vadd.xlane.f32.xlu0 %v5493
        %v5495 = vpop.xlane.xlu0 %5494
        %v5496 = vsel %vm1645, %v5452, 0.0
        %5497 = vadd.xlane.f32.xlu0 %v5496
        %v5498 = vpop.xlane.xlu0 %5497
        %v5499 = vsel %vm1645, %v5454, 0.0
        %5500 = vadd.xlane.f32.xlu0 %v5499
        %v5501 = vpop.xlane.xlu0 %5500
        %v5502 = vsel %vm1645, %v5456, 0.0
        %5503 = vadd.xlane.f32.xlu0 %v5502
        %v5504 = vpop.xlane.xlu0 %5503
        %v5505 = vrcp.pop %v5459
        %v5506 = vrcp.pop %v5462
        %v5507 = vrcp.pop %v5465
        %v5508 = vrcp.pop %v5468
        %v5509 = vrcp.pop %v5471
        %v5510 = vrcp.pop %v5474
        %v5511 = vrcp.pop %v5477
        %v5512 = vrcp.pop %v5480
        %v5513 = vrcp.pop %v5483
        %v5514 = vrcp.pop %v5486
        %v5515 = vrcp.pop %v5489
        %v5516 = vrcp.pop %v5492
        %v5517 = vrcp.pop %v5495
        %v5518 = vrcp.pop %v5498
        %v5519 = vrcp.pop %v5501
        %v5520 = vrcp.pop %v5504
        %v5521 = vmul.f32 %v5426, %v5505
        %v5522 = vmul.f32 %v5428, %v5506
        %v5523 = vmul.f32 %v5430, %v5507
        %v5524 = vmul.f32 %v5432, %v5508
        %v5525 = vmul.f32 %v5434, %v5509
        %v5526 = vmul.f32 %v5436, %v5510
        %v5527 = vmul.f32 %v5438, %v5511
        %v5528 = vmul.f32 %v5440, %v5512
        %v5529 = vmul.f32 %v5442, %v5513
        %v5530 = vmul.f32 %v5444, %v5514
        %v5531 = vmul.f32 %v5446, %v5515
        %v5532 = vmul.f32 %v5448, %v5516
        %v5533 = vmul.f32 %v5450, %v5517
        %v5534 = vmul.f32 %v5452, %v5518
        %v5535 = vmul.f32 %v5454, %v5519
        %v5536 = vmul.f32 %v5456, %v5520
        %s5537 = scalar_lea.vmem %s262, 16
        %5538 = vst.msk [vmem:[%s5537] sm:$0xff] %vm1645, %v5521
        %5539 = vst.msk [vmem:[%s5537 + $0x20] sm:$0xff] %vm1645, %v5522
        %5540 = vst.msk [vmem:[%s5537 + $0x40] sm:$0xff] %vm1645, %v5523
        %5541 = vst.msk [vmem:[%s5537 + $0x60] sm:$0xff] %vm1645, %v5524
        %5542 = vst.msk [vmem:[%s5537 + $0x80] sm:$0xff] %vm1645, %v5525
        %5543 = vst.msk [vmem:[%s5537 + $0xa0] sm:$0xff] %vm1645, %v5526
        %5544 = vst.msk [vmem:[%s5537 + $0xc0] sm:$0xff] %vm1645, %v5527
        %5545 = vst.msk [vmem:[%s5537 + $0xe0] sm:$0xff] %vm1645, %v5528
        %5546 = vst.msk [vmem:[%s5537 + $0x100] sm:$0xff] %vm1645, %v5529
        %5547 = vst.msk [vmem:[%s5537 + $0x120] sm:$0xff] %vm1645, %v5530
        %5548 = vst.msk [vmem:[%s5537 + $0x140] sm:$0xff] %vm1645, %v5531
        %5549 = vst.msk [vmem:[%s5537 + $0x160] sm:$0xff] %vm1645, %v5532
        %5550 = vst.msk [vmem:[%s5537 + $0x180] sm:$0xff] %vm1645, %v5533
        %5551 = vst.msk [vmem:[%s5537 + $0x1a0] sm:$0xff] %vm1645, %v5534
        %5552 = vst.msk [vmem:[%s5537 + $0x1c0] sm:$0xff] %vm1645, %v5535
        %5553 = vst.msk [vmem:[%s5537 + $0x1e0] sm:$0xff] %vm1645, %v5536
        %v5554 = vpack.c.bf16 %v5521, %v5521
        %v5555 = vpack.c.bf16 %v5522, %v5522
        %v5556 = vpack.c.bf16 %v5523, %v5523
        %v5557 = vpack.c.bf16 %v5524, %v5524
        %v5558 = vpack.c.bf16 %v5525, %v5525
        %v5559 = vpack.c.bf16 %v5526, %v5526
        %v5560 = vpack.c.bf16 %v5527, %v5527
        %v5561 = vpack.c.bf16 %v5528, %v5528
        %v5562 = vpack.c.bf16 %v5529, %v5529
        %v5563 = vpack.c.bf16 %v5530, %v5530
        %v5564 = vpack.c.bf16 %v5531, %v5531
        %v5565 = vpack.c.bf16 %v5532, %v5532
        %v5566 = vpack.c.bf16 %v5533, %v5533
        %v5567 = vpack.c.bf16 %v5534, %v5534
        %v5568 = vpack.c.bf16 %v5535, %v5535
        %v5569 = vpack.c.bf16 %v5536, %v5536
        %v5571 = vsel %vm1645, %v5554, 0
        %v5574 = vsel %vm1857, %v4577, 0
        %5576 = vmatprep.subr.bf16.mxu0 0
        %5577 = vmatpush1.bf16.msra.mxu0 %v5574
        %5578 = vmatprep.subr.bf16.mxu0 0
        %5579 = vmatpush1.bf16.msra.mxu0 0
        %5580 = vmatprep.subr.bf16.mxu0 0
        %5581 = vmatpush1.bf16.msra.mxu0 0
        %5582 = vmatprep.subr.bf16.mxu0 0
        %5583 = vmatpush1.bf16.msra.mxu0 0
        %5584 = vmatprep.subr.bf16.mxu0 0
        %5585 = vmatpush1.bf16.msra.mxu0 0
        %5586 = vmatprep.subr.bf16.mxu0 0
        %5587 = vmatpush1.bf16.msra.mxu0 0
        %5588 = vmatprep.subr.bf16.mxu0 0
        %5589 = vmatpush1.bf16.msra.mxu0 0
        %5590 = vmatprep.subr.bf16.mxu0 0
        %5591 = vmatpush1.bf16.msra.mxu0 0
        %5592 = vmatprep.subr.bf16.mxu0 0
        %5593 = vmatpush1.bf16.msra.mxu0 0
        %5594 = vmatprep.subr.bf16.mxu0 0
        %5595 = vmatpush1.bf16.msra.mxu0 0
        %5596 = vmatprep.subr.bf16.mxu0 0
        %5597 = vmatpush1.bf16.msra.mxu0 0
        %5598 = vmatprep.subr.bf16.mxu0 0
        %5599 = vmatpush1.bf16.msra.mxu0 0
        %5600 = vmatprep.subr.bf16.mxu0 0
        %5601 = vmatpush1.bf16.msra.mxu0 0
        %5602 = vmatprep.subr.bf16.mxu0 0
        %5603 = vmatpush1.bf16.msra.mxu0 0
        %5604 = vmatprep.subr.bf16.mxu0 0
        %5605 = vmatpush1.bf16.msra.mxu0 0
        %5606 = vmatprep.subr.bf16.mxu0 0
        %5607 = vmatpush1.bf16.msra.mxu0 0
        %5608 = vmatprep.mubr.bf16.mxu0 0
        %5609 = vmatmul.mubr.bf16.gmra.mrb[0].mxu0 %v5571
        %v5610 = vpop.f32.mrb[0].mxu0
        %v5611 = vadd.f32 0.0, %v5610
        %v5612 = vpop.f32.mrb[0].mxu0
        %v5613 = vpop.f32.mrb[0].mxu0
        %v5614 = vpop.f32.mrb[0].mxu0
        %5615 = vdwg.mxu0
        %v5617 = vsel %vm1645, %v5555, 0
        %v5620 = vsel %vm1857, %v4578, 0
        %5622 = vmatprep.subr.bf16.mxu0 0
        %5623 = vmatpush1.bf16.msra.mxu0 %v5620
        %5624 = vmatprep.subr.bf16.mxu0 0
        %5625 = vmatpush1.bf16.msra.mxu0 0
        %5626 = vmatprep.subr.bf16.mxu0 0
        %5627 = vmatpush1.bf16.msra.mxu0 0
        %5628 = vmatprep.subr.bf16.mxu0 0
        %5629 = vmatpush1.bf16.msra.mxu0 0
        %5630 = vmatprep.subr.bf16.mxu0 0
        %5631 = vmatpush1.bf16.msra.mxu0 0
        %5632 = vmatprep.subr.bf16.mxu0 0
        %5633 = vmatpush1.bf16.msra.mxu0 0
        %5634 = vmatprep.subr.bf16.mxu0 0
        %5635 = vmatpush1.bf16.msra.mxu0 0
        %5636 = vmatprep.subr.bf16.mxu0 0
        %5637 = vmatpush1.bf16.msra.mxu0 0
        %5638 = vmatprep.subr.bf16.mxu0 0
        %5639 = vmatpush1.bf16.msra.mxu0 0
        %5640 = vmatprep.subr.bf16.mxu0 0
        %5641 = vmatpush1.bf16.msra.mxu0 0
        %5642 = vmatprep.subr.bf16.mxu0 0
        %5643 = vmatpush1.bf16.msra.mxu0 0
        %5644 = vmatprep.subr.bf16.mxu0 0
        %5645 = vmatpush1.bf16.msra.mxu0 0
        %5646 = vmatprep.subr.bf16.mxu0 0
        %5647 = vmatpush1.bf16.msra.mxu0 0
        %5648 = vmatprep.subr.bf16.mxu0 0
        %5649 = vmatpush1.bf16.msra.mxu0 0
        %5650 = vmatprep.subr.bf16.mxu0 0
        %5651 = vmatpush1.bf16.msra.mxu0 0
        %5652 = vmatprep.subr.bf16.mxu0 0
        %5653 = vmatpush1.bf16.msra.mxu0 0
        %5654 = vmatprep.mubr.bf16.mxu0 0
        %5655 = vmatmul.mubr.bf16.gmra.mrb[0].mxu0 %v5617
        %v5656 = vpop.f32.mrb[0].mxu0
        %v5657 = vadd.f32 0.0, %v5656
        %v5658 = vpop.f32.mrb[0].mxu0
        %v5659 = vpop.f32.mrb[0].mxu0
        %v5660 = vpop.f32.mrb[0].mxu0
        %5661 = vdwg.mxu0
        %v5663 = vsel %vm1645, %v5556, 0
        %v5666 = vsel %vm1857, %v4579, 0
        %5668 = vmatprep.subr.bf16.mxu0 0
        %5669 = vmatpush1.bf16.msra.mxu0 %v5666
        %5670 = vmatprep.subr.bf16.mxu0 0
        %5671 = vmatpush1.bf16.msra.mxu0 0
        %5672 = vmatprep.subr.bf16.mxu0 0
        %5673 = vmatpush1.bf16.msra.mxu0 0
        %5674 = vmatprep.subr.bf16.mxu0 0
        %5675 = vmatpush1.bf16.msra.mxu0 0
        %5676 = vmatprep.subr.bf16.mxu0 0
        %5677 = vmatpush1.bf16.msra.mxu0 0
        %5678 = vmatprep.subr.bf16.mxu0 0
        %5679 = vmatpush1.bf16.msra.mxu0 0
        %5680 = vmatprep.subr.bf16.mxu0 0
        %5681 = vmatpush1.bf16.msra.mxu0 0
        %5682 = vmatprep.subr.bf16.mxu0 0
        %5683 = vmatpush1.bf16.msra.mxu0 0
        %5684 = vmatprep.subr.bf16.mxu0 0
        %5685 = vmatpush1.bf16.msra.mxu0 0
        %5686 = vmatprep.subr.bf16.mxu0 0
        %5687 = vmatpush1.bf16.msra.mxu0 0
        %5688 = vmatprep.subr.bf16.mxu0 0
        %5689 = vmatpush1.bf16.msra.mxu0 0
        %5690 = vmatprep.subr.bf16.mxu0 0
        %5691 = vmatpush1.bf16.msra.mxu0 0
        %5692 = vmatprep.subr.bf16.mxu0 0
        %5693 = vmatpush1.bf16.msra.mxu0 0
        %5694 = vmatprep.subr.bf16.mxu0 0
        %5695 = vmatpush1.bf16.msra.mxu0 0
        %5696 = vmatprep.subr.bf16.mxu0 0
        %5697 = vmatpush1.bf16.msra.mxu0 0
        %5698 = vmatprep.subr.bf16.mxu0 0
        %5699 = vmatpush1.bf16.msra.mxu0 0
        %5700 = vmatprep.mubr.bf16.mxu0 0
        %5701 = vmatmul.mubr.bf16.gmra.mrb[0].mxu0 %v5663
        %v5702 = vpop.f32.mrb[0].mxu0
        %v5703 = vadd.f32 0.0, %v5702
        %v5704 = vpop.f32.mrb[0].mxu0
        %v5705 = vpop.f32.mrb[0].mxu0
        %v5706 = vpop.f32.mrb[0].mxu0
        %5707 = vdwg.mxu0
        %v5709 = vsel %vm1645, %v5557, 0
        %v5712 = vsel %vm1857, %v4580, 0
        %5714 = vmatprep.subr.bf16.mxu0 0
        %5715 = vmatpush1.bf16.msra.mxu0 %v5712
        %5716 = vmatprep.subr.bf16.mxu0 0
        %5717 = vmatpush1.bf16.msra.mxu0 0
        %5718 = vmatprep.subr.bf16.mxu0 0
        %5719 = vmatpush1.bf16.msra.mxu0 0
        %5720 = vmatprep.subr.bf16.mxu0 0
        %5721 = vmatpush1.bf16.msra.mxu0 0
        %5722 = vmatprep.subr.bf16.mxu0 0
        %5723 = vmatpush1.bf16.msra.mxu0 0
        %5724 = vmatprep.subr.bf16.mxu0 0
        %5725 = vmatpush1.bf16.msra.mxu0 0
        %5726 = vmatprep.subr.bf16.mxu0 0
        %5727 = vmatpush1.bf16.msra.mxu0 0
        %5728 = vmatprep.subr.bf16.mxu0 0
        %5729 = vmatpush1.bf16.msra.mxu0 0
        %5730 = vmatprep.subr.bf16.mxu0 0
        %5731 = vmatpush1.bf16.msra.mxu0 0
        %5732 = vmatprep.subr.bf16.mxu0 0
        %5733 = vmatpush1.bf16.msra.mxu0 0
        %5734 = vmatprep.subr.bf16.mxu0 0
        %5735 = vmatpush1.bf16.msra.mxu0 0
        %5736 = vmatprep.subr.bf16.mxu0 0
        %5737 = vmatpush1.bf16.msra.mxu0 0
        %5738 = vmatprep.subr.bf16.mxu0 0
        %5739 = vmatpush1.bf16.msra.mxu0 0
        %5740 = vmatprep.subr.bf16.mxu0 0
        %5741 = vmatpush1.bf16.msra.mxu0 0
        %5742 = vmatprep.subr.bf16.mxu0 0
        %5743 = vmatpush1.bf16.msra.mxu0 0
        %5744 = vmatprep.subr.bf16.mxu0 0
        %5745 = vmatpush1.bf16.msra.mxu0 0
        %5746 = vmatprep.mubr.bf16.mxu0 0
        %5747 = vmatmul.mubr.bf16.gmra.mrb[0].mxu0 %v5709
        %v5748 = vpop.f32.mrb[0].mxu0
        %v5749 = vadd.f32 0.0, %v5748
        %v5750 = vpop.f32.mrb[0].mxu0
        %v5751 = vpop.f32.mrb[0].mxu0
        %v5752 = vpop.f32.mrb[0].mxu0
        %5753 = vdwg.mxu0
        %v5755 = vsel %vm1645, %v5558, 0
        %v5758 = vsel %vm1857, %v4581, 0
        %5760 = vmatprep.subr.bf16.mxu0 0
        %5761 = vmatpush1.bf16.msra.mxu0 %v5758
        %5762 = vmatprep.subr.bf16.mxu0 0
        %5763 = vmatpush1.bf16.msra.mxu0 0
        %5764 = vmatprep.subr.bf16.mxu0 0
        %5765 = vmatpush1.bf16.msra.mxu0 0
        %5766 = vmatprep.subr.bf16.mxu0 0
        %5767 = vmatpush1.bf16.msra.mxu0 0
        %5768 = vmatprep.subr.bf16.mxu0 0
        %5769 = vmatpush1.bf16.msra.mxu0 0
        %5770 = vmatprep.subr.bf16.mxu0 0
        %5771 = vmatpush1.bf16.msra.mxu0 0
        %5772 = vmatprep.subr.bf16.mxu0 0
        %5773 = vmatpush1.bf16.msra.mxu0 0
        %5774 = vmatprep.subr.bf16.mxu0 0
        %5775 = vmatpush1.bf16.msra.mxu0 0
        %5776 = vmatprep.subr.bf16.mxu0 0
        %5777 = vmatpush1.bf16.msra.mxu0 0
        %5778 = vmatprep.subr.bf16.mxu0 0
        %5779 = vmatpush1.bf16.msra.mxu0 0
        %5780 = vmatprep.subr.bf16.mxu0 0
        %5781 = vmatpush1.bf16.msra.mxu0 0
        %5782 = vmatprep.subr.bf16.mxu0 0
        %5783 = vmatpush1.bf16.msra.mxu0 0
        %5784 = vmatprep.subr.bf16.mxu0 0
        %5785 = vmatpush1.bf16.msra.mxu0 0
        %5786 = vmatprep.subr.bf16.mxu0 0
        %5787 = vmatpush1.bf16.msra.mxu0 0
        %5788 = vmatprep.subr.bf16.mxu0 0
        %5789 = vmatpush1.bf16.msra.mxu0 0
        %5790 = vmatprep.subr.bf16.mxu0 0
        %5791 = vmatpush1.bf16.msra.mxu0 0
        %5792 = vmatprep.mubr.bf16.mxu0 0
        %5793 = vmatmul.mubr.bf16.gmra.mrb[0].mxu0 %v5755
        %v5794 = vpop.f32.mrb[0].mxu0
        %v5795 = vadd.f32 0.0, %v5794
        %v5796 = vpop.f32.mrb[0].mxu0
        %v5797 = vpop.f32.mrb[0].mxu0
        %v5798 = vpop.f32.mrb[0].mxu0
        %5799 = vdwg.mxu0
        %v5801 = vsel %vm1645, %v5559, 0
        %v5804 = vsel %vm1857, %v4582, 0
        %5806 = vmatprep.subr.bf16.mxu0 0
        %5807 = vmatpush1.bf16.msra.mxu0 %v5804
        %5808 = vmatprep.subr.bf16.mxu0 0
        %5809 = vmatpush1.bf16.msra.mxu0 0
        %5810 = vmatprep.subr.bf16.mxu0 0
        %5811 = vmatpush1.bf16.msra.mxu0 0
        %5812 = vmatprep.subr.bf16.mxu0 0
        %5813 = vmatpush1.bf16.msra.mxu0 0
        %5814 = vmatprep.subr.bf16.mxu0 0
        %5815 = vmatpush1.bf16.msra.mxu0 0
        %5816 = vmatprep.subr.bf16.mxu0 0
        %5817 = vmatpush1.bf16.msra.mxu0 0
        %5818 = vmatprep.subr.bf16.mxu0 0
        %5819 = vmatpush1.bf16.msra.mxu0 0
        %5820 = vmatprep.subr.bf16.mxu0 0
        %5821 = vmatpush1.bf16.msra.mxu0 0
        %5822 = vmatprep.subr.bf16.mxu0 0
        %5823 = vmatpush1.bf16.msra.mxu0 0
        %5824 = vmatprep.subr.bf16.mxu0 0
        %5825 = vmatpush1.bf16.msra.mxu0 0
        %5826 = vmatprep.subr.bf16.mxu0 0
        %5827 = vmatpush1.bf16.msra.mxu0 0
        %5828 = vmatprep.subr.bf16.mxu0 0
        %5829 = vmatpush1.bf16.msra.mxu0 0
        %5830 = vmatprep.subr.bf16.mxu0 0
        %5831 = vmatpush1.bf16.msra.mxu0 0
        %5832 = vmatprep.subr.bf16.mxu0 0
        %5833 = vmatpush1.bf16.msra.mxu0 0
        %5834 = vmatprep.subr.bf16.mxu0 0
        %5835 = vmatpush1.bf16.msra.mxu0 0
        %5836 = vmatprep.subr.bf16.mxu0 0
        %5837 = vmatpush1.bf16.msra.mxu0 0
        %5838 = vmatprep.mubr.bf16.mxu0 0
        %5839 = vmatmul.mubr.bf16.gmra.mrb[0].mxu0 %v5801
        %v5840 = vpop.f32.mrb[0].mxu0
        %v5841 = vadd.f32 0.0, %v5840
        %v5842 = vpop.f32.mrb[0].mxu0
        %v5843 = vpop.f32.mrb[0].mxu0
        %v5844 = vpop.f32.mrb[0].mxu0
        %5845 = vdwg.mxu0
        %v5847 = vsel %vm1645, %v5560, 0
        %v5850 = vsel %vm1857, %v4583, 0
        %5852 = vmatprep.subr.bf16.mxu0 0
        %5853 = vmatpush1.bf16.msra.mxu0 %v5850
        %5854 = vmatprep.subr.bf16.mxu0 0
        %5855 = vmatpush1.bf16.msra.mxu0 0
        %5856 = vmatprep.subr.bf16.mxu0 0
        %5857 = vmatpush1.bf16.msra.mxu0 0
        %5858 = vmatprep.subr.bf16.mxu0 0
        %5859 = vmatpush1.bf16.msra.mxu0 0
        %5860 = vmatprep.subr.bf16.mxu0 0
        %5861 = vmatpush1.bf16.msra.mxu0 0
        %5862 = vmatprep.subr.bf16.mxu0 0
        %5863 = vmatpush1.bf16.msra.mxu0 0
        %5864 = vmatprep.subr.bf16.mxu0 0
        %5865 = vmatpush1.bf16.msra.mxu0 0
        %5866 = vmatprep.subr.bf16.mxu0 0
        %5867 = vmatpush1.bf16.msra.mxu0 0
        %5868 = vmatprep.subr.bf16.mxu0 0
        %5869 = vmatpush1.bf16.msra.mxu0 0
        %5870 = vmatprep.subr.bf16.mxu0 0
        %5871 = vmatpush1.bf16.msra.mxu0 0
        %5872 = vmatprep.subr.bf16.mxu0 0
        %5873 = vmatpush1.bf16.msra.mxu0 0
        %5874 = vmatprep.subr.bf16.mxu0 0
        %5875 = vmatpush1.bf16.msra.mxu0 0
        %5876 = vmatprep.subr.bf16.mxu0 0
        %5877 = vmatpush1.bf16.msra.mxu0 0
        %5878 = vmatprep.subr.bf16.mxu0 0
        %5879 = vmatpush1.bf16.msra.mxu0 0
        %5880 = vmatprep.subr.bf16.mxu0 0
        %5881 = vmatpush1.bf16.msra.mxu0 0
        %5882 = vmatprep.subr.bf16.mxu0 0
        %5883 = vmatpush1.bf16.msra.mxu0 0
        %5884 = vmatprep.mubr.bf16.mxu0 0
        %5885 = vmatmul.mubr.bf16.gmra.mrb[0].mxu0 %v5847
        %v5886 = vpop.f32.mrb[0].mxu0
        %v5887 = vadd.f32 0.0, %v5886
        %v5888 = vpop.f32.mrb[0].mxu0
        %v5889 = vpop.f32.mrb[0].mxu0
        %v5890 = vpop.f32.mrb[0].mxu0
        %5891 = vdwg.mxu0
        %v5893 = vsel %vm1645, %v5561, 0
        %v5896 = vsel %vm1857, %v4584, 0
        %5898 = vmatprep.subr.bf16.mxu0 0
        %5899 = vmatpush1.bf16.msra.mxu0 %v5896
        %5900 = vmatprep.subr.bf16.mxu0 0
        %5901 = vmatpush1.bf16.msra.mxu0 0
        %5902 = vmatprep.subr.bf16.mxu0 0
        %5903 = vmatpush1.bf16.msra.mxu0 0
        %5904 = vmatprep.subr.bf16.mxu0 0
        %5905 = vmatpush1.bf16.msra.mxu0 0
        %5906 = vmatprep.subr.bf16.mxu0 0
        %5907 = vmatpush1.bf16.msra.mxu0 0
        %5908 = vmatprep.subr.bf16.mxu0 0
        %5909 = vmatpush1.bf16.msra.mxu0 0
        %5910 = vmatprep.subr.bf16.mxu0 0
        %5911 = vmatpush1.bf16.msra.mxu0 0
        %5912 = vmatprep.subr.bf16.mxu0 0
        %5913 = vmatpush1.bf16.msra.mxu0 0
        %5914 = vmatprep.subr.bf16.mxu0 0
        %5915 = vmatpush1.bf16.msra.mxu0 0
        %5916 = vmatprep.subr.bf16.mxu0 0
        %5917 = vmatpush1.bf16.msra.mxu0 0
        %5918 = vmatprep.subr.bf16.mxu0 0
        %5919 = vmatpush1.bf16.msra.mxu0 0
        %5920 = vmatprep.subr.bf16.mxu0 0
        %5921 = vmatpush1.bf16.msra.mxu0 0
        %5922 = vmatprep.subr.bf16.mxu0 0
        %5923 = vmatpush1.bf16.msra.mxu0 0
        %5924 = vmatprep.subr.bf16.mxu0 0
        %5925 = vmatpush1.bf16.msra.mxu0 0
        %5926 = vmatprep.subr.bf16.mxu0 0
        %5927 = vmatpush1.bf16.msra.mxu0 0
        %5928 = vmatprep.subr.bf16.mxu0 0
        %5929 = vmatpush1.bf16.msra.mxu0 0
        %5930 = vmatprep.mubr.bf16.mxu0 0
        %5931 = vmatmul.mubr.bf16.gmra.mrb[0].mxu0 %v5893
        %v5932 = vpop.f32.mrb[0].mxu0
        %v5933 = vadd.f32 0.0, %v5932
        %v5934 = vpop.f32.mrb[0].mxu0
        %v5935 = vpop.f32.mrb[0].mxu0
        %v5936 = vpop.f32.mrb[0].mxu0
        %5937 = vdwg.mxu0
        %v5939 = vsel %vm1645, %v5562, 0
        %v5942 = vsel %vm1857, %v4585, 0
        %5944 = vmatprep.subr.bf16.mxu0 0
        %5945 = vmatpush1.bf16.msra.mxu0 %v5942
        %5946 = vmatprep.subr.bf16.mxu0 0
        %5947 = vmatpush1.bf16.msra.mxu0 0
        %5948 = vmatprep.subr.bf16.mxu0 0
        %5949 = vmatpush1.bf16.msra.mxu0 0
        %5950 = vmatprep.subr.bf16.mxu0 0
        %5951 = vmatpush1.bf16.msra.mxu0 0
        %5952 = vmatprep.subr.bf16.mxu0 0
        %5953 = vmatpush1.bf16.msra.mxu0 0
        %5954 = vmatprep.subr.bf16.mxu0 0
        %5955 = vmatpush1.bf16.msra.mxu0 0
        %5956 = vmatprep.subr.bf16.mxu0 0
        %5957 = vmatpush1.bf16.msra.mxu0 0
        %5958 = vmatprep.subr.bf16.mxu0 0
        %5959 = vmatpush1.bf16.msra.mxu0 0
        %5960 = vmatprep.subr.bf16.mxu0 0
        %5961 = vmatpush1.bf16.msra.mxu0 0
        %5962 = vmatprep.subr.bf16.mxu0 0
        %5963 = vmatpush1.bf16.msra.mxu0 0
        %5964 = vmatprep.subr.bf16.mxu0 0
        %5965 = vmatpush1.bf16.msra.mxu0 0
        %5966 = vmatprep.subr.bf16.mxu0 0
        %5967 = vmatpush1.bf16.msra.mxu0 0
        %5968 = vmatprep.subr.bf16.mxu0 0
        %5969 = vmatpush1.bf16.msra.mxu0 0
        %5970 = vmatprep.subr.bf16.mxu0 0
        %5971 = vmatpush1.bf16.msra.mxu0 0
        %5972 = vmatprep.subr.bf16.mxu0 0
        %5973 = vmatpush1.bf16.msra.mxu0 0
        %5974 = vmatprep.subr.bf16.mxu0 0
        %5975 = vmatpush1.bf16.msra.mxu0 0
        %5976 = vmatprep.mubr.bf16.mxu0 0
        %5977 = vmatmul.mubr.bf16.gmra.mrb[0].mxu0 %v5939
        %v5978 = vpop.f32.mrb[0].mxu0
        %v5979 = vadd.f32 0.0, %v5978
        %v5980 = vpop.f32.mrb[0].mxu0
        %v5981 = vpop.f32.mrb[0].mxu0
        %v5982 = vpop.f32.mrb[0].mxu0
        %5983 = vdwg.mxu0
        %v5985 = vsel %vm1645, %v5563, 0
        %v5988 = vsel %vm1857, %v4586, 0
        %5990 = vmatprep.subr.bf16.mxu0 0
        %5991 = vmatpush1.bf16.msra.mxu0 %v5988
        %5992 = vmatprep.subr.bf16.mxu0 0
        %5993 = vmatpush1.bf16.msra.mxu0 0
        %5994 = vmatprep.subr.bf16.mxu0 0
        %5995 = vmatpush1.bf16.msra.mxu0 0
        %5996 = vmatprep.subr.bf16.mxu0 0
        %5997 = vmatpush1.bf16.msra.mxu0 0
        %5998 = vmatprep.subr.bf16.mxu0 0
        %5999 = vmatpush1.bf16.msra.mxu0 0
        %6000 = vmatprep.subr.bf16.mxu0 0
        %6001 = vmatpush1.bf16.msra.mxu0 0
        %6002 = vmatprep.subr.bf16.mxu0 0
        %6003 = vmatpush1.bf16.msra.mxu0 0
        %6004 = vmatprep.subr.bf16.mxu0 0
        %6005 = vmatpush1.bf16.msra.mxu0 0
        %6006 = vmatprep.subr.bf16.mxu0 0
        %6007 = vmatpush1.bf16.msra.mxu0 0
        %6008 = vmatprep.subr.bf16.mxu0 0
        %6009 = vmatpush1.bf16.msra.mxu0 0
        %6010 = vmatprep.subr.bf16.mxu0 0
        %6011 = vmatpush1.bf16.msra.mxu0 0
        %6012 = vmatprep.subr.bf16.mxu0 0
        %6013 = vmatpush1.bf16.msra.mxu0 0
        %6014 = vmatprep.subr.bf16.mxu0 0
        %6015 = vmatpush1.bf16.msra.mxu0 0
        %6016 = vmatprep.subr.bf16.mxu0 0
        %6017 = vmatpush1.bf16.msra.mxu0 0
        %6018 = vmatprep.subr.bf16.mxu0 0
        %6019 = vmatpush1.bf16.msra.mxu0 0
        %6020 = vmatprep.subr.bf16.mxu0 0
        %6021 = vmatpush1.bf16.msra.mxu0 0
        %6022 = vmatprep.mubr.bf16.mxu0 0
        %6023 = vmatmul.mubr.bf16.gmra.mrb[0].mxu0 %v5985
        %v6024 = vpop.f32.mrb[0].mxu0
        %v6025 = vadd.f32 0.0, %v6024
        %v6026 = vpop.f32.mrb[0].mxu0
        %v6027 = vpop.f32.mrb[0].mxu0
        %v6028 = vpop.f32.mrb[0].mxu0
        %6029 = vdwg.mxu0
        %v6031 = vsel %vm1645, %v5564, 0
        %v6034 = vsel %vm1857, %v4587, 0
        %6036 = vmatprep.subr.bf16.mxu0 0
        %6037 = vmatpush1.bf16.msra.mxu0 %v6034
        %6038 = vmatprep.subr.bf16.mxu0 0
        %6039 = vmatpush1.bf16.msra.mxu0 0
        %6040 = vmatprep.subr.bf16.mxu0 0
        %6041 = vmatpush1.bf16.msra.mxu0 0
        %6042 = vmatprep.subr.bf16.mxu0 0
        %6043 = vmatpush1.bf16.msra.mxu0 0
        %6044 = vmatprep.subr.bf16.mxu0 0
        %6045 = vmatpush1.bf16.msra.mxu0 0
        %6046 = vmatprep.subr.bf16.mxu0 0
        %6047 = vmatpush1.bf16.msra.mxu0 0
        %6048 = vmatprep.subr.bf16.mxu0 0
        %6049 = vmatpush1.bf16.msra.mxu0 0
        %6050 = vmatprep.subr.bf16.mxu0 0
        %6051 = vmatpush1.bf16.msra.mxu0 0
        %6052 = vmatprep.subr.bf16.mxu0 0
        %6053 = vmatpush1.bf16.msra.mxu0 0
        %6054 = vmatprep.subr.bf16.mxu0 0
        %6055 = vmatpush1.bf16.msra.mxu0 0
        %6056 = vmatprep.subr.bf16.mxu0 0
        %6057 = vmatpush1.bf16.msra.mxu0 0
        %6058 = vmatprep.subr.bf16.mxu0 0
        %6059 = vmatpush1.bf16.msra.mxu0 0
        %6060 = vmatprep.subr.bf16.mxu0 0
        %6061 = vmatpush1.bf16.msra.mxu0 0
        %6062 = vmatprep.subr.bf16.mxu0 0
        %6063 = vmatpush1.bf16.msra.mxu0 0
        %6064 = vmatprep.subr.bf16.mxu0 0
        %6065 = vmatpush1.bf16.msra.mxu0 0
        %6066 = vmatprep.subr.bf16.mxu0 0
        %6067 = vmatpush1.bf16.msra.mxu0 0
        %6068 = vmatprep.mubr.bf16.mxu0 0
        %6069 = vmatmul.mubr.bf16.gmra.mrb[0].mxu0 %v6031
        %v6070 = vpop.f32.mrb[0].mxu0
        %v6071 = vadd.f32 0.0, %v6070
        %v6072 = vpop.f32.mrb[0].mxu0
        %v6073 = vpop.f32.mrb[0].mxu0
        %v6074 = vpop.f32.mrb[0].mxu0
        %6075 = vdwg.mxu0
        %v6077 = vsel %vm1645, %v5565, 0
        %v6080 = vsel %vm1857, %v4588, 0
        %6082 = vmatprep.subr.bf16.mxu0 0
        %6083 = vmatpush1.bf16.msra.mxu0 %v6080
        %6084 = vmatprep.subr.bf16.mxu0 0
        %6085 = vmatpush1.bf16.msra.mxu0 0
        %6086 = vmatprep.subr.bf16.mxu0 0
        %6087 = vmatpush1.bf16.msra.mxu0 0
        %6088 = vmatprep.subr.bf16.mxu0 0
        %6089 = vmatpush1.bf16.msra.mxu0 0
        %6090 = vmatprep.subr.bf16.mxu0 0
        %6091 = vmatpush1.bf16.msra.mxu0 0
        %6092 = vmatprep.subr.bf16.mxu0 0
        %6093 = vmatpush1.bf16.msra.mxu0 0
        %6094 = vmatprep.subr.bf16.mxu0 0
        %6095 = vmatpush1.bf16.msra.mxu0 0
        %6096 = vmatprep.subr.bf16.mxu0 0
        %6097 = vmatpush1.bf16.msra.mxu0 0
        %6098 = vmatprep.subr.bf16.mxu0 0
        %6099 = vmatpush1.bf16.msra.mxu0 0
        %6100 = vmatprep.subr.bf16.mxu0 0
        %6101 = vmatpush1.bf16.msra.mxu0 0
        %6102 = vmatprep.subr.bf16.mxu0 0
        %6103 = vmatpush1.bf16.msra.mxu0 0
        %6104 = vmatprep.subr.bf16.mxu0 0
        %6105 = vmatpush1.bf16.msra.mxu0 0
        %6106 = vmatprep.subr.bf16.mxu0 0
        %6107 = vmatpush1.bf16.msra.mxu0 0
        %6108 = vmatprep.subr.bf16.mxu0 0
        %6109 = vmatpush1.bf16.msra.mxu0 0
        %6110 = vmatprep.subr.bf16.mxu0 0
        %6111 = vmatpush1.bf16.msra.mxu0 0
        %6112 = vmatprep.subr.bf16.mxu0 0
        %6113 = vmatpush1.bf16.msra.mxu0 0
        %6114 = vmatprep.mubr.bf16.mxu0 0
        %6115 = vmatmul.mubr.bf16.gmra.mrb[0].mxu0 %v6077
        %v6116 = vpop.f32.mrb[0].mxu0
        %v6117 = vadd.f32 0.0, %v6116
        %v6118 = vpop.f32.mrb[0].mxu0
        %v6119 = vpop.f32.mrb[0].mxu0
        %v6120 = vpop.f32.mrb[0].mxu0
        %6121 = vdwg.mxu0
        %v6123 = vsel %vm1645, %v5566, 0
        %v6126 = vsel %vm1857, %v4589, 0
        %6128 = vmatprep.subr.bf16.mxu0 0
        %6129 = vmatpush1.bf16.msra.mxu0 %v6126
        %6130 = vmatprep.subr.bf16.mxu0 0
        %6131 = vmatpush1.bf16.msra.mxu0 0
        %6132 = vmatprep.subr.bf16.mxu0 0
        %6133 = vmatpush1.bf16.msra.mxu0 0
        %6134 = vmatprep.subr.bf16.mxu0 0
        %6135 = vmatpush1.bf16.msra.mxu0 0
        %6136 = vmatprep.subr.bf16.mxu0 0
        %6137 = vmatpush1.bf16.msra.mxu0 0
        %6138 = vmatprep.subr.bf16.mxu0 0
        %6139 = vmatpush1.bf16.msra.mxu0 0
        %6140 = vmatprep.subr.bf16.mxu0 0
        %6141 = vmatpush1.bf16.msra.mxu0 0
        %6142 = vmatprep.subr.bf16.mxu0 0
        %6143 = vmatpush1.bf16.msra.mxu0 0
        %6144 = vmatprep.subr.bf16.mxu0 0
        %6145 = vmatpush1.bf16.msra.mxu0 0
        %6146 = vmatprep.subr.bf16.mxu0 0
        %6147 = vmatpush1.bf16.msra.mxu0 0
        %6148 = vmatprep.subr.bf16.mxu0 0
        %6149 = vmatpush1.bf16.msra.mxu0 0
        %6150 = vmatprep.subr.bf16.mxu0 0
        %6151 = vmatpush1.bf16.msra.mxu0 0
        %6152 = vmatprep.subr.bf16.mxu0 0
        %6153 = vmatpush1.bf16.msra.mxu0 0
        %6154 = vmatprep.subr.bf16.mxu0 0
        %6155 = vmatpush1.bf16.msra.mxu0 0
        %6156 = vmatprep.subr.bf16.mxu0 0
        %6157 = vmatpush1.bf16.msra.mxu0 0
        %6158 = vmatprep.subr.bf16.mxu0 0
        %6159 = vmatpush1.bf16.msra.mxu0 0
        %6160 = vmatprep.mubr.bf16.mxu0 0
        %6161 = vmatmul.mubr.bf16.gmra.mrb[0].mxu0 %v6123
        %v6162 = vpop.f32.mrb[0].mxu0
        %v6163 = vadd.f32 0.0, %v6162
        %v6164 = vpop.f32.mrb[0].mxu0
        %v6165 = vpop.f32.mrb[0].mxu0
        %v6166 = vpop.f32.mrb[0].mxu0
        %6167 = vdwg.mxu0
        %v6169 = vsel %vm1645, %v5567, 0
        %v6172 = vsel %vm1857, %v4590, 0
        %6174 = vmatprep.subr.bf16.mxu0 0
        %6175 = vmatpush1.bf16.msra.mxu0 %v6172
        %6176 = vmatprep.subr.bf16.mxu0 0
        %6177 = vmatpush1.bf16.msra.mxu0 0
        %6178 = vmatprep.subr.bf16.mxu0 0
        %6179 = vmatpush1.bf16.msra.mxu0 0
        %6180 = vmatprep.subr.bf16.mxu0 0
        %6181 = vmatpush1.bf16.msra.mxu0 0
        %6182 = vmatprep.subr.bf16.mxu0 0
        %6183 = vmatpush1.bf16.msra.mxu0 0
        %6184 = vmatprep.subr.bf16.mxu0 0
        %6185 = vmatpush1.bf16.msra.mxu0 0
        %6186 = vmatprep.subr.bf16.mxu0 0
        %6187 = vmatpush1.bf16.msra.mxu0 0
        %6188 = vmatprep.subr.bf16.mxu0 0
        %6189 = vmatpush1.bf16.msra.mxu0 0
        %6190 = vmatprep.subr.bf16.mxu0 0
        %6191 = vmatpush1.bf16.msra.mxu0 0
        %6192 = vmatprep.subr.bf16.mxu0 0
        %6193 = vmatpush1.bf16.msra.mxu0 0
        %6194 = vmatprep.subr.bf16.mxu0 0
        %6195 = vmatpush1.bf16.msra.mxu0 0
        %6196 = vmatprep.subr.bf16.mxu0 0
        %6197 = vmatpush1.bf16.msra.mxu0 0
        %6198 = vmatprep.subr.bf16.mxu0 0
        %6199 = vmatpush1.bf16.msra.mxu0 0
        %6200 = vmatprep.subr.bf16.mxu0 0
        %6201 = vmatpush1.bf16.msra.mxu0 0
        %6202 = vmatprep.subr.bf16.mxu0 0
        %6203 = vmatpush1.bf16.msra.mxu0 0
        %6204 = vmatprep.subr.bf16.mxu0 0
        %6205 = vmatpush1.bf16.msra.mxu0 0
        %6206 = vmatprep.mubr.bf16.mxu0 0
        %6207 = vmatmul.mubr.bf16.gmra.mrb[0].mxu0 %v6169
        %v6208 = vpop.f32.mrb[0].mxu0
        %v6209 = vadd.f32 0.0, %v6208
        %v6210 = vpop.f32.mrb[0].mxu0
        %v6211 = vpop.f32.mrb[0].mxu0
        %v6212 = vpop.f32.mrb[0].mxu0
        %6213 = vdwg.mxu0
        %v6215 = vsel %vm1645, %v5568, 0
        %v6218 = vsel %vm1857, %v4591, 0
        %6220 = vmatprep.subr.bf16.mxu0 0
        %6221 = vmatpush1.bf16.msra.mxu0 %v6218
        %6222 = vmatprep.subr.bf16.mxu0 0
        %6223 = vmatpush1.bf16.msra.mxu0 0
        %6224 = vmatprep.subr.bf16.mxu0 0
        %6225 = vmatpush1.bf16.msra.mxu0 0
        %6226 = vmatprep.subr.bf16.mxu0 0
        %6227 = vmatpush1.bf16.msra.mxu0 0
        %6228 = vmatprep.subr.bf16.mxu0 0
        %6229 = vmatpush1.bf16.msra.mxu0 0
        %6230 = vmatprep.subr.bf16.mxu0 0
        %6231 = vmatpush1.bf16.msra.mxu0 0
        %6232 = vmatprep.subr.bf16.mxu0 0
        %6233 = vmatpush1.bf16.msra.mxu0 0
        %6234 = vmatprep.subr.bf16.mxu0 0
        %6235 = vmatpush1.bf16.msra.mxu0 0
        %6236 = vmatprep.subr.bf16.mxu0 0
        %6237 = vmatpush1.bf16.msra.mxu0 0
        %6238 = vmatprep.subr.bf16.mxu0 0
        %6239 = vmatpush1.bf16.msra.mxu0 0
        %6240 = vmatprep.subr.bf16.mxu0 0
        %6241 = vmatpush1.bf16.msra.mxu0 0
        %6242 = vmatprep.subr.bf16.mxu0 0
        %6243 = vmatpush1.bf16.msra.mxu0 0
        %6244 = vmatprep.subr.bf16.mxu0 0
        %6245 = vmatpush1.bf16.msra.mxu0 0
        %6246 = vmatprep.subr.bf16.mxu0 0
        %6247 = vmatpush1.bf16.msra.mxu0 0
        %6248 = vmatprep.subr.bf16.mxu0 0
        %6249 = vmatpush1.bf16.msra.mxu0 0
        %6250 = vmatprep.subr.bf16.mxu0 0
        %6251 = vmatpush1.bf16.msra.mxu0 0
        %6252 = vmatprep.mubr.bf16.mxu0 0
        %6253 = vmatmul.mubr.bf16.gmra.mrb[0].mxu0 %v6215
        %v6254 = vpop.f32.mrb[0].mxu0
        %v6255 = vadd.f32 0.0, %v6254
        %v6256 = vpop.f32.mrb[0].mxu0
        %v6257 = vpop.f32.mrb[0].mxu0
        %v6258 = vpop.f32.mrb[0].mxu0
        %6259 = vdwg.mxu0
        %v6261 = vsel %vm1645, %v5569, 0
        %v6264 = vsel %vm1857, %v4592, 0
        %6266 = vmatprep.subr.bf16.mxu0 0
        %6267 = vmatpush1.bf16.msra.mxu0 %v6264
        %6268 = vmatprep.subr.bf16.mxu0 0
        %6269 = vmatpush1.bf16.msra.mxu0 0
        %6270 = vmatprep.subr.bf16.mxu0 0
        %6271 = vmatpush1.bf16.msra.mxu0 0
        %6272 = vmatprep.subr.bf16.mxu0 0
        %6273 = vmatpush1.bf16.msra.mxu0 0
        %6274 = vmatprep.subr.bf16.mxu0 0
        %6275 = vmatpush1.bf16.msra.mxu0 0
        %6276 = vmatprep.subr.bf16.mxu0 0
        %6277 = vmatpush1.bf16.msra.mxu0 0
        %6278 = vmatprep.subr.bf16.mxu0 0
        %6279 = vmatpush1.bf16.msra.mxu0 0
        %6280 = vmatprep.subr.bf16.mxu0 0
        %6281 = vmatpush1.bf16.msra.mxu0 0
        %6282 = vmatprep.subr.bf16.mxu0 0
        %6283 = vmatpush1.bf16.msra.mxu0 0
        %6284 = vmatprep.subr.bf16.mxu0 0
        %6285 = vmatpush1.bf16.msra.mxu0 0
        %6286 = vmatprep.subr.bf16.mxu0 0
        %6287 = vmatpush1.bf16.msra.mxu0 0
        %6288 = vmatprep.subr.bf16.mxu0 0
        %6289 = vmatpush1.bf16.msra.mxu0 0
        %6290 = vmatprep.subr.bf16.mxu0 0
        %6291 = vmatpush1.bf16.msra.mxu0 0
        %6292 = vmatprep.subr.bf16.mxu0 0
        %6293 = vmatpush1.bf16.msra.mxu0 0
        %6294 = vmatprep.subr.bf16.mxu0 0
        %6295 = vmatpush1.bf16.msra.mxu0 0
        %6296 = vmatprep.subr.bf16.mxu0 0
        %6297 = vmatpush1.bf16.msra.mxu0 0
        %6298 = vmatprep.mubr.bf16.mxu0 0
        %6299 = vmatmul.mubr.bf16.gmra.mrb[0].mxu0 %v6261
        %v6300 = vpop.f32.mrb[0].mxu0
        %v6301 = vadd.f32 0.0, %v6300
        %v6302 = vpop.f32.mrb[0].mxu0
        %v6303 = vpop.f32.mrb[0].mxu0
        %v6304 = vpop.f32.mrb[0].mxu0
        %6305 = vdwg.mxu0
        %6306 = vst.msk [vmem:[#allocation2 + $0x8] sm:$0xff] %vm433, %v5611
        %6307 = vst.msk [vmem:[#allocation2 + $0x18] sm:$0xff] %vm433, %v5657
        %6308 = vst.msk [vmem:[#allocation2 + $0x28] sm:$0xff] %vm433, %v5703
        %6309 = vst.msk [vmem:[#allocation2 + $0x38] sm:$0xff] %vm433, %v5749
        %6310 = vst.msk [vmem:[#allocation2 + $0x48] sm:$0xff] %vm433, %v5795
        %6311 = vst.msk [vmem:[#allocation2 + $0x58] sm:$0xff] %vm433, %v5841
        %6312 = vst.msk [vmem:[#allocation2 + $0x68] sm:$0xff] %vm433, %v5887
        %6313 = vst.msk [vmem:[#allocation2 + $0x78] sm:$0xff] %vm433, %v5933
        %6314 = vst.msk [vmem:[#allocation2 + $0x88] sm:$0xff] %vm433, %v5979
        %6315 = vst.msk [vmem:[#allocation2 + $0x98] sm:$0xff] %vm433, %v6025
        %6316 = vst.msk [vmem:[#allocation2 + $0xa8] sm:$0xff] %vm433, %v6071
        %6317 = vst.msk [vmem:[#allocation2 + $0xb8] sm:$0xff] %vm433, %v6117
        %6318 = vst.msk [vmem:[#allocation2 + $0xc8] sm:$0xff] %vm433, %v6163
        %6319 = vst.msk [vmem:[#allocation2 + $0xd8] sm:$0xff] %vm433, %v6209
        %6320 = vst.msk [vmem:[#allocation2 + $0xe8] sm:$0xff] %vm433, %v6255
        %6321 = vst.msk [vmem:[#allocation2 + $0xf8] sm:$0xff] %vm433, %v6301
        %6323 = vrot.lane.b32.xlu0 %v4545, 64
        %v6324 = vpop.permute.xlu0 %6323
        %6326 = vrot.lane.b32.xlu0 %v4561, 64
        %v6327 = vpop.permute.xlu0 %6326
        %v6329 = vsel %vm433, %v6324, 0
        %v6332 = vsel %vm433, %v6327, 0
        %6334 = vmatprep.subr.bf16.mxu0 0
        %6335 = vmatpush1.bf16.xpose.msra.mxu0 %v6332
        %6336 = vmatprep.subr.bf16.mxu0 0
        %6337 = vmatpush1.bf16.xpose.msra.mxu0 0
        %6338 = vmatprep.subr.bf16.mxu0 0
        %6339 = vmatpush1.bf16.xpose.msra.mxu0 0
        %6340 = vmatprep.subr.bf16.mxu0 0
        %6341 = vmatpush1.bf16.xpose.msra.mxu0 0
        %6342 = vmatprep.subr.bf16.mxu0 0
        %6343 = vmatpush1.bf16.xpose.msra.mxu0 0
        %6344 = vmatprep.subr.bf16.mxu0 0
        %6345 = vmatpush1.bf16.xpose.msra.mxu0 0
        %6346 = vmatprep.subr.bf16.mxu0 0
        %6347 = vmatpush1.bf16.xpose.msra.mxu0 0
        %6348 = vmatprep.subr.bf16.mxu0 0
        %6349 = vmatpush1.bf16.xpose.msra.mxu0 0
        %6350 = vmatprep.subr.bf16.mxu0 0
        %6351 = vmatpush1.bf16.xpose.msra.mxu0 0
        %6352 = vmatprep.subr.bf16.mxu0 0
        %6353 = vmatpush1.bf16.xpose.msra.mxu0 0
        %6354 = vmatprep.subr.bf16.mxu0 0
        %6355 = vmatpush1.bf16.xpose.msra.mxu0 0
        %6356 = vmatprep.subr.bf16.mxu0 0
        %6357 = vmatpush1.bf16.xpose.msra.mxu0 0
        %6358 = vmatprep.subr.bf16.mxu0 0
        %6359 = vmatpush1.bf16.xpose.msra.mxu0 0
        %6360 = vmatprep.subr.bf16.mxu0 0
        %6361 = vmatpush1.bf16.xpose.msra.mxu0 0
        %6362 = vmatprep.subr.bf16.mxu0 0
        %6363 = vmatpush1.bf16.xpose.msra.mxu0 0
        %6364 = vmatprep.subr.bf16.mxu0 0
        %6365 = vmatpush1.bf16.xpose.msra.mxu0 0
        %6366 = vmatprep.mubr.bf16.mxu0 0
        %6367 = vmatmul.mubr.bf16.gmra.mrb[0].mxu0 %v6329
        %v6368 = vpop.f32.mrb[0].mxu0
        %v6369 = vadd.f32 0.0, %v6368
        %v6370 = vpop.f32.mrb[0].mxu0
        %v6371 = vpop.f32.mrb[0].mxu0
        %v6372 = vpop.f32.mrb[0].mxu0
        %6373 = vdwg.mxu0
        %6375 = vrot.lane.b32.xlu0 %v4546, 64
        %v6376 = vpop.permute.xlu0 %6375
        %6378 = vrot.lane.b32.xlu0 %v4562, 64
        %v6379 = vpop.permute.xlu0 %6378
        %v6381 = vsel %vm433, %v6376, 0
        %v6384 = vsel %vm433, %v6379, 0
        %6386 = vmatprep.subr.bf16.mxu0 0
        %6387 = vmatpush1.bf16.xpose.msra.mxu0 %v6384
        %6388 = vmatprep.subr.bf16.mxu0 0
        %6389 = vmatpush1.bf16.xpose.msra.mxu0 0
        %6390 = vmatprep.subr.bf16.mxu0 0
        %6391 = vmatpush1.bf16.xpose.msra.mxu0 0
        %6392 = vmatprep.subr.bf16.mxu0 0
        %6393 = vmatpush1.bf16.xpose.msra.mxu0 0
        %6394 = vmatprep.subr.bf16.mxu0 0
        %6395 = vmatpush1.bf16.xpose.msra.mxu0 0
        %6396 = vmatprep.subr.bf16.mxu0 0
        %6397 = vmatpush1.bf16.xpose.msra.mxu0 0
        %6398 = vmatprep.subr.bf16.mxu0 0
        %6399 = vmatpush1.bf16.xpose.msra.mxu0 0
        %6400 = vmatprep.subr.bf16.mxu0 0
        %6401 = vmatpush1.bf16.xpose.msra.mxu0 0
        %6402 = vmatprep.subr.bf16.mxu0 0
        %6403 = vmatpush1.bf16.xpose.msra.mxu0 0
        %6404 = vmatprep.subr.bf16.mxu0 0
        %6405 = vmatpush1.bf16.xpose.msra.mxu0 0
        %6406 = vmatprep.subr.bf16.mxu0 0
        %6407 = vmatpush1.bf16.xpose.msra.mxu0 0
        %6408 = vmatprep.subr.bf16.mxu0 0
        %6409 = vmatpush1.bf16.xpose.msra.mxu0 0
        %6410 = vmatprep.subr.bf16.mxu0 0
        %6411 = vmatpush1.bf16.xpose.msra.mxu0 0
        %6412 = vmatprep.subr.bf16.mxu0 0
        %6413 = vmatpush1.bf16.xpose.msra.mxu0 0
        %6414 = vmatprep.subr.bf16.mxu0 0
        %6415 = vmatpush1.bf16.xpose.msra.mxu0 0
        %6416 = vmatprep.subr.bf16.mxu0 0
        %6417 = vmatpush1.bf16.xpose.msra.mxu0 0
        %6418 = vmatprep.mubr.bf16.mxu0 0
        %6419 = vmatmul.mubr.bf16.gmra.mrb[0].mxu0 %v6381
        %v6420 = vpop.f32.mrb[0].mxu0
        %v6421 = vadd.f32 0.0, %v6420
        %v6422 = vpop.f32.mrb[0].mxu0
        %v6423 = vpop.f32.mrb[0].mxu0
        %v6424 = vpop.f32.mrb[0].mxu0
        %6425 = vdwg.mxu0
        %6427 = vrot.lane.b32.xlu0 %v4547, 64
        %v6428 = vpop.permute.xlu0 %6427
        %6430 = vrot.lane.b32.xlu0 %v4563, 64
        %v6431 = vpop.permute.xlu0 %6430
        %v6433 = vsel %vm433, %v6428, 0
        %v6436 = vsel %vm433, %v6431, 0
        %6438 = vmatprep.subr.bf16.mxu0 0
        %6439 = vmatpush1.bf16.xpose.msra.mxu0 %v6436
        %6440 = vmatprep.subr.bf16.mxu0 0
        %6441 = vmatpush1.bf16.xpose.msra.mxu0 0
        %6442 = vmatprep.subr.bf16.mxu0 0
        %6443 = vmatpush1.bf16.xpose.msra.mxu0 0
        %6444 = vmatprep.subr.bf16.mxu0 0
        %6445 = vmatpush1.bf16.xpose.msra.mxu0 0
        %6446 = vmatprep.subr.bf16.mxu0 0
        %6447 = vmatpush1.bf16.xpose.msra.mxu0 0
        %6448 = vmatprep.subr.bf16.mxu0 0
        %6449 = vmatpush1.bf16.xpose.msra.mxu0 0
        %6450 = vmatprep.subr.bf16.mxu0 0
        %6451 = vmatpush1.bf16.xpose.msra.mxu0 0
        %6452 = vmatprep.subr.bf16.mxu0 0
        %6453 = vmatpush1.bf16.xpose.msra.mxu0 0
        %6454 = vmatprep.subr.bf16.mxu0 0
        %6455 = vmatpush1.bf16.xpose.msra.mxu0 0
        %6456 = vmatprep.subr.bf16.mxu0 0
        %6457 = vmatpush1.bf16.xpose.msra.mxu0 0
        %6458 = vmatprep.subr.bf16.mxu0 0
        %6459 = vmatpush1.bf16.xpose.msra.mxu0 0
        %6460 = vmatprep.subr.bf16.mxu0 0
        %6461 = vmatpush1.bf16.xpose.msra.mxu0 0
        %6462 = vmatprep.subr.bf16.mxu0 0
        %6463 = vmatpush1.bf16.xpose.msra.mxu0 0
        %6464 = vmatprep.subr.bf16.mxu0 0
        %6465 = vmatpush1.bf16.xpose.msra.mxu0 0
        %6466 = vmatprep.subr.bf16.mxu0 0
        %6467 = vmatpush1.bf16.xpose.msra.mxu0 0
        %6468 = vmatprep.subr.bf16.mxu0 0
        %6469 = vmatpush1.bf16.xpose.msra.mxu0 0
        %6470 = vmatprep.mubr.bf16.mxu0 0
        %6471 = vmatmul.mubr.bf16.gmra.mrb[0].mxu0 %v6433
        %v6472 = vpop.f32.mrb[0].mxu0
        %v6473 = vadd.f32 0.0, %v6472
        %v6474 = vpop.f32.mrb[0].mxu0
        %v6475 = vpop.f32.mrb[0].mxu0
        %v6476 = vpop.f32.mrb[0].mxu0
        %6477 = vdwg.mxu0
        %6479 = vrot.lane.b32.xlu0 %v4548, 64
        %v6480 = vpop.permute.xlu0 %6479
        %6482 = vrot.lane.b32.xlu0 %v4564, 64
        %v6483 = vpop.permute.xlu0 %6482
        %v6485 = vsel %vm433, %v6480, 0
        %v6488 = vsel %vm433, %v6483, 0
        %6490 = vmatprep.subr.bf16.mxu0 0
        %6491 = vmatpush1.bf16.xpose.msra.mxu0 %v6488
        %6492 = vmatprep.subr.bf16.mxu0 0
        %6493 = vmatpush1.bf16.xpose.msra.mxu0 0
        %6494 = vmatprep.subr.bf16.mxu0 0
        %6495 = vmatpush1.bf16.xpose.msra.mxu0 0
        %6496 = vmatprep.subr.bf16.mxu0 0
        %6497 = vmatpush1.bf16.xpose.msra.mxu0 0
        %6498 = vmatprep.subr.bf16.mxu0 0
        %6499 = vmatpush1.bf16.xpose.msra.mxu0 0
        %6500 = vmatprep.subr.bf16.mxu0 0
        %6501 = vmatpush1.bf16.xpose.msra.mxu0 0
        %6502 = vmatprep.subr.bf16.mxu0 0
        %6503 = vmatpush1.bf16.xpose.msra.mxu0 0
        %6504 = vmatprep.subr.bf16.mxu0 0
        %6505 = vmatpush1.bf16.xpose.msra.mxu0 0
        %6506 = vmatprep.subr.bf16.mxu0 0
        %6507 = vmatpush1.bf16.xpose.msra.mxu0 0
        %6508 = vmatprep.subr.bf16.mxu0 0
        %6509 = vmatpush1.bf16.xpose.msra.mxu0 0
        %6510 = vmatprep.subr.bf16.mxu0 0
        %6511 = vmatpush1.bf16.xpose.msra.mxu0 0
        %6512 = vmatprep.subr.bf16.mxu0 0
        %6513 = vmatpush1.bf16.xpose.msra.mxu0 0
        %6514 = vmatprep.subr.bf16.mxu0 0
        %6515 = vmatpush1.bf16.xpose.msra.mxu0 0
        %6516 = vmatprep.subr.bf16.mxu0 0
        %6517 = vmatpush1.bf16.xpose.msra.mxu0 0
        %6518 = vmatprep.subr.bf16.mxu0 0
        %6519 = vmatpush1.bf16.xpose.msra.mxu0 0
        %6520 = vmatprep.subr.bf16.mxu0 0
        %6521 = vmatpush1.bf16.xpose.msra.mxu0 0
        %6522 = vmatprep.mubr.bf16.mxu0 0
        %6523 = vmatmul.mubr.bf16.gmra.mrb[0].mxu0 %v6485
        %v6524 = vpop.f32.mrb[0].mxu0
        %v6525 = vadd.f32 0.0, %v6524
        %v6526 = vpop.f32.mrb[0].mxu0
        %v6527 = vpop.f32.mrb[0].mxu0
        %v6528 = vpop.f32.mrb[0].mxu0
        %6529 = vdwg.mxu0
        %6531 = vrot.lane.b32.xlu0 %v4549, 64
        %v6532 = vpop.permute.xlu0 %6531
        %6534 = vrot.lane.b32.xlu0 %v4565, 64
        %v6535 = vpop.permute.xlu0 %6534
        %v6537 = vsel %vm433, %v6532, 0
        %v6540 = vsel %vm433, %v6535, 0
        %6542 = vmatprep.subr.bf16.mxu0 0
        %6543 = vmatpush1.bf16.xpose.msra.mxu0 %v6540
        %6544 = vmatprep.subr.bf16.mxu0 0
        %6545 = vmatpush1.bf16.xpose.msra.mxu0 0
        %6546 = vmatprep.subr.bf16.mxu0 0
        %6547 = vmatpush1.bf16.xpose.msra.mxu0 0
        %6548 = vmatprep.subr.bf16.mxu0 0
        %6549 = vmatpush1.bf16.xpose.msra.mxu0 0
        %6550 = vmatprep.subr.bf16.mxu0 0
        %6551 = vmatpush1.bf16.xpose.msra.mxu0 0
        %6552 = vmatprep.subr.bf16.mxu0 0
        %6553 = vmatpush1.bf16.xpose.msra.mxu0 0
        %6554 = vmatprep.subr.bf16.mxu0 0
        %6555 = vmatpush1.bf16.xpose.msra.mxu0 0
        %6556 = vmatprep.subr.bf16.mxu0 0
        %6557 = vmatpush1.bf16.xpose.msra.mxu0 0
        %6558 = vmatprep.subr.bf16.mxu0 0
        %6559 = vmatpush1.bf16.xpose.msra.mxu0 0
        %6560 = vmatprep.subr.bf16.mxu0 0
        %6561 = vmatpush1.bf16.xpose.msra.mxu0 0
        %6562 = vmatprep.subr.bf16.mxu0 0
        %6563 = vmatpush1.bf16.xpose.msra.mxu0 0
        %6564 = vmatprep.subr.bf16.mxu0 0
        %6565 = vmatpush1.bf16.xpose.msra.mxu0 0
        %6566 = vmatprep.subr.bf16.mxu0 0
        %6567 = vmatpush1.bf16.xpose.msra.mxu0 0
        %6568 = vmatprep.subr.bf16.mxu0 0
        %6569 = vmatpush1.bf16.xpose.msra.mxu0 0
        %6570 = vmatprep.subr.bf16.mxu0 0
        %6571 = vmatpush1.bf16.xpose.msra.mxu0 0
        %6572 = vmatprep.subr.bf16.mxu0 0
        %6573 = vmatpush1.bf16.xpose.msra.mxu0 0
        %6574 = vmatprep.mubr.bf16.mxu0 0
        %6575 = vmatmul.mubr.bf16.gmra.mrb[0].mxu0 %v6537
        %v6576 = vpop.f32.mrb[0].mxu0
        %v6577 = vadd.f32 0.0, %v6576
        %v6578 = vpop.f32.mrb[0].mxu0
        %v6579 = vpop.f32.mrb[0].mxu0
        %v6580 = vpop.f32.mrb[0].mxu0
        %6581 = vdwg.mxu0
        %6583 = vrot.lane.b32.xlu0 %v4550, 64
        %v6584 = vpop.permute.xlu0 %6583
        %6586 = vrot.lane.b32.xlu0 %v4566, 64
        %v6587 = vpop.permute.xlu0 %6586
        %v6589 = vsel %vm433, %v6584, 0
        %v6592 = vsel %vm433, %v6587, 0
        %6594 = vmatprep.subr.bf16.mxu0 0
        %6595 = vmatpush1.bf16.xpose.msra.mxu0 %v6592
        %6596 = vmatprep.subr.bf16.mxu0 0
        %6597 = vmatpush1.bf16.xpose.msra.mxu0 0
        %6598 = vmatprep.subr.bf16.mxu0 0
        %6599 = vmatpush1.bf16.xpose.msra.mxu0 0
        %6600 = vmatprep.subr.bf16.mxu0 0
        %6601 = vmatpush1.bf16.xpose.msra.mxu0 0
        %6602 = vmatprep.subr.bf16.mxu0 0
        %6603 = vmatpush1.bf16.xpose.msra.mxu0 0
        %6604 = vmatprep.subr.bf16.mxu0 0
        %6605 = vmatpush1.bf16.xpose.msra.mxu0 0
        %6606 = vmatprep.subr.bf16.mxu0 0
        %6607 = vmatpush1.bf16.xpose.msra.mxu0 0
        %6608 = vmatprep.subr.bf16.mxu0 0
        %6609 = vmatpush1.bf16.xpose.msra.mxu0 0
        %6610 = vmatprep.subr.bf16.mxu0 0
        %6611 = vmatpush1.bf16.xpose.msra.mxu0 0
        %6612 = vmatprep.subr.bf16.mxu0 0
        %6613 = vmatpush1.bf16.xpose.msra.mxu0 0
        %6614 = vmatprep.subr.bf16.mxu0 0
        %6615 = vmatpush1.bf16.xpose.msra.mxu0 0
        %6616 = vmatprep.subr.bf16.mxu0 0
        %6617 = vmatpush1.bf16.xpose.msra.mxu0 0
        %6618 = vmatprep.subr.bf16.mxu0 0
        %6619 = vmatpush1.bf16.xpose.msra.mxu0 0
        %6620 = vmatprep.subr.bf16.mxu0 0
        %6621 = vmatpush1.bf16.xpose.msra.mxu0 0
        %6622 = vmatprep.subr.bf16.mxu0 0
        %6623 = vmatpush1.bf16.xpose.msra.mxu0 0
        %6624 = vmatprep.subr.bf16.mxu0 0
        %6625 = vmatpush1.bf16.xpose.msra.mxu0 0
        %6626 = vmatprep.mubr.bf16.mxu0 0
        %6627 = vmatmul.mubr.bf16.gmra.mrb[0].mxu0 %v6589
        %v6628 = vpop.f32.mrb[0].mxu0
        %v6629 = vadd.f32 0.0, %v6628
        %v6630 = vpop.f32.mrb[0].mxu0
        %v6631 = vpop.f32.mrb[0].mxu0
        %v6632 = vpop.f32.mrb[0].mxu0
        %6633 = vdwg.mxu0
        %6635 = vrot.lane.b32.xlu0 %v4551, 64
        %v6636 = vpop.permute.xlu0 %6635
        %6638 = vrot.lane.b32.xlu0 %v4567, 64
        %v6639 = vpop.permute.xlu0 %6638
        %v6641 = vsel %vm433, %v6636, 0
        %v6644 = vsel %vm433, %v6639, 0
        %6646 = vmatprep.subr.bf16.mxu0 0
        %6647 = vmatpush1.bf16.xpose.msra.mxu0 %v6644
        %6648 = vmatprep.subr.bf16.mxu0 0
        %6649 = vmatpush1.bf16.xpose.msra.mxu0 0
        %6650 = vmatprep.subr.bf16.mxu0 0
        %6651 = vmatpush1.bf16.xpose.msra.mxu0 0
        %6652 = vmatprep.subr.bf16.mxu0 0
        %6653 = vmatpush1.bf16.xpose.msra.mxu0 0
        %6654 = vmatprep.subr.bf16.mxu0 0
        %6655 = vmatpush1.bf16.xpose.msra.mxu0 0
        %6656 = vmatprep.subr.bf16.mxu0 0
        %6657 = vmatpush1.bf16.xpose.msra.mxu0 0
        %6658 = vmatprep.subr.bf16.mxu0 0
        %6659 = vmatpush1.bf16.xpose.msra.mxu0 0
        %6660 = vmatprep.subr.bf16.mxu0 0
        %6661 = vmatpush1.bf16.xpose.msra.mxu0 0
        %6662 = vmatprep.subr.bf16.mxu0 0
        %6663 = vmatpush1.bf16.xpose.msra.mxu0 0
        %6664 = vmatprep.subr.bf16.mxu0 0
        %6665 = vmatpush1.bf16.xpose.msra.mxu0 0
        %6666 = vmatprep.subr.bf16.mxu0 0
        %6667 = vmatpush1.bf16.xpose.msra.mxu0 0
        %6668 = vmatprep.subr.bf16.mxu0 0
        %6669 = vmatpush1.bf16.xpose.msra.mxu0 0
        %6670 = vmatprep.subr.bf16.mxu0 0
        %6671 = vmatpush1.bf16.xpose.msra.mxu0 0
        %6672 = vmatprep.subr.bf16.mxu0 0
        %6673 = vmatpush1.bf16.xpose.msra.mxu0 0
        %6674 = vmatprep.subr.bf16.mxu0 0
        %6675 = vmatpush1.bf16.xpose.msra.mxu0 0
        %6676 = vmatprep.subr.bf16.mxu0 0
        %6677 = vmatpush1.bf16.xpose.msra.mxu0 0
        %6678 = vmatprep.mubr.bf16.mxu0 0
        %6679 = vmatmul.mubr.bf16.gmra.mrb[0].mxu0 %v6641
        %v6680 = vpop.f32.mrb[0].mxu0
        %v6681 = vadd.f32 0.0, %v6680
        %v6682 = vpop.f32.mrb[0].mxu0
        %v6683 = vpop.f32.mrb[0].mxu0
        %v6684 = vpop.f32.mrb[0].mxu0
        %6685 = vdwg.mxu0
        %6687 = vrot.lane.b32.xlu0 %v4552, 64
        %v6688 = vpop.permute.xlu0 %6687
        %6690 = vrot.lane.b32.xlu0 %v4568, 64
        %v6691 = vpop.permute.xlu0 %6690
        %v6693 = vsel %vm433, %v6688, 0
        %v6696 = vsel %vm433, %v6691, 0
        %6698 = vmatprep.subr.bf16.mxu0 0
        %6699 = vmatpush1.bf16.xpose.msra.mxu0 %v6696
        %6700 = vmatprep.subr.bf16.mxu0 0
        %6701 = vmatpush1.bf16.xpose.msra.mxu0 0
        %6702 = vmatprep.subr.bf16.mxu0 0
        %6703 = vmatpush1.bf16.xpose.msra.mxu0 0
        %6704 = vmatprep.subr.bf16.mxu0 0
        %6705 = vmatpush1.bf16.xpose.msra.mxu0 0
        %6706 = vmatprep.subr.bf16.mxu0 0
        %6707 = vmatpush1.bf16.xpose.msra.mxu0 0
        %6708 = vmatprep.subr.bf16.mxu0 0
        %6709 = vmatpush1.bf16.xpose.msra.mxu0 0
        %6710 = vmatprep.subr.bf16.mxu0 0
        %6711 = vmatpush1.bf16.xpose.msra.mxu0 0
        %6712 = vmatprep.subr.bf16.mxu0 0
        %6713 = vmatpush1.bf16.xpose.msra.mxu0 0
        %6714 = vmatprep.subr.bf16.mxu0 0
        %6715 = vmatpush1.bf16.xpose.msra.mxu0 0
        %6716 = vmatprep.subr.bf16.mxu0 0
        %6717 = vmatpush1.bf16.xpose.msra.mxu0 0
        %6718 = vmatprep.subr.bf16.mxu0 0
        %6719 = vmatpush1.bf16.xpose.msra.mxu0 0
        %6720 = vmatprep.subr.bf16.mxu0 0
        %6721 = vmatpush1.bf16.xpose.msra.mxu0 0
        %6722 = vmatprep.subr.bf16.mxu0 0
        %6723 = vmatpush1.bf16.xpose.msra.mxu0 0
        %6724 = vmatprep.subr.bf16.mxu0 0
        %6725 = vmatpush1.bf16.xpose.msra.mxu0 0
        %6726 = vmatprep.subr.bf16.mxu0 0
        %6727 = vmatpush1.bf16.xpose.msra.mxu0 0
        %6728 = vmatprep.subr.bf16.mxu0 0
        %6729 = vmatpush1.bf16.xpose.msra.mxu0 0
        %6730 = vmatprep.mubr.bf16.mxu0 0
        %6731 = vmatmul.mubr.bf16.gmra.mrb[0].mxu0 %v6693
        %v6732 = vpop.f32.mrb[0].mxu0
        %v6733 = vadd.f32 0.0, %v6732
        %v6734 = vpop.f32.mrb[0].mxu0
        %v6735 = vpop.f32.mrb[0].mxu0
        %v6736 = vpop.f32.mrb[0].mxu0
        %6737 = vdwg.mxu0
        %6739 = vrot.lane.b32.xlu0 %v4553, 64
        %v6740 = vpop.permute.xlu0 %6739
        %6742 = vrot.lane.b32.xlu0 %v4569, 64
        %v6743 = vpop.permute.xlu0 %6742
        %v6745 = vsel %vm433, %v6740, 0
        %v6748 = vsel %vm433, %v6743, 0
        %6750 = vmatprep.subr.bf16.mxu0 0
        %6751 = vmatpush1.bf16.xpose.msra.mxu0 %v6748
        %6752 = vmatprep.subr.bf16.mxu0 0
        %6753 = vmatpush1.bf16.xpose.msra.mxu0 0
        %6754 = vmatprep.subr.bf16.mxu0 0
        %6755 = vmatpush1.bf16.xpose.msra.mxu0 0
        %6756 = vmatprep.subr.bf16.mxu0 0
        %6757 = vmatpush1.bf16.xpose.msra.mxu0 0
        %6758 = vmatprep.subr.bf16.mxu0 0
        %6759 = vmatpush1.bf16.xpose.msra.mxu0 0
        %6760 = vmatprep.subr.bf16.mxu0 0
        %6761 = vmatpush1.bf16.xpose.msra.mxu0 0
        %6762 = vmatprep.subr.bf16.mxu0 0
        %6763 = vmatpush1.bf16.xpose.msra.mxu0 0
        %6764 = vmatprep.subr.bf16.mxu0 0
        %6765 = vmatpush1.bf16.xpose.msra.mxu0 0
        %6766 = vmatprep.subr.bf16.mxu0 0
        %6767 = vmatpush1.bf16.xpose.msra.mxu0 0
        %6768 = vmatprep.subr.bf16.mxu0 0
        %6769 = vmatpush1.bf16.xpose.msra.mxu0 0
        %6770 = vmatprep.subr.bf16.mxu0 0
        %6771 = vmatpush1.bf16.xpose.msra.mxu0 0
        %6772 = vmatprep.subr.bf16.mxu0 0
        %6773 = vmatpush1.bf16.xpose.msra.mxu0 0
        %6774 = vmatprep.subr.bf16.mxu0 0
        %6775 = vmatpush1.bf16.xpose.msra.mxu0 0
        %6776 = vmatprep.subr.bf16.mxu0 0
        %6777 = vmatpush1.bf16.xpose.msra.mxu0 0
        %6778 = vmatprep.subr.bf16.mxu0 0
        %6779 = vmatpush1.bf16.xpose.msra.mxu0 0
        %6780 = vmatprep.subr.bf16.mxu0 0
        %6781 = vmatpush1.bf16.xpose.msra.mxu0 0
        %6782 = vmatprep.mubr.bf16.mxu0 0
        %6783 = vmatmul.mubr.bf16.gmra.mrb[0].mxu0 %v6745
        %v6784 = vpop.f32.mrb[0].mxu0
        %v6785 = vadd.f32 0.0, %v6784
        %v6786 = vpop.f32.mrb[0].mxu0
        %v6787 = vpop.f32.mrb[0].mxu0
        %v6788 = vpop.f32.mrb[0].mxu0
        %6789 = vdwg.mxu0
        %6791 = vrot.lane.b32.xlu0 %v4554, 64
        %v6792 = vpop.permute.xlu0 %6791
        %6794 = vrot.lane.b32.xlu0 %v4570, 64
        %v6795 = vpop.permute.xlu0 %6794
        %v6797 = vsel %vm433, %v6792, 0
        %v6800 = vsel %vm433, %v6795, 0
        %6802 = vmatprep.subr.bf16.mxu0 0
        %6803 = vmatpush1.bf16.xpose.msra.mxu0 %v6800
        %6804 = vmatprep.subr.bf16.mxu0 0
        %6805 = vmatpush1.bf16.xpose.msra.mxu0 0
        %6806 = vmatprep.subr.bf16.mxu0 0
        %6807 = vmatpush1.bf16.xpose.msra.mxu0 0
        %6808 = vmatprep.subr.bf16.mxu0 0
        %6809 = vmatpush1.bf16.xpose.msra.mxu0 0
        %6810 = vmatprep.subr.bf16.mxu0 0
        %6811 = vmatpush1.bf16.xpose.msra.mxu0 0
        %6812 = vmatprep.subr.bf16.mxu0 0
        %6813 = vmatpush1.bf16.xpose.msra.mxu0 0
        %6814 = vmatprep.subr.bf16.mxu0 0
        %6815 = vmatpush1.bf16.xpose.msra.mxu0 0
        %6816 = vmatprep.subr.bf16.mxu0 0
        %6817 = vmatpush1.bf16.xpose.msra.mxu0 0
        %6818 = vmatprep.subr.bf16.mxu0 0
        %6819 = vmatpush1.bf16.xpose.msra.mxu0 0
        %6820 = vmatprep.subr.bf16.mxu0 0
        %6821 = vmatpush1.bf16.xpose.msra.mxu0 0
        %6822 = vmatprep.subr.bf16.mxu0 0
        %6823 = vmatpush1.bf16.xpose.msra.mxu0 0
        %6824 = vmatprep.subr.bf16.mxu0 0
        %6825 = vmatpush1.bf16.xpose.msra.mxu0 0
        %6826 = vmatprep.subr.bf16.mxu0 0
        %6827 = vmatpush1.bf16.xpose.msra.mxu0 0
        %6828 = vmatprep.subr.bf16.mxu0 0
        %6829 = vmatpush1.bf16.xpose.msra.mxu0 0
        %6830 = vmatprep.subr.bf16.mxu0 0
        %6831 = vmatpush1.bf16.xpose.msra.mxu0 0
        %6832 = vmatprep.subr.bf16.mxu0 0
        %6833 = vmatpush1.bf16.xpose.msra.mxu0 0
        %6834 = vmatprep.mubr.bf16.mxu0 0
        %6835 = vmatmul.mubr.bf16.gmra.mrb[0].mxu0 %v6797
        %v6836 = vpop.f32.mrb[0].mxu0
        %v6837 = vadd.f32 0.0, %v6836
        %v6838 = vpop.f32.mrb[0].mxu0
        %v6839 = vpop.f32.mrb[0].mxu0
        %v6840 = vpop.f32.mrb[0].mxu0
        %6841 = vdwg.mxu0
        %6843 = vrot.lane.b32.xlu0 %v4555, 64
        %v6844 = vpop.permute.xlu0 %6843
        %6846 = vrot.lane.b32.xlu0 %v4571, 64
        %v6847 = vpop.permute.xlu0 %6846
        %v6849 = vsel %vm433, %v6844, 0
        %v6852 = vsel %vm433, %v6847, 0
        %6854 = vmatprep.subr.bf16.mxu0 0
        %6855 = vmatpush1.bf16.xpose.msra.mxu0 %v6852
        %6856 = vmatprep.subr.bf16.mxu0 0
        %6857 = vmatpush1.bf16.xpose.msra.mxu0 0
        %6858 = vmatprep.subr.bf16.mxu0 0
        %6859 = vmatpush1.bf16.xpose.msra.mxu0 0
        %6860 = vmatprep.subr.bf16.mxu0 0
        %6861 = vmatpush1.bf16.xpose.msra.mxu0 0
        %6862 = vmatprep.subr.bf16.mxu0 0
        %6863 = vmatpush1.bf16.xpose.msra.mxu0 0
        %6864 = vmatprep.subr.bf16.mxu0 0
        %6865 = vmatpush1.bf16.xpose.msra.mxu0 0
        %6866 = vmatprep.subr.bf16.mxu0 0
        %6867 = vmatpush1.bf16.xpose.msra.mxu0 0
        %6868 = vmatprep.subr.bf16.mxu0 0
        %6869 = vmatpush1.bf16.xpose.msra.mxu0 0
        %6870 = vmatprep.subr.bf16.mxu0 0
        %6871 = vmatpush1.bf16.xpose.msra.mxu0 0
        %6872 = vmatprep.subr.bf16.mxu0 0
        %6873 = vmatpush1.bf16.xpose.msra.mxu0 0
        %6874 = vmatprep.subr.bf16.mxu0 0
        %6875 = vmatpush1.bf16.xpose.msra.mxu0 0
        %6876 = vmatprep.subr.bf16.mxu0 0
        %6877 = vmatpush1.bf16.xpose.msra.mxu0 0
        %6878 = vmatprep.subr.bf16.mxu0 0
        %6879 = vmatpush1.bf16.xpose.msra.mxu0 0
        %6880 = vmatprep.subr.bf16.mxu0 0
        %6881 = vmatpush1.bf16.xpose.msra.mxu0 0
        %6882 = vmatprep.subr.bf16.mxu0 0
        %6883 = vmatpush1.bf16.xpose.msra.mxu0 0
        %6884 = vmatprep.subr.bf16.mxu0 0
        %6885 = vmatpush1.bf16.xpose.msra.mxu0 0
        %6886 = vmatprep.mubr.bf16.mxu0 0
        %6887 = vmatmul.mubr.bf16.gmra.mrb[0].mxu0 %v6849
        %v6888 = vpop.f32.mrb[0].mxu0
        %v6889 = vadd.f32 0.0, %v6888
        %v6890 = vpop.f32.mrb[0].mxu0
        %v6891 = vpop.f32.mrb[0].mxu0
        %v6892 = vpop.f32.mrb[0].mxu0
        %6893 = vdwg.mxu0
        %6895 = vrot.lane.b32.xlu0 %v4556, 64
        %v6896 = vpop.permute.xlu0 %6895
        %6898 = vrot.lane.b32.xlu0 %v4572, 64
        %v6899 = vpop.permute.xlu0 %6898
        %v6901 = vsel %vm433, %v6896, 0
        %v6904 = vsel %vm433, %v6899, 0
        %6906 = vmatprep.subr.bf16.mxu0 0
        %6907 = vmatpush1.bf16.xpose.msra.mxu0 %v6904
        %6908 = vmatprep.subr.bf16.mxu0 0
        %6909 = vmatpush1.bf16.xpose.msra.mxu0 0
        %6910 = vmatprep.subr.bf16.mxu0 0
        %6911 = vmatpush1.bf16.xpose.msra.mxu0 0
        %6912 = vmatprep.subr.bf16.mxu0 0
        %6913 = vmatpush1.bf16.xpose.msra.mxu0 0
        %6914 = vmatprep.subr.bf16.mxu0 0
        %6915 = vmatpush1.bf16.xpose.msra.mxu0 0
        %6916 = vmatprep.subr.bf16.mxu0 0
        %6917 = vmatpush1.bf16.xpose.msra.mxu0 0
        %6918 = vmatprep.subr.bf16.mxu0 0
        %6919 = vmatpush1.bf16.xpose.msra.mxu0 0
        %6920 = vmatprep.subr.bf16.mxu0 0
        %6921 = vmatpush1.bf16.xpose.msra.mxu0 0
        %6922 = vmatprep.subr.bf16.mxu0 0
        %6923 = vmatpush1.bf16.xpose.msra.mxu0 0
        %6924 = vmatprep.subr.bf16.mxu0 0
        %6925 = vmatpush1.bf16.xpose.msra.mxu0 0
        %6926 = vmatprep.subr.bf16.mxu0 0
        %6927 = vmatpush1.bf16.xpose.msra.mxu0 0
        %6928 = vmatprep.subr.bf16.mxu0 0
        %6929 = vmatpush1.bf16.xpose.msra.mxu0 0
        %6930 = vmatprep.subr.bf16.mxu0 0
        %6931 = vmatpush1.bf16.xpose.msra.mxu0 0
        %6932 = vmatprep.subr.bf16.mxu0 0
        %6933 = vmatpush1.bf16.xpose.msra.mxu0 0
        %6934 = vmatprep.subr.bf16.mxu0 0
        %6935 = vmatpush1.bf16.xpose.msra.mxu0 0
        %6936 = vmatprep.subr.bf16.mxu0 0
        %6937 = vmatpush1.bf16.xpose.msra.mxu0 0
        %6938 = vmatprep.mubr.bf16.mxu0 0
        %6939 = vmatmul.mubr.bf16.gmra.mrb[0].mxu0 %v6901
        %v6940 = vpop.f32.mrb[0].mxu0
        %v6941 = vadd.f32 0.0, %v6940
        %v6942 = vpop.f32.mrb[0].mxu0
        %v6943 = vpop.f32.mrb[0].mxu0
        %v6944 = vpop.f32.mrb[0].mxu0
        %6945 = vdwg.mxu0
        %6947 = vrot.lane.b32.xlu0 %v4557, 64
        %v6948 = vpop.permute.xlu0 %6947
        %6950 = vrot.lane.b32.xlu0 %v4573, 64
        %v6951 = vpop.permute.xlu0 %6950
        %v6953 = vsel %vm433, %v6948, 0
        %v6956 = vsel %vm433, %v6951, 0
        %6958 = vmatprep.subr.bf16.mxu0 0
        %6959 = vmatpush1.bf16.xpose.msra.mxu0 %v6956
        %6960 = vmatprep.subr.bf16.mxu0 0
        %6961 = vmatpush1.bf16.xpose.msra.mxu0 0
        %6962 = vmatprep.subr.bf16.mxu0 0
        %6963 = vmatpush1.bf16.xpose.msra.mxu0 0
        %6964 = vmatprep.subr.bf16.mxu0 0
        %6965 = vmatpush1.bf16.xpose.msra.mxu0 0
        %6966 = vmatprep.subr.bf16.mxu0 0
        %6967 = vmatpush1.bf16.xpose.msra.mxu0 0
        %6968 = vmatprep.subr.bf16.mxu0 0
        %6969 = vmatpush1.bf16.xpose.msra.mxu0 0
        %6970 = vmatprep.subr.bf16.mxu0 0
        %6971 = vmatpush1.bf16.xpose.msra.mxu0 0
        %6972 = vmatprep.subr.bf16.mxu0 0
        %6973 = vmatpush1.bf16.xpose.msra.mxu0 0
        %6974 = vmatprep.subr.bf16.mxu0 0
        %6975 = vmatpush1.bf16.xpose.msra.mxu0 0
        %6976 = vmatprep.subr.bf16.mxu0 0
        %6977 = vmatpush1.bf16.xpose.msra.mxu0 0
        %6978 = vmatprep.subr.bf16.mxu0 0
        %6979 = vmatpush1.bf16.xpose.msra.mxu0 0
        %6980 = vmatprep.subr.bf16.mxu0 0
        %6981 = vmatpush1.bf16.xpose.msra.mxu0 0
        %6982 = vmatprep.subr.bf16.mxu0 0
        %6983 = vmatpush1.bf16.xpose.msra.mxu0 0
        %6984 = vmatprep.subr.bf16.mxu0 0
        %6985 = vmatpush1.bf16.xpose.msra.mxu0 0
        %6986 = vmatprep.subr.bf16.mxu0 0
        %6987 = vmatpush1.bf16.xpose.msra.mxu0 0
        %6988 = vmatprep.subr.bf16.mxu0 0
        %6989 = vmatpush1.bf16.xpose.msra.mxu0 0
        %6990 = vmatprep.mubr.bf16.mxu0 0
        %6991 = vmatmul.mubr.bf16.gmra.mrb[0].mxu0 %v6953
        %v6992 = vpop.f32.mrb[0].mxu0
        %v6993 = vadd.f32 0.0, %v6992
        %v6994 = vpop.f32.mrb[0].mxu0
        %v6995 = vpop.f32.mrb[0].mxu0
        %v6996 = vpop.f32.mrb[0].mxu0
        %6997 = vdwg.mxu0
        %6999 = vrot.lane.b32.xlu0 %v4558, 64
        %v7000 = vpop.permute.xlu0 %6999
        %7002 = vrot.lane.b32.xlu0 %v4574, 64
        %v7003 = vpop.permute.xlu0 %7002
        %v7005 = vsel %vm433, %v7000, 0
        %v7008 = vsel %vm433, %v7003, 0
        %7010 = vmatprep.subr.bf16.mxu0 0
        %7011 = vmatpush1.bf16.xpose.msra.mxu0 %v7008
        %7012 = vmatprep.subr.bf16.mxu0 0
        %7013 = vmatpush1.bf16.xpose.msra.mxu0 0
        %7014 = vmatprep.subr.bf16.mxu0 0
        %7015 = vmatpush1.bf16.xpose.msra.mxu0 0
        %7016 = vmatprep.subr.bf16.mxu0 0
        %7017 = vmatpush1.bf16.xpose.msra.mxu0 0
        %7018 = vmatprep.subr.bf16.mxu0 0
        %7019 = vmatpush1.bf16.xpose.msra.mxu0 0
        %7020 = vmatprep.subr.bf16.mxu0 0
        %7021 = vmatpush1.bf16.xpose.msra.mxu0 0
        %7022 = vmatprep.subr.bf16.mxu0 0
        %7023 = vmatpush1.bf16.xpose.msra.mxu0 0
        %7024 = vmatprep.subr.bf16.mxu0 0
        %7025 = vmatpush1.bf16.xpose.msra.mxu0 0
        %7026 = vmatprep.subr.bf16.mxu0 0
        %7027 = vmatpush1.bf16.xpose.msra.mxu0 0
        %7028 = vmatprep.subr.bf16.mxu0 0
        %7029 = vmatpush1.bf16.xpose.msra.mxu0 0
        %7030 = vmatprep.subr.bf16.mxu0 0
        %7031 = vmatpush1.bf16.xpose.msra.mxu0 0
        %7032 = vmatprep.subr.bf16.mxu0 0
        %7033 = vmatpush1.bf16.xpose.msra.mxu0 0
        %7034 = vmatprep.subr.bf16.mxu0 0
        %7035 = vmatpush1.bf16.xpose.msra.mxu0 0
        %7036 = vmatprep.subr.bf16.mxu0 0
        %7037 = vmatpush1.bf16.xpose.msra.mxu0 0
        %7038 = vmatprep.subr.bf16.mxu0 0
        %7039 = vmatpush1.bf16.xpose.msra.mxu0 0
        %7040 = vmatprep.subr.bf16.mxu0 0
        %7041 = vmatpush1.bf16.xpose.msra.mxu0 0
        %7042 = vmatprep.mubr.bf16.mxu0 0
        %7043 = vmatmul.mubr.bf16.gmra.mrb[0].mxu0 %v7005
        %v7044 = vpop.f32.mrb[0].mxu0
        %v7045 = vadd.f32 0.0, %v7044
        %v7046 = vpop.f32.mrb[0].mxu0
        %v7047 = vpop.f32.mrb[0].mxu0
        %v7048 = vpop.f32.mrb[0].mxu0
        %7049 = vdwg.mxu0
        %7051 = vrot.lane.b32.xlu0 %v4559, 64
        %v7052 = vpop.permute.xlu0 %7051
        %7054 = vrot.lane.b32.xlu0 %v4575, 64
        %v7055 = vpop.permute.xlu0 %7054
        %v7057 = vsel %vm433, %v7052, 0
        %v7060 = vsel %vm433, %v7055, 0
        %7062 = vmatprep.subr.bf16.mxu0 0
        %7063 = vmatpush1.bf16.xpose.msra.mxu0 %v7060
        %7064 = vmatprep.subr.bf16.mxu0 0
        %7065 = vmatpush1.bf16.xpose.msra.mxu0 0
        %7066 = vmatprep.subr.bf16.mxu0 0
        %7067 = vmatpush1.bf16.xpose.msra.mxu0 0
        %7068 = vmatprep.subr.bf16.mxu0 0
        %7069 = vmatpush1.bf16.xpose.msra.mxu0 0
        %7070 = vmatprep.subr.bf16.mxu0 0
        %7071 = vmatpush1.bf16.xpose.msra.mxu0 0
        %7072 = vmatprep.subr.bf16.mxu0 0
        %7073 = vmatpush1.bf16.xpose.msra.mxu0 0
        %7074 = vmatprep.subr.bf16.mxu0 0
        %7075 = vmatpush1.bf16.xpose.msra.mxu0 0
        %7076 = vmatprep.subr.bf16.mxu0 0
        %7077 = vmatpush1.bf16.xpose.msra.mxu0 0
        %7078 = vmatprep.subr.bf16.mxu0 0
        %7079 = vmatpush1.bf16.xpose.msra.mxu0 0
        %7080 = vmatprep.subr.bf16.mxu0 0
        %7081 = vmatpush1.bf16.xpose.msra.mxu0 0
        %7082 = vmatprep.subr.bf16.mxu0 0
        %7083 = vmatpush1.bf16.xpose.msra.mxu0 0
        %7084 = vmatprep.subr.bf16.mxu0 0
        %7085 = vmatpush1.bf16.xpose.msra.mxu0 0
        %7086 = vmatprep.subr.bf16.mxu0 0
        %7087 = vmatpush1.bf16.xpose.msra.mxu0 0
        %7088 = vmatprep.subr.bf16.mxu0 0
        %7089 = vmatpush1.bf16.xpose.msra.mxu0 0
        %7090 = vmatprep.subr.bf16.mxu0 0
        %7091 = vmatpush1.bf16.xpose.msra.mxu0 0
        %7092 = vmatprep.subr.bf16.mxu0 0
        %7093 = vmatpush1.bf16.xpose.msra.mxu0 0
        %7094 = vmatprep.mubr.bf16.mxu0 0
        %7095 = vmatmul.mubr.bf16.gmra.mrb[0].mxu0 %v7057
        %v7096 = vpop.f32.mrb[0].mxu0
        %v7097 = vadd.f32 0.0, %v7096
        %v7098 = vpop.f32.mrb[0].mxu0
        %v7099 = vpop.f32.mrb[0].mxu0
        %v7100 = vpop.f32.mrb[0].mxu0
        %7101 = vdwg.mxu0
        %7103 = vrot.lane.b32.xlu0 %v4560, 64
        %v7104 = vpop.permute.xlu0 %7103
        %7106 = vrot.lane.b32.xlu0 %v4576, 64
        %v7107 = vpop.permute.xlu0 %7106
        %v7109 = vsel %vm433, %v7104, 0
        %v7112 = vsel %vm433, %v7107, 0
        %7114 = vmatprep.subr.bf16.mxu0 0
        %7115 = vmatpush1.bf16.xpose.msra.mxu0 %v7112
        %7116 = vmatprep.subr.bf16.mxu0 0
        %7117 = vmatpush1.bf16.xpose.msra.mxu0 0
        %7118 = vmatprep.subr.bf16.mxu0 0
        %7119 = vmatpush1.bf16.xpose.msra.mxu0 0
        %7120 = vmatprep.subr.bf16.mxu0 0
        %7121 = vmatpush1.bf16.xpose.msra.mxu0 0
        %7122 = vmatprep.subr.bf16.mxu0 0
        %7123 = vmatpush1.bf16.xpose.msra.mxu0 0
        %7124 = vmatprep.subr.bf16.mxu0 0
        %7125 = vmatpush1.bf16.xpose.msra.mxu0 0
        %7126 = vmatprep.subr.bf16.mxu0 0
        %7127 = vmatpush1.bf16.xpose.msra.mxu0 0
        %7128 = vmatprep.subr.bf16.mxu0 0
        %7129 = vmatpush1.bf16.xpose.msra.mxu0 0
        %7130 = vmatprep.subr.bf16.mxu0 0
        %7131 = vmatpush1.bf16.xpose.msra.mxu0 0
        %7132 = vmatprep.subr.bf16.mxu0 0
        %7133 = vmatpush1.bf16.xpose.msra.mxu0 0
        %7134 = vmatprep.subr.bf16.mxu0 0
        %7135 = vmatpush1.bf16.xpose.msra.mxu0 0
        %7136 = vmatprep.subr.bf16.mxu0 0
        %7137 = vmatpush1.bf16.xpose.msra.mxu0 0
        %7138 = vmatprep.subr.bf16.mxu0 0
        %7139 = vmatpush1.bf16.xpose.msra.mxu0 0
        %7140 = vmatprep.subr.bf16.mxu0 0
        %7141 = vmatpush1.bf16.xpose.msra.mxu0 0
        %7142 = vmatprep.subr.bf16.mxu0 0
        %7143 = vmatpush1.bf16.xpose.msra.mxu0 0
        %7144 = vmatprep.subr.bf16.mxu0 0
        %7145 = vmatpush1.bf16.xpose.msra.mxu0 0
        %7146 = vmatprep.mubr.bf16.mxu0 0
        %7147 = vmatmul.mubr.bf16.gmra.mrb[0].mxu0 %v7109
        %v7148 = vpop.f32.mrb[0].mxu0
        %v7149 = vadd.f32 0.0, %v7148
        %v7150 = vpop.f32.mrb[0].mxu0
        %v7151 = vpop.f32.mrb[0].mxu0
        %v7152 = vpop.f32.mrb[0].mxu0
        %7153 = vdwg.mxu0
        %v7154 = vmul.f32 %v6369, 0.125
        %v7155 = vmul.f32 %v6421, 0.125
        %v7156 = vmul.f32 %v6473, 0.125
        %v7157 = vmul.f32 %v6525, 0.125
        %v7158 = vmul.f32 %v6577, 0.125
        %v7159 = vmul.f32 %v6629, 0.125
        %v7160 = vmul.f32 %v6681, 0.125
        %v7161 = vmul.f32 %v6733, 0.125
        %v7162 = vmul.f32 %v6785, 0.125
        %v7163 = vmul.f32 %v6837, 0.125
        %v7164 = vmul.f32 %v6889, 0.125
        %v7165 = vmul.f32 %v6941, 0.125
        %v7166 = vmul.f32 %v6993, 0.125
        %v7167 = vmul.f32 %v7045, 0.125
        %v7168 = vmul.f32 %v7097, 0.125
        %v7169 = vmul.f32 %v7149, 0.125
        %v7170 = vadd.f32 %v7154, %v813
        %v7171 = vadd.f32 %v7155, %v814
        %v7172 = vadd.f32 %v7156, %v815
        %v7173 = vadd.f32 %v7157, %v816
        %v7174 = vadd.f32 %v7158, %v817
        %v7175 = vadd.f32 %v7159, %v818
        %v7176 = vadd.f32 %v7160, %v819
        %v7177 = vadd.f32 %v7161, %v820
        %v7178 = vadd.f32 %v7162, %v821
        %v7179 = vadd.f32 %v7163, %v822
        %v7180 = vadd.f32 %v7164, %v823
        %v7181 = vadd.f32 %v7165, %v824
        %v7182 = vadd.f32 %v7166, %v825
        %v7183 = vadd.f32 %v7167, %v826
        %v7184 = vadd.f32 %v7168, %v827
        %v7185 = vadd.f32 %v7169, %v828
        %v7186 = vsel %vm1645, %v7170, -inf
        %7187 = vmax.xlane.f32.xlu0 %v7186
        %v7188 = vpop.xlane.xlu0 %7187
        %v7189 = vsel %vm1645, %v7171, -inf
        %7190 = vmax.xlane.f32.xlu0 %v7189
        %v7191 = vpop.xlane.xlu0 %7190
        %v7192 = vsel %vm1645, %v7172, -inf
        %7193 = vmax.xlane.f32.xlu0 %v7192
        %v7194 = vpop.xlane.xlu0 %7193
        %v7195 = vsel %vm1645, %v7173, -inf
        %7196 = vmax.xlane.f32.xlu0 %v7195
        %v7197 = vpop.xlane.xlu0 %7196
        %v7198 = vsel %vm1645, %v7174, -inf
        %7199 = vmax.xlane.f32.xlu0 %v7198
        %v7200 = vpop.xlane.xlu0 %7199
        %v7201 = vsel %vm1645, %v7175, -inf
        %7202 = vmax.xlane.f32.xlu0 %v7201
        %v7203 = vpop.xlane.xlu0 %7202
        %v7204 = vsel %vm1645, %v7176, -inf
        %7205 = vmax.xlane.f32.xlu0 %v7204
        %v7206 = vpop.xlane.xlu0 %7205
        %v7207 = vsel %vm1645, %v7177, -inf
        %7208 = vmax.xlane.f32.xlu0 %v7207
        %v7209 = vpop.xlane.xlu0 %7208
        %v7210 = vsel %vm1645, %v7178, -inf
        %7211 = vmax.xlane.f32.xlu0 %v7210
        %v7212 = vpop.xlane.xlu0 %7211
        %v7213 = vsel %vm1645, %v7179, -inf
        %7214 = vmax.xlane.f32.xlu0 %v7213
        %v7215 = vpop.xlane.xlu0 %7214
        %v7216 = vsel %vm1645, %v7180, -inf
        %7217 = vmax.xlane.f32.xlu0 %v7216
        %v7218 = vpop.xlane.xlu0 %7217
        %v7219 = vsel %vm1645, %v7181, -inf
        %7220 = vmax.xlane.f32.xlu0 %v7219
        %v7221 = vpop.xlane.xlu0 %7220
        %v7222 = vsel %vm1645, %v7182, -inf
        %7223 = vmax.xlane.f32.xlu0 %v7222
        %v7224 = vpop.xlane.xlu0 %7223
        %v7225 = vsel %vm1645, %v7183, -inf
        %7226 = vmax.xlane.f32.xlu0 %v7225
        %v7227 = vpop.xlane.xlu0 %7226
        %v7228 = vsel %vm1645, %v7184, -inf
        %7229 = vmax.xlane.f32.xlu0 %v7228
        %v7230 = vpop.xlane.xlu0 %7229
        %v7231 = vsel %vm1645, %v7185, -inf
        %7232 = vmax.xlane.f32.xlu0 %v7231
        %v7233 = vpop.xlane.xlu0 %7232
        %v7234 = vsub.f32 %v7170, %v7188
        %v7235 = vsub.f32 %v7171, %v7191
        %v7236 = vsub.f32 %v7172, %v7194
        %v7237 = vsub.f32 %v7173, %v7197
        %v7238 = vsub.f32 %v7174, %v7200
        %v7239 = vsub.f32 %v7175, %v7203
        %v7240 = vsub.f32 %v7176, %v7206
        %v7241 = vsub.f32 %v7177, %v7209
        %v7242 = vsub.f32 %v7178, %v7212
        %v7243 = vsub.f32 %v7179, %v7215
        %v7244 = vsub.f32 %v7180, %v7218
        %v7245 = vsub.f32 %v7181, %v7221
        %v7246 = vsub.f32 %v7182, %v7224
        %v7247 = vsub.f32 %v7183, %v7227
        %v7248 = vsub.f32 %v7184, %v7230
        %v7249 = vsub.f32 %v7185, %v7233
        %v7250 = vmul.f32 %v7234, 1.442695
        %v7251 = vpow.pop %v7250
        %v7252 = vmul.f32 %v7235, 1.442695
        %v7253 = vpow.pop %v7252
        %v7254 = vmul.f32 %v7236, 1.442695
        %v7255 = vpow.pop %v7254
        %v7256 = vmul.f32 %v7237, 1.442695
        %v7257 = vpow.pop %v7256
        %v7258 = vmul.f32 %v7238, 1.442695
        %v7259 = vpow.pop %v7258
        %v7260 = vmul.f32 %v7239, 1.442695
        %v7261 = vpow.pop %v7260
        %v7262 = vmul.f32 %v7240, 1.442695
        %v7263 = vpow.pop %v7262
        %v7264 = vmul.f32 %v7241, 1.442695
        %v7265 = vpow.pop %v7264
        %v7266 = vmul.f32 %v7242, 1.442695
        %v7267 = vpow.pop %v7266
        %v7268 = vmul.f32 %v7243, 1.442695
        %v7269 = vpow.pop %v7268
        %v7270 = vmul.f32 %v7244, 1.442695
        %v7271 = vpow.pop %v7270
        %v7272 = vmul.f32 %v7245, 1.442695
        %v7273 = vpow.pop %v7272
        %v7274 = vmul.f32 %v7246, 1.442695
        %v7275 = vpow.pop %v7274
        %v7276 = vmul.f32 %v7247, 1.442695
        %v7277 = vpow.pop %v7276
        %v7278 = vmul.f32 %v7248, 1.442695
        %v7279 = vpow.pop %v7278
        %v7280 = vmul.f32 %v7249, 1.442695
        %v7281 = vpow.pop %v7280
        %v7282 = vsel %vm1645, %v7251, 0.0
        %7283 = vadd.xlane.f32.xlu0 %v7282
        %v7284 = vpop.xlane.xlu0 %7283
        %v7285 = vsel %vm1645, %v7253, 0.0
        %7286 = vadd.xlane.f32.xlu0 %v7285
        %v7287 = vpop.xlane.xlu0 %7286
        %v7288 = vsel %vm1645, %v7255, 0.0
        %7289 = vadd.xlane.f32.xlu0 %v7288
        %v7290 = vpop.xlane.xlu0 %7289
        %v7291 = vsel %vm1645, %v7257, 0.0
        %7292 = vadd.xlane.f32.xlu0 %v7291
        %v7293 = vpop.xlane.xlu0 %7292
        %v7294 = vsel %vm1645, %v7259, 0.0
        %7295 = vadd.xlane.f32.xlu0 %v7294
        %v7296 = vpop.xlane.xlu0 %7295
        %v7297 = vsel %vm1645, %v7261, 0.0
        %7298 = vadd.xlane.f32.xlu0 %v7297
        %v7299 = vpop.xlane.xlu0 %7298
        %v7300 = vsel %vm1645, %v7263, 0.0
        %7301 = vadd.xlane.f32.xlu0 %v7300
        %v7302 = vpop.xlane.xlu0 %7301
        %v7303 = vsel %vm1645, %v7265, 0.0
        %7304 = vadd.xlane.f32.xlu0 %v7303
        %v7305 = vpop.xlane.xlu0 %7304
        %v7306 = vsel %vm1645, %v7267, 0.0
        %7307 = vadd.xlane.f32.xlu0 %v7306
        %v7308 = vpop.xlane.xlu0 %7307
        %v7309 = vsel %vm1645, %v7269, 0.0
        %7310 = vadd.xlane.f32.xlu0 %v7309
        %v7311 = vpop.xlane.xlu0 %7310
        %v7312 = vsel %vm1645, %v7271, 0.0
        %7313 = vadd.xlane.f32.xlu0 %v7312
        %v7314 = vpop.xlane.xlu0 %7313
        %v7315 = vsel %vm1645, %v7273, 0.0
        %7316 = vadd.xlane.f32.xlu0 %v7315
        %v7317 = vpop.xlane.xlu0 %7316
        %v7318 = vsel %vm1645, %v7275, 0.0
        %7319 = vadd.xlane.f32.xlu0 %v7318
        %v7320 = vpop.xlane.xlu0 %7319
        %v7321 = vsel %vm1645, %v7277, 0.0
        %7322 = vadd.xlane.f32.xlu0 %v7321
        %v7323 = vpop.xlane.xlu0 %7322
        %v7324 = vsel %vm1645, %v7279, 0.0
        %7325 = vadd.xlane.f32.xlu0 %v7324
        %v7326 = vpop.xlane.xlu0 %7325
        %v7327 = vsel %vm1645, %v7281, 0.0
        %7328 = vadd.xlane.f32.xlu0 %v7327
        %v7329 = vpop.xlane.xlu0 %7328
        %v7330 = vrcp.pop %v7284
        %v7331 = vrcp.pop %v7287
        %v7332 = vrcp.pop %v7290
        %v7333 = vrcp.pop %v7293
        %v7334 = vrcp.pop %v7296
        %v7335 = vrcp.pop %v7299
        %v7336 = vrcp.pop %v7302
        %v7337 = vrcp.pop %v7305
        %v7338 = vrcp.pop %v7308
        %v7339 = vrcp.pop %v7311
        %v7340 = vrcp.pop %v7314
        %v7341 = vrcp.pop %v7317
        %v7342 = vrcp.pop %v7320
        %v7343 = vrcp.pop %v7323
        %v7344 = vrcp.pop %v7326
        %v7345 = vrcp.pop %v7329
        %v7346 = vmul.f32 %v7251, %v7330
        %v7347 = vmul.f32 %v7253, %v7331
        %v7348 = vmul.f32 %v7255, %v7332
        %v7349 = vmul.f32 %v7257, %v7333
        %v7350 = vmul.f32 %v7259, %v7334
        %v7351 = vmul.f32 %v7261, %v7335
        %v7352 = vmul.f32 %v7263, %v7336
        %v7353 = vmul.f32 %v7265, %v7337
        %v7354 = vmul.f32 %v7267, %v7338
        %v7355 = vmul.f32 %v7269, %v7339
        %v7356 = vmul.f32 %v7271, %v7340
        %v7357 = vmul.f32 %v7273, %v7341
        %v7358 = vmul.f32 %v7275, %v7342
        %v7359 = vmul.f32 %v7277, %v7343
        %v7360 = vmul.f32 %v7279, %v7344
        %v7361 = vmul.f32 %v7281, %v7345
        %s7362 = scalar_lea.vmem %s262, 24
        %7363 = vst.msk [vmem:[%s7362] sm:$0xff] %vm1645, %v7346
        %7364 = vst.msk [vmem:[%s7362 + $0x20] sm:$0xff] %vm1645, %v7347
        %7365 = vst.msk [vmem:[%s7362 + $0x40] sm:$0xff] %vm1645, %v7348
        %7366 = vst.msk [vmem:[%s7362 + $0x60] sm:$0xff] %vm1645, %v7349
        %7367 = vst.msk [vmem:[%s7362 + $0x80] sm:$0xff] %vm1645, %v7350
        %7368 = vst.msk [vmem:[%s7362 + $0xa0] sm:$0xff] %vm1645, %v7351
        %7369 = vst.msk [vmem:[%s7362 + $0xc0] sm:$0xff] %vm1645, %v7352
        %7370 = vst.msk [vmem:[%s7362 + $0xe0] sm:$0xff] %vm1645, %v7353
        %7371 = vst.msk [vmem:[%s7362 + $0x100] sm:$0xff] %vm1645, %v7354
        %7372 = vst.msk [vmem:[%s7362 + $0x120] sm:$0xff] %vm1645, %v7355
        %7373 = vst.msk [vmem:[%s7362 + $0x140] sm:$0xff] %vm1645, %v7356
        %7374 = vst.msk [vmem:[%s7362 + $0x160] sm:$0xff] %vm1645, %v7357
        %7375 = vst.msk [vmem:[%s7362 + $0x180] sm:$0xff] %vm1645, %v7358
        %7376 = vst.msk [vmem:[%s7362 + $0x1a0] sm:$0xff] %vm1645, %v7359
        %7377 = vst.msk [vmem:[%s7362 + $0x1c0] sm:$0xff] %vm1645, %v7360
        %7378 = vst.msk [vmem:[%s7362 + $0x1e0] sm:$0xff] %vm1645, %v7361
        %v7379 = vpack.c.bf16 %v7346, %v7346
        %v7380 = vpack.c.bf16 %v7347, %v7347
        %v7381 = vpack.c.bf16 %v7348, %v7348
        %v7382 = vpack.c.bf16 %v7349, %v7349
        %v7383 = vpack.c.bf16 %v7350, %v7350
        %v7384 = vpack.c.bf16 %v7351, %v7351
        %v7385 = vpack.c.bf16 %v7352, %v7352
        %v7386 = vpack.c.bf16 %v7353, %v7353
        %v7387 = vpack.c.bf16 %v7354, %v7354
        %v7388 = vpack.c.bf16 %v7355, %v7355
        %v7389 = vpack.c.bf16 %v7356, %v7356
        %v7390 = vpack.c.bf16 %v7357, %v7357
        %v7391 = vpack.c.bf16 %v7358, %v7358
        %v7392 = vpack.c.bf16 %v7359, %v7359
        %v7393 = vpack.c.bf16 %v7360, %v7360
        %v7394 = vpack.c.bf16 %v7361, %v7361
        %7396 = vrot.lane.b32.xlu0 %v4577, 64
        %v7397 = vpop.permute.xlu0 %7396
        %v7399 = vsel %vm1645, %v7379, 0
        %v7402 = vsel %vm1857, %v7397, 0
        %7404 = vmatprep.subr.bf16.mxu0 0
        %7405 = vmatpush1.bf16.msra.mxu0 %v7402
        %7406 = vmatprep.subr.bf16.mxu0 0
        %7407 = vmatpush1.bf16.msra.mxu0 0
        %7408 = vmatprep.subr.bf16.mxu0 0
        %7409 = vmatpush1.bf16.msra.mxu0 0
        %7410 = vmatprep.subr.bf16.mxu0 0
        %7411 = vmatpush1.bf16.msra.mxu0 0
        %7412 = vmatprep.subr.bf16.mxu0 0
        %7413 = vmatpush1.bf16.msra.mxu0 0
        %7414 = vmatprep.subr.bf16.mxu0 0
        %7415 = vmatpush1.bf16.msra.mxu0 0
        %7416 = vmatprep.subr.bf16.mxu0 0
        %7417 = vmatpush1.bf16.msra.mxu0 0
        %7418 = vmatprep.subr.bf16.mxu0 0
        %7419 = vmatpush1.bf16.msra.mxu0 0
        %7420 = vmatprep.subr.bf16.mxu0 0
        %7421 = vmatpush1.bf16.msra.mxu0 0
        %7422 = vmatprep.subr.bf16.mxu0 0
        %7423 = vmatpush1.bf16.msra.mxu0 0
        %7424 = vmatprep.subr.bf16.mxu0 0
        %7425 = vmatpush1.bf16.msra.mxu0 0
        %7426 = vmatprep.subr.bf16.mxu0 0
        %7427 = vmatpush1.bf16.msra.mxu0 0
        %7428 = vmatprep.subr.bf16.mxu0 0
        %7429 = vmatpush1.bf16.msra.mxu0 0
        %7430 = vmatprep.subr.bf16.mxu0 0
        %7431 = vmatpush1.bf16.msra.mxu0 0
        %7432 = vmatprep.subr.bf16.mxu0 0
        %7433 = vmatpush1.bf16.msra.mxu0 0
        %7434 = vmatprep.subr.bf16.mxu0 0
        %7435 = vmatpush1.bf16.msra.mxu0 0
        %7436 = vmatprep.mubr.bf16.mxu0 0
        %7437 = vmatmul.mubr.bf16.gmra.mrb[0].mxu0 %v7399
        %v7438 = vpop.f32.mrb[0].mxu0
        %v7439 = vadd.f32 0.0, %v7438
        %v7440 = vpop.f32.mrb[0].mxu0
        %v7441 = vpop.f32.mrb[0].mxu0
        %v7442 = vpop.f32.mrb[0].mxu0
        %7443 = vdwg.mxu0
        %7445 = vrot.lane.b32.xlu0 %v4578, 64
        %v7446 = vpop.permute.xlu0 %7445
        %v7448 = vsel %vm1645, %v7380, 0
        %v7451 = vsel %vm1857, %v7446, 0
        %7453 = vmatprep.subr.bf16.mxu0 0
        %7454 = vmatpush1.bf16.msra.mxu0 %v7451
        %7455 = vmatprep.subr.bf16.mxu0 0
        %7456 = vmatpush1.bf16.msra.mxu0 0
        %7457 = vmatprep.subr.bf16.mxu0 0
        %7458 = vmatpush1.bf16.msra.mxu0 0
        %7459 = vmatprep.subr.bf16.mxu0 0
        %7460 = vmatpush1.bf16.msra.mxu0 0
        %7461 = vmatprep.subr.bf16.mxu0 0
        %7462 = vmatpush1.bf16.msra.mxu0 0
        %7463 = vmatprep.subr.bf16.mxu0 0
        %7464 = vmatpush1.bf16.msra.mxu0 0
        %7465 = vmatprep.subr.bf16.mxu0 0
        %7466 = vmatpush1.bf16.msra.mxu0 0
        %7467 = vmatprep.subr.bf16.mxu0 0
        %7468 = vmatpush1.bf16.msra.mxu0 0
        %7469 = vmatprep.subr.bf16.mxu0 0
        %7470 = vmatpush1.bf16.msra.mxu0 0
        %7471 = vmatprep.subr.bf16.mxu0 0
        %7472 = vmatpush1.bf16.msra.mxu0 0
        %7473 = vmatprep.subr.bf16.mxu0 0
        %7474 = vmatpush1.bf16.msra.mxu0 0
        %7475 = vmatprep.subr.bf16.mxu0 0
        %7476 = vmatpush1.bf16.msra.mxu0 0
        %7477 = vmatprep.subr.bf16.mxu0 0
        %7478 = vmatpush1.bf16.msra.mxu0 0
        %7479 = vmatprep.subr.bf16.mxu0 0
        %7480 = vmatpush1.bf16.msra.mxu0 0
        %7481 = vmatprep.subr.bf16.mxu0 0
        %7482 = vmatpush1.bf16.msra.mxu0 0
        %7483 = vmatprep.subr.bf16.mxu0 0
        %7484 = vmatpush1.bf16.msra.mxu0 0
        %7485 = vmatprep.mubr.bf16.mxu0 0
        %7486 = vmatmul.mubr.bf16.gmra.mrb[0].mxu0 %v7448
        %v7487 = vpop.f32.mrb[0].mxu0
        %v7488 = vadd.f32 0.0, %v7487
        %v7489 = vpop.f32.mrb[0].mxu0
        %v7490 = vpop.f32.mrb[0].mxu0
        %v7491 = vpop.f32.mrb[0].mxu0
        %7492 = vdwg.mxu0
        %7494 = vrot.lane.b32.xlu0 %v4579, 64
        %v7495 = vpop.permute.xlu0 %7494
        %v7497 = vsel %vm1645, %v7381, 0
        %v7500 = vsel %vm1857, %v7495, 0
        %7502 = vmatprep.subr.bf16.mxu0 0
        %7503 = vmatpush1.bf16.msra.mxu0 %v7500
        %7504 = vmatprep.subr.bf16.mxu0 0
        %7505 = vmatpush1.bf16.msra.mxu0 0
        %7506 = vmatprep.subr.bf16.mxu0 0
        %7507 = vmatpush1.bf16.msra.mxu0 0
        %7508 = vmatprep.subr.bf16.mxu0 0
        %7509 = vmatpush1.bf16.msra.mxu0 0
        %7510 = vmatprep.subr.bf16.mxu0 0
        %7511 = vmatpush1.bf16.msra.mxu0 0
        %7512 = vmatprep.subr.bf16.mxu0 0
        %7513 = vmatpush1.bf16.msra.mxu0 0
        %7514 = vmatprep.subr.bf16.mxu0 0
        %7515 = vmatpush1.bf16.msra.mxu0 0
        %7516 = vmatprep.subr.bf16.mxu0 0
        %7517 = vmatpush1.bf16.msra.mxu0 0
        %7518 = vmatprep.subr.bf16.mxu0 0
        %7519 = vmatpush1.bf16.msra.mxu0 0
        %7520 = vmatprep.subr.bf16.mxu0 0
        %7521 = vmatpush1.bf16.msra.mxu0 0
        %7522 = vmatprep.subr.bf16.mxu0 0
        %7523 = vmatpush1.bf16.msra.mxu0 0
        %7524 = vmatprep.subr.bf16.mxu0 0
        %7525 = vmatpush1.bf16.msra.mxu0 0
        %7526 = vmatprep.subr.bf16.mxu0 0
        %7527 = vmatpush1.bf16.msra.mxu0 0
        %7528 = vmatprep.subr.bf16.mxu0 0
        %7529 = vmatpush1.bf16.msra.mxu0 0
        %7530 = vmatprep.subr.bf16.mxu0 0
        %7531 = vmatpush1.bf16.msra.mxu0 0
        %7532 = vmatprep.subr.bf16.mxu0 0
        %7533 = vmatpush1.bf16.msra.mxu0 0
        %7534 = vmatprep.mubr.bf16.mxu0 0
        %7535 = vmatmul.mubr.bf16.gmra.mrb[0].mxu0 %v7497
        %v7536 = vpop.f32.mrb[0].mxu0
        %v7537 = vadd.f32 0.0, %v7536
        %v7538 = vpop.f32.mrb[0].mxu0
        %v7539 = vpop.f32.mrb[0].mxu0
        %v7540 = vpop.f32.mrb[0].mxu0
        %7541 = vdwg.mxu0
        %7543 = vrot.lane.b32.xlu0 %v4580, 64
        %v7544 = vpop.permute.xlu0 %7543
        %v7546 = vsel %vm1645, %v7382, 0
        %v7549 = vsel %vm1857, %v7544, 0
        %7551 = vmatprep.subr.bf16.mxu0 0
        %7552 = vmatpush1.bf16.msra.mxu0 %v7549
        %7553 = vmatprep.subr.bf16.mxu0 0
        %7554 = vmatpush1.bf16.msra.mxu0 0
        %7555 = vmatprep.subr.bf16.mxu0 0
        %7556 = vmatpush1.bf16.msra.mxu0 0
        %7557 = vmatprep.subr.bf16.mxu0 0
        %7558 = vmatpush1.bf16.msra.mxu0 0
        %7559 = vmatprep.subr.bf16.mxu0 0
        %7560 = vmatpush1.bf16.msra.mxu0 0
        %7561 = vmatprep.subr.bf16.mxu0 0
        %7562 = vmatpush1.bf16.msra.mxu0 0
        %7563 = vmatprep.subr.bf16.mxu0 0
        %7564 = vmatpush1.bf16.msra.mxu0 0
        %7565 = vmatprep.subr.bf16.mxu0 0
        %7566 = vmatpush1.bf16.msra.mxu0 0
        %7567 = vmatprep.subr.bf16.mxu0 0
        %7568 = vmatpush1.bf16.msra.mxu0 0
        %7569 = vmatprep.subr.bf16.mxu0 0
        %7570 = vmatpush1.bf16.msra.mxu0 0
        %7571 = vmatprep.subr.bf16.mxu0 0
        %7572 = vmatpush1.bf16.msra.mxu0 0
        %7573 = vmatprep.subr.bf16.mxu0 0
        %7574 = vmatpush1.bf16.msra.mxu0 0
        %7575 = vmatprep.subr.bf16.mxu0 0
        %7576 = vmatpush1.bf16.msra.mxu0 0
        %7577 = vmatprep.subr.bf16.mxu0 0
        %7578 = vmatpush1.bf16.msra.mxu0 0
        %7579 = vmatprep.subr.bf16.mxu0 0
        %7580 = vmatpush1.bf16.msra.mxu0 0
        %7581 = vmatprep.subr.bf16.mxu0 0
        %7582 = vmatpush1.bf16.msra.mxu0 0
        %7583 = vmatprep.mubr.bf16.mxu0 0
        %7584 = vmatmul.mubr.bf16.gmra.mrb[0].mxu0 %v7546
        %v7585 = vpop.f32.mrb[0].mxu0
        %v7586 = vadd.f32 0.0, %v7585
        %v7587 = vpop.f32.mrb[0].mxu0
        %v7588 = vpop.f32.mrb[0].mxu0
        %v7589 = vpop.f32.mrb[0].mxu0
        %7590 = vdwg.mxu0
        %7592 = vrot.lane.b32.xlu0 %v4581, 64
        %v7593 = vpop.permute.xlu0 %7592
        %v7595 = vsel %vm1645, %v7383, 0
        %v7598 = vsel %vm1857, %v7593, 0
        %7600 = vmatprep.subr.bf16.mxu0 0
        %7601 = vmatpush1.bf16.msra.mxu0 %v7598
        %7602 = vmatprep.subr.bf16.mxu0 0
        %7603 = vmatpush1.bf16.msra.mxu0 0
        %7604 = vmatprep.subr.bf16.mxu0 0
        %7605 = vmatpush1.bf16.msra.mxu0 0
        %7606 = vmatprep.subr.bf16.mxu0 0
        %7607 = vmatpush1.bf16.msra.mxu0 0
        %7608 = vmatprep.subr.bf16.mxu0 0
        %7609 = vmatpush1.bf16.msra.mxu0 0
        %7610 = vmatprep.subr.bf16.mxu0 0
        %7611 = vmatpush1.bf16.msra.mxu0 0
        %7612 = vmatprep.subr.bf16.mxu0 0
        %7613 = vmatpush1.bf16.msra.mxu0 0
        %7614 = vmatprep.subr.bf16.mxu0 0
        %7615 = vmatpush1.bf16.msra.mxu0 0
        %7616 = vmatprep.subr.bf16.mxu0 0
        %7617 = vmatpush1.bf16.msra.mxu0 0
        %7618 = vmatprep.subr.bf16.mxu0 0
        %7619 = vmatpush1.bf16.msra.mxu0 0
        %7620 = vmatprep.subr.bf16.mxu0 0
        %7621 = vmatpush1.bf16.msra.mxu0 0
        %7622 = vmatprep.subr.bf16.mxu0 0
        %7623 = vmatpush1.bf16.msra.mxu0 0
        %7624 = vmatprep.subr.bf16.mxu0 0
        %7625 = vmatpush1.bf16.msra.mxu0 0
        %7626 = vmatprep.subr.bf16.mxu0 0
        %7627 = vmatpush1.bf16.msra.mxu0 0
        %7628 = vmatprep.subr.bf16.mxu0 0
        %7629 = vmatpush1.bf16.msra.mxu0 0
        %7630 = vmatprep.subr.bf16.mxu0 0
        %7631 = vmatpush1.bf16.msra.mxu0 0
        %7632 = vmatprep.mubr.bf16.mxu0 0
        %7633 = vmatmul.mubr.bf16.gmra.mrb[0].mxu0 %v7595
        %v7634 = vpop.f32.mrb[0].mxu0
        %v7635 = vadd.f32 0.0, %v7634
        %v7636 = vpop.f32.mrb[0].mxu0
        %v7637 = vpop.f32.mrb[0].mxu0
        %v7638 = vpop.f32.mrb[0].mxu0
        %7639 = vdwg.mxu0
        %7641 = vrot.lane.b32.xlu0 %v4582, 64
        %v7642 = vpop.permute.xlu0 %7641
        %v7644 = vsel %vm1645, %v7384, 0
        %v7647 = vsel %vm1857, %v7642, 0
        %7649 = vmatprep.subr.bf16.mxu0 0
        %7650 = vmatpush1.bf16.msra.mxu0 %v7647
        %7651 = vmatprep.subr.bf16.mxu0 0
        %7652 = vmatpush1.bf16.msra.mxu0 0
        %7653 = vmatprep.subr.bf16.mxu0 0
        %7654 = vmatpush1.bf16.msra.mxu0 0
        %7655 = vmatprep.subr.bf16.mxu0 0
        %7656 = vmatpush1.bf16.msra.mxu0 0
        %7657 = vmatprep.subr.bf16.mxu0 0
        %7658 = vmatpush1.bf16.msra.mxu0 0
        %7659 = vmatprep.subr.bf16.mxu0 0
        %7660 = vmatpush1.bf16.msra.mxu0 0
        %7661 = vmatprep.subr.bf16.mxu0 0
        %7662 = vmatpush1.bf16.msra.mxu0 0
        %7663 = vmatprep.subr.bf16.mxu0 0
        %7664 = vmatpush1.bf16.msra.mxu0 0
        %7665 = vmatprep.subr.bf16.mxu0 0
        %7666 = vmatpush1.bf16.msra.mxu0 0
        %7667 = vmatprep.subr.bf16.mxu0 0
        %7668 = vmatpush1.bf16.msra.mxu0 0
        %7669 = vmatprep.subr.bf16.mxu0 0
        %7670 = vmatpush1.bf16.msra.mxu0 0
        %7671 = vmatprep.subr.bf16.mxu0 0
        %7672 = vmatpush1.bf16.msra.mxu0 0
        %7673 = vmatprep.subr.bf16.mxu0 0
        %7674 = vmatpush1.bf16.msra.mxu0 0
        %7675 = vmatprep.subr.bf16.mxu0 0
        %7676 = vmatpush1.bf16.msra.mxu0 0
        %7677 = vmatprep.subr.bf16.mxu0 0
        %7678 = vmatpush1.bf16.msra.mxu0 0
        %7679 = vmatprep.subr.bf16.mxu0 0
        %7680 = vmatpush1.bf16.msra.mxu0 0
        %7681 = vmatprep.mubr.bf16.mxu0 0
        %7682 = vmatmul.mubr.bf16.gmra.mrb[0].mxu0 %v7644
        %v7683 = vpop.f32.mrb[0].mxu0
        %v7684 = vadd.f32 0.0, %v7683
        %v7685 = vpop.f32.mrb[0].mxu0
        %v7686 = vpop.f32.mrb[0].mxu0
        %v7687 = vpop.f32.mrb[0].mxu0
        %7688 = vdwg.mxu0
        %7690 = vrot.lane.b32.xlu0 %v4583, 64
        %v7691 = vpop.permute.xlu0 %7690
        %v7693 = vsel %vm1645, %v7385, 0
        %v7696 = vsel %vm1857, %v7691, 0
        %7698 = vmatprep.subr.bf16.mxu0 0
        %7699 = vmatpush1.bf16.msra.mxu0 %v7696
        %7700 = vmatprep.subr.bf16.mxu0 0
        %7701 = vmatpush1.bf16.msra.mxu0 0
        %7702 = vmatprep.subr.bf16.mxu0 0
        %7703 = vmatpush1.bf16.msra.mxu0 0
        %7704 = vmatprep.subr.bf16.mxu0 0
        %7705 = vmatpush1.bf16.msra.mxu0 0
        %7706 = vmatprep.subr.bf16.mxu0 0
        %7707 = vmatpush1.bf16.msra.mxu0 0
        %7708 = vmatprep.subr.bf16.mxu0 0
        %7709 = vmatpush1.bf16.msra.mxu0 0
        %7710 = vmatprep.subr.bf16.mxu0 0
        %7711 = vmatpush1.bf16.msra.mxu0 0
        %7712 = vmatprep.subr.bf16.mxu0 0
        %7713 = vmatpush1.bf16.msra.mxu0 0
        %7714 = vmatprep.subr.bf16.mxu0 0
        %7715 = vmatpush1.bf16.msra.mxu0 0
        %7716 = vmatprep.subr.bf16.mxu0 0
        %7717 = vmatpush1.bf16.msra.mxu0 0
        %7718 = vmatprep.subr.bf16.mxu0 0
        %7719 = vmatpush1.bf16.msra.mxu0 0
        %7720 = vmatprep.subr.bf16.mxu0 0
        %7721 = vmatpush1.bf16.msra.mxu0 0
        %7722 = vmatprep.subr.bf16.mxu0 0
        %7723 = vmatpush1.bf16.msra.mxu0 0
        %7724 = vmatprep.subr.bf16.mxu0 0
        %7725 = vmatpush1.bf16.msra.mxu0 0
        %7726 = vmatprep.subr.bf16.mxu0 0
        %7727 = vmatpush1.bf16.msra.mxu0 0
        %7728 = vmatprep.subr.bf16.mxu0 0
        %7729 = vmatpush1.bf16.msra.mxu0 0
        %7730 = vmatprep.mubr.bf16.mxu0 0
        %7731 = vmatmul.mubr.bf16.gmra.mrb[0].mxu0 %v7693
        %v7732 = vpop.f32.mrb[0].mxu0
        %v7733 = vadd.f32 0.0, %v7732
        %v7734 = vpop.f32.mrb[0].mxu0
        %v7735 = vpop.f32.mrb[0].mxu0
        %v7736 = vpop.f32.mrb[0].mxu0
        %7737 = vdwg.mxu0
        %7739 = vrot.lane.b32.xlu0 %v4584, 64
        %v7740 = vpop.permute.xlu0 %7739
        %v7742 = vsel %vm1645, %v7386, 0
        %v7745 = vsel %vm1857, %v7740, 0
        %7747 = vmatprep.subr.bf16.mxu0 0
        %7748 = vmatpush1.bf16.msra.mxu0 %v7745
        %7749 = vmatprep.subr.bf16.mxu0 0
        %7750 = vmatpush1.bf16.msra.mxu0 0
        %7751 = vmatprep.subr.bf16.mxu0 0
        %7752 = vmatpush1.bf16.msra.mxu0 0
        %7753 = vmatprep.subr.bf16.mxu0 0
        %7754 = vmatpush1.bf16.msra.mxu0 0
        %7755 = vmatprep.subr.bf16.mxu0 0
        %7756 = vmatpush1.bf16.msra.mxu0 0
        %7757 = vmatprep.subr.bf16.mxu0 0
        %7758 = vmatpush1.bf16.msra.mxu0 0
        %7759 = vmatprep.subr.bf16.mxu0 0
        %7760 = vmatpush1.bf16.msra.mxu0 0
        %7761 = vmatprep.subr.bf16.mxu0 0
        %7762 = vmatpush1.bf16.msra.mxu0 0
        %7763 = vmatprep.subr.bf16.mxu0 0
        %7764 = vmatpush1.bf16.msra.mxu0 0
        %7765 = vmatprep.subr.bf16.mxu0 0
        %7766 = vmatpush1.bf16.msra.mxu0 0
        %7767 = vmatprep.subr.bf16.mxu0 0
        %7768 = vmatpush1.bf16.msra.mxu0 0
        %7769 = vmatprep.subr.bf16.mxu0 0
        %7770 = vmatpush1.bf16.msra.mxu0 0
        %7771 = vmatprep.subr.bf16.mxu0 0
        %7772 = vmatpush1.bf16.msra.mxu0 0
        %7773 = vmatprep.subr.bf16.mxu0 0
        %7774 = vmatpush1.bf16.msra.mxu0 0
        %7775 = vmatprep.subr.bf16.mxu0 0
        %7776 = vmatpush1.bf16.msra.mxu0 0
        %7777 = vmatprep.subr.bf16.mxu0 0
        %7778 = vmatpush1.bf16.msra.mxu0 0
        %7779 = vmatprep.mubr.bf16.mxu0 0
        %7780 = vmatmul.mubr.bf16.gmra.mrb[0].mxu0 %v7742
        %v7781 = vpop.f32.mrb[0].mxu0
        %v7782 = vadd.f32 0.0, %v7781
        %v7783 = vpop.f32.mrb[0].mxu0
        %v7784 = vpop.f32.mrb[0].mxu0
        %v7785 = vpop.f32.mrb[0].mxu0
        %7786 = vdwg.mxu0
        %7788 = vrot.lane.b32.xlu0 %v4585, 64
        %v7789 = vpop.permute.xlu0 %7788
        %v7791 = vsel %vm1645, %v7387, 0
        %v7794 = vsel %vm1857, %v7789, 0
        %7796 = vmatprep.subr.bf16.mxu0 0
        %7797 = vmatpush1.bf16.msra.mxu0 %v7794
        %7798 = vmatprep.subr.bf16.mxu0 0
        %7799 = vmatpush1.bf16.msra.mxu0 0
        %7800 = vmatprep.subr.bf16.mxu0 0
        %7801 = vmatpush1.bf16.msra.mxu0 0
        %7802 = vmatprep.subr.bf16.mxu0 0
        %7803 = vmatpush1.bf16.msra.mxu0 0
        %7804 = vmatprep.subr.bf16.mxu0 0
        %7805 = vmatpush1.bf16.msra.mxu0 0
        %7806 = vmatprep.subr.bf16.mxu0 0
        %7807 = vmatpush1.bf16.msra.mxu0 0
        %7808 = vmatprep.subr.bf16.mxu0 0
        %7809 = vmatpush1.bf16.msra.mxu0 0
        %7810 = vmatprep.subr.bf16.mxu0 0
        %7811 = vmatpush1.bf16.msra.mxu0 0
        %7812 = vmatprep.subr.bf16.mxu0 0
        %7813 = vmatpush1.bf16.msra.mxu0 0
        %7814 = vmatprep.subr.bf16.mxu0 0
        %7815 = vmatpush1.bf16.msra.mxu0 0
        %7816 = vmatprep.subr.bf16.mxu0 0
        %7817 = vmatpush1.bf16.msra.mxu0 0
        %7818 = vmatprep.subr.bf16.mxu0 0
        %7819 = vmatpush1.bf16.msra.mxu0 0
        %7820 = vmatprep.subr.bf16.mxu0 0
        %7821 = vmatpush1.bf16.msra.mxu0 0
        %7822 = vmatprep.subr.bf16.mxu0 0
        %7823 = vmatpush1.bf16.msra.mxu0 0
        %7824 = vmatprep.subr.bf16.mxu0 0
        %7825 = vmatpush1.bf16.msra.mxu0 0
        %7826 = vmatprep.subr.bf16.mxu0 0
        %7827 = vmatpush1.bf16.msra.mxu0 0
        %7828 = vmatprep.mubr.bf16.mxu0 0
        %7829 = vmatmul.mubr.bf16.gmra.mrb[0].mxu0 %v7791
        %v7830 = vpop.f32.mrb[0].mxu0
        %v7831 = vadd.f32 0.0, %v7830
        %v7832 = vpop.f32.mrb[0].mxu0
        %v7833 = vpop.f32.mrb[0].mxu0
        %v7834 = vpop.f32.mrb[0].mxu0
        %7835 = vdwg.mxu0
        %7837 = vrot.lane.b32.xlu0 %v4586, 64
        %v7838 = vpop.permute.xlu0 %7837
        %v7840 = vsel %vm1645, %v7388, 0
        %v7843 = vsel %vm1857, %v7838, 0
        %7845 = vmatprep.subr.bf16.mxu0 0
        %7846 = vmatpush1.bf16.msra.mxu0 %v7843
        %7847 = vmatprep.subr.bf16.mxu0 0
        %7848 = vmatpush1.bf16.msra.mxu0 0
        %7849 = vmatprep.subr.bf16.mxu0 0
        %7850 = vmatpush1.bf16.msra.mxu0 0
        %7851 = vmatprep.subr.bf16.mxu0 0
        %7852 = vmatpush1.bf16.msra.mxu0 0
        %7853 = vmatprep.subr.bf16.mxu0 0
        %7854 = vmatpush1.bf16.msra.mxu0 0
        %7855 = vmatprep.subr.bf16.mxu0 0
        %7856 = vmatpush1.bf16.msra.mxu0 0
        %7857 = vmatprep.subr.bf16.mxu0 0
        %7858 = vmatpush1.bf16.msra.mxu0 0
        %7859 = vmatprep.subr.bf16.mxu0 0
        %7860 = vmatpush1.bf16.msra.mxu0 0
        %7861 = vmatprep.subr.bf16.mxu0 0
        %7862 = vmatpush1.bf16.msra.mxu0 0
        %7863 = vmatprep.subr.bf16.mxu0 0
        %7864 = vmatpush1.bf16.msra.mxu0 0
        %7865 = vmatprep.subr.bf16.mxu0 0
        %7866 = vmatpush1.bf16.msra.mxu0 0
        %7867 = vmatprep.subr.bf16.mxu0 0
        %7868 = vmatpush1.bf16.msra.mxu0 0
        %7869 = vmatprep.subr.bf16.mxu0 0
        %7870 = vmatpush1.bf16.msra.mxu0 0
        %7871 = vmatprep.subr.bf16.mxu0 0
        %7872 = vmatpush1.bf16.msra.mxu0 0
        %7873 = vmatprep.subr.bf16.mxu0 0
        %7874 = vmatpush1.bf16.msra.mxu0 0
        %7875 = vmatprep.subr.bf16.mxu0 0
        %7876 = vmatpush1.bf16.msra.mxu0 0
        %7877 = vmatprep.mubr.bf16.mxu0 0
        %7878 = vmatmul.mubr.bf16.gmra.mrb[0].mxu0 %v7840
        %v7879 = vpop.f32.mrb[0].mxu0
        %v7880 = vadd.f32 0.0, %v7879
        %v7881 = vpop.f32.mrb[0].mxu0
        %v7882 = vpop.f32.mrb[0].mxu0
        %v7883 = vpop.f32.mrb[0].mxu0
        %7884 = vdwg.mxu0
        %7886 = vrot.lane.b32.xlu0 %v4587, 64
        %v7887 = vpop.permute.xlu0 %7886
        %v7889 = vsel %vm1645, %v7389, 0
        %v7892 = vsel %vm1857, %v7887, 0
        %7894 = vmatprep.subr.bf16.mxu0 0
        %7895 = vmatpush1.bf16.msra.mxu0 %v7892
        %7896 = vmatprep.subr.bf16.mxu0 0
        %7897 = vmatpush1.bf16.msra.mxu0 0
        %7898 = vmatprep.subr.bf16.mxu0 0
        %7899 = vmatpush1.bf16.msra.mxu0 0
        %7900 = vmatprep.subr.bf16.mxu0 0
        %7901 = vmatpush1.bf16.msra.mxu0 0
        %7902 = vmatprep.subr.bf16.mxu0 0
        %7903 = vmatpush1.bf16.msra.mxu0 0
        %7904 = vmatprep.subr.bf16.mxu0 0
        %7905 = vmatpush1.bf16.msra.mxu0 0
        %7906 = vmatprep.subr.bf16.mxu0 0
        %7907 = vmatpush1.bf16.msra.mxu0 0
        %7908 = vmatprep.subr.bf16.mxu0 0
        %7909 = vmatpush1.bf16.msra.mxu0 0
        %7910 = vmatprep.subr.bf16.mxu0 0
        %7911 = vmatpush1.bf16.msra.mxu0 0
        %7912 = vmatprep.subr.bf16.mxu0 0
        %7913 = vmatpush1.bf16.msra.mxu0 0
        %7914 = vmatprep.subr.bf16.mxu0 0
        %7915 = vmatpush1.bf16.msra.mxu0 0
        %7916 = vmatprep.subr.bf16.mxu0 0
        %7917 = vmatpush1.bf16.msra.mxu0 0
        %7918 = vmatprep.subr.bf16.mxu0 0
        %7919 = vmatpush1.bf16.msra.mxu0 0
        %7920 = vmatprep.subr.bf16.mxu0 0
        %7921 = vmatpush1.bf16.msra.mxu0 0
        %7922 = vmatprep.subr.bf16.mxu0 0
        %7923 = vmatpush1.bf16.msra.mxu0 0
        %7924 = vmatprep.subr.bf16.mxu0 0
        %7925 = vmatpush1.bf16.msra.mxu0 0
        %7926 = vmatprep.mubr.bf16.mxu0 0
        %7927 = vmatmul.mubr.bf16.gmra.mrb[0].mxu0 %v7889
        %v7928 = vpop.f32.mrb[0].mxu0
        %v7929 = vadd.f32 0.0, %v7928
        %v7930 = vpop.f32.mrb[0].mxu0
        %v7931 = vpop.f32.mrb[0].mxu0
        %v7932 = vpop.f32.mrb[0].mxu0
        %7933 = vdwg.mxu0
        %7935 = vrot.lane.b32.xlu0 %v4588, 64
        %v7936 = vpop.permute.xlu0 %7935
        %v7938 = vsel %vm1645, %v7390, 0
        %v7941 = vsel %vm1857, %v7936, 0
        %7943 = vmatprep.subr.bf16.mxu0 0
        %7944 = vmatpush1.bf16.msra.mxu0 %v7941
        %7945 = vmatprep.subr.bf16.mxu0 0
        %7946 = vmatpush1.bf16.msra.mxu0 0
        %7947 = vmatprep.subr.bf16.mxu0 0
        %7948 = vmatpush1.bf16.msra.mxu0 0
        %7949 = vmatprep.subr.bf16.mxu0 0
        %7950 = vmatpush1.bf16.msra.mxu0 0
        %7951 = vmatprep.subr.bf16.mxu0 0
        %7952 = vmatpush1.bf16.msra.mxu0 0
        %7953 = vmatprep.subr.bf16.mxu0 0
        %7954 = vmatpush1.bf16.msra.mxu0 0
        %7955 = vmatprep.subr.bf16.mxu0 0
        %7956 = vmatpush1.bf16.msra.mxu0 0
        %7957 = vmatprep.subr.bf16.mxu0 0
        %7958 = vmatpush1.bf16.msra.mxu0 0
        %7959 = vmatprep.subr.bf16.mxu0 0
        %7960 = vmatpush1.bf16.msra.mxu0 0
        %7961 = vmatprep.subr.bf16.mxu0 0
        %7962 = vmatpush1.bf16.msra.mxu0 0
        %7963 = vmatprep.subr.bf16.mxu0 0
        %7964 = vmatpush1.bf16.msra.mxu0 0
        %7965 = vmatprep.subr.bf16.mxu0 0
        %7966 = vmatpush1.bf16.msra.mxu0 0
        %7967 = vmatprep.subr.bf16.mxu0 0
        %7968 = vmatpush1.bf16.msra.mxu0 0
        %7969 = vmatprep.subr.bf16.mxu0 0
        %7970 = vmatpush1.bf16.msra.mxu0 0
        %7971 = vmatprep.subr.bf16.mxu0 0
        %7972 = vmatpush1.bf16.msra.mxu0 0
        %7973 = vmatprep.subr.bf16.mxu0 0
        %7974 = vmatpush1.bf16.msra.mxu0 0
        %7975 = vmatprep.mubr.bf16.mxu0 0
        %7976 = vmatmul.mubr.bf16.gmra.mrb[0].mxu0 %v7938
        %v7977 = vpop.f32.mrb[0].mxu0
        %v7978 = vadd.f32 0.0, %v7977
        %v7979 = vpop.f32.mrb[0].mxu0
        %v7980 = vpop.f32.mrb[0].mxu0
        %v7981 = vpop.f32.mrb[0].mxu0
        %7982 = vdwg.mxu0
        %7984 = vrot.lane.b32.xlu0 %v4589, 64
        %v7985 = vpop.permute.xlu0 %7984
        %v7987 = vsel %vm1645, %v7391, 0
        %v7990 = vsel %vm1857, %v7985, 0
        %7992 = vmatprep.subr.bf16.mxu0 0
        %7993 = vmatpush1.bf16.msra.mxu0 %v7990
        %7994 = vmatprep.subr.bf16.mxu0 0
        %7995 = vmatpush1.bf16.msra.mxu0 0
        %7996 = vmatprep.subr.bf16.mxu0 0
        %7997 = vmatpush1.bf16.msra.mxu0 0
        %7998 = vmatprep.subr.bf16.mxu0 0
        %7999 = vmatpush1.bf16.msra.mxu0 0
        %8000 = vmatprep.subr.bf16.mxu0 0
        %8001 = vmatpush1.bf16.msra.mxu0 0
        %8002 = vmatprep.subr.bf16.mxu0 0
        %8003 = vmatpush1.bf16.msra.mxu0 0
        %8004 = vmatprep.subr.bf16.mxu0 0
        %8005 = vmatpush1.bf16.msra.mxu0 0
        %8006 = vmatprep.subr.bf16.mxu0 0
        %8007 = vmatpush1.bf16.msra.mxu0 0
        %8008 = vmatprep.subr.bf16.mxu0 0
        %8009 = vmatpush1.bf16.msra.mxu0 0
        %8010 = vmatprep.subr.bf16.mxu0 0
        %8011 = vmatpush1.bf16.msra.mxu0 0
        %8012 = vmatprep.subr.bf16.mxu0 0
        %8013 = vmatpush1.bf16.msra.mxu0 0
        %8014 = vmatprep.subr.bf16.mxu0 0
        %8015 = vmatpush1.bf16.msra.mxu0 0
        %8016 = vmatprep.subr.bf16.mxu0 0
        %8017 = vmatpush1.bf16.msra.mxu0 0
        %8018 = vmatprep.subr.bf16.mxu0 0
        %8019 = vmatpush1.bf16.msra.mxu0 0
        %8020 = vmatprep.subr.bf16.mxu0 0
        %8021 = vmatpush1.bf16.msra.mxu0 0
        %8022 = vmatprep.subr.bf16.mxu0 0
        %8023 = vmatpush1.bf16.msra.mxu0 0
        %8024 = vmatprep.mubr.bf16.mxu0 0
        %8025 = vmatmul.mubr.bf16.gmra.mrb[0].mxu0 %v7987
        %v8026 = vpop.f32.mrb[0].mxu0
        %v8027 = vadd.f32 0.0, %v8026
        %v8028 = vpop.f32.mrb[0].mxu0
        %v8029 = vpop.f32.mrb[0].mxu0
        %v8030 = vpop.f32.mrb[0].mxu0
        %8031 = vdwg.mxu0
        %8033 = vrot.lane.b32.xlu0 %v4590, 64
        %v8034 = vpop.permute.xlu0 %8033
        %v8036 = vsel %vm1645, %v7392, 0
        %v8039 = vsel %vm1857, %v8034, 0
        %8041 = vmatprep.subr.bf16.mxu0 0
        %8042 = vmatpush1.bf16.msra.mxu0 %v8039
        %8043 = vmatprep.subr.bf16.mxu0 0
        %8044 = vmatpush1.bf16.msra.mxu0 0
        %8045 = vmatprep.subr.bf16.mxu0 0
        %8046 = vmatpush1.bf16.msra.mxu0 0
        %8047 = vmatprep.subr.bf16.mxu0 0
        %8048 = vmatpush1.bf16.msra.mxu0 0
        %8049 = vmatprep.subr.bf16.mxu0 0
        %8050 = vmatpush1.bf16.msra.mxu0 0
        %8051 = vmatprep.subr.bf16.mxu0 0
        %8052 = vmatpush1.bf16.msra.mxu0 0
        %8053 = vmatprep.subr.bf16.mxu0 0
        %8054 = vmatpush1.bf16.msra.mxu0 0
        %8055 = vmatprep.subr.bf16.mxu0 0
        %8056 = vmatpush1.bf16.msra.mxu0 0
        %8057 = vmatprep.subr.bf16.mxu0 0
        %8058 = vmatpush1.bf16.msra.mxu0 0
        %8059 = vmatprep.subr.bf16.mxu0 0
        %8060 = vmatpush1.bf16.msra.mxu0 0
        %8061 = vmatprep.subr.bf16.mxu0 0
        %8062 = vmatpush1.bf16.msra.mxu0 0
        %8063 = vmatprep.subr.bf16.mxu0 0
        %8064 = vmatpush1.bf16.msra.mxu0 0
        %8065 = vmatprep.subr.bf16.mxu0 0
        %8066 = vmatpush1.bf16.msra.mxu0 0
        %8067 = vmatprep.subr.bf16.mxu0 0
        %8068 = vmatpush1.bf16.msra.mxu0 0
        %8069 = vmatprep.subr.bf16.mxu0 0
        %8070 = vmatpush1.bf16.msra.mxu0 0
        %8071 = vmatprep.subr.bf16.mxu0 0
        %8072 = vmatpush1.bf16.msra.mxu0 0
        %8073 = vmatprep.mubr.bf16.mxu0 0
        %8074 = vmatmul.mubr.bf16.gmra.mrb[0].mxu0 %v8036
        %v8075 = vpop.f32.mrb[0].mxu0
        %v8076 = vadd.f32 0.0, %v8075
        %v8077 = vpop.f32.mrb[0].mxu0
        %v8078 = vpop.f32.mrb[0].mxu0
        %v8079 = vpop.f32.mrb[0].mxu0
        %8080 = vdwg.mxu0
        %8082 = vrot.lane.b32.xlu0 %v4591, 64
        %v8083 = vpop.permute.xlu0 %8082
        %v8085 = vsel %vm1645, %v7393, 0
        %v8088 = vsel %vm1857, %v8083, 0
        %8090 = vmatprep.subr.bf16.mxu0 0
        %8091 = vmatpush1.bf16.msra.mxu0 %v8088
        %8092 = vmatprep.subr.bf16.mxu0 0
        %8093 = vmatpush1.bf16.msra.mxu0 0
        %8094 = vmatprep.subr.bf16.mxu0 0
        %8095 = vmatpush1.bf16.msra.mxu0 0
        %8096 = vmatprep.subr.bf16.mxu0 0
        %8097 = vmatpush1.bf16.msra.mxu0 0
        %8098 = vmatprep.subr.bf16.mxu0 0
        %8099 = vmatpush1.bf16.msra.mxu0 0
        %8100 = vmatprep.subr.bf16.mxu0 0
        %8101 = vmatpush1.bf16.msra.mxu0 0
        %8102 = vmatprep.subr.bf16.mxu0 0
        %8103 = vmatpush1.bf16.msra.mxu0 0
        %8104 = vmatprep.subr.bf16.mxu0 0
        %8105 = vmatpush1.bf16.msra.mxu0 0
        %8106 = vmatprep.subr.bf16.mxu0 0
        %8107 = vmatpush1.bf16.msra.mxu0 0
        %8108 = vmatprep.subr.bf16.mxu0 0
        %8109 = vmatpush1.bf16.msra.mxu0 0
        %8110 = vmatprep.subr.bf16.mxu0 0
        %8111 = vmatpush1.bf16.msra.mxu0 0
        %8112 = vmatprep.subr.bf16.mxu0 0
        %8113 = vmatpush1.bf16.msra.mxu0 0
        %8114 = vmatprep.subr.bf16.mxu0 0
        %8115 = vmatpush1.bf16.msra.mxu0 0
        %8116 = vmatprep.subr.bf16.mxu0 0
        %8117 = vmatpush1.bf16.msra.mxu0 0
        %8118 = vmatprep.subr.bf16.mxu0 0
        %8119 = vmatpush1.bf16.msra.mxu0 0
        %8120 = vmatprep.subr.bf16.mxu0 0
        %8121 = vmatpush1.bf16.msra.mxu0 0
        %8122 = vmatprep.mubr.bf16.mxu0 0
        %8123 = vmatmul.mubr.bf16.gmra.mrb[0].mxu0 %v8085
        %v8124 = vpop.f32.mrb[0].mxu0
        %v8125 = vadd.f32 0.0, %v8124
        %v8126 = vpop.f32.mrb[0].mxu0
        %v8127 = vpop.f32.mrb[0].mxu0
        %v8128 = vpop.f32.mrb[0].mxu0
        %8129 = vdwg.mxu0
        %8131 = vrot.lane.b32.xlu0 %v4592, 64
        %v8132 = vpop.permute.xlu0 %8131
        %v8134 = vsel %vm1645, %v7394, 0
        %v8137 = vsel %vm1857, %v8132, 0
        %8139 = vmatprep.subr.bf16.mxu0 0
        %8140 = vmatpush1.bf16.msra.mxu0 %v8137
        %8141 = vmatprep.subr.bf16.mxu0 0
        %8142 = vmatpush1.bf16.msra.mxu0 0
        %8143 = vmatprep.subr.bf16.mxu0 0
        %8144 = vmatpush1.bf16.msra.mxu0 0
        %8145 = vmatprep.subr.bf16.mxu0 0
        %8146 = vmatpush1.bf16.msra.mxu0 0
        %8147 = vmatprep.subr.bf16.mxu0 0
        %8148 = vmatpush1.bf16.msra.mxu0 0
        %8149 = vmatprep.subr.bf16.mxu0 0
        %8150 = vmatpush1.bf16.msra.mxu0 0
        %8151 = vmatprep.subr.bf16.mxu0 0
        %8152 = vmatpush1.bf16.msra.mxu0 0
        %8153 = vmatprep.subr.bf16.mxu0 0
        %8154 = vmatpush1.bf16.msra.mxu0 0
        %8155 = vmatprep.subr.bf16.mxu0 0
        %8156 = vmatpush1.bf16.msra.mxu0 0
        %8157 = vmatprep.subr.bf16.mxu0 0
        %8158 = vmatpush1.bf16.msra.mxu0 0
        %8159 = vmatprep.subr.bf16.mxu0 0
        %8160 = vmatpush1.bf16.msra.mxu0 0
        %8161 = vmatprep.subr.bf16.mxu0 0
        %8162 = vmatpush1.bf16.msra.mxu0 0
        %8163 = vmatprep.subr.bf16.mxu0 0
        %8164 = vmatpush1.bf16.msra.mxu0 0
        %8165 = vmatprep.subr.bf16.mxu0 0
        %8166 = vmatpush1.bf16.msra.mxu0 0
        %8167 = vmatprep.subr.bf16.mxu0 0
        %8168 = vmatpush1.bf16.msra.mxu0 0
        %8169 = vmatprep.subr.bf16.mxu0 0
        %8170 = vmatpush1.bf16.msra.mxu0 0
        %8171 = vmatprep.mubr.bf16.mxu0 0
        %8172 = vmatmul.mubr.bf16.gmra.mrb[0].mxu0 %v8134
        %v8173 = vpop.f32.mrb[0].mxu0
        %v8174 = vadd.f32 0.0, %v8173
        %v8175 = vpop.f32.mrb[0].mxu0
        %v8176 = vpop.f32.mrb[0].mxu0
        %v8177 = vpop.f32.mrb[0].mxu0
        %8178 = vdwg.mxu0
        %8195 = vrot.lane.b32.xlu0 %v7439, 64
        %v8196 = vpop.permute.xlu0 %8195
        %8197 = vrot.lane.b32.xlu0 %v7488, 64
        %v8198 = vpop.permute.xlu0 %8197
        %8199 = vrot.lane.b32.xlu0 %v7537, 64
        %v8200 = vpop.permute.xlu0 %8199
        %8201 = vrot.lane.b32.xlu0 %v7586, 64
        %v8202 = vpop.permute.xlu0 %8201
        %8203 = vrot.lane.b32.xlu0 %v7635, 64
        %v8204 = vpop.permute.xlu0 %8203
        %8205 = vrot.lane.b32.xlu0 %v7684, 64
        %v8206 = vpop.permute.xlu0 %8205
        %8207 = vrot.lane.b32.xlu0 %v7733, 64
        %v8208 = vpop.permute.xlu0 %8207
        %8209 = vrot.lane.b32.xlu0 %v7782, 64
        %v8210 = vpop.permute.xlu0 %8209
        %8211 = vrot.lane.b32.xlu0 %v7831, 64
        %v8212 = vpop.permute.xlu0 %8211
        %8213 = vrot.lane.b32.xlu0 %v7880, 64
        %v8214 = vpop.permute.xlu0 %8213
        %8215 = vrot.lane.b32.xlu0 %v7929, 64
        %v8216 = vpop.permute.xlu0 %8215
        %8217 = vrot.lane.b32.xlu0 %v7978, 64
        %v8218 = vpop.permute.xlu0 %8217
        %8219 = vrot.lane.b32.xlu0 %v8027, 64
        %v8220 = vpop.permute.xlu0 %8219
        %8221 = vrot.lane.b32.xlu0 %v8076, 64
        %v8222 = vpop.permute.xlu0 %8221
        %8223 = vrot.lane.b32.xlu0 %v8125, 64
        %v8224 = vpop.permute.xlu0 %8223
        %8225 = vrot.lane.b32.xlu0 %v8174, 64
        %v8226 = vpop.permute.xlu0 %8225
        %8243 = vst.msk [vmem:[#allocation2 + $0x8] sm:$0xff] %vm4528, %v8196
        %8244 = vst.msk [vmem:[#allocation2 + $0x18] sm:$0xff] %vm4528, %v8198
        %8245 = vst.msk [vmem:[#allocation2 + $0x28] sm:$0xff] %vm4528, %v8200
        %8246 = vst.msk [vmem:[#allocation2 + $0x38] sm:$0xff] %vm4528, %v8202
        %8247 = vst.msk [vmem:[#allocation2 + $0x48] sm:$0xff] %vm4528, %v8204
        %8248 = vst.msk [vmem:[#allocation2 + $0x58] sm:$0xff] %vm4528, %v8206
        %8249 = vst.msk [vmem:[#allocation2 + $0x68] sm:$0xff] %vm4528, %v8208
        %8250 = vst.msk [vmem:[#allocation2 + $0x78] sm:$0xff] %vm4528, %v8210
        %8251 = vst.msk [vmem:[#allocation2 + $0x88] sm:$0xff] %vm4528, %v8212
        %8252 = vst.msk [vmem:[#allocation2 + $0x98] sm:$0xff] %vm4528, %v8214
        %8253 = vst.msk [vmem:[#allocation2 + $0xa8] sm:$0xff] %vm4528, %v8216
        %8254 = vst.msk [vmem:[#allocation2 + $0xb8] sm:$0xff] %vm4528, %v8218
        %8255 = vst.msk [vmem:[#allocation2 + $0xc8] sm:$0xff] %vm4528, %v8220
        %8256 = vst.msk [vmem:[#allocation2 + $0xd8] sm:$0xff] %vm4528, %v8222
        %8257 = vst.msk [vmem:[#allocation2 + $0xe8] sm:$0xff] %vm4528, %v8224
        %8258 = vst.msk [vmem:[#allocation2 + $0xf8] sm:$0xff] %vm4528, %v8226
        %v8259 = vld [vmem:[#allocation2] sm:$0xff]
        %v8260 = vld [vmem:[#allocation2 + $0x8] sm:$0xff]
        %v8261 = vld [vmem:[#allocation2 + $0x10] sm:$0xff]
        %v8262 = vld [vmem:[#allocation2 + $0x18] sm:$0xff]
        %v8263 = vld [vmem:[#allocation2 + $0x20] sm:$0xff]
        %v8264 = vld [vmem:[#allocation2 + $0x28] sm:$0xff]
        %v8265 = vld [vmem:[#allocation2 + $0x30] sm:$0xff]
        %v8266 = vld [vmem:[#allocation2 + $0x38] sm:$0xff]
        %v8267 = vld [vmem:[#allocation2 + $0x40] sm:$0xff]
        %v8268 = vld [vmem:[#allocation2 + $0x48] sm:$0xff]
        %v8269 = vld [vmem:[#allocation2 + $0x50] sm:$0xff]
        %v8270 = vld [vmem:[#allocation2 + $0x58] sm:$0xff]
        %v8271 = vld [vmem:[#allocation2 + $0x60] sm:$0xff]
        %v8272 = vld [vmem:[#allocation2 + $0x68] sm:$0xff]
        %v8273 = vld [vmem:[#allocation2 + $0x70] sm:$0xff]
        %v8274 = vld [vmem:[#allocation2 + $0x78] sm:$0xff]
        %v8275 = vld [vmem:[#allocation2 + $0x80] sm:$0xff]
        %v8276 = vld [vmem:[#allocation2 + $0x88] sm:$0xff]
        %v8277 = vld [vmem:[#allocation2 + $0x90] sm:$0xff]
        %v8278 = vld [vmem:[#allocation2 + $0x98] sm:$0xff]
        %v8279 = vld [vmem:[#allocation2 + $0xa0] sm:$0xff]
        %v8280 = vld [vmem:[#allocation2 + $0xa8] sm:$0xff]
        %v8281 = vld [vmem:[#allocation2 + $0xb0] sm:$0xff]
        %v8282 = vld [vmem:[#allocation2 + $0xb8] sm:$0xff]
        %v8283 = vld [vmem:[#allocation2 + $0xc0] sm:$0xff]
        %v8284 = vld [vmem:[#allocation2 + $0xc8] sm:$0xff]
        %v8285 = vld [vmem:[#allocation2 + $0xd0] sm:$0xff]
        %v8286 = vld [vmem:[#allocation2 + $0xd8] sm:$0xff]
        %v8287 = vld [vmem:[#allocation2 + $0xe0] sm:$0xff]
        %v8288 = vld [vmem:[#allocation2 + $0xe8] sm:$0xff]
        %v8289 = vld [vmem:[#allocation2 + $0xf0] sm:$0xff]
        %v8290 = vld [vmem:[#allocation2 + $0xf8] sm:$0xff]
        %v8291 = vpack.c.bf16 %v8261, %v8259
        %v8292 = vpack.c.bf16 %v8262, %v8260
        %v8293 = vpack.c.bf16 %v8265, %v8263
        %v8294 = vpack.c.bf16 %v8266, %v8264
        %v8295 = vpack.c.bf16 %v8269, %v8267
        %v8296 = vpack.c.bf16 %v8270, %v8268
        %v8297 = vpack.c.bf16 %v8273, %v8271
        %v8298 = vpack.c.bf16 %v8274, %v8272
        %v8299 = vpack.c.bf16 %v8277, %v8275
        %v8300 = vpack.c.bf16 %v8278, %v8276
        %v8301 = vpack.c.bf16 %v8281, %v8279
        %v8302 = vpack.c.bf16 %v8282, %v8280
        %v8303 = vpack.c.bf16 %v8285, %v8283
        %v8304 = vpack.c.bf16 %v8286, %v8284
        %v8305 = vpack.c.bf16 %v8289, %v8287
        %v8306 = vpack.c.bf16 %v8290, %v8288
        %v8307 = vld [vmem:[%s3] sm:$0xf]
        %v8308 = vld [vmem:[%s3 + $0x4] sm:$0xf]
        %v8309 = vld [vmem:[%s3 + $0x8] sm:$0xf]
        %v8310 = vld [vmem:[%s3 + $0xc] sm:$0xf]
        %v8311 = vld [vmem:[%s3 + $0x10] sm:$0xf]
        %v8312 = vld [vmem:[%s3 + $0x14] sm:$0xf]
        %v8313 = vld [vmem:[%s3 + $0x18] sm:$0xf]
        %v8314 = vld [vmem:[%s3 + $0x1c] sm:$0xf]
        %v8315 = vld [vmem:[%s3 + $0x20] sm:$0xf]
        %v8316 = vld [vmem:[%s3 + $0x24] sm:$0xf]
        %v8317 = vld [vmem:[%s3 + $0x28] sm:$0xf]
        %v8318 = vld [vmem:[%s3 + $0x2c] sm:$0xf]
        %v8319 = vld [vmem:[%s3 + $0x30] sm:$0xf]
        %v8320 = vld [vmem:[%s3 + $0x34] sm:$0xf]
        %v8321 = vld [vmem:[%s3 + $0x38] sm:$0xf]
        %v8322 = vld [vmem:[%s3 + $0x3c] sm:$0xf]
        %v8323 = vld [vmem:[%s3 + $0x40] sm:$0xf]
        %v8324 = vld [vmem:[%s3 + $0x44] sm:$0xf]
        %v8325 = vld [vmem:[%s3 + $0x48] sm:$0xf]
        %v8326 = vld [vmem:[%s3 + $0x4c] sm:$0xf]
        %v8327 = vld [vmem:[%s3 + $0x50] sm:$0xf]
        %v8328 = vld [vmem:[%s3 + $0x54] sm:$0xf]
        %v8329 = vld [vmem:[%s3 + $0x58] sm:$0xf]
        %v8330 = vld [vmem:[%s3 + $0x5c] sm:$0xf]
        %v8331 = vld [vmem:[%s3 + $0x60] sm:$0xf]
        %v8332 = vld [vmem:[%s3 + $0x64] sm:$0xf]
        %v8333 = vld [vmem:[%s3 + $0x68] sm:$0xf]
        %v8334 = vld [vmem:[%s3 + $0x6c] sm:$0xf]
        %v8335 = vld [vmem:[%s3 + $0x70] sm:$0xf]
        %v8336 = vld [vmem:[%s3 + $0x74] sm:$0xf]
        %v8337 = vld [vmem:[%s3 + $0x78] sm:$0xf]
        %v8338 = vld [vmem:[%s3 + $0x7c] sm:$0xf]
        %v8371 = vunpack.c.l.b16 %v8307
        %v8372 = vunpack.c.l.b16 %v8308
        %v8373 = vunpack.c.l.b16 %v8309
        %v8374 = vunpack.c.l.b16 %v8310
        %v8375 = vunpack.c.l.b16 %v8311
        %v8376 = vunpack.c.l.b16 %v8312
        %v8377 = vunpack.c.l.b16 %v8313
        %v8378 = vunpack.c.l.b16 %v8314
        %v8379 = vunpack.c.l.b16 %v8315
        %v8380 = vunpack.c.l.b16 %v8316
        %v8381 = vunpack.c.l.b16 %v8317
        %v8382 = vunpack.c.l.b16 %v8318
        %v8383 = vunpack.c.l.b16 %v8319
        %v8384 = vunpack.c.l.b16 %v8320
        %v8385 = vunpack.c.l.b16 %v8321
        %v8386 = vunpack.c.l.b16 %v8322
        %v8387 = vunpack.c.l.b16 %v8323
        %v8388 = vunpack.c.l.b16 %v8324
        %v8389 = vunpack.c.l.b16 %v8325
        %v8390 = vunpack.c.l.b16 %v8326
        %v8391 = vunpack.c.l.b16 %v8327
        %v8392 = vunpack.c.l.b16 %v8328
        %v8393 = vunpack.c.l.b16 %v8329
        %v8394 = vunpack.c.l.b16 %v8330
        %v8395 = vunpack.c.l.b16 %v8331
        %v8396 = vunpack.c.l.b16 %v8332
        %v8397 = vunpack.c.l.b16 %v8333
        %v8398 = vunpack.c.l.b16 %v8334
        %v8399 = vunpack.c.l.b16 %v8335
        %v8400 = vunpack.c.l.b16 %v8336
        %v8401 = vunpack.c.l.b16 %v8337
        %v8402 = vunpack.c.l.b16 %v8338
        %v8403 = vpack.c.b16 %v8372, %v8371
        %v8404 = vpack.c.b16 %v8374, %v8373
        %v8405 = vpack.c.b16 %v8376, %v8375
        %v8406 = vpack.c.b16 %v8378, %v8377
        %v8407 = vpack.c.b16 %v8380, %v8379
        %v8408 = vpack.c.b16 %v8382, %v8381
        %v8409 = vpack.c.b16 %v8384, %v8383
        %v8410 = vpack.c.b16 %v8386, %v8385
        %v8411 = vpack.c.b16 %v8388, %v8387
        %v8412 = vpack.c.b16 %v8390, %v8389
        %v8413 = vpack.c.b16 %v8392, %v8391
        %v8414 = vpack.c.b16 %v8394, %v8393
        %v8415 = vpack.c.b16 %v8396, %v8395
        %v8416 = vpack.c.b16 %v8398, %v8397
        %v8417 = vpack.c.b16 %v8400, %v8399
        %v8418 = vpack.c.b16 %v8402, %v8401
        %8435 = vmatprep.subr.bf16.mxu0 0
        %8436 = vmatpush1.bf16.msra.mxu0 %v8403
        %8437 = vmatprep.subr.bf16.mxu0 0
        %8438 = vmatpush1.bf16.msra.mxu0 %v8404
        %8439 = vmatprep.subr.bf16.mxu0 0
        %8440 = vmatpush1.bf16.msra.mxu0 %v8405
        %8441 = vmatprep.subr.bf16.mxu0 0
        %8442 = vmatpush1.bf16.msra.mxu0 %v8406
        %8443 = vmatprep.subr.bf16.mxu0 0
        %8444 = vmatpush1.bf16.msra.mxu0 %v8407
        %8445 = vmatprep.subr.bf16.mxu0 0
        %8446 = vmatpush1.bf16.msra.mxu0 %v8408
        %8447 = vmatprep.subr.bf16.mxu0 0
        %8448 = vmatpush1.bf16.msra.mxu0 %v8409
        %8449 = vmatprep.subr.bf16.mxu0 0
        %8450 = vmatpush1.bf16.msra.mxu0 %v8410
        %8451 = vmatprep.subr.bf16.mxu0 0
        %8452 = vmatpush1.bf16.msra.mxu0 %v8411
        %8453 = vmatprep.subr.bf16.mxu0 0
        %8454 = vmatpush1.bf16.msra.mxu0 %v8412
        %8455 = vmatprep.subr.bf16.mxu0 0
        %8456 = vmatpush1.bf16.msra.mxu0 %v8413
        %8457 = vmatprep.subr.bf16.mxu0 0
        %8458 = vmatpush1.bf16.msra.mxu0 %v8414
        %8459 = vmatprep.subr.bf16.mxu0 0
        %8460 = vmatpush1.bf16.msra.mxu0 %v8415
        %8461 = vmatprep.subr.bf16.mxu0 0
        %8462 = vmatpush1.bf16.msra.mxu0 %v8416
        %8463 = vmatprep.subr.bf16.mxu0 0
        %8464 = vmatpush1.bf16.msra.mxu0 %v8417
        %8465 = vmatprep.subr.bf16.mxu0 0
        %8466 = vmatpush1.bf16.msra.mxu0 %v8418
        %8467 = vmatprep.mubr.bf16.mxu0 %v8292
        %8468 = vmatmul.mubr.bf16.gmra.mrb[0].mxu0 %v8291
        %v8469 = vpop.f32.mrb[0].mxu0
        %v8470 = vadd.f32 %v265, %v8469
        %v8471 = vpop.f32.mrb[0].mxu0
        %v8472 = vpop.f32.mrb[0].mxu0
        %v8473 = vadd.f32 %v266, %v8472
        %v8474 = vpop.f32.mrb[0].mxu0
        %8475 = vmatprep.mubr.bf16.mxu0 %v8294
        %8476 = vmatmul.mubr.bf16.gmra.mrb[0].mxu0 %v8293
        %v8477 = vpop.f32.mrb[0].mxu0
        %v8478 = vadd.f32 %v267, %v8477
        %v8479 = vpop.f32.mrb[0].mxu0
        %v8480 = vpop.f32.mrb[0].mxu0
        %v8481 = vadd.f32 %v268, %v8480
        %v8482 = vpop.f32.mrb[0].mxu0
        %8483 = vmatprep.mubr.bf16.mxu0 %v8296
        %8484 = vmatmul.mubr.bf16.gmra.mrb[0].mxu0 %v8295
        %v8485 = vpop.f32.mrb[0].mxu0
        %v8486 = vadd.f32 %v269, %v8485
        %v8487 = vpop.f32.mrb[0].mxu0
        %v8488 = vpop.f32.mrb[0].mxu0
        %v8489 = vadd.f32 %v270, %v8488
        %v8490 = vpop.f32.mrb[0].mxu0
        %8491 = vmatprep.mubr.bf16.mxu0 %v8298
        %8492 = vmatmul.mubr.bf16.gmra.mrb[0].mxu0 %v8297
        %v8493 = vpop.f32.mrb[0].mxu0
        %v8494 = vadd.f32 %v271, %v8493
        %v8495 = vpop.f32.mrb[0].mxu0
        %v8496 = vpop.f32.mrb[0].mxu0
        %v8497 = vadd.f32 %v272, %v8496
        %v8498 = vpop.f32.mrb[0].mxu0
        %8499 = vmatprep.mubr.bf16.mxu0 %v8300
        %8500 = vmatmul.mubr.bf16.gmra.mrb[0].mxu0 %v8299
        %v8501 = vpop.f32.mrb[0].mxu0
        %v8502 = vadd.f32 %v273, %v8501
        %v8503 = vpop.f32.mrb[0].mxu0
        %v8504 = vpop.f32.mrb[0].mxu0
        %v8505 = vadd.f32 %v274, %v8504
        %v8506 = vpop.f32.mrb[0].mxu0
        %8507 = vmatprep.mubr.bf16.mxu0 %v8302
        %8508 = vmatmul.mubr.bf16.gmra.mrb[0].mxu0 %v8301
        %v8509 = vpop.f32.mrb[0].mxu0
        %v8510 = vadd.f32 %v275, %v8509
        %v8511 = vpop.f32.mrb[0].mxu0
        %v8512 = vpop.f32.mrb[0].mxu0
        %v8513 = vadd.f32 %v276, %v8512
        %v8514 = vpop.f32.mrb[0].mxu0
        %8515 = vmatprep.mubr.bf16.mxu0 %v8304
        %8516 = vmatmul.mubr.bf16.gmra.mrb[0].mxu0 %v8303
        %v8517 = vpop.f32.mrb[0].mxu0
        %v8518 = vadd.f32 %v277, %v8517
        %v8519 = vpop.f32.mrb[0].mxu0
        %v8520 = vpop.f32.mrb[0].mxu0
        %v8521 = vadd.f32 %v278, %v8520
        %v8522 = vpop.f32.mrb[0].mxu0
        %8523 = vmatprep.mubr.bf16.mxu0 %v8306
        %8524 = vmatmul.mubr.bf16.gmra.mrb[0].mxu0 %v8305
        %v8525 = vpop.f32.mrb[0].mxu0
        %v8526 = vadd.f32 %v279, %v8525
        %v8527 = vpop.f32.mrb[0].mxu0
        %v8528 = vpop.f32.mrb[0].mxu0
        %v8529 = vadd.f32 %v280, %v8528
        %v8530 = vpop.f32.mrb[0].mxu0
        %8531 = vdwg.mxu0
        %v8532 = vsel %vm433, %v8470, 0.0
        %8533 = vadd.xlane.f32.xlu0 %v8532
        %v8534 = vpop.xlane.xlu0 %8533
        %v8535 = vsel %vm433, %v8473, 0.0
        %8536 = vadd.xlane.f32.xlu0 %v8535
        %v8537 = vpop.xlane.xlu0 %8536
        %v8538 = vsel %vm433, %v8478, 0.0
        %8539 = vadd.xlane.f32.xlu0 %v8538
        %v8540 = vpop.xlane.xlu0 %8539
        %v8541 = vsel %vm433, %v8481, 0.0
        %8542 = vadd.xlane.f32.xlu0 %v8541
        %v8543 = vpop.xlane.xlu0 %8542
        %v8544 = vsel %vm433, %v8486, 0.0
        %8545 = vadd.xlane.f32.xlu0 %v8544
        %v8546 = vpop.xlane.xlu0 %8545
        %v8547 = vsel %vm433, %v8489, 0.0
        %8548 = vadd.xlane.f32.xlu0 %v8547
        %v8549 = vpop.xlane.xlu0 %8548
        %v8550 = vsel %vm433, %v8494, 0.0
        %8551 = vadd.xlane.f32.xlu0 %v8550
        %v8552 = vpop.xlane.xlu0 %8551
        %v8553 = vsel %vm433, %v8497, 0.0
        %8554 = vadd.xlane.f32.xlu0 %v8553
        %v8555 = vpop.xlane.xlu0 %8554
        %v8556 = vsel %vm433, %v8502, 0.0
        %8557 = vadd.xlane.f32.xlu0 %v8556
        %v8558 = vpop.xlane.xlu0 %8557
        %v8559 = vsel %vm433, %v8505, 0.0
        %8560 = vadd.xlane.f32.xlu0 %v8559
        %v8561 = vpop.xlane.xlu0 %8560
        %v8562 = vsel %vm433, %v8510, 0.0
        %8563 = vadd.xlane.f32.xlu0 %v8562
        %v8564 = vpop.xlane.xlu0 %8563
        %v8565 = vsel %vm433, %v8513, 0.0
        %8566 = vadd.xlane.f32.xlu0 %v8565
        %v8567 = vpop.xlane.xlu0 %8566
        %v8568 = vsel %vm433, %v8518, 0.0
        %8569 = vadd.xlane.f32.xlu0 %v8568
        %v8570 = vpop.xlane.xlu0 %8569
        %v8571 = vsel %vm433, %v8521, 0.0
        %8572 = vadd.xlane.f32.xlu0 %v8571
        %v8573 = vpop.xlane.xlu0 %8572
        %v8574 = vsel %vm433, %v8526, 0.0
        %8575 = vadd.xlane.f32.xlu0 %v8574
        %v8576 = vpop.xlane.xlu0 %8575
        %v8577 = vsel %vm433, %v8529, 0.0
        %8578 = vadd.xlane.f32.xlu0 %v8577
        %v8579 = vpop.xlane.xlu0 %8578
        %v8580 = vrcp.pop 64.0
        %v8581 = vmul.f32 %v8534, %v8580
        %v8582 = vmul.f32 %v8537, %v8580
        %v8583 = vmul.f32 %v8540, %v8580
        %v8584 = vmul.f32 %v8543, %v8580
        %v8585 = vmul.f32 %v8546, %v8580
        %v8586 = vmul.f32 %v8549, %v8580
        %v8587 = vmul.f32 %v8552, %v8580
        %v8588 = vmul.f32 %v8555, %v8580
        %v8589 = vmul.f32 %v8558, %v8580
        %v8590 = vmul.f32 %v8561, %v8580
        %v8591 = vmul.f32 %v8564, %v8580
        %v8592 = vmul.f32 %v8567, %v8580
        %v8593 = vmul.f32 %v8570, %v8580
        %v8594 = vmul.f32 %v8573, %v8580
        %v8595 = vmul.f32 %v8576, %v8580
        %v8596 = vmul.f32 %v8579, %v8580
        %v8597 = vsub.f32 %v8470, %v8581
        %v8598 = vsub.f32 %v8473, %v8582
        %v8599 = vsub.f32 %v8478, %v8583
        %v8600 = vsub.f32 %v8481, %v8584
        %v8601 = vsub.f32 %v8486, %v8585
        %v8602 = vsub.f32 %v8489, %v8586
        %v8603 = vsub.f32 %v8494, %v8587
        %v8604 = vsub.f32 %v8497, %v8588
        %v8605 = vsub.f32 %v8502, %v8589
        %v8606 = vsub.f32 %v8505, %v8590
        %v8607 = vsub.f32 %v8510, %v8591
        %v8608 = vsub.f32 %v8513, %v8592
        %v8609 = vsub.f32 %v8518, %v8593
        %v8610 = vsub.f32 %v8521, %v8594
        %v8611 = vsub.f32 %v8526, %v8595
        %v8612 = vsub.f32 %v8529, %v8596
        %v8613 = vmul.f32 %v8597, %v8597
        %v8614 = vmul.f32 %v8598, %v8598
        %v8615 = vmul.f32 %v8599, %v8599
        %v8616 = vmul.f32 %v8600, %v8600
        %v8617 = vmul.f32 %v8601, %v8601
        %v8618 = vmul.f32 %v8602, %v8602
        %v8619 = vmul.f32 %v8603, %v8603
        %v8620 = vmul.f32 %v8604, %v8604
        %v8621 = vmul.f32 %v8605, %v8605
        %v8622 = vmul.f32 %v8606, %v8606
        %v8623 = vmul.f32 %v8607, %v8607
        %v8624 = vmul.f32 %v8608, %v8608
        %v8625 = vmul.f32 %v8609, %v8609
        %v8626 = vmul.f32 %v8610, %v8610
        %v8627 = vmul.f32 %v8611, %v8611
        %v8628 = vmul.f32 %v8612, %v8612
        %v8629 = vsel %vm433, %v8613, 0.0
        %8630 = vadd.xlane.f32.xlu0 %v8629
        %v8631 = vpop.xlane.xlu0 %8630
        %v8632 = vsel %vm433, %v8614, 0.0
        %8633 = vadd.xlane.f32.xlu0 %v8632
        %v8634 = vpop.xlane.xlu0 %8633
        %v8635 = vsel %vm433, %v8615, 0.0
        %8636 = vadd.xlane.f32.xlu0 %v8635
        %v8637 = vpop.xlane.xlu0 %8636
        %v8638 = vsel %vm433, %v8616, 0.0
        %8639 = vadd.xlane.f32.xlu0 %v8638
        %v8640 = vpop.xlane.xlu0 %8639
        %v8641 = vsel %vm433, %v8617, 0.0
        %8642 = vadd.xlane.f32.xlu0 %v8641
        %v8643 = vpop.xlane.xlu0 %8642
        %v8644 = vsel %vm433, %v8618, 0.0
        %8645 = vadd.xlane.f32.xlu0 %v8644
        %v8646 = vpop.xlane.xlu0 %8645
        %v8647 = vsel %vm433, %v8619, 0.0
        %8648 = vadd.xlane.f32.xlu0 %v8647
        %v8649 = vpop.xlane.xlu0 %8648
        %v8650 = vsel %vm433, %v8620, 0.0
        %8651 = vadd.xlane.f32.xlu0 %v8650
        %v8652 = vpop.xlane.xlu0 %8651
        %v8653 = vsel %vm433, %v8621, 0.0
        %8654 = vadd.xlane.f32.xlu0 %v8653
        %v8655 = vpop.xlane.xlu0 %8654
        %v8656 = vsel %vm433, %v8622, 0.0
        %8657 = vadd.xlane.f32.xlu0 %v8656
        %v8658 = vpop.xlane.xlu0 %8657
        %v8659 = vsel %vm433, %v8623, 0.0
        %8660 = vadd.xlane.f32.xlu0 %v8659
        %v8661 = vpop.xlane.xlu0 %8660
        %v8662 = vsel %vm433, %v8624, 0.0
        %8663 = vadd.xlane.f32.xlu0 %v8662
        %v8664 = vpop.xlane.xlu0 %8663
        %v8665 = vsel %vm433, %v8625, 0.0
        %8666 = vadd.xlane.f32.xlu0 %v8665
        %v8667 = vpop.xlane.xlu0 %8666
        %v8668 = vsel %vm433, %v8626, 0.0
        %8669 = vadd.xlane.f32.xlu0 %v8668
        %v8670 = vpop.xlane.xlu0 %8669
        %v8671 = vsel %vm433, %v8627, 0.0
        %8672 = vadd.xlane.f32.xlu0 %v8671
        %v8673 = vpop.xlane.xlu0 %8672
        %v8674 = vsel %vm433, %v8628, 0.0
        %8675 = vadd.xlane.f32.xlu0 %v8674
        %v8676 = vpop.xlane.xlu0 %8675
        %v8677 = vmul.f32 %v8631, %v8580
        %v8678 = vmul.f32 %v8634, %v8580
        %v8679 = vmul.f32 %v8637, %v8580
        %v8680 = vmul.f32 %v8640, %v8580
        %v8681 = vmul.f32 %v8643, %v8580
        %v8682 = vmul.f32 %v8646, %v8580
        %v8683 = vmul.f32 %v8649, %v8580
        %v8684 = vmul.f32 %v8652, %v8580
        %v8685 = vmul.f32 %v8655, %v8580
        %v8686 = vmul.f32 %v8658, %v8580
        %v8687 = vmul.f32 %v8661, %v8580
        %v8688 = vmul.f32 %v8664, %v8580
        %v8689 = vmul.f32 %v8667, %v8580
        %v8690 = vmul.f32 %v8670, %v8580
        %v8691 = vmul.f32 %v8673, %v8580
        %v8692 = vmul.f32 %v8676, %v8580
        %v8693 = vadd.f32 %v8677, 1e-05
        %v8694 = vadd.f32 %v8678, 1e-05
        %v8695 = vadd.f32 %v8679, 1e-05
        %v8696 = vadd.f32 %v8680, 1e-05
        %v8697 = vadd.f32 %v8681, 1e-05
        %v8698 = vadd.f32 %v8682, 1e-05
        %v8699 = vadd.f32 %v8683, 1e-05
        %v8700 = vadd.f32 %v8684, 1e-05
        %v8701 = vadd.f32 %v8685, 1e-05
        %v8702 = vadd.f32 %v8686, 1e-05
        %v8703 = vadd.f32 %v8687, 1e-05
        %v8704 = vadd.f32 %v8688, 1e-05
        %v8705 = vadd.f32 %v8689, 1e-05
        %v8706 = vadd.f32 %v8690, 1e-05
        %v8707 = vadd.f32 %v8691, 1e-05
        %v8708 = vadd.f32 %v8692, 1e-05
        %v8709 = vrsqrt.pop %v8693
        %v8710 = vrsqrt.pop %v8694
        %v8711 = vrsqrt.pop %v8695
        %v8712 = vrsqrt.pop %v8696
        %v8713 = vrsqrt.pop %v8697
        %v8714 = vrsqrt.pop %v8698
        %v8715 = vrsqrt.pop %v8699
        %v8716 = vrsqrt.pop %v8700
        %v8717 = vrsqrt.pop %v8701
        %v8718 = vrsqrt.pop %v8702
        %v8719 = vrsqrt.pop %v8703
        %v8720 = vrsqrt.pop %v8704
        %v8721 = vrsqrt.pop %v8705
        %v8722 = vrsqrt.pop %v8706
        %v8723 = vrsqrt.pop %v8707
        %v8724 = vrsqrt.pop %v8708
        %v8725 = vmul.f32 %v8597, %v8709
        %v8726 = vmul.f32 %v8598, %v8710
        %v8727 = vmul.f32 %v8599, %v8711
        %v8728 = vmul.f32 %v8600, %v8712
        %v8729 = vmul.f32 %v8601, %v8713
        %v8730 = vmul.f32 %v8602, %v8714
        %v8731 = vmul.f32 %v8603, %v8715
        %v8732 = vmul.f32 %v8604, %v8716
        %v8733 = vmul.f32 %v8605, %v8717
        %v8734 = vmul.f32 %v8606, %v8718
        %v8735 = vmul.f32 %v8607, %v8719
        %v8736 = vmul.f32 %v8608, %v8720
        %v8737 = vmul.f32 %v8609, %v8721
        %v8738 = vmul.f32 %v8610, %v8722
        %v8739 = vmul.f32 %v8611, %v8723
        %v8740 = vmul.f32 %v8612, %v8724
        %8741 = vst.msk [vmem:[%s235] sm:$0xff] %vm433, %v8725
        %8742 = vst.msk [vmem:[%s235 + $0x8] sm:$0xff] %vm433, %v8726
        %8743 = vst.msk [vmem:[%s235 + $0x10] sm:$0xff] %vm433, %v8727
        %8744 = vst.msk [vmem:[%s235 + $0x18] sm:$0xff] %vm433, %v8728
        %8745 = vst.msk [vmem:[%s235 + $0x20] sm:$0xff] %vm433, %v8729
        %8746 = vst.msk [vmem:[%s235 + $0x28] sm:$0xff] %vm433, %v8730
        %8747 = vst.msk [vmem:[%s235 + $0x30] sm:$0xff] %vm433, %v8731
        %8748 = vst.msk [vmem:[%s235 + $0x38] sm:$0xff] %vm433, %v8732
        %8749 = vst.msk [vmem:[%s235 + $0x40] sm:$0xff] %vm433, %v8733
        %8750 = vst.msk [vmem:[%s235 + $0x48] sm:$0xff] %vm433, %v8734
        %8751 = vst.msk [vmem:[%s235 + $0x50] sm:$0xff] %vm433, %v8735
        %8752 = vst.msk [vmem:[%s235 + $0x58] sm:$0xff] %vm433, %v8736
        %8753 = vst.msk [vmem:[%s235 + $0x60] sm:$0xff] %vm433, %v8737
        %8754 = vst.msk [vmem:[%s235 + $0x68] sm:$0xff] %vm433, %v8738
        %8755 = vst.msk [vmem:[%s235 + $0x70] sm:$0xff] %vm433, %v8739
        %8756 = vst.msk [vmem:[%s235 + $0x78] sm:$0xff] %vm433, %v8740
        %s8757 = sand.u32 %s122, 1
        %s8758 = scalar_lea.sflag [#allocation4], %s8757
        %s8759 = sand.u32 %s122, 1
        %s8760 = smul.addr %s8759, 128
        %s8761 = scalar_lea.vmem [#allocation3], %s8760
        %s8762 = smul.u32 16, %s20
        %p8763 = scmp.lt.s32.totalorder %s8762, 31
        %s8764 = scalar_select %p8763, %s8762, 31
        %s8765 = smul.addr %s8764, 4
        %s8766 = smul.addr %s8765, 8
        %s8767 = scalar_lea.vmem %s5, %s8766
        // Predicated region
        $region37: #{tpu_custom_call.1} parent=35 // pred_check
          %p8768 = pneg %p132
        $region38: #{tpu_custom_call.1} parent=35 // pred_check_branch
          %8770 = sbr.rel (%p8768) target = $region40
        $region39: #{tpu_custom_call.1} parent=35 // pred_region
          %s8771 = smul.u32 16, %s20
          %s8773 = ssub.s32 2048, 2048
          %8774 = vsyncadd %s8758, %s8773
          %s8775 = smul.addr %s8771, 128
          %s8776 = scalar_lea.hbm %s4, %s8775
          %s8777 = sshll.u32 %s8761, 4
          %s8778 = int_to_ptr.vmem [resolvable:$true] %s8777
          %8783 = dma.vmem_to_hbm [thread:$0]  %s8778, 2048, %s8776, %s8758, 128, 128, 8
        $region40: #{tpu_custom_call.1} parent=35 // pred_fallthru
          _
        // Predicated region
        $region41: #{tpu_custom_call.1} parent=35 // pred_check
          %p8784 = pneg %p158
        $region42: #{tpu_custom_call.1} parent=35 // pred_check_branch
          %8786 = sbr.rel (%p8784) target = $region44
        $region43: #{tpu_custom_call.1} parent=35 // pred_region
          %s8787 = smul.u32 16, %s20
        $region44: #{tpu_custom_call.1} parent=35 // pred_fallthru
          _
      $region36: #{tpu_custom_call.1} parent=5 // pred_fallthru
        _
      %p8788 = scmp.le.s32.totalorder 2, %s15
      // Predicated region
      $region45: #{tpu_custom_call.1} parent=5 // pred_check
        %p8789 = pneg %p8788
      $region46: #{tpu_custom_call.1} parent=5 // pred_check_branch
        %8791 = sbr.rel (%p8789) target = $region48
      $region47: #{tpu_custom_call.1} parent=5 // pred_region
        %s8792 = ssub.s32 %s15, 2
        // Predicated region
        $region49: #{tpu_custom_call.1} parent=47 // pred_check
          %p8793 = pneg %p138
        $region50: #{tpu_custom_call.1} parent=47 // pred_check_branch
          %8795 = sbr.rel (%p8793) target = $region52
        $region51: #{tpu_custom_call.1} parent=47 // pred_region
          %s8796 = sand.u32 %s123, 1
          %s8797 = scalar_lea.sflag [#allocation4], %s8796
          %s8798 = sand.u32 %s123, 1
          %s8799 = smul.addr %s8798, 128
          %s8800 = scalar_lea.vmem [#allocation3], %s8799
          %8801 = dma.done %s8797, 2048
        $region52: #{tpu_custom_call.1} parent=47 // pred_fallthru
          _
        // Predicated region
        $region53: #{tpu_custom_call.1} parent=47 // pred_check
          %p8802 = pneg %p164
        $region54: #{tpu_custom_call.1} parent=47 // pred_check_branch
          %8804 = sbr.rel (%p8802) target = $region56
        $region55: #{tpu_custom_call.1} parent=47 // pred_region
          %s8805 = smul.u32 16, %s21
          %p8806 = scmp.lt.s32.totalorder %s8805, 31
          %s8807 = scalar_select %p8806, %s8805, 31
          %s8808 = smul.addr %s8807, 4
          %s8809 = smul.addr %s8808, 8
          %s8810 = scalar_lea.vmem %s5, %s8809
        $region56: #{tpu_custom_call.1} parent=47 // pred_fallthru
          _
      $region48: #{tpu_custom_call.1} parent=5 // pred_fallthru
        _
    $region6: #{tpu_custom_call.1} parent=1 // loop_footer
      %s19 = sadd.s32 1, %s15
    $region7: #{tpu_custom_call.1} parent=1 // loop_footer_branch
      %14 = sbr.rel target = $region3
    $region8: #{tpu_custom_call.1} parent=1 // loop_exit
      _
    %8811 = vsyncpa [#allocation4], 1
    %s8812 = scalar_lea.sflag [#allocation4], 1
    %8813 = vsyncpa %s8812, 1

</llo_original>
